<compile_context>
chip_gen: v7x
topology: tpu7x:2x2x1
jax: 0.10.0
libtpu: 0.0.40
codegen_flags: <defaults>
</compile_context>

<pallas_src>
import functools
import math

import jax
import jax.numpy as jnp
from jax import lax
from jax.experimental import pallas as pl
from jax.experimental.pallas import tpu as pltpu


# ----------------------------------------------------------------------------
# Generation-aware VMEM budget + tiling helpers
# ----------------------------------------------------------------------------
@functools.lru_cache(maxsize=None)
def _vmem_limit_bytes():
    cap = None
    try:
        info = pltpu.get_tpu_info()
        for name in ("vmem_capacity_bytes", "vmem_size_bytes", "vmem_bytes"):
            v = getattr(info, name, None)
            if v:
                cap = int(v)
                break
    except Exception:
        cap = None
    if cap is None:
        cap = 128 * 1024 * 1024
    # Never request more than 3/4 of physical VMEM; cap at 64 MiB.
    # v7x (64 MiB/TC) -> 48 MiB, v5e/v6e (128 MiB) -> 64 MiB.
    return min(64 * 1024 * 1024, (cap * 3) // 4)


def _cparams(*sem):
    return pltpu.CompilerParams(dimension_semantics=tuple(sem),
                                vmem_limit_bytes=_vmem_limit_bytes())


def _pick_tile(m, per_row_bytes, resident_bytes=0):
    """Largest row tile dividing m that fits the VMEM budget; prefer >=2 grid
    steps so both v7x TensorCores get work."""
    budget = _vmem_limit_bytes() // 2
    best = None
    for c in (1024, 512, 256, 128, 64, 32, 16, 8):
        if m % c:
            continue
        if 2 * c * per_row_bytes + resident_bytes > budget:
            continue
        if best is None:
            best = c
        if m // c >= 2:
            return c
    return best if best is not None else m


def _roll(x, shift, axis):
    """jnp.roll semantics.  pltpu.roll (XLU, co-issues with VPU) when the lane
    dim is 128-aligned; otherwise two static slices + concat (always lowers)."""
    n = x.shape[axis]
    shift = shift % n
    if shift == 0:
        return x
    if axis == x.ndim - 1 and n % 128 == 0:
        return pltpu.roll(x, shift, axis)
    hi = lax.slice_in_dim(x, n - shift, n, axis=axis)
    lo = lax.slice_in_dim(x, 0, n - shift, axis=axis)
    return jnp.concatenate([hi, lo], axis=axis)


# ----------------------------------------------------------------------------
# Linear / fused FFN kernels (bf16 weights in HBM, f32 accumulation)
# ----------------------------------------------------------------------------
def _linear_kernel(x_ref, w_ref, b_ref, o_ref, *, activation):
    y = jnp.dot(x_ref[...].astype(jnp.bfloat16), w_ref[...],
                preferred_element_type=jnp.float32) + b_ref[...]
    if activation == "relu":
        y = jnp.maximum(y, 0.0)
    o_ref[...] = y


def linear2d(x, w, b=None, activation=None):
    M, K = x.shape
    N = w.shape[1]
    bias = (jnp.zeros((1, N), jnp.float32) if b is None
            else b.reshape(1, N).astype(jnp.float32))
    resident = 2 * (K * N * w.dtype.itemsize + N * 4)
    tm = _pick_tile(M, per_row_bytes=(K + N) * 4, resident_bytes=resident)
    # TODO(synk): pad sub-128 output widths (c_out projections) to 128 lanes in
    # the out_spec and slice in the wrapper to avoid masked vst on v5e.
    return pl.pallas_call(
        functools.partial(_linear_kernel, activation=activation),
        out_shape=jax.ShapeDtypeStruct((M, N), jnp.float32),
        grid=(M // tm,),
        in_specs=[pl.BlockSpec((tm, K), lambda i: (i, 0)),
                  pl.BlockSpec((K, N), lambda i: (0, 0)),
                  pl.BlockSpec((1, N), lambda i: (0, 0))],
        out_specs=pl.BlockSpec((tm, N), lambda i: (i, 0)),
        compiler_params=_cparams("parallel"),
    )(x, w, bias)


def linear3d(x, w, b=None, activation=None):
    B, L, K = x.shape
    return linear2d(x.reshape(B * L, K), w, b, activation).reshape(B, L, w.shape[1])


def _ffn_kernel(x_ref, w1_ref, w2_ref, o_ref):
    h = jnp.dot(x_ref[...].astype(jnp.bfloat16), w1_ref[...],
                preferred_element_type=jnp.float32)
    h = jnp.maximum(h, 0.0)
    o_ref[...] = jnp.dot(h.astype(jnp.bfloat16), w2_ref[...],
                         preferred_element_type=jnp.float32)


def ffn(x, w1, w2):
    # Fused conv1(k=1) -> ReLU -> conv2(k=1); hidden never touches HBM.
    B, L, D = x.shape
    Dff = w1.shape[1]
    M = B * L
    resident = 2 * 2 * (D * Dff + Dff * D)          # double-buffered bf16 weights
    tm = _pick_tile(M, per_row_bytes=(2 * D + Dff) * 4, resident_bytes=resident)
    y = pl.pallas_call(
        _ffn_kernel,
        out_shape=jax.ShapeDtypeStruct((M, D), jnp.float32),
        grid=(M // tm,),
        in_specs=[pl.BlockSpec((tm, D), lambda i: (i, 0)),
                  pl.BlockSpec((D, Dff), lambda i: (0, 0)),
                  pl.BlockSpec((Dff, D), lambda i: (0, 0))],
        out_specs=pl.BlockSpec((tm, D), lambda i: (i, 0)),
        compiler_params=_cparams("parallel"),
    )(x.reshape(M, D), w1, w2)
    return y.reshape(B, L, D)


# ----------------------------------------------------------------------------
# k=3 circular conv / embedding: per-tap matmuls, circular shifts built in-VMEM
# ----------------------------------------------------------------------------
def _conv3_kernel(*refs, n_x, has_mark):
    xs = refs[:n_x]
    i = n_x
    mark = None
    if has_mark:
        mark = refs[i][0]
        i += 1
    wm1_ref, w0_ref, wp1_ref = refs[i], refs[i + 1], refs[i + 2]
    i += 3
    wmark_ref = None
    if has_mark:
        wmark_ref = refs[i]
        i += 1
    o_ref = refs[i]

    x = xs[0][0]                                    # (L, C)
    for r in xs[1:]:
        x = x + r[0]                                # fused pre-sum (trend add)
    xm1 = _roll(x, 1, axis=0)                       # x[(t-1) mod L]
    xp1 = _roll(x, -1, axis=0)                      # x[(t+1) mod L]
    y = jnp.dot(xm1.astype(jnp.bfloat16), wm1_ref[...],
                preferred_element_type=jnp.float32)
    y = y + jnp.dot(x.astype(jnp.bfloat16), w0_ref[...],
                    preferred_element_type=jnp.float32)
    y = y + jnp.dot(xp1.astype(jnp.bfloat16), wp1_ref[...],
                    preferred_element_type=jnp.float32)
    if has_mark:
        y = y + jnp.dot(mark.astype(jnp.bfloat16), wmark_ref[...],
                        preferred_element_type=jnp.float32)
    o_ref[0] = y


def _conv3_call(xs, mark, w):
    B, L, C = xs[0].shape
    N = w.shape[1]
    has_mark = mark is not None
    taps = [w[0:C], w[C:2 * C], w[2 * C:3 * C]]
    wm = w[3 * C:] if has_mark else None

    in_arrays = list(xs)
    in_specs = [pl.BlockSpec((1, L, C), lambda b: (b, 0, 0)) for _ in xs]
    if has_mark:
        Cm = mark.shape[2]
        in_arrays.append(mark)
        in_specs.append(pl.BlockSpec((1, L, Cm), lambda b: (b, 0, 0)))
    for t in taps:
        in_arrays.append(t)
        in_specs.append(pl.BlockSpec((C, N), lambda b: (0, 0)))
    if has_mark:
        in_arrays.append(wm)
        in_specs.append(pl.BlockSpec((wm.shape[0], N), lambda b: (0, 0)))

    return pl.pallas_call(
        functools.partial(_conv3_kernel, n_x=len(xs), has_mark=has_mark),
        out_shape=jax.ShapeDtypeStruct((B, L, N), jnp.float32),
        grid=(B,),
        in_specs=in_specs,
        out_specs=pl.BlockSpec((1, L, N), lambda b: (b, 0, 0)),
        compiler_params=_cparams("parallel"),
    )(*in_arrays)


def data_embedding(x, x_mark, w):
    # TokenEmbedding (Conv1d k=3 circular, no bias) + TimeFeatureEmbedding
    # (Linear, no bias) fused into per-tap MXU matmuls.
    return _conv3_call([x], x_mark, w)


def circular_conv3(w, *xs):
    # Conv1d(k=3, padding=1, circular, bias=False); extra inputs summed in-kernel.
    return _conv3_call(list(xs), None, w)


# ----------------------------------------------------------------------------
# Series decomposition: moving average as one MXU matmul, fused residual adds
# ----------------------------------------------------------------------------
def _decomp_kernel(*refs, ksize, n_in):
    x = refs[0][0]                                  # (L, D)
    for r in refs[1:n_in]:
        x = x + r[0]
    res_ref, mean_ref = refs[n_in], refs[n_in + 1]
    L = x.shape[0]
    pad = (ksize - 1) // 2
    # Banded averaging matrix (replicate padding folded into the edge columns),
    # built from iotas; the moving average becomes one matmul.
    t_io = lax.broadcasted_iota(jnp.int32, (L, L), 0)    # output time
    s_io = lax.broadcasted_iota(jnp.int32, (L, L), 1)    # source time
    interior = ((jnp.abs(t_io - s_io) <= pad) &
                (s_io > 0) & (s_io < L - 1)).astype(jnp.float32)
    first = jnp.where(s_io == 0,
                      jnp.maximum(pad - t_io + 1, 0).astype(jnp.float32), 0.0)
    last = jnp.where(s_io == L - 1,
                     jnp.maximum(t_io + pad - (L - 2), 0).astype(jnp.float32), 0.0)
    avg = (interior + first + last) * (1.0 / ksize)
    mov = jnp.dot(avg, x, preferred_element_type=jnp.float32)
    mean_ref[0] = mov
    res_ref[0] = x - mov


def series_decomp(x, ksize, *extra):
    # series_decomp(x + extra_0 + ...): residual adds fused into the kernel.
    assert ksize % 2 == 1, "moving_avg kernel size must be odd"
    B, L, D = x.shape
    inputs = (x,) + tuple(extra)
    n_in = len(inputs)
    spec = pl.BlockSpec((1, L, D), lambda b: (b, 0, 0))
    return pl.pallas_call(
        functools.partial(_decomp_kernel, ksize=ksize, n_in=n_in),
        out_shape=(jax.ShapeDtypeStruct((B, L, D), jnp.float32),
                   jax.ShapeDtypeStruct((B, L, D), jnp.float32)),
        grid=(B,),
        in_specs=[spec] * n_in,
        out_specs=(spec, spec),
        compiler_params=_cparams("parallel"),
    )(*inputs)


# ----------------------------------------------------------------------------
# my_Layernorm: LayerNorm over features, then subtract temporal mean
# ----------------------------------------------------------------------------
def _mylayernorm_kernel(x_ref, g_ref, b_ref, o_ref):
    x = x_ref[0]                                    # (L, D)
    g = g_ref[...]
    b = b_ref[...]
    mu = jnp.mean(x, axis=-1, keepdims=True)
    var = jnp.mean((x - mu) ** 2, axis=-1, keepdims=True)
    xh = (x - mu) * lax.rsqrt(var + 1e-5) * g + b
    o_ref[0] = xh - jnp.mean(xh, axis=0, keepdims=True)


def my_layernorm(x, gamma, beta):
    B, L, D = x.shape
    return pl.pallas_call(
        _mylayernorm_kernel,
        out_shape=jax.ShapeDtypeStruct((B, L, D), jnp.float32),
        grid=(B,),
        in_specs=[pl.BlockSpec((1, L, D), lambda b: (b, 0, 0)),
                  pl.BlockSpec((1, D), lambda b: (0, 0)),
                  pl.BlockSpec((1, D), lambda b: (0, 0))],
        out_specs=pl.BlockSpec((1, L, D), lambda b: (b, 0, 0)),
        compiler_params=_cparams("parallel"),
    )(x, gamma.reshape(1, D), beta.reshape(1, D))


# ----------------------------------------------------------------------------
# Fused auto-correlation attention:
#   correlation matmul -> barrel-shift diag sums -> top-k -> softmax ->
#   time-delay aggregation -> output projection, all per batch in one kernel.
# ----------------------------------------------------------------------------
def _autocorr_kernel(*refs, dm, top_k, split):
    if split:                                       # cross-attn: q ref + fused kv ref
        q_ref, kv_ref, wo_ref, bo_ref, o_ref = refs
        q = q_ref[0]                                # (L, dm)
        kv = kv_ref[0]                              # (S, 2*dm)
        L = q.shape[0]
        S = kv.shape[0]
        k = kv[:, :dm]
        v = kv[:, dm:]
        if S > L:                                   # truncate (reference semantics)
            k, v = k[:L], v[:L]
        elif S < L:                                 # zero-pad
            zpad = jnp.zeros((L - S, dm), jnp.float32)
            k = jnp.concatenate([k, zpad], axis=0)
            v = jnp.concatenate([v, zpad], axis=0)
    else:                                           # self-attn: fused qkv ref
        qkv_ref, wo_ref, bo_ref, o_ref = refs
        qkv = qkv_ref[0]                            # (L, 3*dm)
        L = qkv.shape[0]
        q = qkv[:, :dm]
        k = qkv[:, dm:2 * dm]
        v = qkv[:, 2 * dm:]

    # --- correlation: G[u, t] = sum_c k[u, c] * q[t, c] (one MXU matmul).
    g = jnp.dot(k.astype(jnp.bfloat16), q.T.astype(jnp.bfloat16),
                preferred_element_type=jnp.float32)            # (L, L)
    # corr[tau] = sum_u G[u, (u + tau) % L]: rotate row u left by u with a
    # log2(L)-step barrel shift, then reduce over rows -> lane-dense (1, L).
    row = lax.broadcasted_iota(jnp.int32, (L, 1), 0)
    cur = g
    bit = 0
    while (1 << bit) < L:
        amt = 1 << bit
        shifted = _roll(cur, -amt, axis=1)          # rotate left by amt
        cur = jnp.where((row & amt) != 0, shifted, cur)
        bit += 1
    # Mean over heads*channels (irfft "backward" norm needs no extra 1/L).
    corr = jnp.sum(cur, axis=0, keepdims=True) * (1.0 / dm)    # (1, L)

    # --- top-k (static, unrolled max/mask passes) + softmax, all in-kernel.
    lane = lax.broadcasted_iota(jnp.int32, (1, L), 1).astype(jnp.float32)
    work = corr
    wvals, dvals = [], []
    for _ in range(top_k):
        m = jnp.max(work, axis=-1, keepdims=True)
        idx = jnp.min(jnp.where(work >= m, lane, jnp.float32(L)),
                      axis=-1, keepdims=True)
        wvals.append(m)
        dvals.append(idx)
        work = jnp.where(lane == idx, jnp.float32(-3.0e38), work)
    wmax = wvals[0]
    for wv in wvals[1:]:
        wmax = jnp.maximum(wmax, wv)
    es = [jnp.exp(wv - wmax) for wv in wvals]
    tot = es[0]
    for e_ in es[1:]:
        tot = tot + e_
    ps = [e_ / tot for e_ in es]                    # list of (1, 1) softmax weights

    # --- time-delay aggregation matrix built in-kernel (never in HBM):
    #     A[t, s] = sum_i p_i * [(s - t) mod L == delay_i]
    t_io = lax.broadcasted_iota(jnp.int32, (L, L), 0)
    s_io = lax.broadcasted_iota(jnp.int32, (L, L), 1)
    diff = s_io - t_io
    diff = jnp.where(diff < 0, diff + L, diff).astype(jnp.float32)
    a = jnp.zeros((L, L), jnp.float32)
    for i in range(top_k):
        a = a + jnp.where(diff == dvals[i], ps[i], 0.0)
    agg = jnp.dot(a.astype(jnp.bfloat16), v.astype(jnp.bfloat16),
                  preferred_element_type=jnp.float32)          # (L, dm)

    # --- fused output projection
    o_ref[0] = jnp.dot(agg.astype(jnp.bfloat16), wo_ref[...],
                       preferred_element_type=jnp.float32) + bo_ref[...]


def autocorr_attention(p, x, cross, cfg, is_self):
    B, L, dm = x.shape
    top_k = max(1, min(int(cfg["factor"] * math.log(L)), L))
    wo = p["wo"]
    bo = p["bo"].reshape(1, dm).astype(jnp.float32)

    if is_self:
        qkv = linear3d(x, p["w_qkv"], p["b_qkv"])               # (B, L, 3*dm)
        return pl.pallas_call(
            functools.partial(_autocorr_kernel, dm=dm, top_k=top_k, split=False),
            out_shape=jax.ShapeDtypeStruct((B, L, dm), jnp.float32),
            grid=(B,),
            in_specs=[pl.BlockSpec((1, L, 3 * dm), lambda b: (b, 0, 0)),
                      pl.BlockSpec((dm, dm), lambda b: (0, 0)),
                      pl.BlockSpec((1, dm), lambda b: (0, 0))],
            out_specs=pl.BlockSpec((1, L, dm), lambda b: (b, 0, 0)),
            compiler_params=_cparams("parallel"),
        )(qkv, wo, bo)

    S = cross.shape[1]
    q = linear3d(x, p["w_qkv"][:, :dm], p["b_qkv"][:dm])        # (B, L, dm)
    kv = linear3d(cross, p["w_qkv"][:, dm:], p["b_qkv"][dm:])   # (B, S, 2*dm)
    return pl.pallas_call(
        functools.partial(_autocorr_kernel, dm=dm, top_k=top_k, split=True),
        out_shape=jax.ShapeDtypeStruct((B, L, dm), jnp.float32),
        grid=(B,),
        in_specs=[pl.BlockSpec((1, L, dm), lambda b: (b, 0, 0)),
                  pl.BlockSpec((1, S, 2 * dm), lambda b: (b, 0, 0)),
                  pl.BlockSpec((dm, dm), lambda b: (0, 0)),
                  pl.BlockSpec((1, dm), lambda b: (0, 0))],
        out_specs=pl.BlockSpec((1, L, dm), lambda b: (b, 0, 0)),
        compiler_params=_cparams("parallel"),
    )(q, kv, wo, bo)


# ----------------------------------------------------------------------------
# Model building blocks
# ----------------------------------------------------------------------------
def encoder_layer(x, p, cfg):
    new_x = autocorr_attention(p["attn"], x, x, cfg, is_self=True)
    x, _ = series_decomp(x, cfg["moving_avg"], new_x)           # decomp(x + new_x)
    y = ffn(x, p["w1"], p["w2"])
    res, _ = series_decomp(x, cfg["moving_avg"], y)             # decomp(x + y)
    return res


def decoder_layer(x, cross, p, cfg):
    ma = cfg["moving_avg"]
    s = autocorr_attention(p["self_attn"], x, x, cfg, is_self=True)
    x, trend1 = series_decomp(x, ma, s)
    c = autocorr_attention(p["cross_attn"], x, cross, cfg, is_self=False)
    x, trend2 = series_decomp(x, ma, c)
    y = ffn(x, p["w1"], p["w2"])
    x, trend3 = series_decomp(x, ma, y)
    # 3-way trend add fused into the circular conv kernel.
    residual_trend = circular_conv3(p["w_trend"], trend1, trend2, trend3)
    return x, residual_trend


def autoformer_forward(x_enc, x_mark_enc, x_dec, x_mark_dec, params, cfg):
    B = x_enc.shape[0]
    pred_len, label_len = cfg["pred_len"], cfg["label_len"]
    ma = cfg["moving_avg"]

    mean = jnp.mean(x_enc, axis=1, keepdims=True)
    mean = jnp.broadcast_to(mean, (B, pred_len, x_enc.shape[2]))
    zeros = jnp.zeros((x_dec.shape[0], pred_len, x_dec.shape[2]), jnp.float32)

    seasonal_init, trend_init = series_decomp(x_enc, ma)
    trend_init = jnp.concatenate([trend_init[:, -label_len:, :], mean], axis=1)
    seasonal_init = jnp.concatenate([seasonal_init[:, -label_len:, :], zeros], axis=1)

    enc_out = data_embedding(x_enc, x_mark_enc, params["enc_emb"]["w"])
    for lp in params["enc_layers"]:
        enc_out = encoder_layer(enc_out, lp, cfg)
    enc_out = my_layernorm(enc_out, params["enc_norm"]["g"], params["enc_norm"]["b"])

    dec_out = data_embedding(seasonal_init, x_mark_dec, params["dec_emb"]["w"])
    trend = trend_init
    for lp in params["dec_layers"]:
        dec_out, rt = decoder_layer(dec_out, enc_out, lp, cfg)
        trend = trend + rt
    dec_out = my_layernorm(dec_out, params["dec_norm"]["g"], params["dec_norm"]["b"])
    seasonal_part = linear3d(dec_out, params["proj_w"], params["proj_b"])

    out = trend + seasonal_part
    return out[:, -pred_len:, :]


# ----------------------------------------------------------------------------
# Deterministic parameter init (matmul weights bf16, biases/norms f32)
# ----------------------------------------------------------------------------
def init_params(key, cfg):
    dm, dff = cfg["d_model"], cfg["d_ff"]
    c_in, c_out, dt = cfg["enc_in"], cfg["c_out"], cfg["d_time"]
    keys = iter(jax.random.split(key, 256))

    def w(shape, scale=0.05):
        # Weights live in HBM as bf16: half the weight DMA bytes / VMEM.
        return (scale * jax.random.normal(next(keys), shape, jnp.float32)
                ).astype(jnp.bfloat16)

    def bias(shape, scale=0.02):
        return scale * jax.random.normal(next(keys), shape, jnp.float32)

    def attn_params():
        return dict(w_qkv=w((dm, 3 * dm)), b_qkv=bias((3 * dm,)),
                    wo=w((dm, dm)), bo=bias((dm,)))

    params = dict(
        enc_emb=dict(w=w((3 * c_in + dt, dm))),
        dec_emb=dict(w=w((3 * cfg["dec_in"] + dt, dm))),
        enc_layers=[dict(attn=attn_params(), w1=w((dm, dff)), w2=w((dff, dm)))
                    for _ in range(cfg["e_layers"])],
        enc_norm=dict(g=jnp.ones((dm,), jnp.float32), b=jnp.zeros((dm,), jnp.float32)),
        dec_layers=[dict(self_attn=attn_params(), cross_attn=attn_params(),
                         w1=w((dm, dff)), w2=w((dff, dm)),
                         w_trend=w((3 * dm, c_out)))
                    for _ in range(cfg["d_layers"])],
        dec_norm=dict(g=jnp.ones((dm,), jnp.float32), b=jnp.zeros((dm,), jnp.float32)),
        proj_w=w((dm, c_out)),
        proj_b=jnp.zeros((c_out,), jnp.float32),
    )
    return params


# ----------------------------------------------------------------------------
if __name__ == "__main__":
    cfg = dict(seq_len=16, label_len=8, pred_len=8,
               enc_in=4, dec_in=4, c_out=4,
               d_model=128, n_heads=8, d_ff=256,
               e_layers=1, d_layers=1,
               moving_avg=5, factor=1, d_time=4)

    params = init_params(jax.random.PRNGKey(1), cfg)

    key = jax.random.PRNGKey(0)
    k1, k2, k3, k4 = jax.random.split(key, 4)
    B = 2
    dec_len = cfg["label_len"] + cfg["pred_len"]
    x_enc = jax.random.normal(k1, (B, cfg["seq_len"], cfg["enc_in"]), jnp.float32)
    x_mark_enc = jax.random.normal(k2, (B, cfg["seq_len"], cfg["d_time"]), jnp.float32)
    x_dec = jax.random.normal(k3, (B, dec_len, cfg["dec_in"]), jnp.float32)
    x_mark_dec = jax.random.normal(k4, (B, dec_len, cfg["d_time"]), jnp.float32)

    fwd = jax.jit(lambda xe, me, xd, md, p: autoformer_forward(xe, me, xd, md, p, cfg))
    out = fwd(x_enc, x_mark_enc, x_dec, x_mark_dec, params)
    out = jax.block_until_ready(out)
    assert out.shape == (B, cfg["pred_len"], cfg["c_out"]), out.shape
    assert jnp.all(jnp.isfinite(out))
    print("KERNEL_OK")
</pallas_src>

<mosaic_0001>
module attributes {stable_mosaic.version = 11 : i64} {
  func.func @_decomp_kernel(%arg0: i32, %arg1: memref<1x16x4xf32, #tpu.memory_space<vmem>>, %arg2: memref<1x16x4xf32, #tpu.memory_space<vmem>>, %arg3: memref<1x16x4xf32, #tpu.memory_space<vmem>>) attributes {dimension_semantics = [#tpu.dimension_semantics<parallel>], iteration_bounds = array<i64: 2>, scalar_prefetch = 0 : i64, scratch_operands = 0 : i64, tpu.core_type = #tpu.core_type<tc>, window_params = [{transform_indices = @transform_0, window_bounds = array<i64: 1, 16, 4>}, {transform_indices = @transform_1, window_bounds = array<i64: 1, 16, 4>}, {transform_indices = @transform_2, window_bounds = array<i64: 1, 16, 4>}]} {
    %c0 = arith.constant 0 : index
    %c0_0 = arith.constant 0 : index
    %c0_1 = arith.constant 0 : index
    %0 = vector.load %arg1[%c0, %c0_0, %c0_1] : memref<1x16x4xf32, #tpu.memory_space<vmem>>, vector<1x16x4xf32>
    %1 = vector.shape_cast %0 : vector<1x16x4xf32> to vector<16x4xf32>
    %2 = tpu.iota {dimensions = array<i32: 0>} : vector<16x16xi32>
    %3 = tpu.iota {dimensions = array<i32: 1>} : vector<16x16xi32>
    %4 = arith.subi %2, %3 : vector<16x16xi32>
    %5 = math.absi %4 : vector<16x16xi32>
    %c2_i32 = arith.constant 2 : i32
    %6 = vector.broadcast %c2_i32 : i32 to vector<16x16xi32>
    %7 = arith.cmpi sle, %5, %6 : vector<16x16xi32>
    %c0_i32 = arith.constant 0 : i32
    %8 = vector.broadcast %c0_i32 : i32 to vector<16x16xi32>
    %9 = arith.cmpi sgt, %3, %8 : vector<16x16xi32>
    %10 = arith.andi %7, %9 : vector<16x16xi1>
    %c15_i32 = arith.constant 15 : i32
    %11 = vector.broadcast %c15_i32 : i32 to vector<16x16xi32>
    %12 = arith.cmpi slt, %3, %11 : vector<16x16xi32>
    %13 = arith.andi %10, %12 : vector<16x16xi1>
    %14 = arith.extui %13 : vector<16x16xi1> to vector<16x16xi32>
    %15 = arith.sitofp %14 : vector<16x16xi32> to vector<16x16xf32>
    %c0_i32_2 = arith.constant 0 : i32
    %16 = vector.broadcast %c0_i32_2 : i32 to vector<16x16xi32>
    %17 = arith.cmpi eq, %3, %16 : vector<16x16xi32>
    %c2_i32_3 = arith.constant 2 : i32
    %18 = vector.broadcast %c2_i32_3 : i32 to vector<16x16xi32>
    %19 = arith.subi %18, %2 : vector<16x16xi32>
    %c1_i32 = arith.constant 1 : i32
    %20 = vector.broadcast %c1_i32 : i32 to vector<16x16xi32>
    %21 = arith.addi %19, %20 : vector<16x16xi32>
    %c0_i32_4 = arith.constant 0 : i32
    %22 = vector.broadcast %c0_i32_4 : i32 to vector<16x16xi32>
    %23 = arith.maxsi %21, %22 : vector<16x16xi32>
    %24 = arith.sitofp %23 : vector<16x16xi32> to vector<16x16xf32>
    %cst = arith.constant 0.000000e+00 : f32
    %25 = vector.broadcast %cst : f32 to vector<16x16xf32>
    %26 = arith.select %17, %24, %25 : vector<16x16xi1>, vector<16x16xf32>
    %c15_i32_5 = arith.constant 15 : i32
    %27 = vector.broadcast %c15_i32_5 : i32 to vector<16x16xi32>
    %28 = arith.cmpi eq, %3, %27 : vector<16x16xi32>
    %c2_i32_6 = arith.constant 2 : i32
    %29 = vector.broadcast %c2_i32_6 : i32 to vector<16x16xi32>
    %30 = arith.addi %2, %29 : vector<16x16xi32>
    %c14_i32 = arith.constant 14 : i32
    %31 = vector.broadcast %c14_i32 : i32 to vector<16x16xi32>
    %32 = arith.subi %30, %31 : vector<16x16xi32>
    %c0_i32_7 = arith.constant 0 : i32
    %33 = vector.broadcast %c0_i32_7 : i32 to vector<16x16xi32>
    %34 = arith.maxsi %32, %33 : vector<16x16xi32>
    %35 = arith.sitofp %34 : vector<16x16xi32> to vector<16x16xf32>
    %cst_8 = arith.constant 0.000000e+00 : f32
    %36 = vector.broadcast %cst_8 : f32 to vector<16x16xf32>
    %37 = arith.select %28, %35, %36 : vector<16x16xi1>, vector<16x16xf32>
    %38 = arith.addf %15, %26 : vector<16x16xf32>
    %39 = arith.addf %38, %37 : vector<16x16xf32>
    %cst_9 = arith.constant 2.000000e-01 : f32
    %40 = vector.broadcast %cst_9 : f32 to vector<16x16xf32>
    %41 = arith.mulf %39, %40 : vector<16x16xf32>
    %cst_10 = arith.constant dense<0.000000e+00> : vector<16x4xf32>
    %42 = tpu.matmul %41, %1, %cst_10 {dimension_numbers = #tpu.dot_dimension_numbers<[1], [0], [0], [1], [0, 0, 1, 1], [], []>} : vector<16x16xf32>, vector<16x4xf32>, vector<16x4xf32> -> vector<16x4xf32>
    %c0_11 = arith.constant 0 : index
    %c0_12 = arith.constant 0 : index
    %c0_13 = arith.constant 0 : index
    %43 = vector.load %arg3[%c0_11, %c0_12, %c0_13] : memref<1x16x4xf32, #tpu.memory_space<vmem>>, vector<1x16x4xf32>
    %44 = vector.shape_cast %43 : vector<1x16x4xf32> to vector<16x4xf32>
    %45 = vector.shape_cast %42 : vector<16x4xf32> to vector<1x16x4xf32>
    tpu.vector_store %arg3[%c0_11, %c0_12, %c0_13], %45 {strides = array<i32>} : memref<1x16x4xf32, #tpu.memory_space<vmem>>, vector<1x16x4xf32>,
    %46 = arith.subf %1, %42 : vector<16x4xf32>
    %c0_14 = arith.constant 0 : index
    %c0_15 = arith.constant 0 : index
    %c0_16 = arith.constant 0 : index
    %47 = vector.load %arg2[%c0_14, %c0_15, %c0_16] : memref<1x16x4xf32, #tpu.memory_space<vmem>>, vector<1x16x4xf32>
    %48 = vector.shape_cast %47 : vector<1x16x4xf32> to vector<16x4xf32>
    %49 = vector.shape_cast %46 : vector<16x4xf32> to vector<1x16x4xf32>
    tpu.vector_store %arg2[%c0_14, %c0_15, %c0_16], %49 {strides = array<i32>} : memref<1x16x4xf32, #tpu.memory_space<vmem>>, vector<1x16x4xf32>,
    return
  }
  func.func @transform_0(%arg0: i32) -> (i32, i32, i32) {
    %c0_i32 = arith.constant 0 : i32
    %c0_i32_0 = arith.constant 0 : i32
    %c0_i32_1 = arith.constant 0 : i32
    return %arg0, %c0_i32, %c0_i32_0 : i32, i32, i32
  }
  func.func @transform_1(%arg0: i32) -> (i32, i32, i32) {
    %c0_i32 = arith.constant 0 : i32
    %c0_i32_0 = arith.constant 0 : i32
    %c0_i32_1 = arith.constant 0 : i32
    return %arg0, %c0_i32, %c0_i32_0 : i32, i32, i32
  }
  func.func @transform_2(%arg0: i32) -> (i32, i32, i32) {
    %c0_i32 = arith.constant 0 : i32
    %c0_i32_0 = arith.constant 0 : i32
    %c0_i32_1 = arith.constant 0 : i32
    return %arg0, %c0_i32, %c0_i32_0 : i32, i32, i32
  }
}

module attributes {stable_mosaic.version = 11 : i64} {
  func.func @_autocorr_kernel(%arg0: i32, %arg1: memref<1x16x384xf32, #tpu.memory_space<vmem>>, %arg2: memref<128x128xbf16, #tpu.memory_space<vmem>>, %arg3: memref<1x128xf32, #tpu.memory_space<vmem>>, %arg4: memref<1x16x128xf32, #tpu.memory_space<vmem>>) attributes {dimension_semantics = [#tpu.dimension_semantics<parallel>], iteration_bounds = array<i64: 2>, scalar_prefetch = 0 : i64, scratch_operands = 0 : i64, tpu.core_type = #tpu.core_type<tc>, window_params = [{transform_indices = @transform_0, window_bounds = array<i64: 1, 16, 384>}, {pipeline_mode = #tpu.pipeline_mode<synchronous>, transform_indices = @transform_1, window_bounds = array<i64: 128, 128>}, {pipeline_mode = #tpu.pipeline_mode<synchronous>, transform_indices = @transform_2, window_bounds = array<i64: 1, 128>}, {transform_indices = @transform_3, window_bounds = array<i64: 1, 16, 128>}]} {
    %c0 = arith.constant 0 : index
    %c0_0 = arith.constant 0 : index
    %c0_1 = arith.constant 0 : index
    %0 = vector.load %arg1[%c0, %c0_0, %c0_1] : memref<1x16x384xf32, #tpu.memory_space<vmem>>, vector<1x16x384xf32>
    %1 = vector.shape_cast %0 : vector<1x16x384xf32> to vector<16x384xf32>
    %2 = vector.extract_strided_slice %1 {offsets = [0, 0], sizes = [16, 128], strides = [1, 1]} : vector<16x384xf32> to vector<16x128xf32>
    %3 = vector.extract_strided_slice %1 {offsets = [0, 128], sizes = [16, 128], strides = [1, 1]} : vector<16x384xf32> to vector<16x128xf32>
    %4 = vector.extract_strided_slice %1 {offsets = [0, 256], sizes = [16, 128], strides = [1, 1]} : vector<16x384xf32> to vector<16x128xf32>
    %5 = arith.truncf %3 : vector<16x128xf32> to vector<16x128xbf16>
    %6 = tpu.transpose %2, [1, 0] : vector<16x128xf32> -> vector<128x16xf32>
    %7 = arith.truncf %6 : vector<128x16xf32> to vector<128x16xbf16>
    %cst = arith.constant dense<0.000000e+00> : vector<16x16xf32>
    %8 = tpu.matmul %5, %7, %cst {dimension_numbers = #tpu.dot_dimension_numbers<[1], [0], [0], [1], [0, 0, 1, 1], [], []>} : vector<16x128xbf16>, vector<128x16xbf16>, vector<16x16xf32> -> vector<16x16xf32>
    %9 = tpu.iota {dimensions = array<i32: 0>} : vector<16x1xi32>
    %10 = vector.extract_strided_slice %8 {offsets = [0, 1], sizes = [16, 15], strides = [1, 1]} : vector<16x16xf32> to vector<16x15xf32>
    %11 = vector.extract_strided_slice %8 {offsets = [0, 0], sizes = [16, 1], strides = [1, 1]} : vector<16x16xf32> to vector<16x1xf32>
    %12 = tpu.concatenate %10, %11 in 1 : vector<16x15xf32>, vector<16x1xf32> -> vector<16x16xf32>
    %c1_i32 = arith.constant 1 : i32
    %13 = vector.broadcast %c1_i32 : i32 to vector<16x1xi32>
    %14 = arith.andi %9, %13 : vector<16x1xi32>
    %c0_i32 = arith.constant 0 : i32
    %15 = vector.broadcast %c0_i32 : i32 to vector<16x1xi32>
    %16 = arith.cmpi ne, %14, %15 : vector<16x1xi32>
    %17 = vector.shape_cast %16 : vector<16x1xi1> to vector<16x1xi1>
    %18 = vector.broadcast %17 : vector<16x1xi1> to vector<16x16xi1>
    %19 = arith.select %18, %12, %8 : vector<16x16xi1>, vector<16x16xf32>
    %20 = vector.extract_strided_slice %19 {offsets = [0, 2], sizes = [16, 14], strides = [1, 1]} : vector<16x16xf32> to vector<16x14xf32>
    %21 = vector.extract_strided_slice %19 {offsets = [0, 0], sizes = [16, 2], strides = [1, 1]} : vector<16x16xf32> to vector<16x2xf32>
    %22 = tpu.concatenate %20, %21 in 1 : vector<16x14xf32>, vector<16x2xf32> -> vector<16x16xf32>
    %c2_i32 = arith.constant 2 : i32
    %23 = vector.broadcast %c2_i32 : i32 to vector<16x1xi32>
    %24 = arith.andi %9, %23 : vector<16x1xi32>
    %c0_i32_2 = arith.constant 0 : i32
    %25 = vector.broadcast %c0_i32_2 : i32 to vector<16x1xi32>
    %26 = arith.cmpi ne, %24, %25 : vector<16x1xi32>
    %27 = vector.shape_cast %26 : vector<16x1xi1> to vector<16x1xi1>
    %28 = vector.broadcast %27 : vector<16x1xi1> to vector<16x16xi1>
    %29 = arith.select %28, %22, %19 : vector<16x16xi1>, vector<16x16xf32>
    %30 = vector.extract_strided_slice %29 {offsets = [0, 4], sizes = [16, 12], strides = [1, 1]} : vector<16x16xf32> to vector<16x12xf32>
    %31 = vector.extract_strided_slice %29 {offsets = [0, 0], sizes = [16, 4], strides = [1, 1]} : vector<16x16xf32> to vector<16x4xf32>
    %32 = tpu.concatenate %30, %31 in 1 : vector<16x12xf32>, vector<16x4xf32> -> vector<16x16xf32>
    %c4_i32 = arith.constant 4 : i32
    %33 = vector.broadcast %c4_i32 : i32 to vector<16x1xi32>
    %34 = arith.andi %9, %33 : vector<16x1xi32>
    %c0_i32_3 = arith.constant 0 : i32
    %35 = vector.broadcast %c0_i32_3 : i32 to vector<16x1xi32>
    %36 = arith.cmpi ne, %34, %35 : vector<16x1xi32>
    %37 = vector.shape_cast %36 : vector<16x1xi1> to vector<16x1xi1>
    %38 = vector.broadcast %37 : vector<16x1xi1> to vector<16x16xi1>
    %39 = arith.select %38, %32, %29 : vector<16x16xi1>, vector<16x16xf32>
    %40 = vector.extract_strided_slice %39 {offsets = [0, 8], sizes = [16, 8], strides = [1, 1]} : vector<16x16xf32> to vector<16x8xf32>
    %41 = vector.extract_strided_slice %39 {offsets = [0, 0], sizes = [16, 8], strides = [1, 1]} : vector<16x16xf32> to vector<16x8xf32>
    %42 = tpu.concatenate %40, %41 in 1 : vector<16x8xf32>, vector<16x8xf32> -> vector<16x16xf32>
    %c8_i32 = arith.constant 8 : i32
    %43 = vector.broadcast %c8_i32 : i32 to vector<16x1xi32>
    %44 = arith.andi %9, %43 : vector<16x1xi32>
    %c0_i32_4 = arith.constant 0 : i32
    %45 = vector.broadcast %c0_i32_4 : i32 to vector<16x1xi32>
    %46 = arith.cmpi ne, %44, %45 : vector<16x1xi32>
    %47 = vector.shape_cast %46 : vector<16x1xi1> to vector<16x1xi1>
    %48 = vector.broadcast %47 : vector<16x1xi1> to vector<16x16xi1>
    %49 = arith.select %48, %42, %39 : vector<16x16xi1>, vector<16x16xf32>
    %cst_5 = arith.constant dense<0.000000e+00> : vector<16xf32>
    %50 = vector.multi_reduction <add>, %49, %cst_5 [0] : vector<16x16xf32> to vector<16xf32>
    %51 = vector.shape_cast %50 : vector<16xf32> to vector<1x16xf32>
    %cst_6 = arith.constant 7.812500e-03 : f32
    %52 = vector.broadcast %cst_6 : f32 to vector<1x16xf32>
    %53 = arith.mulf %51, %52 : vector<1x16xf32>
    %54 = tpu.iota {dimensions = array<i32: 1>} : vector<1x16xi32>
    %55 = arith.sitofp %54 : vector<1x16xi32> to vector<1x16xf32>
    %cst_7 = arith.constant dense<0xFF800000> : vector<1xf32>
    %56 = vector.multi_reduction <maximumf>, %53, %cst_7 [1] : vector<1x16xf32> to vector<1xf32>
    %57 = vector.shape_cast %56 : vector<1xf32> to vector<1x1xf32>
    %58 = vector.broadcast %57 : vector<1x1xf32> to vector<1x16xf32>
    %59 = arith.cmpf oge, %53, %58 : vector<1x16xf32>
    %cst_8 = arith.constant 1.600000e+01 : f32
    %60 = vector.broadcast %cst_8 : f32 to vector<1x16xf32>
    %61 = arith.select %59, %55, %60 : vector<1x16xi1>, vector<1x16xf32>
    %cst_9 = arith.constant dense<0x7F800000> : vector<1xf32>
    %62 = vector.multi_reduction <minimumf>, %61, %cst_9 [1] : vector<1x16xf32> to vector<1xf32>
    %63 = vector.shape_cast %62 : vector<1xf32> to vector<1x1xf32>
    %64 = vector.broadcast %63 : vector<1x1xf32> to vector<1x16xf32>
    %65 = arith.cmpf oeq, %55, %64 : vector<1x16xf32>
    %cst_10 = arith.constant -3.000000e+38 : f32
    %66 = vector.broadcast %cst_10 : f32 to vector<1x16xf32>
    %67 = arith.select %65, %66, %53 : vector<1x16xi1>, vector<1x16xf32>
    %cst_11 = arith.constant dense<0xFF800000> : vector<1xf32>
    %68 = vector.multi_reduction <maximumf>, %67, %cst_11 [1] : vector<1x16xf32> to vector<1xf32>
    %69 = vector.shape_cast %68 : vector<1xf32> to vector<1x1xf32>
    %70 = vector.broadcast %69 : vector<1x1xf32> to vector<1x16xf32>
    %71 = arith.cmpf oge, %67, %70 : vector<1x16xf32>
    %cst_12 = arith.constant 1.600000e+01 : f32
    %72 = vector.broadcast %cst_12 : f32 to vector<1x16xf32>
    %73 = arith.select %71, %55, %72 : vector<1x16xi1>, vector<1x16xf32>
    %cst_13 = arith.constant dense<0x7F800000> : vector<1xf32>
    %74 = vector.multi_reduction <minimumf>, %73, %cst_13 [1] : vector<1x16xf32> to vector<1xf32>
    %75 = vector.shape_cast %74 : vector<1xf32> to vector<1x1xf32>
    %76 = arith.maximumf %57, %69 : vector<1x1xf32>
    %77 = arith.subf %57, %76 : vector<1x1xf32>
    %78 = math.exp %77 : vector<1x1xf32>
    %79 = arith.subf %69, %76 : vector<1x1xf32>
    %80 = math.exp %79 : vector<1x1xf32>
    %81 = arith.addf %78, %80 : vector<1x1xf32>
    %82 = arith.divf %78, %81 : vector<1x1xf32>
    %83 = arith.divf %80, %81 : vector<1x1xf32>
    %84 = tpu.iota {dimensions = array<i32: 0>} : vector<16x16xi32>
    %85 = tpu.iota {dimensions = array<i32: 1>} : vector<16x16xi32>
    %86 = arith.subi %85, %84 : vector<16x16xi32>
    %c0_i32_14 = arith.constant 0 : i32
    %87 = vector.broadcast %c0_i32_14 : i32 to vector<16x16xi32>
    %88 = arith.cmpi slt, %86, %87 : vector<16x16xi32>
    %c16_i32 = arith.constant 16 : i32
    %89 = vector.broadcast %c16_i32 : i32 to vector<16x16xi32>
    %90 = arith.addi %86, %89 : vector<16x16xi32>
    %91 = arith.select %88, %90, %86 : vector<16x16xi1>, vector<16x16xi32>
    %92 = arith.sitofp %91 : vector<16x16xi32> to vector<16x16xf32>
    %cst_15 = arith.constant 0.000000e+00 : f32
    %93 = vector.broadcast %cst_15 : f32 to vector<16x16xf32>
    %94 = vector.broadcast %63 : vector<1x1xf32> to vector<16x16xf32>
    %95 = arith.cmpf oeq, %92, %94 : vector<16x16xf32>
    %cst_16 = arith.constant 0.000000e+00 : f32
    %96 = vector.shape_cast %82 : vector<1x1xf32> to vector<1x1xf32>
    %97 = vector.broadcast %96 : vector<1x1xf32> to vector<16x16xf32>
    %98 = vector.broadcast %cst_16 : f32 to vector<16x16xf32>
    %99 = arith.select %95, %97, %98 : vector<16x16xi1>, vector<16x16xf32>
    %100 = arith.addf %93, %99 : vector<16x16xf32>
    %101 = vector.broadcast %75 : vector<1x1xf32> to vector<16x16xf32>
    %102 = arith.cmpf oeq, %92, %101 : vector<16x16xf32>
    %cst_17 = arith.constant 0.000000e+00 : f32
    %103 = vector.shape_cast %83 : vector<1x1xf32> to vector<1x1xf32>
    %104 = vector.broadcast %103 : vector<1x1xf32> to vector<16x16xf32>
    %105 = vector.broadcast %cst_17 : f32 to vector<16x16xf32>
    %106 = arith.select %102, %104, %105 : vector<16x16xi1>, vector<16x16xf32>
    %107 = arith.addf %100, %106 : vector<16x16xf32>
    %108 = arith.truncf %107 : vector<16x16xf32> to vector<16x16xbf16>
    %109 = arith.truncf %4 : vector<16x128xf32> to vector<16x128xbf16>
    %cst_18 = arith.constant dense<0.000000e+00> : vector<16x128xf32>
    %110 = tpu.matmul %108, %109, %cst_18 {dimension_numbers = #tpu.dot_dimension_numbers<[1], [0], [0], [1], [0, 0, 1, 1], [], []>} : vector<16x16xbf16>, vector<16x128xbf16>, vector<16x128xf32> -> vector<16x128xf32>
    %111 = arith.truncf %110 : vector<16x128xf32> to vector<16x128xbf16>
    %c0_19 = arith.constant 0 : index
    %c0_20 = arith.constant 0 : index
    %112 = vector.load %arg2[%c0_19, %c0_20] : memref<128x128xbf16, #tpu.memory_space<vmem>>, vector<128x128xbf16>
    %cst_21 = arith.constant dense<0.000000e+00> : vector<16x128xf32>
    %113 = tpu.matmul %111, %112, %cst_21 {dimension_numbers = #tpu.dot_dimension_numbers<[1], [0], [0], [1], [0, 0, 1, 1], [], []>} : vector<16x128xbf16>, vector<128x128xbf16>, vector<16x128xf32> -> vector<16x128xf32>
    %c0_22 = arith.constant 0 : index
    %c0_23 = arith.constant 0 : index
    %114 = vector.load %arg3[%c0_22, %c0_23] : memref<1x128xf32, #tpu.memory_space<vmem>>, vector<1x128xf32>
    %115 = vector.broadcast %114 : vector<1x128xf32> to vector<16x128xf32>
    %116 = arith.addf %113, %115 : vector<16x128xf32>
    %c0_24 = arith.constant 0 : index
    %c0_25 = arith.constant 0 : index
    %c0_26 = arith.constant 0 : index
    %117 = vector.load %arg4[%c0_24, %c0_25, %c0_26] : memref<1x16x128xf32, #tpu.memory_space<vmem>>, vector<1x16x128xf32>
    %118 = vector.shape_cast %117 : vector<1x16x128xf32> to vector<16x128xf32>
    %119 = vector.shape_cast %116 : vector<16x128xf32> to vector<1x16x128xf32>
    tpu.vector_store %arg4[%c0_24, %c0_25, %c0_26], %119 {strides = array<i32>} : memref<1x16x128xf32, #tpu.memory_space<vmem>>, vector<1x16x128xf32>,
    return
  }
  func.func @transform_0(%arg0: i32) -> (i32, i32, i32) {
    %c0_i32 = arith.constant 0 : i32
    %c0_i32_0 = arith.constant 0 : i32
    %c0_i32_1 = arith.constant 0 : i32
    return %arg0, %c0_i32, %c0_i32_0 : i32, i32, i32
  }
  func.func @transform_1(%arg0: i32) -> (i32, i32) {
    %c0_i32 = arith.constant 0 : i32
    %c0_i32_0 = arith.constant 0 : i32
    %c0_i32_1 = arith.constant 0 : i32
    return %c0_i32, %c0_i32_0 : i32, i32
  }
  func.func @transform_2(%arg0: i32) -> (i32, i32) {
    %c0_i32 = arith.constant 0 : i32
    %c0_i32_0 = arith.constant 0 : i32
    %c0_i32_1 = arith.constant 0 : i32
    return %c0_i32, %c0_i32_0 : i32, i32
  }
  func.func @transform_3(%arg0: i32) -> (i32, i32, i32) {
    %c0_i32 = arith.constant 0 : i32
    %c0_i32_0 = arith.constant 0 : i32
    %c0_i32_1 = arith.constant 0 : i32
    return %arg0, %c0_i32, %c0_i32_0 : i32, i32, i32
  }
}

module attributes {stable_mosaic.version = 11 : i64} {
  func.func @_conv3_kernel(%arg0: i32, %arg1: memref<1x16x4xf32, #tpu.memory_space<vmem>>, %arg2: memref<1x16x4xf32, #tpu.memory_space<vmem>>, %arg3: memref<4x128xbf16, #tpu.memory_space<vmem>>, %arg4: memref<4x128xbf16, #tpu.memory_space<vmem>>, %arg5: memref<4x128xbf16, #tpu.memory_space<vmem>>, %arg6: memref<4x128xbf16, #tpu.memory_space<vmem>>, %arg7: memref<1x16x128xf32, #tpu.memory_space<vmem>>) attributes {dimension_semantics = [#tpu.dimension_semantics<parallel>], iteration_bounds = array<i64: 2>, scalar_prefetch = 0 : i64, scratch_operands = 0 : i64, tpu.core_type = #tpu.core_type<tc>, window_params = [{transform_indices = @transform_0, window_bounds = array<i64: 1, 16, 4>}, {transform_indices = @transform_1, window_bounds = array<i64: 1, 16, 4>}, {pipeline_mode = #tpu.pipeline_mode<synchronous>, transform_indices = @transform_2, window_bounds = array<i64: 4, 128>}, {pipeline_mode = #tpu.pipeline_mode<synchronous>, transform_indices = @transform_3, window_bounds = array<i64: 4, 128>}, {pipeline_mode = #tpu.pipeline_mode<synchronous>, transform_indices = @transform_4, window_bounds = array<i64: 4, 128>}, {pipeline_mode = #tpu.pipeline_mode<synchronous>, transform_indices = @transform_5, window_bounds = array<i64: 4, 128>}, {transform_indices = @transform_6, window_bounds = array<i64: 1, 16, 128>}]} {
    %c0 = arith.constant 0 : index
    %c0_0 = arith.constant 0 : index
    %c0_1 = arith.constant 0 : index
    %0 = vector.load %arg2[%c0, %c0_0, %c0_1] : memref<1x16x4xf32, #tpu.memory_space<vmem>>, vector<1x16x4xf32>
    %1 = vector.shape_cast %0 : vector<1x16x4xf32> to vector<16x4xf32>
    %c0_2 = arith.constant 0 : index
    %c0_3 = arith.constant 0 : index
    %c0_4 = arith.constant 0 : index
    %2 = vector.load %arg1[%c0_2, %c0_3, %c0_4] : memref<1x16x4xf32, #tpu.memory_space<vmem>>, vector<1x16x4xf32>
    %3 = vector.shape_cast %2 : vector<1x16x4xf32> to vector<16x4xf32>
    %4 = vector.extract_strided_slice %3 {offsets = [15, 0], sizes = [1, 4], strides = [1, 1]} : vector<16x4xf32> to vector<1x4xf32>
    %5 = vector.extract_strided_slice %3 {offsets = [0, 0], sizes = [15, 4], strides = [1, 1]} : vector<16x4xf32> to vector<15x4xf32>
    %6 = tpu.concatenate %4, %5 in 0 : vector<1x4xf32>, vector<15x4xf32> -> vector<16x4xf32>
    %7 = vector.extract_strided_slice %3 {offsets = [1, 0], sizes = [15, 4], strides = [1, 1]} : vector<16x4xf32> to vector<15x4xf32>
    %8 = vector.extract_strided_slice %3 {offsets = [0, 0], sizes = [1, 4], strides = [1, 1]} : vector<16x4xf32> to vector<1x4xf32>
    %9 = tpu.concatenate %7, %8 in 0 : vector<15x4xf32>, vector<1x4xf32> -> vector<16x4xf32>
    %10 = arith.truncf %6 : vector<16x4xf32> to vector<16x4xbf16>
    %c0_5 = arith.constant 0 : index
    %c0_6 = arith.constant 0 : index
    %11 = vector.load %arg3[%c0_5, %c0_6] : memref<4x128xbf16, #tpu.memory_space<vmem>>, vector<4x128xbf16>
    %cst = arith.constant dense<0.000000e+00> : vector<16x128xf32>
    %12 = tpu.matmul %10, %11, %cst {dimension_numbers = #tpu.dot_dimension_numbers<[1], [0], [0], [1], [0, 0, 1, 1], [], []>} : vector<16x4xbf16>, vector<4x128xbf16>, vector<16x128xf32> -> vector<16x128xf32>
    %13 = arith.truncf %3 : vector<16x4xf32> to vector<16x4xbf16>
    %c0_7 = arith.constant 0 : index
    %c0_8 = arith.constant 0 : index
    %14 = vector.load %arg4[%c0_7, %c0_8] : memref<4x128xbf16, #tpu.memory_space<vmem>>, vector<4x128xbf16>
    %cst_9 = arith.constant dense<0.000000e+00> : vector<16x128xf32>
    %15 = tpu.matmul %13, %14, %cst_9 {dimension_numbers = #tpu.dot_dimension_numbers<[1], [0], [0], [1], [0, 0, 1, 1], [], []>} : vector<16x4xbf16>, vector<4x128xbf16>, vector<16x128xf32> -> vector<16x128xf32>
    %16 = arith.addf %12, %15 : vector<16x128xf32>
    %17 = arith.truncf %9 : vector<16x4xf32> to vector<16x4xbf16>
    %c0_10 = arith.constant 0 : index
    %c0_11 = arith.constant 0 : index
    %18 = vector.load %arg5[%c0_10, %c0_11] : memref<4x128xbf16, #tpu.memory_space<vmem>>, vector<4x128xbf16>
    %cst_12 = arith.constant dense<0.000000e+00> : vector<16x128xf32>
    %19 = tpu.matmul %17, %18, %cst_12 {dimension_numbers = #tpu.dot_dimension_numbers<[1], [0], [0], [1], [0, 0, 1, 1], [], []>} : vector<16x4xbf16>, vector<4x128xbf16>, vector<16x128xf32> -> vector<16x128xf32>
    %20 = arith.addf %16, %19 : vector<16x128xf32>
    %21 = arith.truncf %1 : vector<16x4xf32> to vector<16x4xbf16>
    %c0_13 = arith.constant 0 : index
    %c0_14 = arith.constant 0 : index
    %22 = vector.load %arg6[%c0_13, %c0_14] : memref<4x128xbf16, #tpu.memory_space<vmem>>, vector<4x128xbf16>
    %cst_15 = arith.constant dense<0.000000e+00> : vector<16x128xf32>
    %23 = tpu.matmul %21, %22, %cst_15 {dimension_numbers = #tpu.dot_dimension_numbers<[1], [0], [0], [1], [0, 0, 1, 1], [], []>} : vector<16x4xbf16>, vector<4x128xbf16>, vector<16x128xf32> -> vector<16x128xf32>
    %24 = arith.addf %20, %23 : vector<16x128xf32>
    %c0_16 = arith.constant 0 : index
    %c0_17 = arith.constant 0 : index
    %c0_18 = arith.constant 0 : index
    %25 = vector.load %arg7[%c0_16, %c0_17, %c0_18] : memref<1x16x128xf32, #tpu.memory_space<vmem>>, vector<1x16x128xf32>
    %26 = vector.shape_cast %25 : vector<1x16x128xf32> to vector<16x128xf32>
    %27 = vector.shape_cast %24 : vector<16x128xf32> to vector<1x16x128xf32>
    tpu.vector_store %arg7[%c0_16, %c0_17, %c0_18], %27 {strides = array<i32>} : memref<1x16x128xf32, #tpu.memory_space<vmem>>, vector<1x16x128xf32>,
    return
  }
  func.func @transform_0(%arg0: i32) -> (i32, i32, i32) {
    %c0_i32 = arith.constant 0 : i32
    %c0_i32_0 = arith.constant 0 : i32
    %c0_i32_1 = arith.constant 0 : i32
    return %arg0, %c0_i32, %c0_i32_0 : i32, i32, i32
  }
  func.func @transform_1(%arg0: i32) -> (i32, i32, i32) {
    %c0_i32 = arith.constant 0 : i32
    %c0_i32_0 = arith.constant 0 : i32
    %c0_i32_1 = arith.constant 0 : i32
    return %arg0, %c0_i32, %c0_i32_0 : i32, i32, i32
  }
  func.func @transform_2(%arg0: i32) -> (i32, i32) {
    %c0_i32 = arith.constant 0 : i32
    %c0_i32_0 = arith.constant 0 : i32
    %c0_i32_1 = arith.constant 0 : i32
    return %c0_i32, %c0_i32_0 : i32, i32
  }
  func.func @transform_3(%arg0: i32) -> (i32, i32) {
    %c0_i32 = arith.constant 0 : i32
    %c0_i32_0 = arith.constant 0 : i32
    %c0_i32_1 = arith.constant 0 : i32
    return %c0_i32, %c0_i32_0 : i32, i32
  }
  func.func @transform_4(%arg0: i32) -> (i32, i32) {
    %c0_i32 = arith.constant 0 : i32
    %c0_i32_0 = arith.constant 0 : i32
    %c0_i32_1 = arith.constant 0 : i32
    return %c0_i32, %c0_i32_0 : i32, i32
  }
  func.func @transform_5(%arg0: i32) -> (i32, i32) {
    %c0_i32 = arith.constant 0 : i32
    %c0_i32_0 = arith.constant 0 : i32
    %c0_i32_1 = arith.constant 0 : i32
    return %c0_i32, %c0_i32_0 : i32, i32
  }
  func.func @transform_6(%arg0: i32) -> (i32, i32, i32) {
    %c0_i32 = arith.constant 0 : i32
    %c0_i32_0 = arith.constant 0 : i32
    %c0_i32_1 = arith.constant 0 : i32
    return %arg0, %c0_i32, %c0_i32_0 : i32, i32, i32
  }
}

module attributes {stable_mosaic.version = 11 : i64} {
  func.func @_linear_kernel(%arg0: i32, %arg1: memref<16x128xf32, #tpu.memory_space<vmem>>, %arg2: memref<128x384xbf16, #tpu.memory_space<vmem>>, %arg3: memref<1x384xf32, #tpu.memory_space<vmem>>, %arg4: memref<16x384xf32, #tpu.memory_space<vmem>>) attributes {dimension_semantics = [#tpu.dimension_semantics<parallel>], iteration_bounds = array<i64: 2>, scalar_prefetch = 0 : i64, scratch_operands = 0 : i64, tpu.core_type = #tpu.core_type<tc>, window_params = [{transform_indices = @transform_0, window_bounds = array<i64: 16, 128>}, {pipeline_mode = #tpu.pipeline_mode<synchronous>, transform_indices = @transform_1, window_bounds = array<i64: 128, 384>}, {pipeline_mode = #tpu.pipeline_mode<synchronous>, transform_indices = @transform_2, window_bounds = array<i64: 1, 384>}, {transform_indices = @transform_3, window_bounds = array<i64: 16, 384>}]} {
    %c0 = arith.constant 0 : index
    %c0_0 = arith.constant 0 : index
    %0 = vector.load %arg1[%c0, %c0_0] : memref<16x128xf32, #tpu.memory_space<vmem>>, vector<16x128xf32>
    %1 = arith.truncf %0 : vector<16x128xf32> to vector<16x128xbf16>
    %c0_1 = arith.constant 0 : index
    %c0_2 = arith.constant 0 : index
    %2 = vector.load %arg2[%c0_1, %c0_2] : memref<128x384xbf16, #tpu.memory_space<vmem>>, vector<128x384xbf16>
    %cst = arith.constant dense<0.000000e+00> : vector<16x384xf32>
    %3 = tpu.matmul %1, %2, %cst {dimension_numbers = #tpu.dot_dimension_numbers<[1], [0], [0], [1], [0, 0, 1, 1], [], []>} : vector<16x128xbf16>, vector<128x384xbf16>, vector<16x384xf32> -> vector<16x384xf32>
    %c0_3 = arith.constant 0 : index
    %c0_4 = arith.constant 0 : index
    %4 = vector.load %arg3[%c0_3, %c0_4] : memref<1x384xf32, #tpu.memory_space<vmem>>, vector<1x384xf32>
    %5 = vector.broadcast %4 : vector<1x384xf32> to vector<16x384xf32>
    %6 = arith.addf %3, %5 : vector<16x384xf32>
    %c0_5 = arith.constant 0 : index
    %c0_6 = arith.constant 0 : index
    %7 = vector.load %arg4[%c0_5, %c0_6] : memref<16x384xf32, #tpu.memory_space<vmem>>, vector<16x384xf32>
    tpu.vector_store %arg4[%c0_5, %c0_6], %6 {strides = array<i32>} : memref<16x384xf32, #tpu.memory_space<vmem>>, vector<16x384xf32>,
    return
  }
  func.func @transform_0(%arg0: i32) -> (i32, i32) {
    %c0_i32 = arith.constant 0 : i32
    %c0_i32_0 = arith.constant 0 : i32
    return %arg0, %c0_i32 : i32, i32
  }
  func.func @transform_1(%arg0: i32) -> (i32, i32) {
    %c0_i32 = arith.constant 0 : i32
    %c0_i32_0 = arith.constant 0 : i32
    %c0_i32_1 = arith.constant 0 : i32
    return %c0_i32, %c0_i32_0 : i32, i32
  }
  func.func @transform_2(%arg0: i32) -> (i32, i32) {
    %c0_i32 = arith.constant 0 : i32
    %c0_i32_0 = arith.constant 0 : i32
    %c0_i32_1 = arith.constant 0 : i32
    return %c0_i32, %c0_i32_0 : i32, i32
  }
  func.func @transform_3(%arg0: i32) -> (i32, i32) {
    %c0_i32 = arith.constant 0 : i32
    %c0_i32_0 = arith.constant 0 : i32
    return %arg0, %c0_i32 : i32, i32
  }
}

module attributes {stable_mosaic.version = 11 : i64} {
  func.func @_linear_kernel(%arg0: i32, %arg1: memref<16x128xf32, #tpu.memory_space<vmem>>, %arg2: memref<128x128xbf16, #tpu.memory_space<vmem>>, %arg3: memref<1x128xf32, #tpu.memory_space<vmem>>, %arg4: memref<16x128xf32, #tpu.memory_space<vmem>>) attributes {dimension_semantics = [#tpu.dimension_semantics<parallel>], iteration_bounds = array<i64: 2>, scalar_prefetch = 0 : i64, scratch_operands = 0 : i64, tpu.core_type = #tpu.core_type<tc>, window_params = [{transform_indices = @transform_0, window_bounds = array<i64: 16, 128>}, {pipeline_mode = #tpu.pipeline_mode<synchronous>, transform_indices = @transform_1, window_bounds = array<i64: 128, 128>}, {pipeline_mode = #tpu.pipeline_mode<synchronous>, transform_indices = @transform_2, window_bounds = array<i64: 1, 128>}, {transform_indices = @transform_3, window_bounds = array<i64: 16, 128>}]} {
    %c0 = arith.constant 0 : index
    %c0_0 = arith.constant 0 : index
    %0 = vector.load %arg1[%c0, %c0_0] : memref<16x128xf32, #tpu.memory_space<vmem>>, vector<16x128xf32>
    %1 = arith.truncf %0 : vector<16x128xf32> to vector<16x128xbf16>
    %c0_1 = arith.constant 0 : index
    %c0_2 = arith.constant 0 : index
    %2 = vector.load %arg2[%c0_1, %c0_2] : memref<128x128xbf16, #tpu.memory_space<vmem>>, vector<128x128xbf16>
    %cst = arith.constant dense<0.000000e+00> : vector<16x128xf32>
    %3 = tpu.matmul %1, %2, %cst {dimension_numbers = #tpu.dot_dimension_numbers<[1], [0], [0], [1], [0, 0, 1, 1], [], []>} : vector<16x128xbf16>, vector<128x128xbf16>, vector<16x128xf32> -> vector<16x128xf32>
    %c0_3 = arith.constant 0 : index
    %c0_4 = arith.constant 0 : index
    %4 = vector.load %arg3[%c0_3, %c0_4] : memref<1x128xf32, #tpu.memory_space<vmem>>, vector<1x128xf32>
    %5 = vector.broadcast %4 : vector<1x128xf32> to vector<16x128xf32>
    %6 = arith.addf %3, %5 : vector<16x128xf32>
    %c0_5 = arith.constant 0 : index
    %c0_6 = arith.constant 0 : index
    %7 = vector.load %arg4[%c0_5, %c0_6] : memref<16x128xf32, #tpu.memory_space<vmem>>, vector<16x128xf32>
    tpu.vector_store %arg4[%c0_5, %c0_6], %6 {strides = array<i32>} : memref<16x128xf32, #tpu.memory_space<vmem>>, vector<16x128xf32>,
    return
  }
  func.func @transform_0(%arg0: i32) -> (i32, i32) {
    %c0_i32 = arith.constant 0 : i32
    %c0_i32_0 = arith.constant 0 : i32
    return %arg0, %c0_i32 : i32, i32
  }
  func.func @transform_1(%arg0: i32) -> (i32, i32) {
    %c0_i32 = arith.constant 0 : i32
    %c0_i32_0 = arith.constant 0 : i32
    %c0_i32_1 = arith.constant 0 : i32
    return %c0_i32, %c0_i32_0 : i32, i32
  }
  func.func @transform_2(%arg0: i32) -> (i32, i32) {
    %c0_i32 = arith.constant 0 : i32
    %c0_i32_0 = arith.constant 0 : i32
    %c0_i32_1 = arith.constant 0 : i32
    return %c0_i32, %c0_i32_0 : i32, i32
  }
  func.func @transform_3(%arg0: i32) -> (i32, i32) {
    %c0_i32 = arith.constant 0 : i32
    %c0_i32_0 = arith.constant 0 : i32
    return %arg0, %c0_i32 : i32, i32
  }
}

module attributes {stable_mosaic.version = 11 : i64} {
  func.func @_decomp_kernel(%arg0: i32, %arg1: memref<1x16x128xf32, #tpu.memory_space<vmem>>, %arg2: memref<1x16x128xf32, #tpu.memory_space<vmem>>, %arg3: memref<1x16x128xf32, #tpu.memory_space<vmem>>, %arg4: memref<1x16x128xf32, #tpu.memory_space<vmem>>) attributes {dimension_semantics = [#tpu.dimension_semantics<parallel>], iteration_bounds = array<i64: 2>, scalar_prefetch = 0 : i64, scratch_operands = 0 : i64, tpu.core_type = #tpu.core_type<tc>, window_params = [{transform_indices = @transform_0, window_bounds = array<i64: 1, 16, 128>}, {transform_indices = @transform_1, window_bounds = array<i64: 1, 16, 128>}, {transform_indices = @transform_2, window_bounds = array<i64: 1, 16, 128>}, {transform_indices = @transform_3, window_bounds = array<i64: 1, 16, 128>}]} {
    %c0 = arith.constant 0 : index
    %c0_0 = arith.constant 0 : index
    %c0_1 = arith.constant 0 : index
    %0 = vector.load %arg1[%c0, %c0_0, %c0_1] : memref<1x16x128xf32, #tpu.memory_space<vmem>>, vector<1x16x128xf32>
    %1 = vector.shape_cast %0 : vector<1x16x128xf32> to vector<16x128xf32>
    %c0_2 = arith.constant 0 : index
    %c0_3 = arith.constant 0 : index
    %c0_4 = arith.constant 0 : index
    %2 = vector.load %arg2[%c0_2, %c0_3, %c0_4] : memref<1x16x128xf32, #tpu.memory_space<vmem>>, vector<1x16x128xf32>
    %3 = vector.shape_cast %2 : vector<1x16x128xf32> to vector<16x128xf32>
    %4 = arith.addf %1, %3 : vector<16x128xf32>
    %5 = tpu.iota {dimensions = array<i32: 0>} : vector<16x16xi32>
    %6 = tpu.iota {dimensions = array<i32: 1>} : vector<16x16xi32>
    %7 = arith.subi %5, %6 : vector<16x16xi32>
    %8 = math.absi %7 : vector<16x16xi32>
    %c2_i32 = arith.constant 2 : i32
    %9 = vector.broadcast %c2_i32 : i32 to vector<16x16xi32>
    %10 = arith.cmpi sle, %8, %9 : vector<16x16xi32>
    %c0_i32 = arith.constant 0 : i32
    %11 = vector.broadcast %c0_i32 : i32 to vector<16x16xi32>
    %12 = arith.cmpi sgt, %6, %11 : vector<16x16xi32>
    %13 = arith.andi %10, %12 : vector<16x16xi1>
    %c15_i32 = arith.constant 15 : i32
    %14 = vector.broadcast %c15_i32 : i32 to vector<16x16xi32>
    %15 = arith.cmpi slt, %6, %14 : vector<16x16xi32>
    %16 = arith.andi %13, %15 : vector<16x16xi1>
    %17 = arith.extui %16 : vector<16x16xi1> to vector<16x16xi32>
    %18 = arith.sitofp %17 : vector<16x16xi32> to vector<16x16xf32>
    %c0_i32_5 = arith.constant 0 : i32
    %19 = vector.broadcast %c0_i32_5 : i32 to vector<16x16xi32>
    %20 = arith.cmpi eq, %6, %19 : vector<16x16xi32>
    %c2_i32_6 = arith.constant 2 : i32
    %21 = vector.broadcast %c2_i32_6 : i32 to vector<16x16xi32>
    %22 = arith.subi %21, %5 : vector<16x16xi32>
    %c1_i32 = arith.constant 1 : i32
    %23 = vector.broadcast %c1_i32 : i32 to vector<16x16xi32>
    %24 = arith.addi %22, %23 : vector<16x16xi32>
    %c0_i32_7 = arith.constant 0 : i32
    %25 = vector.broadcast %c0_i32_7 : i32 to vector<16x16xi32>
    %26 = arith.maxsi %24, %25 : vector<16x16xi32>
    %27 = arith.sitofp %26 : vector<16x16xi32> to vector<16x16xf32>
    %cst = arith.constant 0.000000e+00 : f32
    %28 = vector.broadcast %cst : f32 to vector<16x16xf32>
    %29 = arith.select %20, %27, %28 : vector<16x16xi1>, vector<16x16xf32>
    %c15_i32_8 = arith.constant 15 : i32
    %30 = vector.broadcast %c15_i32_8 : i32 to vector<16x16xi32>
    %31 = arith.cmpi eq, %6, %30 : vector<16x16xi32>
    %c2_i32_9 = arith.constant 2 : i32
    %32 = vector.broadcast %c2_i32_9 : i32 to vector<16x16xi32>
    %33 = arith.addi %5, %32 : vector<16x16xi32>
    %c14_i32 = arith.constant 14 : i32
    %34 = vector.broadcast %c14_i32 : i32 to vector<16x16xi32>
    %35 = arith.subi %33, %34 : vector<16x16xi32>
    %c0_i32_10 = arith.constant 0 : i32
    %36 = vector.broadcast %c0_i32_10 : i32 to vector<16x16xi32>
    %37 = arith.maxsi %35, %36 : vector<16x16xi32>
    %38 = arith.sitofp %37 : vector<16x16xi32> to vector<16x16xf32>
    %cst_11 = arith.constant 0.000000e+00 : f32
    %39 = vector.broadcast %cst_11 : f32 to vector<16x16xf32>
    %40 = arith.select %31, %38, %39 : vector<16x16xi1>, vector<16x16xf32>
    %41 = arith.addf %18, %29 : vector<16x16xf32>
    %42 = arith.addf %41, %40 : vector<16x16xf32>
    %cst_12 = arith.constant 2.000000e-01 : f32
    %43 = vector.broadcast %cst_12 : f32 to vector<16x16xf32>
    %44 = arith.mulf %42, %43 : vector<16x16xf32>
    %cst_13 = arith.constant dense<0.000000e+00> : vector<16x128xf32>
    %45 = tpu.matmul %44, %4, %cst_13 {dimension_numbers = #tpu.dot_dimension_numbers<[1], [0], [0], [1], [0, 0, 1, 1], [], []>} : vector<16x16xf32>, vector<16x128xf32>, vector<16x128xf32> -> vector<16x128xf32>
    %c0_14 = arith.constant 0 : index
    %c0_15 = arith.constant 0 : index
    %c0_16 = arith.constant 0 : index
    %46 = vector.load %arg4[%c0_14, %c0_15, %c0_16] : memref<1x16x128xf32, #tpu.memory_space<vmem>>, vector<1x16x128xf32>
    %47 = vector.shape_cast %46 : vector<1x16x128xf32> to vector<16x128xf32>
    %48 = vector.shape_cast %45 : vector<16x128xf32> to vector<1x16x128xf32>
    tpu.vector_store %arg4[%c0_14, %c0_15, %c0_16], %48 {strides = array<i32>} : memref<1x16x128xf32, #tpu.memory_space<vmem>>, vector<1x16x128xf32>,
    %49 = arith.subf %4, %45 : vector<16x128xf32>
    %c0_17 = arith.constant 0 : index
    %c0_18 = arith.constant 0 : index
    %c0_19 = arith.constant 0 : index
    %50 = vector.load %arg3[%c0_17, %c0_18, %c0_19] : memref<1x16x128xf32, #tpu.memory_space<vmem>>, vector<1x16x128xf32>
    %51 = vector.shape_cast %50 : vector<1x16x128xf32> to vector<16x128xf32>
    %52 = vector.shape_cast %49 : vector<16x128xf32> to vector<1x16x128xf32>
    tpu.vector_store %arg3[%c0_17, %c0_18, %c0_19], %52 {strides = array<i32>} : memref<1x16x128xf32, #tpu.memory_space<vmem>>, vector<1x16x128xf32>,
    return
  }
  func.func @transform_0(%arg0: i32) -> (i32, i32, i32) {
    %c0_i32 = arith.constant 0 : i32
    %c0_i32_0 = arith.constant 0 : i32
    %c0_i32_1 = arith.constant 0 : i32
    return %arg0, %c0_i32, %c0_i32_0 : i32, i32, i32
  }
  func.func @transform_1(%arg0: i32) -> (i32, i32, i32) {
    %c0_i32 = arith.constant 0 : i32
    %c0_i32_0 = arith.constant 0 : i32
    %c0_i32_1 = arith.constant 0 : i32
    return %arg0, %c0_i32, %c0_i32_0 : i32, i32, i32
  }
  func.func @transform_2(%arg0: i32) -> (i32, i32, i32) {
    %c0_i32 = arith.constant 0 : i32
    %c0_i32_0 = arith.constant 0 : i32
    %c0_i32_1 = arith.constant 0 : i32
    return %arg0, %c0_i32, %c0_i32_0 : i32, i32, i32
  }
  func.func @transform_3(%arg0: i32) -> (i32, i32, i32) {
    %c0_i32 = arith.constant 0 : i32
    %c0_i32_0 = arith.constant 0 : i32
    %c0_i32_1 = arith.constant 0 : i32
    return %arg0, %c0_i32, %c0_i32_0 : i32, i32, i32
  }
}

module attributes {stable_mosaic.version = 11 : i64} {
  func.func @_mylayernorm_kernel(%arg0: i32, %arg1: memref<1x16x128xf32, #tpu.memory_space<vmem>>, %arg2: memref<1x128xf32, #tpu.memory_space<vmem>>, %arg3: memref<1x128xf32, #tpu.memory_space<vmem>>, %arg4: memref<1x16x128xf32, #tpu.memory_space<vmem>>) attributes {dimension_semantics = [#tpu.dimension_semantics<parallel>], iteration_bounds = array<i64: 2>, scalar_prefetch = 0 : i64, scratch_operands = 0 : i64, tpu.core_type = #tpu.core_type<tc>, window_params = [{transform_indices = @transform_0, window_bounds = array<i64: 1, 16, 128>}, {pipeline_mode = #tpu.pipeline_mode<synchronous>, transform_indices = @transform_1, window_bounds = array<i64: 1, 128>}, {pipeline_mode = #tpu.pipeline_mode<synchronous>, transform_indices = @transform_2, window_bounds = array<i64: 1, 128>}, {transform_indices = @transform_3, window_bounds = array<i64: 1, 16, 128>}]} {
    %c0 = arith.constant 0 : index
    %c0_0 = arith.constant 0 : index
    %c0_1 = arith.constant 0 : index
    %0 = vector.load %arg1[%c0, %c0_0, %c0_1] : memref<1x16x128xf32, #tpu.memory_space<vmem>>, vector<1x16x128xf32>
    %1 = vector.shape_cast %0 : vector<1x16x128xf32> to vector<16x128xf32>
    %c0_2 = arith.constant 0 : index
    %c0_3 = arith.constant 0 : index
    %2 = vector.load %arg2[%c0_2, %c0_3] : memref<1x128xf32, #tpu.memory_space<vmem>>, vector<1x128xf32>
    %c0_4 = arith.constant 0 : index
    %c0_5 = arith.constant 0 : index
    %3 = vector.load %arg3[%c0_4, %c0_5] : memref<1x128xf32, #tpu.memory_space<vmem>>, vector<1x128xf32>
    %cst = arith.constant dense<0.000000e+00> : vector<16xf32>
    %4 = vector.multi_reduction <add>, %1, %cst [1] : vector<16x128xf32> to vector<16xf32>
    %5 = vector.shape_cast %4 : vector<16xf32> to vector<16x1xf32>
    %cst_6 = arith.constant 1.280000e+02 : f32
    %6 = vector.broadcast %cst_6 : f32 to vector<16x1xf32>
    %7 = arith.divf %5, %6 : vector<16x1xf32>
    %8 = vector.broadcast %7 : vector<16x1xf32> to vector<16x128xf32>
    %9 = arith.subf %1, %8 : vector<16x128xf32>
    %10 = arith.mulf %9, %9 : vector<16x128xf32>
    %cst_7 = arith.constant dense<0.000000e+00> : vector<16xf32>
    %11 = vector.multi_reduction <add>, %10, %cst_7 [1] : vector<16x128xf32> to vector<16xf32>
    %12 = vector.shape_cast %11 : vector<16xf32> to vector<16x1xf32>
    %cst_8 = arith.constant 1.280000e+02 : f32
    %13 = vector.broadcast %cst_8 : f32 to vector<16x1xf32>
    %14 = arith.divf %12, %13 : vector<16x1xf32>
    %15 = vector.broadcast %7 : vector<16x1xf32> to vector<16x128xf32>
    %16 = arith.subf %1, %15 : vector<16x128xf32>
    %cst_9 = arith.constant 9.99999974E-6 : f32
    %17 = vector.broadcast %cst_9 : f32 to vector<16x1xf32>
    %18 = arith.addf %14, %17 : vector<16x1xf32>
    %19 = math.rsqrt %18 : vector<16x1xf32>
    %20 = vector.broadcast %19 : vector<16x1xf32> to vector<16x128xf32>
    %21 = arith.mulf %16, %20 : vector<16x128xf32>
    %22 = vector.broadcast %2 : vector<1x128xf32> to vector<16x128xf32>
    %23 = arith.mulf %21, %22 : vector<16x128xf32>
    %24 = vector.broadcast %3 : vector<1x128xf32> to vector<16x128xf32>
    %25 = arith.addf %23, %24 : vector<16x128xf32>
    %cst_10 = arith.constant dense<0.000000e+00> : vector<128xf32>
    %26 = vector.multi_reduction <add>, %25, %cst_10 [0] : vector<16x128xf32> to vector<128xf32>
    %27 = vector.shape_cast %26 : vector<128xf32> to vector<1x128xf32>
    %cst_11 = arith.constant 1.600000e+01 : f32
    %28 = vector.broadcast %cst_11 : f32 to vector<1x128xf32>
    %29 = arith.divf %27, %28 : vector<1x128xf32>
    %30 = vector.broadcast %29 : vector<1x128xf32> to vector<16x128xf32>
    %31 = arith.subf %25, %30 : vector<16x128xf32>
    %c0_12 = arith.constant 0 : index
    %c0_13 = arith.constant 0 : index
    %c0_14 = arith.constant 0 : index
    %32 = vector.load %arg4[%c0_12, %c0_13, %c0_14] : memref<1x16x128xf32, #tpu.memory_space<vmem>>, vector<1x16x128xf32>
    %33 = vector.shape_cast %32 : vector<1x16x128xf32> to vector<16x128xf32>
    %34 = vector.shape_cast %31 : vector<16x128xf32> to vector<1x16x128xf32>
    tpu.vector_store %arg4[%c0_12, %c0_13, %c0_14], %34 {strides = array<i32>} : memref<1x16x128xf32, #tpu.memory_space<vmem>>, vector<1x16x128xf32>,
    return
  }
  func.func @transform_0(%arg0: i32) -> (i32, i32, i32) {
    %c0_i32 = arith.constant 0 : i32
    %c0_i32_0 = arith.constant 0 : i32
    %c0_i32_1 = arith.constant 0 : i32
    return %arg0, %c0_i32, %c0_i32_0 : i32, i32, i32
  }
  func.func @transform_1(%arg0: i32) -> (i32, i32) {
    %c0_i32 = arith.constant 0 : i32
    %c0_i32_0 = arith.constant 0 : i32
    %c0_i32_1 = arith.constant 0 : i32
    return %c0_i32, %c0_i32_0 : i32, i32
  }
  func.func @transform_2(%arg0: i32) -> (i32, i32) {
    %c0_i32 = arith.constant 0 : i32
    %c0_i32_0 = arith.constant 0 : i32
    %c0_i32_1 = arith.constant 0 : i32
    return %c0_i32, %c0_i32_0 : i32, i32
  }
  func.func @transform_3(%arg0: i32) -> (i32, i32, i32) {
    %c0_i32 = arith.constant 0 : i32
    %c0_i32_0 = arith.constant 0 : i32
    %c0_i32_1 = arith.constant 0 : i32
    return %arg0, %c0_i32, %c0_i32_0 : i32, i32, i32
  }
}

module attributes {stable_mosaic.version = 11 : i64} {
  func.func @_ffn_kernel(%arg0: i32, %arg1: memref<16x128xf32, #tpu.memory_space<vmem>>, %arg2: memref<128x256xbf16, #tpu.memory_space<vmem>>, %arg3: memref<256x128xbf16, #tpu.memory_space<vmem>>, %arg4: memref<16x128xf32, #tpu.memory_space<vmem>>) attributes {dimension_semantics = [#tpu.dimension_semantics<parallel>], iteration_bounds = array<i64: 2>, scalar_prefetch = 0 : i64, scratch_operands = 0 : i64, tpu.core_type = #tpu.core_type<tc>, window_params = [{transform_indices = @transform_0, window_bounds = array<i64: 16, 128>}, {pipeline_mode = #tpu.pipeline_mode<synchronous>, transform_indices = @transform_1, window_bounds = array<i64: 128, 256>}, {pipeline_mode = #tpu.pipeline_mode<synchronous>, transform_indices = @transform_2, window_bounds = array<i64: 256, 128>}, {transform_indices = @transform_3, window_bounds = array<i64: 16, 128>}]} {
    %c0 = arith.constant 0 : index
    %c0_0 = arith.constant 0 : index
    %0 = vector.load %arg1[%c0, %c0_0] : memref<16x128xf32, #tpu.memory_space<vmem>>, vector<16x128xf32>
    %1 = arith.truncf %0 : vector<16x128xf32> to vector<16x128xbf16>
    %c0_1 = arith.constant 0 : index
    %c0_2 = arith.constant 0 : index
    %2 = vector.load %arg2[%c0_1, %c0_2] : memref<128x256xbf16, #tpu.memory_space<vmem>>, vector<128x256xbf16>
    %cst = arith.constant dense<0.000000e+00> : vector<16x256xf32>
    %3 = tpu.matmul %1, %2, %cst {dimension_numbers = #tpu.dot_dimension_numbers<[1], [0], [0], [1], [0, 0, 1, 1], [], []>} : vector<16x128xbf16>, vector<128x256xbf16>, vector<16x256xf32> -> vector<16x256xf32>
    %cst_3 = arith.constant 0.000000e+00 : f32
    %4 = vector.broadcast %cst_3 : f32 to vector<16x256xf32>
    %5 = arith.maximumf %3, %4 : vector<16x256xf32>
    %6 = arith.truncf %5 : vector<16x256xf32> to vector<16x256xbf16>
    %c0_4 = arith.constant 0 : index
    %c0_5 = arith.constant 0 : index
    %7 = vector.load %arg3[%c0_4, %c0_5] : memref<256x128xbf16, #tpu.memory_space<vmem>>, vector<256x128xbf16>
    %cst_6 = arith.constant dense<0.000000e+00> : vector<16x128xf32>
    %8 = tpu.matmul %6, %7, %cst_6 {dimension_numbers = #tpu.dot_dimension_numbers<[1], [0], [0], [1], [0, 0, 1, 1], [], []>} : vector<16x256xbf16>, vector<256x128xbf16>, vector<16x128xf32> -> vector<16x128xf32>
    %c0_7 = arith.constant 0 : index
    %c0_8 = arith.constant 0 : index
    %9 = vector.load %arg4[%c0_7, %c0_8] : memref<16x128xf32, #tpu.memory_space<vmem>>, vector<16x128xf32>
    tpu.vector_store %arg4[%c0_7, %c0_8], %8 {strides = array<i32>} : memref<16x128xf32, #tpu.memory_space<vmem>>, vector<16x128xf32>,
    return
  }
  func.func @transform_0(%arg0: i32) -> (i32, i32) {
    %c0_i32 = arith.constant 0 : i32
    %c0_i32_0 = arith.constant 0 : i32
    return %arg0, %c0_i32 : i32, i32
  }
  func.func @transform_1(%arg0: i32) -> (i32, i32) {
    %c0_i32 = arith.constant 0 : i32
    %c0_i32_0 = arith.constant 0 : i32
    %c0_i32_1 = arith.constant 0 : i32
    return %c0_i32, %c0_i32_0 : i32, i32
  }
  func.func @transform_2(%arg0: i32) -> (i32, i32) {
    %c0_i32 = arith.constant 0 : i32
    %c0_i32_0 = arith.constant 0 : i32
    %c0_i32_1 = arith.constant 0 : i32
    return %c0_i32, %c0_i32_0 : i32, i32
  }
  func.func @transform_3(%arg0: i32) -> (i32, i32) {
    %c0_i32 = arith.constant 0 : i32
    %c0_i32_0 = arith.constant 0 : i32
    return %arg0, %c0_i32 : i32, i32
  }
}

module attributes {stable_mosaic.version = 11 : i64} {
  func.func @_linear_kernel(%arg0: i32, %arg1: memref<16x128xf32, #tpu.memory_space<vmem>>, %arg2: memref<128x256xbf16, #tpu.memory_space<vmem>>, %arg3: memref<1x256xf32, #tpu.memory_space<vmem>>, %arg4: memref<16x256xf32, #tpu.memory_space<vmem>>) attributes {dimension_semantics = [#tpu.dimension_semantics<parallel>], iteration_bounds = array<i64: 2>, scalar_prefetch = 0 : i64, scratch_operands = 0 : i64, tpu.core_type = #tpu.core_type<tc>, window_params = [{transform_indices = @transform_0, window_bounds = array<i64: 16, 128>}, {pipeline_mode = #tpu.pipeline_mode<synchronous>, transform_indices = @transform_1, window_bounds = array<i64: 128, 256>}, {pipeline_mode = #tpu.pipeline_mode<synchronous>, transform_indices = @transform_2, window_bounds = array<i64: 1, 256>}, {transform_indices = @transform_3, window_bounds = array<i64: 16, 256>}]} {
    %c0 = arith.constant 0 : index
    %c0_0 = arith.constant 0 : index
    %0 = vector.load %arg1[%c0, %c0_0] : memref<16x128xf32, #tpu.memory_space<vmem>>, vector<16x128xf32>
    %1 = arith.truncf %0 : vector<16x128xf32> to vector<16x128xbf16>
    %c0_1 = arith.constant 0 : index
    %c0_2 = arith.constant 0 : index
    %2 = vector.load %arg2[%c0_1, %c0_2] : memref<128x256xbf16, #tpu.memory_space<vmem>>, vector<128x256xbf16>
    %cst = arith.constant dense<0.000000e+00> : vector<16x256xf32>
    %3 = tpu.matmul %1, %2, %cst {dimension_numbers = #tpu.dot_dimension_numbers<[1], [0], [0], [1], [0, 0, 1, 1], [], []>} : vector<16x128xbf16>, vector<128x256xbf16>, vector<16x256xf32> -> vector<16x256xf32>
    %c0_3 = arith.constant 0 : index
    %c0_4 = arith.constant 0 : index
    %4 = vector.load %arg3[%c0_3, %c0_4] : memref<1x256xf32, #tpu.memory_space<vmem>>, vector<1x256xf32>
    %5 = vector.broadcast %4 : vector<1x256xf32> to vector<16x256xf32>
    %6 = arith.addf %3, %5 : vector<16x256xf32>
    %c0_5 = arith.constant 0 : index
    %c0_6 = arith.constant 0 : index
    %7 = vector.load %arg4[%c0_5, %c0_6] : memref<16x256xf32, #tpu.memory_space<vmem>>, vector<16x256xf32>
    tpu.vector_store %arg4[%c0_5, %c0_6], %6 {strides = array<i32>} : memref<16x256xf32, #tpu.memory_space<vmem>>, vector<16x256xf32>,
    return
  }
  func.func @transform_0(%arg0: i32) -> (i32, i32) {
    %c0_i32 = arith.constant 0 : i32
    %c0_i32_0 = arith.constant 0 : i32
    return %arg0, %c0_i32 : i32, i32
  }
  func.func @transform_1(%arg0: i32) -> (i32, i32) {
    %c0_i32 = arith.constant 0 : i32
    %c0_i32_0 = arith.constant 0 : i32
    %c0_i32_1 = arith.constant 0 : i32
    return %c0_i32, %c0_i32_0 : i32, i32
  }
  func.func @transform_2(%arg0: i32) -> (i32, i32) {
    %c0_i32 = arith.constant 0 : i32
    %c0_i32_0 = arith.constant 0 : i32
    %c0_i32_1 = arith.constant 0 : i32
    return %c0_i32, %c0_i32_0 : i32, i32
  }
  func.func @transform_3(%arg0: i32) -> (i32, i32) {
    %c0_i32 = arith.constant 0 : i32
    %c0_i32_0 = arith.constant 0 : i32
    return %arg0, %c0_i32 : i32, i32
  }
}

module attributes {stable_mosaic.version = 11 : i64} {
  func.func @_autocorr_kernel(%arg0: i32, %arg1: memref<1x16x128xf32, #tpu.memory_space<vmem>>, %arg2: memref<1x16x256xf32, #tpu.memory_space<vmem>>, %arg3: memref<128x128xbf16, #tpu.memory_space<vmem>>, %arg4: memref<1x128xf32, #tpu.memory_space<vmem>>, %arg5: memref<1x16x128xf32, #tpu.memory_space<vmem>>) attributes {dimension_semantics = [#tpu.dimension_semantics<parallel>], iteration_bounds = array<i64: 2>, scalar_prefetch = 0 : i64, scratch_operands = 0 : i64, tpu.core_type = #tpu.core_type<tc>, window_params = [{transform_indices = @transform_0, window_bounds = array<i64: 1, 16, 128>}, {transform_indices = @transform_1, window_bounds = array<i64: 1, 16, 256>}, {pipeline_mode = #tpu.pipeline_mode<synchronous>, transform_indices = @transform_2, window_bounds = array<i64: 128, 128>}, {pipeline_mode = #tpu.pipeline_mode<synchronous>, transform_indices = @transform_3, window_bounds = array<i64: 1, 128>}, {transform_indices = @transform_4, window_bounds = array<i64: 1, 16, 128>}]} {
    %c0 = arith.constant 0 : index
    %c0_0 = arith.constant 0 : index
    %c0_1 = arith.constant 0 : index
    %0 = vector.load %arg1[%c0, %c0_0, %c0_1] : memref<1x16x128xf32, #tpu.memory_space<vmem>>, vector<1x16x128xf32>
    %1 = vector.shape_cast %0 : vector<1x16x128xf32> to vector<16x128xf32>
    %c0_2 = arith.constant 0 : index
    %c0_3 = arith.constant 0 : index
    %c0_4 = arith.constant 0 : index
    %2 = vector.load %arg2[%c0_2, %c0_3, %c0_4] : memref<1x16x256xf32, #tpu.memory_space<vmem>>, vector<1x16x256xf32>
    %3 = vector.shape_cast %2 : vector<1x16x256xf32> to vector<16x256xf32>
    %4 = vector.extract_strided_slice %3 {offsets = [0, 0], sizes = [16, 128], strides = [1, 1]} : vector<16x256xf32> to vector<16x128xf32>
    %5 = vector.extract_strided_slice %3 {offsets = [0, 128], sizes = [16, 128], strides = [1, 1]} : vector<16x256xf32> to vector<16x128xf32>
    %6 = arith.truncf %4 : vector<16x128xf32> to vector<16x128xbf16>
    %7 = tpu.transpose %1, [1, 0] : vector<16x128xf32> -> vector<128x16xf32>
    %8 = arith.truncf %7 : vector<128x16xf32> to vector<128x16xbf16>
    %cst = arith.constant dense<0.000000e+00> : vector<16x16xf32>
    %9 = tpu.matmul %6, %8, %cst {dimension_numbers = #tpu.dot_dimension_numbers<[1], [0], [0], [1], [0, 0, 1, 1], [], []>} : vector<16x128xbf16>, vector<128x16xbf16>, vector<16x16xf32> -> vector<16x16xf32>
    %10 = tpu.iota {dimensions = array<i32: 0>} : vector<16x1xi32>
    %11 = vector.extract_strided_slice %9 {offsets = [0, 1], sizes = [16, 15], strides = [1, 1]} : vector<16x16xf32> to vector<16x15xf32>
    %12 = vector.extract_strided_slice %9 {offsets = [0, 0], sizes = [16, 1], strides = [1, 1]} : vector<16x16xf32> to vector<16x1xf32>
    %13 = tpu.concatenate %11, %12 in 1 : vector<16x15xf32>, vector<16x1xf32> -> vector<16x16xf32>
    %c1_i32 = arith.constant 1 : i32
    %14 = vector.broadcast %c1_i32 : i32 to vector<16x1xi32>
    %15 = arith.andi %10, %14 : vector<16x1xi32>
    %c0_i32 = arith.constant 0 : i32
    %16 = vector.broadcast %c0_i32 : i32 to vector<16x1xi32>
    %17 = arith.cmpi ne, %15, %16 : vector<16x1xi32>
    %18 = vector.shape_cast %17 : vector<16x1xi1> to vector<16x1xi1>
    %19 = vector.broadcast %18 : vector<16x1xi1> to vector<16x16xi1>
    %20 = arith.select %19, %13, %9 : vector<16x16xi1>, vector<16x16xf32>
    %21 = vector.extract_strided_slice %20 {offsets = [0, 2], sizes = [16, 14], strides = [1, 1]} : vector<16x16xf32> to vector<16x14xf32>
    %22 = vector.extract_strided_slice %20 {offsets = [0, 0], sizes = [16, 2], strides = [1, 1]} : vector<16x16xf32> to vector<16x2xf32>
    %23 = tpu.concatenate %21, %22 in 1 : vector<16x14xf32>, vector<16x2xf32> -> vector<16x16xf32>
    %c2_i32 = arith.constant 2 : i32
    %24 = vector.broadcast %c2_i32 : i32 to vector<16x1xi32>
    %25 = arith.andi %10, %24 : vector<16x1xi32>
    %c0_i32_5 = arith.constant 0 : i32
    %26 = vector.broadcast %c0_i32_5 : i32 to vector<16x1xi32>
    %27 = arith.cmpi ne, %25, %26 : vector<16x1xi32>
    %28 = vector.shape_cast %27 : vector<16x1xi1> to vector<16x1xi1>
    %29 = vector.broadcast %28 : vector<16x1xi1> to vector<16x16xi1>
    %30 = arith.select %29, %23, %20 : vector<16x16xi1>, vector<16x16xf32>
    %31 = vector.extract_strided_slice %30 {offsets = [0, 4], sizes = [16, 12], strides = [1, 1]} : vector<16x16xf32> to vector<16x12xf32>
    %32 = vector.extract_strided_slice %30 {offsets = [0, 0], sizes = [16, 4], strides = [1, 1]} : vector<16x16xf32> to vector<16x4xf32>
    %33 = tpu.concatenate %31, %32 in 1 : vector<16x12xf32>, vector<16x4xf32> -> vector<16x16xf32>
    %c4_i32 = arith.constant 4 : i32
    %34 = vector.broadcast %c4_i32 : i32 to vector<16x1xi32>
    %35 = arith.andi %10, %34 : vector<16x1xi32>
    %c0_i32_6 = arith.constant 0 : i32
    %36 = vector.broadcast %c0_i32_6 : i32 to vector<16x1xi32>
    %37 = arith.cmpi ne, %35, %36 : vector<16x1xi32>
    %38 = vector.shape_cast %37 : vector<16x1xi1> to vector<16x1xi1>
    %39 = vector.broadcast %38 : vector<16x1xi1> to vector<16x16xi1>
    %40 = arith.select %39, %33, %30 : vector<16x16xi1>, vector<16x16xf32>
    %41 = vector.extract_strided_slice %40 {offsets = [0, 8], sizes = [16, 8], strides = [1, 1]} : vector<16x16xf32> to vector<16x8xf32>
    %42 = vector.extract_strided_slice %40 {offsets = [0, 0], sizes = [16, 8], strides = [1, 1]} : vector<16x16xf32> to vector<16x8xf32>
    %43 = tpu.concatenate %41, %42 in 1 : vector<16x8xf32>, vector<16x8xf32> -> vector<16x16xf32>
    %c8_i32 = arith.constant 8 : i32
    %44 = vector.broadcast %c8_i32 : i32 to vector<16x1xi32>
    %45 = arith.andi %10, %44 : vector<16x1xi32>
    %c0_i32_7 = arith.constant 0 : i32
    %46 = vector.broadcast %c0_i32_7 : i32 to vector<16x1xi32>
    %47 = arith.cmpi ne, %45, %46 : vector<16x1xi32>
    %48 = vector.shape_cast %47 : vector<16x1xi1> to vector<16x1xi1>
    %49 = vector.broadcast %48 : vector<16x1xi1> to vector<16x16xi1>
    %50 = arith.select %49, %43, %40 : vector<16x16xi1>, vector<16x16xf32>
    %cst_8 = arith.constant dense<0.000000e+00> : vector<16xf32>
    %51 = vector.multi_reduction <add>, %50, %cst_8 [0] : vector<16x16xf32> to vector<16xf32>
    %52 = vector.shape_cast %51 : vector<16xf32> to vector<1x16xf32>
    %cst_9 = arith.constant 7.812500e-03 : f32
    %53 = vector.broadcast %cst_9 : f32 to vector<1x16xf32>
    %54 = arith.mulf %52, %53 : vector<1x16xf32>
    %55 = tpu.iota {dimensions = array<i32: 1>} : vector<1x16xi32>
    %56 = arith.sitofp %55 : vector<1x16xi32> to vector<1x16xf32>
    %cst_10 = arith.constant dense<0xFF800000> : vector<1xf32>
    %57 = vector.multi_reduction <maximumf>, %54, %cst_10 [1] : vector<1x16xf32> to vector<1xf32>
    %58 = vector.shape_cast %57 : vector<1xf32> to vector<1x1xf32>
    %59 = vector.broadcast %58 : vector<1x1xf32> to vector<1x16xf32>
    %60 = arith.cmpf oge, %54, %59 : vector<1x16xf32>
    %cst_11 = arith.constant 1.600000e+01 : f32
    %61 = vector.broadcast %cst_11 : f32 to vector<1x16xf32>
    %62 = arith.select %60, %56, %61 : vector<1x16xi1>, vector<1x16xf32>
    %cst_12 = arith.constant dense<0x7F800000> : vector<1xf32>
    %63 = vector.multi_reduction <minimumf>, %62, %cst_12 [1] : vector<1x16xf32> to vector<1xf32>
    %64 = vector.shape_cast %63 : vector<1xf32> to vector<1x1xf32>
    %65 = vector.broadcast %64 : vector<1x1xf32> to vector<1x16xf32>
    %66 = arith.cmpf oeq, %56, %65 : vector<1x16xf32>
    %cst_13 = arith.constant -3.000000e+38 : f32
    %67 = vector.broadcast %cst_13 : f32 to vector<1x16xf32>
    %68 = arith.select %66, %67, %54 : vector<1x16xi1>, vector<1x16xf32>
    %cst_14 = arith.constant dense<0xFF800000> : vector<1xf32>
    %69 = vector.multi_reduction <maximumf>, %68, %cst_14 [1] : vector<1x16xf32> to vector<1xf32>
    %70 = vector.shape_cast %69 : vector<1xf32> to vector<1x1xf32>
    %71 = vector.broadcast %70 : vector<1x1xf32> to vector<1x16xf32>
    %72 = arith.cmpf oge, %68, %71 : vector<1x16xf32>
    %cst_15 = arith.constant 1.600000e+01 : f32
    %73 = vector.broadcast %cst_15 : f32 to vector<1x16xf32>
    %74 = arith.select %72, %56, %73 : vector<1x16xi1>, vector<1x16xf32>
    %cst_16 = arith.constant dense<0x7F800000> : vector<1xf32>
    %75 = vector.multi_reduction <minimumf>, %74, %cst_16 [1] : vector<1x16xf32> to vector<1xf32>
    %76 = vector.shape_cast %75 : vector<1xf32> to vector<1x1xf32>
    %77 = arith.maximumf %58, %70 : vector<1x1xf32>
    %78 = arith.subf %58, %77 : vector<1x1xf32>
    %79 = math.exp %78 : vector<1x1xf32>
    %80 = arith.subf %70, %77 : vector<1x1xf32>
    %81 = math.exp %80 : vector<1x1xf32>
    %82 = arith.addf %79, %81 : vector<1x1xf32>
    %83 = arith.divf %79, %82 : vector<1x1xf32>
    %84 = arith.divf %81, %82 : vector<1x1xf32>
    %85 = tpu.iota {dimensions = array<i32: 0>} : vector<16x16xi32>
    %86 = tpu.iota {dimensions = array<i32: 1>} : vector<16x16xi32>
    %87 = arith.subi %86, %85 : vector<16x16xi32>
    %c0_i32_17 = arith.constant 0 : i32
    %88 = vector.broadcast %c0_i32_17 : i32 to vector<16x16xi32>
    %89 = arith.cmpi slt, %87, %88 : vector<16x16xi32>
    %c16_i32 = arith.constant 16 : i32
    %90 = vector.broadcast %c16_i32 : i32 to vector<16x16xi32>
    %91 = arith.addi %87, %90 : vector<16x16xi32>
    %92 = arith.select %89, %91, %87 : vector<16x16xi1>, vector<16x16xi32>
    %93 = arith.sitofp %92 : vector<16x16xi32> to vector<16x16xf32>
    %cst_18 = arith.constant 0.000000e+00 : f32
    %94 = vector.broadcast %cst_18 : f32 to vector<16x16xf32>
    %95 = vector.broadcast %64 : vector<1x1xf32> to vector<16x16xf32>
    %96 = arith.cmpf oeq, %93, %95 : vector<16x16xf32>
    %cst_19 = arith.constant 0.000000e+00 : f32
    %97 = vector.shape_cast %83 : vector<1x1xf32> to vector<1x1xf32>
    %98 = vector.broadcast %97 : vector<1x1xf32> to vector<16x16xf32>
    %99 = vector.broadcast %cst_19 : f32 to vector<16x16xf32>
    %100 = arith.select %96, %98, %99 : vector<16x16xi1>, vector<16x16xf32>
    %101 = arith.addf %94, %100 : vector<16x16xf32>
    %102 = vector.broadcast %76 : vector<1x1xf32> to vector<16x16xf32>
    %103 = arith.cmpf oeq, %93, %102 : vector<16x16xf32>
    %cst_20 = arith.constant 0.000000e+00 : f32
    %104 = vector.shape_cast %84 : vector<1x1xf32> to vector<1x1xf32>
    %105 = vector.broadcast %104 : vector<1x1xf32> to vector<16x16xf32>
    %106 = vector.broadcast %cst_20 : f32 to vector<16x16xf32>
    %107 = arith.select %103, %105, %106 : vector<16x16xi1>, vector<16x16xf32>
    %108 = arith.addf %101, %107 : vector<16x16xf32>
    %109 = arith.truncf %108 : vector<16x16xf32> to vector<16x16xbf16>
    %110 = arith.truncf %5 : vector<16x128xf32> to vector<16x128xbf16>
    %cst_21 = arith.constant dense<0.000000e+00> : vector<16x128xf32>
    %111 = tpu.matmul %109, %110, %cst_21 {dimension_numbers = #tpu.dot_dimension_numbers<[1], [0], [0], [1], [0, 0, 1, 1], [], []>} : vector<16x16xbf16>, vector<16x128xbf16>, vector<16x128xf32> -> vector<16x128xf32>
    %112 = arith.truncf %111 : vector<16x128xf32> to vector<16x128xbf16>
    %c0_22 = arith.constant 0 : index
    %c0_23 = arith.constant 0 : index
    %113 = vector.load %arg3[%c0_22, %c0_23] : memref<128x128xbf16, #tpu.memory_space<vmem>>, vector<128x128xbf16>
    %cst_24 = arith.constant dense<0.000000e+00> : vector<16x128xf32>
    %114 = tpu.matmul %112, %113, %cst_24 {dimension_numbers = #tpu.dot_dimension_numbers<[1], [0], [0], [1], [0, 0, 1, 1], [], []>} : vector<16x128xbf16>, vector<128x128xbf16>, vector<16x128xf32> -> vector<16x128xf32>
    %c0_25 = arith.constant 0 : index
    %c0_26 = arith.constant 0 : index
    %115 = vector.load %arg4[%c0_25, %c0_26] : memref<1x128xf32, #tpu.memory_space<vmem>>, vector<1x128xf32>
    %116 = vector.broadcast %115 : vector<1x128xf32> to vector<16x128xf32>
    %117 = arith.addf %114, %116 : vector<16x128xf32>
    %c0_27 = arith.constant 0 : index
    %c0_28 = arith.constant 0 : index
    %c0_29 = arith.constant 0 : index
    %118 = vector.load %arg5[%c0_27, %c0_28, %c0_29] : memref<1x16x128xf32, #tpu.memory_space<vmem>>, vector<1x16x128xf32>
    %119 = vector.shape_cast %118 : vector<1x16x128xf32> to vector<16x128xf32>
    %120 = vector.shape_cast %117 : vector<16x128xf32> to vector<1x16x128xf32>
    tpu.vector_store %arg5[%c0_27, %c0_28, %c0_29], %120 {strides = array<i32>} : memref<1x16x128xf32, #tpu.memory_space<vmem>>, vector<1x16x128xf32>,
    return
  }
  func.func @transform_0(%arg0: i32) -> (i32, i32, i32) {
    %c0_i32 = arith.constant 0 : i32
    %c0_i32_0 = arith.constant 0 : i32
    %c0_i32_1 = arith.constant 0 : i32
    return %arg0, %c0_i32, %c0_i32_0 : i32, i32, i32
  }
  func.func @transform_1(%arg0: i32) -> (i32, i32, i32) {
    %c0_i32 = arith.constant 0 : i32
    %c0_i32_0 = arith.constant 0 : i32
    %c0_i32_1 = arith.constant 0 : i32
    return %arg0, %c0_i32, %c0_i32_0 : i32, i32, i32
  }
  func.func @transform_2(%arg0: i32) -> (i32, i32) {
    %c0_i32 = arith.constant 0 : i32
    %c0_i32_0 = arith.constant 0 : i32
    %c0_i32_1 = arith.constant 0 : i32
    return %c0_i32, %c0_i32_0 : i32, i32
  }
  func.func @transform_3(%arg0: i32) -> (i32, i32) {
    %c0_i32 = arith.constant 0 : i32
    %c0_i32_0 = arith.constant 0 : i32
    %c0_i32_1 = arith.constant 0 : i32
    return %c0_i32, %c0_i32_0 : i32, i32
  }
  func.func @transform_4(%arg0: i32) -> (i32, i32, i32) {
    %c0_i32 = arith.constant 0 : i32
    %c0_i32_0 = arith.constant 0 : i32
    %c0_i32_1 = arith.constant 0 : i32
    return %arg0, %c0_i32, %c0_i32_0 : i32, i32, i32
  }
}

module attributes {stable_mosaic.version = 11 : i64} {
  func.func @_linear_kernel(%arg0: i32, %arg1: memref<16x128xf32, #tpu.memory_space<vmem>>, %arg2: memref<128x4xbf16, #tpu.memory_space<vmem>>, %arg3: memref<1x4xf32, #tpu.memory_space<vmem>>, %arg4: memref<16x4xf32, #tpu.memory_space<vmem>>) attributes {dimension_semantics = [#tpu.dimension_semantics<parallel>], iteration_bounds = array<i64: 2>, scalar_prefetch = 0 : i64, scratch_operands = 0 : i64, tpu.core_type = #tpu.core_type<tc>, window_params = [{transform_indices = @transform_0, window_bounds = array<i64: 16, 128>}, {pipeline_mode = #tpu.pipeline_mode<synchronous>, transform_indices = @transform_1, window_bounds = array<i64: 128, 4>}, {pipeline_mode = #tpu.pipeline_mode<synchronous>, transform_indices = @transform_2, window_bounds = array<i64: 1, 4>}, {transform_indices = @transform_3, window_bounds = array<i64: 16, 4>}]} {
    %c0 = arith.constant 0 : index
    %c0_0 = arith.constant 0 : index
    %0 = vector.load %arg1[%c0, %c0_0] : memref<16x128xf32, #tpu.memory_space<vmem>>, vector<16x128xf32>
    %1 = arith.truncf %0 : vector<16x128xf32> to vector<16x128xbf16>
    %c0_1 = arith.constant 0 : index
    %c0_2 = arith.constant 0 : index
    %2 = vector.load %arg2[%c0_1, %c0_2] : memref<128x4xbf16, #tpu.memory_space<vmem>>, vector<128x4xbf16>
    %cst = arith.constant dense<0.000000e+00> : vector<16x4xf32>
    %3 = tpu.matmul %1, %2, %cst {dimension_numbers = #tpu.dot_dimension_numbers<[1], [0], [0], [1], [0, 0, 1, 1], [], []>} : vector<16x128xbf16>, vector<128x4xbf16>, vector<16x4xf32> -> vector<16x4xf32>
    %c0_3 = arith.constant 0 : index
    %c0_4 = arith.constant 0 : index
    %4 = vector.load %arg3[%c0_3, %c0_4] : memref<1x4xf32, #tpu.memory_space<vmem>>, vector<1x4xf32>
    %5 = vector.broadcast %4 : vector<1x4xf32> to vector<16x4xf32>
    %6 = arith.addf %3, %5 : vector<16x4xf32>
    %c0_5 = arith.constant 0 : index
    %c0_6 = arith.constant 0 : index
    %7 = vector.load %arg4[%c0_5, %c0_6] : memref<16x4xf32, #tpu.memory_space<vmem>>, vector<16x4xf32>
    tpu.vector_store %arg4[%c0_5, %c0_6], %6 {strides = array<i32>} : memref<16x4xf32, #tpu.memory_space<vmem>>, vector<16x4xf32>,
    return
  }
  func.func @transform_0(%arg0: i32) -> (i32, i32) {
    %c0_i32 = arith.constant 0 : i32
    %c0_i32_0 = arith.constant 0 : i32
    return %arg0, %c0_i32 : i32, i32
  }
  func.func @transform_1(%arg0: i32) -> (i32, i32) {
    %c0_i32 = arith.constant 0 : i32
    %c0_i32_0 = arith.constant 0 : i32
    %c0_i32_1 = arith.constant 0 : i32
    return %c0_i32, %c0_i32_0 : i32, i32
  }
  func.func @transform_2(%arg0: i32) -> (i32, i32) {
    %c0_i32 = arith.constant 0 : i32
    %c0_i32_0 = arith.constant 0 : i32
    %c0_i32_1 = arith.constant 0 : i32
    return %c0_i32, %c0_i32_0 : i32, i32
  }
  func.func @transform_3(%arg0: i32) -> (i32, i32) {
    %c0_i32 = arith.constant 0 : i32
    %c0_i32_0 = arith.constant 0 : i32
    return %arg0, %c0_i32 : i32, i32
  }
}

module attributes {stable_mosaic.version = 11 : i64} {
  func.func @_conv3_kernel(%arg0: i32, %arg1: memref<1x16x128xf32, #tpu.memory_space<vmem>>, %arg2: memref<1x16x128xf32, #tpu.memory_space<vmem>>, %arg3: memref<1x16x128xf32, #tpu.memory_space<vmem>>, %arg4: memref<128x4xbf16, #tpu.memory_space<vmem>>, %arg5: memref<128x4xbf16, #tpu.memory_space<vmem>>, %arg6: memref<128x4xbf16, #tpu.memory_space<vmem>>, %arg7: memref<1x16x4xf32, #tpu.memory_space<vmem>>) attributes {dimension_semantics = [#tpu.dimension_semantics<parallel>], iteration_bounds = array<i64: 2>, scalar_prefetch = 0 : i64, scratch_operands = 0 : i64, tpu.core_type = #tpu.core_type<tc>, window_params = [{transform_indices = @transform_0, window_bounds = array<i64: 1, 16, 128>}, {transform_indices = @transform_1, window_bounds = array<i64: 1, 16, 128>}, {transform_indices = @transform_2, window_bounds = array<i64: 1, 16, 128>}, {pipeline_mode = #tpu.pipeline_mode<synchronous>, transform_indices = @transform_3, window_bounds = array<i64: 128, 4>}, {pipeline_mode = #tpu.pipeline_mode<synchronous>, transform_indices = @transform_4, window_bounds = array<i64: 128, 4>}, {pipeline_mode = #tpu.pipeline_mode<synchronous>, transform_indices = @transform_5, window_bounds = array<i64: 128, 4>}, {transform_indices = @transform_6, window_bounds = array<i64: 1, 16, 4>}]} {
    %c0 = arith.constant 0 : index
    %c0_0 = arith.constant 0 : index
    %c0_1 = arith.constant 0 : index
    %0 = vector.load %arg1[%c0, %c0_0, %c0_1] : memref<1x16x128xf32, #tpu.memory_space<vmem>>, vector<1x16x128xf32>
    %1 = vector.shape_cast %0 : vector<1x16x128xf32> to vector<16x128xf32>
    %c0_2 = arith.constant 0 : index
    %c0_3 = arith.constant 0 : index
    %c0_4 = arith.constant 0 : index
    %2 = vector.load %arg2[%c0_2, %c0_3, %c0_4] : memref<1x16x128xf32, #tpu.memory_space<vmem>>, vector<1x16x128xf32>
    %3 = vector.shape_cast %2 : vector<1x16x128xf32> to vector<16x128xf32>
    %4 = arith.addf %1, %3 : vector<16x128xf32>
    %c0_5 = arith.constant 0 : index
    %c0_6 = arith.constant 0 : index
    %c0_7 = arith.constant 0 : index
    %5 = vector.load %arg3[%c0_5, %c0_6, %c0_7] : memref<1x16x128xf32, #tpu.memory_space<vmem>>, vector<1x16x128xf32>
    %6 = vector.shape_cast %5 : vector<1x16x128xf32> to vector<16x128xf32>
    %7 = arith.addf %4, %6 : vector<16x128xf32>
    %8 = vector.extract_strided_slice %7 {offsets = [15, 0], sizes = [1, 128], strides = [1, 1]} : vector<16x128xf32> to vector<1x128xf32>
    %9 = vector.extract_strided_slice %7 {offsets = [0, 0], sizes = [15, 128], strides = [1, 1]} : vector<16x128xf32> to vector<15x128xf32>
    %10 = tpu.concatenate %8, %9 in 0 : vector<1x128xf32>, vector<15x128xf32> -> vector<16x128xf32>
    %11 = vector.extract_strided_slice %7 {offsets = [1, 0], sizes = [15, 128], strides = [1, 1]} : vector<16x128xf32> to vector<15x128xf32>
    %12 = vector.extract_strided_slice %7 {offsets = [0, 0], sizes = [1, 128], strides = [1, 1]} : vector<16x128xf32> to vector<1x128xf32>
    %13 = tpu.concatenate %11, %12 in 0 : vector<15x128xf32>, vector<1x128xf32> -> vector<16x128xf32>
    %14 = arith.truncf %10 : vector<16x128xf32> to vector<16x128xbf16>
    %c0_8 = arith.constant 0 : index
    %c0_9 = arith.constant 0 : index
    %15 = vector.load %arg4[%c0_8, %c0_9] : memref<128x4xbf16, #tpu.memory_space<vmem>>, vector<128x4xbf16>
    %cst = arith.constant dense<0.000000e+00> : vector<16x4xf32>
    %16 = tpu.matmul %14, %15, %cst {dimension_numbers = #tpu.dot_dimension_numbers<[1], [0], [0], [1], [0, 0, 1, 1], [], []>} : vector<16x128xbf16>, vector<128x4xbf16>, vector<16x4xf32> -> vector<16x4xf32>
    %17 = arith.truncf %7 : vector<16x128xf32> to vector<16x128xbf16>
    %c0_10 = arith.constant 0 : index
    %c0_11 = arith.constant 0 : index
    %18 = vector.load %arg5[%c0_10, %c0_11] : memref<128x4xbf16, #tpu.memory_space<vmem>>, vector<128x4xbf16>
    %cst_12 = arith.constant dense<0.000000e+00> : vector<16x4xf32>
    %19 = tpu.matmul %17, %18, %cst_12 {dimension_numbers = #tpu.dot_dimension_numbers<[1], [0], [0], [1], [0, 0, 1, 1], [], []>} : vector<16x128xbf16>, vector<128x4xbf16>, vector<16x4xf32> -> vector<16x4xf32>
    %20 = arith.addf %16, %19 : vector<16x4xf32>
    %21 = arith.truncf %13 : vector<16x128xf32> to vector<16x128xbf16>
    %c0_13 = arith.constant 0 : index
    %c0_14 = arith.constant 0 : index
    %22 = vector.load %arg6[%c0_13, %c0_14] : memref<128x4xbf16, #tpu.memory_space<vmem>>, vector<128x4xbf16>
    %cst_15 = arith.constant dense<0.000000e+00> : vector<16x4xf32>
    %23 = tpu.matmul %21, %22, %cst_15 {dimension_numbers = #tpu.dot_dimension_numbers<[1], [0], [0], [1], [0, 0, 1, 1], [], []>} : vector<16x128xbf16>, vector<128x4xbf16>, vector<16x4xf32> -> vector<16x4xf32>
    %24 = arith.addf %20, %23 : vector<16x4xf32>
    %c0_16 = arith.constant 0 : index
    %c0_17 = arith.constant 0 : index
    %c0_18 = arith.constant 0 : index
    %25 = vector.load %arg7[%c0_16, %c0_17, %c0_18] : memref<1x16x4xf32, #tpu.memory_space<vmem>>, vector<1x16x4xf32>
    %26 = vector.shape_cast %25 : vector<1x16x4xf32> to vector<16x4xf32>
    %27 = vector.shape_cast %24 : vector<16x4xf32> to vector<1x16x4xf32>
    tpu.vector_store %arg7[%c0_16, %c0_17, %c0_18], %27 {strides = array<i32>} : memref<1x16x4xf32, #tpu.memory_space<vmem>>, vector<1x16x4xf32>,
    return
  }
  func.func @transform_0(%arg0: i32) -> (i32, i32, i32) {
    %c0_i32 = arith.constant 0 : i32
    %c0_i32_0 = arith.constant 0 : i32
    %c0_i32_1 = arith.constant 0 : i32
    return %arg0, %c0_i32, %c0_i32_0 : i32, i32, i32
  }
  func.func @transform_1(%arg0: i32) -> (i32, i32, i32) {
    %c0_i32 = arith.constant 0 : i32
    %c0_i32_0 = arith.constant 0 : i32
    %c0_i32_1 = arith.constant 0 : i32
    return %arg0, %c0_i32, %c0_i32_0 : i32, i32, i32
  }
  func.func @transform_2(%arg0: i32) -> (i32, i32, i32) {
    %c0_i32 = arith.constant 0 : i32
    %c0_i32_0 = arith.constant 0 : i32
    %c0_i32_1 = arith.constant 0 : i32
    return %arg0, %c0_i32, %c0_i32_0 : i32, i32, i32
  }
  func.func @transform_3(%arg0: i32) -> (i32, i32) {
    %c0_i32 = arith.constant 0 : i32
    %c0_i32_0 = arith.constant 0 : i32
    %c0_i32_1 = arith.constant 0 : i32
    return %c0_i32, %c0_i32_0 : i32, i32
  }
  func.func @transform_4(%arg0: i32) -> (i32, i32) {
    %c0_i32 = arith.constant 0 : i32
    %c0_i32_0 = arith.constant 0 : i32
    %c0_i32_1 = arith.constant 0 : i32
    return %c0_i32, %c0_i32_0 : i32, i32
  }
  func.func @transform_5(%arg0: i32) -> (i32, i32) {
    %c0_i32 = arith.constant 0 : i32
    %c0_i32_0 = arith.constant 0 : i32
    %c0_i32_1 = arith.constant 0 : i32
    return %c0_i32, %c0_i32_0 : i32, i32
  }
  func.func @transform_6(%arg0: i32) -> (i32, i32, i32) {
    %c0_i32 = arith.constant 0 : i32
    %c0_i32_0 = arith.constant 0 : i32
    %c0_i32_1 = arith.constant 0 : i32
    return %arg0, %c0_i32, %c0_i32_0 : i32, i32, i32
  }
}

</mosaic_0001>

<llo_original>
// kernel: _lambda_.21
$region0: #{_lambda_.21}
  #allocation0 [shape = 'u32[]', space=smem, size = 0x4, offset = 0x4, fixed_abs, tag = 'smem constant byte address 0x4 - core index']
  #allocation1 [shape = 'u32[144,128]{1,0:T(1,128)}', space=vmem, size = 0x12000, scoped, tag = 'internal scratch']
  %s0 = inlined_call_operand.hbm [shape: f32[2,16,4], index: 0, kind: input, shape index: {}]
  %s1 = inlined_call_operand.hbm [shape: f32[2,16,4], index: 1, kind: output, shape index: {0}]
  %s2 = inlined_call_operand.hbm [shape: f32[2,16,4], index: 2, kind: output, shape index: {1}]
  %3 = xla_tuple %s1, %s2
  %s4 = sld [smem:[#allocation0]]
  $region49: #{_lambda_.21} parent=0
    _
  %s6 = ssub.s32 1, %s4
  %s7 = scalar_select 0, %s6, %s4
  $region1: #{_lambda_.21} parent=0
    #allocation2 [shape = 'u8[16384]{0}', space=vmem, size = 0x4000, scoped, tag = 'input window, operand 0']
    #allocation3 [shape = 's32[2]{0}', space=sflag, size = 0x8, scoped, tag = 'scoped memory for _lambda_.21']
    #allocation4 [shape = 's32[2]{0}', space=sflag, size = 0x8, scoped, tag = 'scoped memory for _lambda_.21']
    #allocation5 [shape = 'u8[16384]{0}', space=vmem, size = 0x4000, scoped, tag = 'output window, operand 0']
    #allocation6 [shape = 'u8[16384]{0}', space=vmem, size = 0x4000, scoped, tag = 'output window, operand 1']
    #allocation7 [shape = 's32[2]{0}', space=sflag, size = 0x8, scoped, tag = 'scoped memory for _lambda_.21']
    %8 = vsyncpa [#allocation3], 0
    %s9 = scalar_lea.sflag [#allocation3], 1
    %10 = vsyncpa %s9, 0
    %11 = vsyncpa [#allocation4], 0
    %s12 = scalar_lea.sflag [#allocation4], 1
    %13 = vsyncpa %s12, 0
    %14 = vsyncpa [#allocation7], 0
    %s15 = scalar_lea.sflag [#allocation7], 1
    %16 = vsyncpa %s15, 0
    loop: start=0, step=1, limit=4
    $region2: #{_lambda_.21} parent=1 // loop_pre_header
      _
    $region3: #{_lambda_.21} parent=1 // loop_header
      %s18 = sphi 0, %s22
      %p19 = scmp.ge.s32.totalorder %s18, 4
      %s28 = sphi 0, %s30
      %s31 = sphi 0, %s28
      %s32 = sphi 0, %s31
      %s48 = sphi 0, %s32
      %s54 = sphi 0, %s56
      %s57 = sphi 0, %s54
      %s58 = sphi 0, %s57
      %s74 = sphi 0, %s58
      %s80 = sphi 0, %s82
      %s83 = sphi 0, %s80
      %s84 = sphi 0, %s83
      %s100 = sphi 0, %s84
    $region4: #{_lambda_.21} parent=1 // loop_header_branch
      %21 = sbr.rel (%p19) target = $region8
    $region5: #{_lambda_.21} parent=1 // loop_body
      %s23 = ssub.s32 %s18, 1
      %s24 = ssub.s32 %s18, 2
      %s25 = sadd.s32 %s18, 1
      %s26 = ssub.s32 %s18, %s25
      %p27 = scmp.eq.s32.totalorder %s26, 0
      %s29 = sadd.s32 %s28, 1
      %s30 = scalar_select %p27, %s28, %s29
      %p33 = pneg %p27
      %p34 = scmp.eq.s32.totalorder %s18, 1
      %p35 = por %p33, %p34
      %p36 = scmp.ne.s32.totalorder %s28, %s31
      %p37 = scmp.eq.s32.totalorder %s18, 0
      %p38 = por %p36, %p37
      %p39 = scmp.ne.s32.totalorder %s28, %s31
      %p40 = scmp.eq.s32.totalorder %s23, 1
      %p41 = por %p39, %p40
      %p42 = scmp.ne.s32.totalorder %s31, %s32
      %p43 = scmp.eq.s32.totalorder %s23, 0
      %p44 = por %p42, %p43
      %p45 = scmp.ne.s32.totalorder %s31, %s32
      %p46 = scmp.eq.s32.totalorder %s24, 1
      %p47 = por %p45, %p46
      %p49 = scmp.ne.s32.totalorder %s32, %s48
      %p50 = scmp.eq.s32.totalorder %s24, 0
      %p51 = por %p49, %p50
      %s52 = ssub.s32 %s18, %s25
      %p53 = scmp.eq.s32.totalorder %s52, 0
      %s55 = sadd.s32 %s54, 1
      %s56 = scalar_select %p53, %s54, %s55
      %p59 = pneg %p53
      %p60 = scmp.eq.s32.totalorder %s18, 1
      %p61 = por %p59, %p60
      %p62 = scmp.ne.s32.totalorder %s54, %s57
      %p63 = scmp.eq.s32.totalorder %s18, 0
      %p64 = por %p62, %p63
      %p65 = scmp.ne.s32.totalorder %s54, %s57
      %p66 = scmp.eq.s32.totalorder %s23, 1
      %p67 = por %p65, %p66
      %p68 = scmp.ne.s32.totalorder %s57, %s58
      %p69 = scmp.eq.s32.totalorder %s23, 0
      %p70 = por %p68, %p69
      %p71 = scmp.ne.s32.totalorder %s57, %s58
      %p72 = scmp.eq.s32.totalorder %s24, 1
      %p73 = por %p71, %p72
      %p75 = scmp.ne.s32.totalorder %s58, %s74
      %p76 = scmp.eq.s32.totalorder %s24, 0
      %p77 = por %p75, %p76
      %s78 = ssub.s32 %s18, %s25
      %p79 = scmp.eq.s32.totalorder %s78, 0
      %s81 = sadd.s32 %s80, 1
      %s82 = scalar_select %p79, %s80, %s81
      %p85 = pneg %p79
      %p86 = scmp.eq.s32.totalorder %s18, 1
      %p87 = por %p85, %p86
      %p88 = scmp.ne.s32.totalorder %s80, %s83
      %p89 = scmp.eq.s32.totalorder %s18, 0
      %p90 = por %p88, %p89
      %p91 = scmp.ne.s32.totalorder %s80, %s83
      %p92 = scmp.eq.s32.totalorder %s23, 1
      %p93 = por %p91, %p92
      %p94 = scmp.ne.s32.totalorder %s83, %s84
      %p95 = scmp.eq.s32.totalorder %s23, 0
      %p96 = por %p94, %p95
      %p97 = scmp.ne.s32.totalorder %s83, %s84
      %p98 = scmp.eq.s32.totalorder %s24, 1
      %p99 = por %p97, %p98
      %p101 = scmp.ne.s32.totalorder %s84, %s100
      %p102 = scmp.eq.s32.totalorder %s24, 0
      %p103 = por %p101, %p102
      %p104 = scmp.le.s32.totalorder 1, %s18
      %p105 = scmp.lt.s32.totalorder %s18, 3
      %p106 = pnand %p104, %p105
      %p107 = pneg %p106
      // Predicated region
      $region9: #{_lambda_.21} parent=5 // pred_check
        _
      $region10: #{_lambda_.21} parent=5 // pred_check_branch
        %109 = sbr.rel (%p106) target = $region12
      $region11: #{_lambda_.21} parent=5 // pred_region
        %s110 = ssub.s32 %s18, 1
      $region12: #{_lambda_.21} parent=5 // pred_fallthru
        _
      %p111 = scmp.lt.s32.totalorder %s18, 2
      // Predicated region
      $region13: #{_lambda_.21} parent=5 // pred_check
        %p112 = pneg %p111
      $region14: #{_lambda_.21} parent=5 // pred_check_branch
        %114 = sbr.rel (%p112) target = $region16
      $region15: #{_lambda_.21} parent=5 // pred_region
        // Predicated region
        $region17: #{_lambda_.21} parent=15 // pred_check
          %p115 = pneg %p38
        $region18: #{_lambda_.21} parent=15 // pred_check_branch
          %117 = sbr.rel (%p115) target = $region20
        $region19: #{_lambda_.21} parent=15 // pred_region
          %s118 = sand.u32 %s28, 1
          %s119 = scalar_lea.sflag [#allocation3], %s118
          %s120 = sand.u32 %s28, 1
          %s121 = smul.addr %s120, 16
          %s122 = scalar_lea.vmem [#allocation2], %s121
          %s124 = ssub.s32 256, 256
          %125 = vsyncadd %s119, %s124
          %s126 = smul.addr %s18, 2
          %s127 = smul.addr %s126, 128
          %s128 = scalar_lea.hbm %s0, %s127
          %s129 = sshll.u32 %s122, 4
          %s130 = int_to_ptr.vmem [resolvable:$true] %s129
          %135 = dma.hbm_to_vmem [thread:$0]  %s128, 256, %s130, %s119, 128, 128, 8
        $region20: #{_lambda_.21} parent=15 // pred_fallthru
          _
      $region16: #{_lambda_.21} parent=5 // pred_fallthru
        _
      %p136 = scmp.le.s32.totalorder 1, %s18
      %p137 = scmp.lt.s32.totalorder %s18, 3
      %p138 = pnand %p136, %p137
      %p139 = pneg %p138
      // Predicated region
      $region21: #{_lambda_.21} parent=5 // pred_check
        _
      $region22: #{_lambda_.21} parent=5 // pred_check_branch
        %141 = sbr.rel (%p138) target = $region24
      $region23: #{_lambda_.21} parent=5 // pred_region
        %s142 = ssub.s32 %s18, 1
        %s143 = sand.u32 %s31, 1
        %s144 = scalar_lea.sflag [#allocation3], %s143
        %s145 = sand.u32 %s31, 1
        %s146 = smul.addr %s145, 16
        %s147 = scalar_lea.vmem [#allocation2], %s146
        // Predicated region
        $region25: #{_lambda_.21} parent=23 // pred_check
          %p148 = pneg %p44
        $region26: #{_lambda_.21} parent=23 // pred_check_branch
          %150 = sbr.rel (%p148) target = $region28
        $region27: #{_lambda_.21} parent=23 // pred_region
          %151 = dma.done %s144, 256
        $region28: #{_lambda_.21} parent=23 // pred_fallthru
          _
        %s152 = sand.u32 %s31, 1
        %s153 = scalar_lea.sflag [#allocation3], %s152
        %s154 = sand.u32 %s31, 1
        %s155 = smul.addr %s154, 16
        %s156 = scalar_lea.vmem [#allocation2], %s155
        %p157 = pneg %p44
        %p158 = pneg %p41
        %p159 = pneg %p70
        %p160 = pneg %p67
        %s161 = sand.u32 %s57, 1
        %s162 = scalar_lea.sflag [#allocation4], %s161
        %s163 = sand.u32 %s57, 1
        %s164 = smul.addr %s163, 16
        %s165 = scalar_lea.vmem [#allocation5], %s164
        %p166 = pneg %p96
        %p167 = pneg %p93
        %s168 = sand.u32 %s83, 1
        %s169 = scalar_lea.sflag [#allocation7], %s168
        %s170 = sand.u32 %s83, 1
        %s171 = smul.addr %s170, 16
        %s172 = scalar_lea.vmem [#allocation6], %s171
        %v173 = vld [vmem:[%s147] sm:$0xff]
        %v174 = vld [vmem:[%s147 + $0x8] sm:$0xff]
        %v175 = vlaneseq
        %v176 = vshrl.u32 %v175, 7
        %v177 = vadd.s32 %v176, 8
        %v178 = vlaneseq
        %v179 = vand.u32 %v178, 127
        %v180 = vsub.s32 %v176, %v179
        %v181 = vsub.s32 %v177, %v179
        %vm182 = vcmp.lt.s32.totalorder %v180, 0
        %v183 = vsub.s32 0, %v180
        %v184 = vsel %vm182, %v183, %v180
        %vm185 = vcmp.lt.s32.totalorder %v181, 0
        %v186 = vsub.s32 0, %v181
        %v187 = vsel %vm185, %v186, %v181
        %vm188 = vcmp.le.s32.totalorder %v184, 2
        %vm189 = vcmp.le.s32.totalorder %v187, 2
        %vm190 = vcmp.gt.s32.totalorder %v179, 0
        %vm191 = vmand %vm188, %vm190
        %vm192 = vmand %vm189, %vm190
        %vm193 = vcmp.lt.s32.totalorder %v179, 15
        %vm194 = vmand %vm191, %vm193
        %vm195 = vmand %vm192, %vm193
        %v196 = vsel %vm194, 1, 0
        %v197 = vsel %vm195, 1, 0
        %v198 = vcvt.s32.f32 %v196
        %v199 = vcvt.s32.f32 %v197
        %vm200 = vcmp.eq.s32.totalorder %v179, 0
        %v201 = vsub.s32 2, %v176
        %v202 = vsub.s32 2, %v177
        %v203 = vadd.s32 %v201, 1
        %v204 = vadd.s32 %v202, 1
        %vm205 = vcmp.gt.s32.totalorder %v203, 0
        %v206 = vsel %vm205, %v203, 0
        %vm207 = vcmp.gt.s32.totalorder %v204, 0
        %v208 = vsel %vm207, %v204, 0
        %v209 = vcvt.s32.f32 %v206
        %v210 = vcvt.s32.f32 %v208
        %v211 = vsel %vm200, %v209, 0.0
        %v212 = vsel %vm200, %v210, 0.0
        %vm213 = vcmp.eq.s32.totalorder %v179, 15
        %v214 = vadd.s32 %v176, 2
        %v215 = vadd.s32 %v177, 2
        %v216 = vsub.s32 %v214, 14
        %v217 = vsub.s32 %v215, 14
        %vm218 = vcmp.gt.s32.totalorder %v216, 0
        %v219 = vsel %vm218, %v216, 0
        %vm220 = vcmp.gt.s32.totalorder %v217, 0
        %v221 = vsel %vm220, %v217, 0
        %v222 = vcvt.s32.f32 %v219
        %v223 = vcvt.s32.f32 %v221
        %v224 = vsel %vm213, %v222, 0.0
        %v225 = vsel %vm213, %v223, 0.0
        %v226 = vadd.f32 %v198, %v211
        %v227 = vadd.f32 %v199, %v212
        %v228 = vadd.f32 %v226, %v224
        %v229 = vadd.f32 %v227, %v225
        %v230 = vmul.f32 %v228, 0.2
        %v231 = vmul.f32 %v229, 0.2
        %vm232 = vcmask 130048
        %v234 = vsel %vm232, %v230, 0
        %v237 = vsel %vm232, %v231, 0
        %239 = vmatprep.subr.mxu0 0.0
        %240 = vmatpush1.msra.mxu0 %v173
        %241 = vmatprep.subr.mxu0 0.0
        %242 = vmatpush1.msra.mxu0 %v174
        %243 = vmatprep.subr.mxu0 0.0
        %244 = vmatpush1.msra.mxu0 0.0
        %245 = vmatprep.subr.mxu0 0.0
        %246 = vmatpush1.msra.mxu0 0.0
        %247 = vmatprep.subr.mxu0 0.0
        %248 = vmatpush1.msra.mxu0 0.0
        %249 = vmatprep.subr.mxu0 0.0
        %250 = vmatpush1.msra.mxu0 0.0
        %251 = vmatprep.subr.mxu0 0.0
        %252 = vmatpush1.msra.mxu0 0.0
        %253 = vmatprep.subr.mxu0 0.0
        %254 = vmatpush1.msra.mxu0 0.0
        %255 = vmatprep.subr.mxu0 0.0
        %256 = vmatpush1.msra.mxu0 0.0
        %257 = vmatprep.subr.mxu0 0.0
        %258 = vmatpush1.msra.mxu0 0.0
        %259 = vmatprep.subr.mxu0 0.0
        %260 = vmatpush1.msra.mxu0 0.0
        %261 = vmatprep.subr.mxu0 0.0
        %262 = vmatpush1.msra.mxu0 0.0
        %263 = vmatprep.subr.mxu0 0.0
        %264 = vmatpush1.msra.mxu0 0.0
        %265 = vmatprep.subr.mxu0 0.0
        %266 = vmatpush1.msra.mxu0 0.0
        %267 = vmatprep.subr.mxu0 0.0
        %268 = vmatpush1.msra.mxu0 0.0
        %269 = vmatprep.subr.mxu0 0.0
        %270 = vmatpush1.msra.mxu0 0.0
        %271 = vmatprep.subr.mxu0 0.0
        %272 = vmatpush1.msra.mxu0 0.0
        %273 = vmatprep.subr.mxu0 0.0
        %274 = vmatpush1.msra.mxu0 0.0
        %275 = vmatprep.subr.mxu0 0.0
        %276 = vmatpush1.msra.mxu0 0.0
        %277 = vmatprep.subr.mxu0 0.0
        %278 = vmatpush1.msra.mxu0 0.0
        %279 = vmatprep.subr.mxu0 0.0
        %280 = vmatpush1.msra.mxu0 0.0
        %281 = vmatprep.subr.mxu0 0.0
        %282 = vmatpush1.msra.mxu0 0.0
        %283 = vmatprep.subr.mxu0 0.0
        %284 = vmatpush1.msra.mxu0 0.0
        %285 = vmatprep.subr.mxu0 0.0
        %286 = vmatpush1.msra.mxu0 0.0
        %287 = vmatprep.subr.mxu0 0.0
        %288 = vmatpush1.msra.mxu0 0.0
        %289 = vmatprep.subr.mxu0 0.0
        %290 = vmatpush1.msra.mxu0 0.0
        %291 = vmatprep.subr.mxu0 0.0
        %292 = vmatpush1.msra.mxu0 0.0
        %293 = vmatprep.subr.mxu0 0.0
        %294 = vmatpush1.msra.mxu0 0.0
        %295 = vmatprep.subr.mxu0 0.0
        %296 = vmatpush1.msra.mxu0 0.0
        %297 = vmatprep.subr.mxu0 0.0
        %298 = vmatpush1.msra.mxu0 0.0
        %299 = vmatprep.subr.mxu0 0.0
        %300 = vmatpush1.msra.mxu0 0.0
        %301 = vmatprep.subr.mxu0 0.0
        %302 = vmatpush1.msra.mxu0 0.0
        %303 = vmatprep.mubr.f32.mxu0 0.0
        %304 = vmatmul.mubr.f32.gmra.mrb[0].mxu0 %v234
        %v305 = vpop.f32.mrb[0].mxu0
        %v306 = vadd.f32 0.0, %v305
        %v307 = vpop.f32.mrb[0].mxu0
        %308 = vmatprep.mubr.f32.mxu0 0.0
        %309 = vmatmul.mubr.f32.gmra.mrb[0].mxu0 %v237
        %v310 = vpop.f32.mrb[0].mxu0
        %v311 = vadd.f32 0.0, %v310
        %v312 = vpop.f32.mrb[0].mxu0
        %313 = vdwg.mxu0
        %vm314 = vcmask 31744
        %315 = vst.msk [vmem:[%s172] sm:$0xff] %vm314, %v306
        %316 = vst.msk [vmem:[%s172 + $0x8] sm:$0xff] %vm314, %v311
        %v317 = vsub.f32 %v173, %v306
        %v318 = vsub.f32 %v174, %v311
        %319 = vst.msk [vmem:[%s165] sm:$0xff] %vm314, %v317
        %320 = vst.msk [vmem:[%s165 + $0x8] sm:$0xff] %vm314, %v318
        %s321 = sand.u32 %s57, 1
        %s322 = scalar_lea.sflag [#allocation4], %s321
        %s323 = sand.u32 %s57, 1
        %s324 = smul.addr %s323, 16
        %s325 = scalar_lea.vmem [#allocation5], %s324
        %s326 = sand.u32 %s83, 1
        %s327 = scalar_lea.sflag [#allocation7], %s326
        %s328 = sand.u32 %s83, 1
        %s329 = smul.addr %s328, 16
        %s330 = scalar_lea.vmem [#allocation6], %s329
        // Predicated region
        $region29: #{_lambda_.21} parent=23 // pred_check
          %p331 = pneg %p67
        $region30: #{_lambda_.21} parent=23 // pred_check_branch
          %333 = sbr.rel (%p331) target = $region32
        $region31: #{_lambda_.21} parent=23 // pred_region
          %s335 = ssub.s32 256, 256
          %336 = vsyncadd %s322, %s335
          %s337 = smul.addr %s23, 2
          %s338 = smul.addr %s337, 128
          %s339 = scalar_lea.hbm %s1, %s338
          %s340 = sshll.u32 %s325, 4
          %s341 = int_to_ptr.vmem [resolvable:$true] %s340
          %346 = dma.vmem_to_hbm [thread:$0]  %s341, 256, %s339, %s322, 128, 128, 8
        $region32: #{_lambda_.21} parent=23 // pred_fallthru
          _
        // Predicated region
        $region33: #{_lambda_.21} parent=23 // pred_check
          %p347 = pneg %p93
        $region34: #{_lambda_.21} parent=23 // pred_check_branch
          %349 = sbr.rel (%p347) target = $region36
        $region35: #{_lambda_.21} parent=23 // pred_region
          %s351 = ssub.s32 256, 256
          %352 = vsyncadd %s327, %s351
          %s353 = smul.addr %s23, 2
          %s354 = smul.addr %s353, 128
          %s355 = scalar_lea.hbm %s2, %s354
          %s356 = sshll.u32 %s330, 4
          %s357 = int_to_ptr.vmem [resolvable:$true] %s356
          %362 = dma.vmem_to_hbm [thread:$0]  %s357, 256, %s355, %s327, 128, 128, 8
        $region36: #{_lambda_.21} parent=23 // pred_fallthru
          _
      $region24: #{_lambda_.21} parent=5 // pred_fallthru
        _
      %p363 = scmp.le.s32.totalorder 2, %s18
      // Predicated region
      $region37: #{_lambda_.21} parent=5 // pred_check
        %p364 = pneg %p363
      $region38: #{_lambda_.21} parent=5 // pred_check_branch
        %366 = sbr.rel (%p364) target = $region40
      $region39: #{_lambda_.21} parent=5 // pred_region
        %s367 = ssub.s32 %s18, 2
        // Predicated region
        $region41: #{_lambda_.21} parent=39 // pred_check
          %p368 = pneg %p73
        $region42: #{_lambda_.21} parent=39 // pred_check_branch
          %370 = sbr.rel (%p368) target = $region44
        $region43: #{_lambda_.21} parent=39 // pred_region
          %s371 = sand.u32 %s58, 1
          %s372 = scalar_lea.sflag [#allocation4], %s371
          %s373 = sand.u32 %s58, 1
          %s374 = smul.addr %s373, 16
          %s375 = scalar_lea.vmem [#allocation5], %s374
          %376 = dma.done %s372, 256
        $region44: #{_lambda_.21} parent=39 // pred_fallthru
          _
        // Predicated region
        $region45: #{_lambda_.21} parent=39 // pred_check
          %p377 = pneg %p99
        $region46: #{_lambda_.21} parent=39 // pred_check_branch
          %379 = sbr.rel (%p377) target = $region48
        $region47: #{_lambda_.21} parent=39 // pred_region
          %s380 = sand.u32 %s84, 1
          %s381 = scalar_lea.sflag [#allocation7], %s380
          %s382 = sand.u32 %s84, 1
          %s383 = smul.addr %s382, 16
          %s384 = scalar_lea.vmem [#allocation6], %s383
          %385 = dma.done %s381, 256
        $region48: #{_lambda_.21} parent=39 // pred_fallthru
          _
      $region40: #{_lambda_.21} parent=5 // pred_fallthru
        _
    $region6: #{_lambda_.21} parent=1 // loop_footer
      %s22 = sadd.s32 1, %s18
    $region7: #{_lambda_.21} parent=1 // loop_footer_branch
      %17 = sbr.rel target = $region3
    $region8: #{_lambda_.21} parent=1 // loop_exit
      _
    %386 = vsyncpa [#allocation3], 1
    %s387 = scalar_lea.sflag [#allocation3], 1
    %388 = vsyncpa %s387, 1
    %389 = vsyncpa [#allocation4], 1
    %s390 = scalar_lea.sflag [#allocation4], 1
    %391 = vsyncpa %s390, 1
    %392 = vsyncpa [#allocation7], 1
    %s393 = scalar_lea.sflag [#allocation7], 1
    %394 = vsyncpa %s393, 1

// kernel: _lambda_.29
$region0: #{_lambda_.29}
  #allocation0 [shape = 'u32[]', space=smem, size = 0x4, offset = 0x4, fixed_abs, tag = 'smem constant byte address 0x4 - core index']
  #allocation1 [shape = 'u32[144,128]{1,0:T(1,128)}', space=vmem, size = 0x12000, scoped, tag = 'internal scratch']
  %s0 = inlined_call_operand.hbm [shape: f32[2,16,4], index: 0, kind: input, shape index: {}]
  %s1 = inlined_call_operand.hbm [shape: f32[2,16,4], index: 1, kind: input, shape index: {}]
  %s2 = inlined_call_operand.hbm [shape: bf16[4,128], index: 2, kind: input, shape index: {}]
  %s3 = inlined_call_operand.hbm [shape: bf16[4,128], index: 3, kind: input, shape index: {}]
  %s4 = inlined_call_operand.hbm [shape: bf16[4,128], index: 4, kind: input, shape index: {}]
  %s5 = inlined_call_operand.hbm [shape: bf16[4,128], index: 5, kind: input, shape index: {}]
  %s6 = inlined_call_operand.hbm [shape: f32[2,16,128], index: 6, kind: output, shape index: {}]
  %s7 = sld [smem:[#allocation0]]
  $region81: #{_lambda_.29} parent=0
    _
  %s9 = ssub.s32 1, %s7
  %s10 = scalar_select 0, %s9, %s7
  $region1: #{_lambda_.29} parent=0
    #allocation2 [shape = 'u8[16384]{0}', space=vmem, size = 0x4000, scoped, tag = 'input window, operand 0']
    #allocation3 [shape = 's32[2]{0}', space=sflag, size = 0x8, scoped, tag = 'scoped memory for _lambda_.29']
    #allocation4 [shape = 's32[2]{0}', space=sflag, size = 0x8, scoped, tag = 'scoped memory for _lambda_.29']
    #allocation5 [shape = 'u8[16384]{0}', space=vmem, size = 0x4000, scoped, tag = 'input window, operand 1']
    #allocation6 [shape = 's32[2]{0}', space=sflag, size = 0x8, scoped, tag = 'scoped memory for _lambda_.29']
    #allocation7 [shape = 'u8[1024]{0}', space=vmem, size = 0x400, scoped, tag = 'input window, operand 2, single buffered']
    #allocation8 [shape = 'u8[1024]{0}', space=vmem, size = 0x400, scoped, tag = 'input window, operand 3, single buffered']
    #allocation9 [shape = 's32[1]{0}', space=sflag, size = 0x4, scoped, tag = 'scoped memory for _lambda_.29']
    #allocation10 [shape = 'u8[1024]{0}', space=vmem, size = 0x400, scoped, tag = 'input window, operand 4, single buffered']
    #allocation11 [shape = 'u8[1024]{0}', space=vmem, size = 0x400, scoped, tag = 'input window, operand 5, single buffered']
    #allocation12 [shape = 's32[1]{0}', space=sflag, size = 0x4, scoped, tag = 'scoped memory for _lambda_.29']
    #allocation13 [shape = 'u8[16384]{0}', space=vmem, size = 0x4000, scoped, tag = 'output window, operand 0']
    %11 = vsyncpa [#allocation3], 0
    %s12 = scalar_lea.sflag [#allocation3], 1
    %13 = vsyncpa %s12, 0
    %14 = vsyncpa [#allocation6], 0
    %s15 = scalar_lea.sflag [#allocation6], 1
    %16 = vsyncpa %s15, 0
    %17 = vsyncpa [#allocation9], 0
    %18 = vsyncpa [#allocation12], 0
    %19 = vsyncpa [#allocation4], 0
    %s20 = scalar_lea.sflag [#allocation4], 1
    %21 = vsyncpa %s20, 0
    loop: start=0, step=1, limit=4
    $region2: #{_lambda_.29} parent=1 // loop_pre_header
      _
    $region3: #{_lambda_.29} parent=1 // loop_header
      %s23 = sphi 0, %s27
      %p24 = scmp.ge.s32.totalorder %s23, 4
      %s33 = sphi 0, %s35
      %s36 = sphi 0, %s33
      %s37 = sphi 0, %s36
      %s53 = sphi 0, %s37
      %s59 = sphi 0, %s61
      %s62 = sphi 0, %s59
      %s63 = sphi 0, %s62
      %s79 = sphi 0, %s63
      %s83 = sphi 0, %s83
      %s85 = sphi 0, %s83
      %s86 = sphi 0, %s85
      %s100 = sphi 0, %s86
      %s104 = sphi 0, %s104
      %s106 = sphi 0, %s104
      %s107 = sphi 0, %s106
      %s121 = sphi 0, %s107
      %s125 = sphi 0, %s125
      %s127 = sphi 0, %s125
      %s128 = sphi 0, %s127
      %s142 = sphi 0, %s128
      %s146 = sphi 0, %s146
      %s148 = sphi 0, %s146
      %s149 = sphi 0, %s148
      %s163 = sphi 0, %s149
      %s169 = sphi 0, %s171
      %s172 = sphi 0, %s169
      %s173 = sphi 0, %s172
      %s189 = sphi 0, %s173
    $region4: #{_lambda_.29} parent=1 // loop_header_branch
      %26 = sbr.rel (%p24) target = $region8
    $region5: #{_lambda_.29} parent=1 // loop_body
      %s28 = ssub.s32 %s23, 1
      %s29 = ssub.s32 %s23, 2
      %s30 = sadd.s32 %s23, 1
      %s31 = ssub.s32 %s23, %s30
      %p32 = scmp.eq.s32.totalorder %s31, 0
      %s34 = sadd.s32 %s33, 1
      %s35 = scalar_select %p32, %s33, %s34
      %p38 = pneg %p32
      %p39 = scmp.eq.s32.totalorder %s23, 1
      %p40 = por %p38, %p39
      %p41 = scmp.ne.s32.totalorder %s33, %s36
      %p42 = scmp.eq.s32.totalorder %s23, 0
      %p43 = por %p41, %p42
      %p44 = scmp.ne.s32.totalorder %s33, %s36
      %p45 = scmp.eq.s32.totalorder %s28, 1
      %p46 = por %p44, %p45
      %p47 = scmp.ne.s32.totalorder %s36, %s37
      %p48 = scmp.eq.s32.totalorder %s28, 0
      %p49 = por %p47, %p48
      %p50 = scmp.ne.s32.totalorder %s36, %s37
      %p51 = scmp.eq.s32.totalorder %s29, 1
      %p52 = por %p50, %p51
      %p54 = scmp.ne.s32.totalorder %s37, %s53
      %p55 = scmp.eq.s32.totalorder %s29, 0
      %p56 = por %p54, %p55
      %s57 = ssub.s32 %s23, %s30
      %p58 = scmp.eq.s32.totalorder %s57, 0
      %s60 = sadd.s32 %s59, 1
      %s61 = scalar_select %p58, %s59, %s60
      %p64 = pneg %p58
      %p65 = scmp.eq.s32.totalorder %s23, 1
      %p66 = por %p64, %p65
      %p67 = scmp.ne.s32.totalorder %s59, %s62
      %p68 = scmp.eq.s32.totalorder %s23, 0
      %p69 = por %p67, %p68
      %p70 = scmp.ne.s32.totalorder %s59, %s62
      %p71 = scmp.eq.s32.totalorder %s28, 1
      %p72 = por %p70, %p71
      %p73 = scmp.ne.s32.totalorder %s62, %s63
      %p74 = scmp.eq.s32.totalorder %s28, 0
      %p75 = por %p73, %p74
      %p76 = scmp.ne.s32.totalorder %s62, %s63
      %p77 = scmp.eq.s32.totalorder %s29, 1
      %p78 = por %p76, %p77
      %p80 = scmp.ne.s32.totalorder %s63, %s79
      %p81 = scmp.eq.s32.totalorder %s29, 0
      %p82 = por %p80, %p81
      %s84 = sadd.s32 %s83, 1
      %p87 = scmp.eq.s32.totalorder %s23, 1
      %p88 = scmp.ne.s32.totalorder %s83, %s85
      %p89 = scmp.eq.s32.totalorder %s23, 0
      %p90 = por %p88, %p89
      %p91 = scmp.ne.s32.totalorder %s83, %s85
      %p92 = scmp.eq.s32.totalorder %s28, 1
      %p93 = por %p91, %p92
      %p94 = scmp.ne.s32.totalorder %s85, %s86
      %p95 = scmp.eq.s32.totalorder %s28, 0
      %p96 = por %p94, %p95
      %p97 = scmp.ne.s32.totalorder %s85, %s86
      %p98 = scmp.eq.s32.totalorder %s29, 1
      %p99 = por %p97, %p98
      %p101 = scmp.ne.s32.totalorder %s86, %s100
      %p102 = scmp.eq.s32.totalorder %s29, 0
      %p103 = por %p101, %p102
      %s105 = sadd.s32 %s104, 1
      %p108 = scmp.eq.s32.totalorder %s23, 1
      %p109 = scmp.ne.s32.totalorder %s104, %s106
      %p110 = scmp.eq.s32.totalorder %s23, 0
      %p111 = por %p109, %p110
      %p112 = scmp.ne.s32.totalorder %s104, %s106
      %p113 = scmp.eq.s32.totalorder %s28, 1
      %p114 = por %p112, %p113
      %p115 = scmp.ne.s32.totalorder %s106, %s107
      %p116 = scmp.eq.s32.totalorder %s28, 0
      %p117 = por %p115, %p116
      %p118 = scmp.ne.s32.totalorder %s106, %s107
      %p119 = scmp.eq.s32.totalorder %s29, 1
      %p120 = por %p118, %p119
      %p122 = scmp.ne.s32.totalorder %s107, %s121
      %p123 = scmp.eq.s32.totalorder %s29, 0
      %p124 = por %p122, %p123
      %s126 = sadd.s32 %s125, 1
      %p129 = scmp.eq.s32.totalorder %s23, 1
      %p130 = scmp.ne.s32.totalorder %s125, %s127
      %p131 = scmp.eq.s32.totalorder %s23, 0
      %p132 = por %p130, %p131
      %p133 = scmp.ne.s32.totalorder %s125, %s127
      %p134 = scmp.eq.s32.totalorder %s28, 1
      %p135 = por %p133, %p134
      %p136 = scmp.ne.s32.totalorder %s127, %s128
      %p137 = scmp.eq.s32.totalorder %s28, 0
      %p138 = por %p136, %p137
      %p139 = scmp.ne.s32.totalorder %s127, %s128
      %p140 = scmp.eq.s32.totalorder %s29, 1
      %p141 = por %p139, %p140
      %p143 = scmp.ne.s32.totalorder %s128, %s142
      %p144 = scmp.eq.s32.totalorder %s29, 0
      %p145 = por %p143, %p144
      %s147 = sadd.s32 %s146, 1
      %p150 = scmp.eq.s32.totalorder %s23, 1
      %p151 = scmp.ne.s32.totalorder %s146, %s148
      %p152 = scmp.eq.s32.totalorder %s23, 0
      %p153 = por %p151, %p152
      %p154 = scmp.ne.s32.totalorder %s146, %s148
      %p155 = scmp.eq.s32.totalorder %s28, 1
      %p156 = por %p154, %p155
      %p157 = scmp.ne.s32.totalorder %s148, %s149
      %p158 = scmp.eq.s32.totalorder %s28, 0
      %p159 = por %p157, %p158
      %p160 = scmp.ne.s32.totalorder %s148, %s149
      %p161 = scmp.eq.s32.totalorder %s29, 1
      %p162 = por %p160, %p161
      %p164 = scmp.ne.s32.totalorder %s149, %s163
      %p165 = scmp.eq.s32.totalorder %s29, 0
      %p166 = por %p164, %p165
      %s167 = ssub.s32 %s23, %s30
      %p168 = scmp.eq.s32.totalorder %s167, 0
      %s170 = sadd.s32 %s169, 1
      %s171 = scalar_select %p168, %s169, %s170
      %p174 = pneg %p168
      %p175 = scmp.eq.s32.totalorder %s23, 1
      %p176 = por %p174, %p175
      %p177 = scmp.ne.s32.totalorder %s169, %s172
      %p178 = scmp.eq.s32.totalorder %s23, 0
      %p179 = por %p177, %p178
      %p180 = scmp.ne.s32.totalorder %s169, %s172
      %p181 = scmp.eq.s32.totalorder %s28, 1
      %p182 = por %p180, %p181
      %p183 = scmp.ne.s32.totalorder %s172, %s173
      %p184 = scmp.eq.s32.totalorder %s28, 0
      %p185 = por %p183, %p184
      %p186 = scmp.ne.s32.totalorder %s172, %s173
      %p187 = scmp.eq.s32.totalorder %s29, 1
      %p188 = por %p186, %p187
      %p190 = scmp.ne.s32.totalorder %s173, %s189
      %p191 = scmp.eq.s32.totalorder %s29, 0
      %p192 = por %p190, %p191
      %p193 = scmp.le.s32.totalorder 1, %s23
      %p194 = scmp.lt.s32.totalorder %s23, 3
      %p195 = pnand %p193, %p194
      %p196 = pneg %p195
      // Predicated region
      $region9: #{_lambda_.29} parent=5 // pred_check
        _
      $region10: #{_lambda_.29} parent=5 // pred_check_branch
        %198 = sbr.rel (%p195) target = $region12
      $region11: #{_lambda_.29} parent=5 // pred_region
        %s199 = ssub.s32 %s23, 1
        // Predicated region
        $region13: #{_lambda_.29} parent=11 // pred_check
          %p200 = pneg %p96
        $region14: #{_lambda_.29} parent=11 // pred_check_branch
          %202 = sbr.rel (%p200) target = $region16
        $region15: #{_lambda_.29} parent=11 // pred_region
          %s204 = ssub.s32 32, 32
          %205 = vsyncadd [#allocation6], %s204
          %s207 = sshll.u32 [#allocation7], 4
          %s208 = int_to_ptr.vmem [resolvable:$true] %s207
          %210 = dma.hbm_to_vmem [thread:$0]  %s2, 32, %s208, [#allocation6]
        $region16: #{_lambda_.29} parent=11 // pred_fallthru
          _
        // Predicated region
        $region17: #{_lambda_.29} parent=11 // pred_check
          %p211 = pneg %p117
        $region18: #{_lambda_.29} parent=11 // pred_check_branch
          %213 = sbr.rel (%p211) target = $region20
        $region19: #{_lambda_.29} parent=11 // pred_region
          %s215 = ssub.s32 32, 32
          %216 = vsyncadd [#allocation9], %s215
          %s218 = sshll.u32 [#allocation8], 4
          %s219 = int_to_ptr.vmem [resolvable:$true] %s218
          %221 = dma.hbm_to_vmem [thread:$0]  %s3, 32, %s219, [#allocation9]
        $region20: #{_lambda_.29} parent=11 // pred_fallthru
          _
        // Predicated region
        $region21: #{_lambda_.29} parent=11 // pred_check
          %p222 = pneg %p138
        $region22: #{_lambda_.29} parent=11 // pred_check_branch
          %224 = sbr.rel (%p222) target = $region24
        $region23: #{_lambda_.29} parent=11 // pred_region
          %s226 = ssub.s32 32, 32
          %227 = vsyncadd [#allocation9], %s226
          %s229 = sshll.u32 [#allocation10], 4
          %s230 = int_to_ptr.vmem [resolvable:$true] %s229
          %232 = dma.hbm_to_vmem [thread:$0]  %s4, 32, %s230, [#allocation9]
        $region24: #{_lambda_.29} parent=11 // pred_fallthru
          _
        // Predicated region
        $region25: #{_lambda_.29} parent=11 // pred_check
          %p233 = pneg %p159
        $region26: #{_lambda_.29} parent=11 // pred_check_branch
          %235 = sbr.rel (%p233) target = $region28
        $region27: #{_lambda_.29} parent=11 // pred_region
          %s237 = ssub.s32 32, 32
          %238 = vsyncadd [#allocation12], %s237
          %s240 = sshll.u32 [#allocation11], 4
          %s241 = int_to_ptr.vmem [resolvable:$true] %s240
          %243 = dma.hbm_to_vmem [thread:$0]  %s5, 32, %s241, [#allocation12]
        $region28: #{_lambda_.29} parent=11 // pred_fallthru
          _
      $region12: #{_lambda_.29} parent=5 // pred_fallthru
        _
      %p244 = scmp.lt.s32.totalorder %s23, 2
      // Predicated region
      $region29: #{_lambda_.29} parent=5 // pred_check
        %p245 = pneg %p244
      $region30: #{_lambda_.29} parent=5 // pred_check_branch
        %247 = sbr.rel (%p245) target = $region32
      $region31: #{_lambda_.29} parent=5 // pred_region
        // Predicated region
        $region33: #{_lambda_.29} parent=31 // pred_check
          %p248 = pneg %p43
        $region34: #{_lambda_.29} parent=31 // pred_check_branch
          %250 = sbr.rel (%p248) target = $region36
        $region35: #{_lambda_.29} parent=31 // pred_region
          %s251 = sand.u32 %s33, 1
          %s252 = scalar_lea.sflag [#allocation3], %s251
          %s253 = sand.u32 %s33, 1
          %s254 = smul.addr %s253, 16
          %s255 = scalar_lea.vmem [#allocation2], %s254
          %s257 = ssub.s32 256, 256
          %258 = vsyncadd %s252, %s257
          %s259 = smul.addr %s23, 2
          %s260 = smul.addr %s259, 128
          %s261 = scalar_lea.hbm %s0, %s260
          %s262 = sshll.u32 %s255, 4
          %s263 = int_to_ptr.vmem [resolvable:$true] %s262
          %268 = dma.hbm_to_vmem [thread:$0]  %s261, 256, %s263, %s252, 128, 128, 8
        $region36: #{_lambda_.29} parent=31 // pred_fallthru
          _
        // Predicated region
        $region37: #{_lambda_.29} parent=31 // pred_check
          %p269 = pneg %p69
        $region38: #{_lambda_.29} parent=31 // pred_check_branch
          %271 = sbr.rel (%p269) target = $region40
        $region39: #{_lambda_.29} parent=31 // pred_region
          %s272 = sand.u32 %s23, 1
          %s273 = scalar_lea.sflag [#allocation6], %s272
          %s274 = sand.u32 %s59, 1
          %s275 = smul.addr %s274, 16
          %s276 = scalar_lea.vmem [#allocation5], %s275
          %s278 = ssub.s32 256, 256
          %279 = vsyncadd %s273, %s278
          %s280 = smul.addr %s23, 2
          %s281 = smul.addr %s280, 128
          %s282 = scalar_lea.hbm %s1, %s281
          %s283 = sshll.u32 %s276, 4
          %s284 = int_to_ptr.vmem [resolvable:$true] %s283
          %289 = dma.hbm_to_vmem [thread:$0]  %s282, 256, %s284, %s273, 128, 128, 8
        $region40: #{_lambda_.29} parent=31 // pred_fallthru
          _
      $region32: #{_lambda_.29} parent=5 // pred_fallthru
        _
      %p290 = scmp.le.s32.totalorder 1, %s23
      %p291 = scmp.lt.s32.totalorder %s23, 3
      %p292 = pnand %p290, %p291
      %p293 = pneg %p292
      // Predicated region
      $region41: #{_lambda_.29} parent=5 // pred_check
        _
      $region42: #{_lambda_.29} parent=5 // pred_check_branch
        %295 = sbr.rel (%p292) target = $region44
      $region43: #{_lambda_.29} parent=5 // pred_region
        %s296 = ssub.s32 %s23, 1
        %s297 = sand.u32 %s36, 1
        %s298 = scalar_lea.sflag [#allocation3], %s297
        %s299 = sand.u32 %s36, 1
        %s300 = smul.addr %s299, 16
        %s301 = scalar_lea.vmem [#allocation2], %s300
        // Predicated region
        $region45: #{_lambda_.29} parent=43 // pred_check
          %p302 = pneg %p49
        $region46: #{_lambda_.29} parent=43 // pred_check_branch
          %304 = sbr.rel (%p302) target = $region48
        $region47: #{_lambda_.29} parent=43 // pred_region
          %305 = dma.done %s298, 256
        $region48: #{_lambda_.29} parent=43 // pred_fallthru
          _
        %s306 = sand.u32 %s28, 1
        %s307 = scalar_lea.sflag [#allocation6], %s306
        %s308 = sand.u32 %s62, 1
        %s309 = smul.addr %s308, 16
        %s310 = scalar_lea.vmem [#allocation5], %s309
        // Predicated region
        $region49: #{_lambda_.29} parent=43 // pred_check
          %p311 = pneg %p75
        $region50: #{_lambda_.29} parent=43 // pred_check_branch
          %313 = sbr.rel (%p311) target = $region52
        $region51: #{_lambda_.29} parent=43 // pred_region
          %314 = dma.done %s307, 256
        $region52: #{_lambda_.29} parent=43 // pred_fallthru
          _
        // Predicated region
        $region53: #{_lambda_.29} parent=43 // pred_check
          %p315 = pneg %p96
        $region54: #{_lambda_.29} parent=43 // pred_check_branch
          %317 = sbr.rel (%p315) target = $region56
        $region55: #{_lambda_.29} parent=43 // pred_region
          %318 = dma.done [#allocation6], 32
        $region56: #{_lambda_.29} parent=43 // pred_fallthru
          _
        // Predicated region
        $region57: #{_lambda_.29} parent=43 // pred_check
          %p319 = pneg %p117
        $region58: #{_lambda_.29} parent=43 // pred_check_branch
          %321 = sbr.rel (%p319) target = $region60
        $region59: #{_lambda_.29} parent=43 // pred_region
          %322 = dma.done [#allocation9], 32
        $region60: #{_lambda_.29} parent=43 // pred_fallthru
          _
        // Predicated region
        $region61: #{_lambda_.29} parent=43 // pred_check
          %p323 = pneg %p138
        $region62: #{_lambda_.29} parent=43 // pred_check_branch
          %325 = sbr.rel (%p323) target = $region64
        $region63: #{_lambda_.29} parent=43 // pred_region
          %326 = dma.done [#allocation9], 32
        $region64: #{_lambda_.29} parent=43 // pred_fallthru
          _
        // Predicated region
        $region65: #{_lambda_.29} parent=43 // pred_check
          %p327 = pneg %p159
        $region66: #{_lambda_.29} parent=43 // pred_check_branch
          %329 = sbr.rel (%p327) target = $region68
        $region67: #{_lambda_.29} parent=43 // pred_region
          %330 = dma.done [#allocation12], 32
        $region68: #{_lambda_.29} parent=43 // pred_fallthru
          _
        %s331 = sand.u32 %s36, 1
        %s332 = scalar_lea.sflag [#allocation3], %s331
        %s333 = sand.u32 %s36, 1
        %s334 = smul.addr %s333, 16
        %s335 = scalar_lea.vmem [#allocation2], %s334
        %p336 = pneg %p49
        %p337 = pneg %p46
        %s338 = sand.u32 %s28, 1
        %s339 = scalar_lea.sflag [#allocation6], %s338
        %s340 = sand.u32 %s62, 1
        %s341 = smul.addr %s340, 16
        %s342 = scalar_lea.vmem [#allocation5], %s341
        %p343 = pneg %p75
        %p344 = pneg %p72
        %p345 = pneg %p96
        %p346 = pneg %p93
        %p347 = pneg %p117
        %p348 = pneg %p114
        %p349 = pneg %p138
        %p350 = pneg %p135
        %p351 = pneg %p159
        %p352 = pneg %p156
        %p353 = pneg %p185
        %p354 = pneg %p182
        %s355 = sand.u32 %s172, 1
        %s356 = scalar_lea.sflag [#allocation4], %s355
        %s357 = sand.u32 %s172, 1
        %s358 = smul.addr %s357, 16
        %s359 = scalar_lea.vmem [#allocation13], %s358
        %v361 = vld [vmem:[%s310] sm:$0xff]
        %v362 = vld [vmem:[%s310 + $0x8] sm:$0xff]
        %v363 = vld [vmem:[%s301] sm:$0xff]
        %v364 = vld [vmem:[%s301 + $0x8] sm:$0xff]
        %v366 = vrot.slane %v364, 7
        %vm369 = vcmask 1040384
        %v370 = vrot.slane %v363, 7
        %v371 = vsel %vm369, %v370, %v366
        %v374 = vsel %vm369, %v366, %v370
        %vm375 = vcmask 1046528
        %v376 = vrot.slane %v363, 1
        %v377 = vrot.slane %v364, 1
        %v378 = vsel %vm375, %v376, %v377
        %v382 = vsel %vm375, %v377, %v376
        %v383 = vpack.c.bf16 %v371, %v374
        %v384 = vld [vmem:[#allocation7] sm:$0x3]
        %v385 = vpack.c.bf16 %v364, %v363
        %v386 = vld [vmem:[#allocation8] sm:$0x3]
        %vm387 = vcmask 31744
        %v389 = vsel %vm387, %v385, 0
        %vm391 = vcmask 1041408
        %v393 = vsel %vm391, %v386, 0
        %395 = vmatprep.subr.bf16.mxu0 0
        %396 = vmatpush1.bf16.msra.mxu0 %v393
        %397 = vmatprep.subr.bf16.mxu0 0
        %398 = vmatpush1.bf16.msra.mxu0 0
        %399 = vmatprep.subr.bf16.mxu0 0
        %400 = vmatpush1.bf16.msra.mxu0 0
        %401 = vmatprep.subr.bf16.mxu0 0
        %402 = vmatpush1.bf16.msra.mxu0 0
        %403 = vmatprep.subr.bf16.mxu0 0
        %404 = vmatpush1.bf16.msra.mxu0 0
        %405 = vmatprep.subr.bf16.mxu0 0
        %406 = vmatpush1.bf16.msra.mxu0 0
        %407 = vmatprep.subr.bf16.mxu0 0
        %408 = vmatpush1.bf16.msra.mxu0 0
        %409 = vmatprep.subr.bf16.mxu0 0
        %410 = vmatpush1.bf16.msra.mxu0 0
        %411 = vmatprep.subr.bf16.mxu0 0
        %412 = vmatpush1.bf16.msra.mxu0 0
        %413 = vmatprep.subr.bf16.mxu0 0
        %414 = vmatpush1.bf16.msra.mxu0 0
        %415 = vmatprep.subr.bf16.mxu0 0
        %416 = vmatpush1.bf16.msra.mxu0 0
        %417 = vmatprep.subr.bf16.mxu0 0
        %418 = vmatpush1.bf16.msra.mxu0 0
        %419 = vmatprep.subr.bf16.mxu0 0
        %420 = vmatpush1.bf16.msra.mxu0 0
        %421 = vmatprep.subr.bf16.mxu0 0
        %422 = vmatpush1.bf16.msra.mxu0 0
        %423 = vmatprep.subr.bf16.mxu0 0
        %424 = vmatpush1.bf16.msra.mxu0 0
        %425 = vmatprep.subr.bf16.mxu0 0
        %426 = vmatpush1.bf16.msra.mxu0 0
        %427 = vmatprep.mubr.bf16.mxu0 0
        %428 = vmatmul.mubr.bf16.gmra.mrb[0].mxu0 %v389
        %v429 = vpop.f32.mrb[0].mxu0
        %v430 = vadd.f32 0.0, %v429
        %v431 = vpop.f32.mrb[0].mxu0
        %v432 = vpop.f32.mrb[0].mxu0
        %v433 = vadd.f32 0.0, %v432
        %v434 = vpop.f32.mrb[0].mxu0
        %435 = vdwg.mxu0
        %v437 = vsel %vm387, %v383, 0
        %v440 = vsel %vm391, %v384, 0
        %442 = vmatprep.subr.bf16.mxu0 0
        %443 = vmatpush1.bf16.msra.mxu0 %v440
        %444 = vmatprep.subr.bf16.mxu0 0
        %445 = vmatpush1.bf16.msra.mxu0 0
        %446 = vmatprep.subr.bf16.mxu0 0
        %447 = vmatpush1.bf16.msra.mxu0 0
        %448 = vmatprep.subr.bf16.mxu0 0
        %449 = vmatpush1.bf16.msra.mxu0 0
        %450 = vmatprep.subr.bf16.mxu0 0
        %451 = vmatpush1.bf16.msra.mxu0 0
        %452 = vmatprep.subr.bf16.mxu0 0
        %453 = vmatpush1.bf16.msra.mxu0 0
        %454 = vmatprep.subr.bf16.mxu0 0
        %455 = vmatpush1.bf16.msra.mxu0 0
        %456 = vmatprep.subr.bf16.mxu0 0
        %457 = vmatpush1.bf16.msra.mxu0 0
        %458 = vmatprep.subr.bf16.mxu0 0
        %459 = vmatpush1.bf16.msra.mxu0 0
        %460 = vmatprep.subr.bf16.mxu0 0
        %461 = vmatpush1.bf16.msra.mxu0 0
        %462 = vmatprep.subr.bf16.mxu0 0
        %463 = vmatpush1.bf16.msra.mxu0 0
        %464 = vmatprep.subr.bf16.mxu0 0
        %465 = vmatpush1.bf16.msra.mxu0 0
        %466 = vmatprep.subr.bf16.mxu0 0
        %467 = vmatpush1.bf16.msra.mxu0 0
        %468 = vmatprep.subr.bf16.mxu0 0
        %469 = vmatpush1.bf16.msra.mxu0 0
        %470 = vmatprep.subr.bf16.mxu0 0
        %471 = vmatpush1.bf16.msra.mxu0 0
        %472 = vmatprep.subr.bf16.mxu0 0
        %473 = vmatpush1.bf16.msra.mxu0 0
        %474 = vmatprep.mubr.bf16.mxu0 0
        %475 = vmatmul.mubr.bf16.gmra.mrb[0].mxu0 %v437
        %v476 = vpop.f32.mrb[0].mxu0
        %v477 = vadd.f32 %v430, %v476
        %v478 = vpop.f32.mrb[0].mxu0
        %v479 = vpop.f32.mrb[0].mxu0
        %v480 = vadd.f32 %v433, %v479
        %v481 = vpop.f32.mrb[0].mxu0
        %482 = vdwg.mxu0
        %v483 = vpack.c.bf16 %v382, %v378
        %v484 = vld [vmem:[#allocation10] sm:$0x3]
        %v486 = vsel %vm387, %v483, 0
        %v489 = vsel %vm391, %v484, 0
        %491 = vmatprep.subr.bf16.mxu0 0
        %492 = vmatpush1.bf16.msra.mxu0 %v489
        %493 = vmatprep.subr.bf16.mxu0 0
        %494 = vmatpush1.bf16.msra.mxu0 0
        %495 = vmatprep.subr.bf16.mxu0 0
        %496 = vmatpush1.bf16.msra.mxu0 0
        %497 = vmatprep.subr.bf16.mxu0 0
        %498 = vmatpush1.bf16.msra.mxu0 0
        %499 = vmatprep.subr.bf16.mxu0 0
        %500 = vmatpush1.bf16.msra.mxu0 0
        %501 = vmatprep.subr.bf16.mxu0 0
        %502 = vmatpush1.bf16.msra.mxu0 0
        %503 = vmatprep.subr.bf16.mxu0 0
        %504 = vmatpush1.bf16.msra.mxu0 0
        %505 = vmatprep.subr.bf16.mxu0 0
        %506 = vmatpush1.bf16.msra.mxu0 0
        %507 = vmatprep.subr.bf16.mxu0 0
        %508 = vmatpush1.bf16.msra.mxu0 0
        %509 = vmatprep.subr.bf16.mxu0 0
        %510 = vmatpush1.bf16.msra.mxu0 0
        %511 = vmatprep.subr.bf16.mxu0 0
        %512 = vmatpush1.bf16.msra.mxu0 0
        %513 = vmatprep.subr.bf16.mxu0 0
        %514 = vmatpush1.bf16.msra.mxu0 0
        %515 = vmatprep.subr.bf16.mxu0 0
        %516 = vmatpush1.bf16.msra.mxu0 0
        %517 = vmatprep.subr.bf16.mxu0 0
        %518 = vmatpush1.bf16.msra.mxu0 0
        %519 = vmatprep.subr.bf16.mxu0 0
        %520 = vmatpush1.bf16.msra.mxu0 0
        %521 = vmatprep.subr.bf16.mxu0 0
        %522 = vmatpush1.bf16.msra.mxu0 0
        %523 = vmatprep.mubr.bf16.mxu0 0
        %524 = vmatmul.mubr.bf16.gmra.mrb[0].mxu0 %v486
        %v525 = vpop.f32.mrb[0].mxu0
        %v526 = vadd.f32 0.0, %v525
        %v527 = vpop.f32.mrb[0].mxu0
        %v528 = vpop.f32.mrb[0].mxu0
        %v529 = vadd.f32 0.0, %v528
        %v530 = vpop.f32.mrb[0].mxu0
        %531 = vdwg.mxu0
        %v532 = vadd.f32 %v477, %v526
        %v533 = vadd.f32 %v480, %v529
        %v534 = vpack.c.bf16 %v362, %v361
        %v535 = vld [vmem:[#allocation11] sm:$0x3]
        %v537 = vsel %vm387, %v534, 0
        %v540 = vsel %vm391, %v535, 0
        %542 = vmatprep.subr.bf16.mxu0 0
        %543 = vmatpush1.bf16.msra.mxu0 %v540
        %544 = vmatprep.subr.bf16.mxu0 0
        %545 = vmatpush1.bf16.msra.mxu0 0
        %546 = vmatprep.subr.bf16.mxu0 0
        %547 = vmatpush1.bf16.msra.mxu0 0
        %548 = vmatprep.subr.bf16.mxu0 0
        %549 = vmatpush1.bf16.msra.mxu0 0
        %550 = vmatprep.subr.bf16.mxu0 0
        %551 = vmatpush1.bf16.msra.mxu0 0
        %552 = vmatprep.subr.bf16.mxu0 0
        %553 = vmatpush1.bf16.msra.mxu0 0
        %554 = vmatprep.subr.bf16.mxu0 0
        %555 = vmatpush1.bf16.msra.mxu0 0
        %556 = vmatprep.subr.bf16.mxu0 0
        %557 = vmatpush1.bf16.msra.mxu0 0
        %558 = vmatprep.subr.bf16.mxu0 0
        %559 = vmatpush1.bf16.msra.mxu0 0
        %560 = vmatprep.subr.bf16.mxu0 0
        %561 = vmatpush1.bf16.msra.mxu0 0
        %562 = vmatprep.subr.bf16.mxu0 0
        %563 = vmatpush1.bf16.msra.mxu0 0
        %564 = vmatprep.subr.bf16.mxu0 0
        %565 = vmatpush1.bf16.msra.mxu0 0
        %566 = vmatprep.subr.bf16.mxu0 0
        %567 = vmatpush1.bf16.msra.mxu0 0
        %568 = vmatprep.subr.bf16.mxu0 0
        %569 = vmatpush1.bf16.msra.mxu0 0
        %570 = vmatprep.subr.bf16.mxu0 0
        %571 = vmatpush1.bf16.msra.mxu0 0
        %572 = vmatprep.subr.bf16.mxu0 0
        %573 = vmatpush1.bf16.msra.mxu0 0
        %574 = vmatprep.mubr.bf16.mxu0 0
        %575 = vmatmul.mubr.bf16.gmra.mrb[0].mxu0 %v537
        %v576 = vpop.f32.mrb[0].mxu0
        %v577 = vadd.f32 0.0, %v576
        %v578 = vpop.f32.mrb[0].mxu0
        %v579 = vpop.f32.mrb[0].mxu0
        %v580 = vadd.f32 0.0, %v579
        %v581 = vpop.f32.mrb[0].mxu0
        %582 = vdwg.mxu0
        %v583 = vadd.f32 %v532, %v577
        %v584 = vadd.f32 %v533, %v580
        %585 = vst [vmem:[%s359] sm:$0xff] %v583
        %586 = vst [vmem:[%s359 + $0x8] sm:$0xff] %v584
        %s587 = sand.u32 %s172, 1
        %s588 = scalar_lea.sflag [#allocation4], %s587
        %s589 = sand.u32 %s172, 1
        %s590 = smul.addr %s589, 16
        %s591 = scalar_lea.vmem [#allocation13], %s590
        // Predicated region
        $region69: #{_lambda_.29} parent=43 // pred_check
          %p592 = pneg %p182
        $region70: #{_lambda_.29} parent=43 // pred_check_branch
          %594 = sbr.rel (%p592) target = $region72
        $region71: #{_lambda_.29} parent=43 // pred_region
          %s596 = ssub.s32 256, 256
          %597 = vsyncadd %s588, %s596
          %s598 = smul.addr %s28, 2
          %s599 = smul.addr %s598, 128
          %s600 = scalar_lea.hbm %s6, %s599
          %s601 = sshll.u32 %s591, 4
          %s602 = int_to_ptr.vmem [resolvable:$true] %s601
          %607 = dma.vmem_to_hbm [thread:$0]  %s602, 256, %s600, %s588, 128, 128, 8
        $region72: #{_lambda_.29} parent=43 // pred_fallthru
          _
      $region44: #{_lambda_.29} parent=5 // pred_fallthru
        _
      %p608 = scmp.le.s32.totalorder 2, %s23
      // Predicated region
      $region73: #{_lambda_.29} parent=5 // pred_check
        %p609 = pneg %p608
      $region74: #{_lambda_.29} parent=5 // pred_check_branch
        %611 = sbr.rel (%p609) target = $region76
      $region75: #{_lambda_.29} parent=5 // pred_region
        %s612 = ssub.s32 %s23, 2
        // Predicated region
        $region77: #{_lambda_.29} parent=75 // pred_check
          %p613 = pneg %p188
        $region78: #{_lambda_.29} parent=75 // pred_check_branch
          %615 = sbr.rel (%p613) target = $region80
        $region79: #{_lambda_.29} parent=75 // pred_region
          %s616 = sand.u32 %s173, 1
          %s617 = scalar_lea.sflag [#allocation4], %s616
          %s618 = sand.u32 %s173, 1
          %s619 = smul.addr %s618, 16
          %s620 = scalar_lea.vmem [#allocation13], %s619
          %621 = dma.done %s617, 256
        $region80: #{_lambda_.29} parent=75 // pred_fallthru
          _
      $region76: #{_lambda_.29} parent=5 // pred_fallthru
        _
    $region6: #{_lambda_.29} parent=1 // loop_footer
      %s27 = sadd.s32 1, %s23
    $region7: #{_lambda_.29} parent=1 // loop_footer_branch
      %22 = sbr.rel target = $region3
    $region8: #{_lambda_.29} parent=1 // loop_exit
      _
    %622 = vsyncpa [#allocation3], 1
    %s623 = scalar_lea.sflag [#allocation3], 1
    %624 = vsyncpa %s623, 1
    %625 = vsyncpa [#allocation6], 1
    %s626 = scalar_lea.sflag [#allocation6], 1
    %627 = vsyncpa %s626, 1
    %628 = vsyncpa [#allocation9], 1
    %629 = vsyncpa [#allocation12], 1
    %630 = vsyncpa [#allocation4], 1
    %s631 = scalar_lea.sflag [#allocation4], 1
    %632 = vsyncpa %s631, 1

// kernel: _lambda_.30
$region0: #{_lambda_.30}
  #allocation0 [shape = 'u32[]', space=smem, size = 0x4, offset = 0x4, fixed_abs, tag = 'smem constant byte address 0x4 - core index']
  #allocation1 [shape = 'u32[144,128]{1,0:T(1,128)}', space=vmem, size = 0x12000, scoped, tag = 'internal scratch']
  %s0 = inlined_call_operand.hbm [shape: f32[32,128], index: 0, kind: input, shape index: {}]
  %s1 = inlined_call_operand.hbm [shape: bf16[128,384], index: 1, kind: input, shape index: {}]
  %s2 = inlined_call_operand.hbm [shape: f32[1,384], index: 2, kind: input, shape index: {}]
  %s3 = inlined_call_operand.hbm [shape: f32[32,384], index: 3, kind: output, shape index: {}]
  %s4 = sld [smem:[#allocation0]]
  $region57: #{_lambda_.30} parent=0
    _
  %s6 = ssub.s32 1, %s4
  %s7 = scalar_select 0, %s6, %s4
  $region1: #{_lambda_.30} parent=0
    #allocation2 [shape = 'u8[16384]{0}', space=vmem, size = 0x4000, scoped, tag = 'input window, operand 0']
    #allocation3 [shape = 's32[2]{0}', space=sflag, size = 0x8, scoped, tag = 'scoped memory for _lambda_.30']
    #allocation4 [shape = 's32[2]{0}', space=sflag, size = 0x8, scoped, tag = 'scoped memory for _lambda_.30']
    #allocation5 [shape = 'u8[98304]{0}', space=vmem, size = 0x18000, scoped, tag = 'input window, operand 1, single buffered']
    #allocation6 [shape = 's32[1]{0}', space=sflag, size = 0x4, scoped, tag = 'scoped memory for _lambda_.30']
    #allocation7 [shape = 'u8[1536]{0}', space=vmem, size = 0x800, scoped, tag = 'input window, operand 2, single buffered']
    #allocation8 [shape = 'u8[49152]{0}', space=vmem, size = 0xc000, scoped, tag = 'output window, operand 0']
    %8 = vsyncpa [#allocation3], 0
    %s9 = scalar_lea.sflag [#allocation3], 1
    %10 = vsyncpa %s9, 0
    %11 = vsyncpa [#allocation6], 0
    %12 = vsyncpa [#allocation4], 0
    %s13 = scalar_lea.sflag [#allocation4], 1
    %14 = vsyncpa %s13, 0
    loop: start=0, step=1, limit=4
    $region2: #{_lambda_.30} parent=1 // loop_pre_header
      _
    $region3: #{_lambda_.30} parent=1 // loop_header
      %s16 = sphi 0, %s20
      %p17 = scmp.ge.s32.totalorder %s16, 4
      %s26 = sphi 0, %s28
      %s29 = sphi 0, %s26
      %s30 = sphi 0, %s29
      %s46 = sphi 0, %s30
      %s50 = sphi 0, %s50
      %s52 = sphi 0, %s50
      %s53 = sphi 0, %s52
      %s67 = sphi 0, %s53
      %s71 = sphi 0, %s71
      %s73 = sphi 0, %s71
      %s74 = sphi 0, %s73
      %s88 = sphi 0, %s74
      %s94 = sphi 0, %s96
      %s97 = sphi 0, %s94
      %s98 = sphi 0, %s97
      %s114 = sphi 0, %s98
    $region4: #{_lambda_.30} parent=1 // loop_header_branch
      %19 = sbr.rel (%p17) target = $region8
    $region5: #{_lambda_.30} parent=1 // loop_body
      %s21 = ssub.s32 %s16, 1
      %s22 = ssub.s32 %s16, 2
      %s23 = sadd.s32 %s16, 1
      %s24 = ssub.s32 %s16, %s23
      %p25 = scmp.eq.s32.totalorder %s24, 0
      %s27 = sadd.s32 %s26, 1
      %s28 = scalar_select %p25, %s26, %s27
      %p31 = pneg %p25
      %p32 = scmp.eq.s32.totalorder %s16, 1
      %p33 = por %p31, %p32
      %p34 = scmp.ne.s32.totalorder %s26, %s29
      %p35 = scmp.eq.s32.totalorder %s16, 0
      %p36 = por %p34, %p35
      %p37 = scmp.ne.s32.totalorder %s26, %s29
      %p38 = scmp.eq.s32.totalorder %s21, 1
      %p39 = por %p37, %p38
      %p40 = scmp.ne.s32.totalorder %s29, %s30
      %p41 = scmp.eq.s32.totalorder %s21, 0
      %p42 = por %p40, %p41
      %p43 = scmp.ne.s32.totalorder %s29, %s30
      %p44 = scmp.eq.s32.totalorder %s22, 1
      %p45 = por %p43, %p44
      %p47 = scmp.ne.s32.totalorder %s30, %s46
      %p48 = scmp.eq.s32.totalorder %s22, 0
      %p49 = por %p47, %p48
      %s51 = sadd.s32 %s50, 1
      %p54 = scmp.eq.s32.totalorder %s16, 1
      %p55 = scmp.ne.s32.totalorder %s50, %s52
      %p56 = scmp.eq.s32.totalorder %s16, 0
      %p57 = por %p55, %p56
      %p58 = scmp.ne.s32.totalorder %s50, %s52
      %p59 = scmp.eq.s32.totalorder %s21, 1
      %p60 = por %p58, %p59
      %p61 = scmp.ne.s32.totalorder %s52, %s53
      %p62 = scmp.eq.s32.totalorder %s21, 0
      %p63 = por %p61, %p62
      %p64 = scmp.ne.s32.totalorder %s52, %s53
      %p65 = scmp.eq.s32.totalorder %s22, 1
      %p66 = por %p64, %p65
      %p68 = scmp.ne.s32.totalorder %s53, %s67
      %p69 = scmp.eq.s32.totalorder %s22, 0
      %p70 = por %p68, %p69
      %s72 = sadd.s32 %s71, 1
      %p75 = scmp.eq.s32.totalorder %s16, 1
      %p76 = scmp.ne.s32.totalorder %s71, %s73
      %p77 = scmp.eq.s32.totalorder %s16, 0
      %p78 = por %p76, %p77
      %p79 = scmp.ne.s32.totalorder %s71, %s73
      %p80 = scmp.eq.s32.totalorder %s21, 1
      %p81 = por %p79, %p80
      %p82 = scmp.ne.s32.totalorder %s73, %s74
      %p83 = scmp.eq.s32.totalorder %s21, 0
      %p84 = por %p82, %p83
      %p85 = scmp.ne.s32.totalorder %s73, %s74
      %p86 = scmp.eq.s32.totalorder %s22, 1
      %p87 = por %p85, %p86
      %p89 = scmp.ne.s32.totalorder %s74, %s88
      %p90 = scmp.eq.s32.totalorder %s22, 0
      %p91 = por %p89, %p90
      %s92 = ssub.s32 %s16, %s23
      %p93 = scmp.eq.s32.totalorder %s92, 0
      %s95 = sadd.s32 %s94, 1
      %s96 = scalar_select %p93, %s94, %s95
      %p99 = pneg %p93
      %p100 = scmp.eq.s32.totalorder %s16, 1
      %p101 = por %p99, %p100
      %p102 = scmp.ne.s32.totalorder %s94, %s97
      %p103 = scmp.eq.s32.totalorder %s16, 0
      %p104 = por %p102, %p103
      %p105 = scmp.ne.s32.totalorder %s94, %s97
      %p106 = scmp.eq.s32.totalorder %s21, 1
      %p107 = por %p105, %p106
      %p108 = scmp.ne.s32.totalorder %s97, %s98
      %p109 = scmp.eq.s32.totalorder %s21, 0
      %p110 = por %p108, %p109
      %p111 = scmp.ne.s32.totalorder %s97, %s98
      %p112 = scmp.eq.s32.totalorder %s22, 1
      %p113 = por %p111, %p112
      %p115 = scmp.ne.s32.totalorder %s98, %s114
      %p116 = scmp.eq.s32.totalorder %s22, 0
      %p117 = por %p115, %p116
      %p118 = scmp.le.s32.totalorder 1, %s16
      %p119 = scmp.lt.s32.totalorder %s16, 3
      %p120 = pnand %p118, %p119
      %p121 = pneg %p120
      // Predicated region
      $region9: #{_lambda_.30} parent=5 // pred_check
        _
      $region10: #{_lambda_.30} parent=5 // pred_check_branch
        %123 = sbr.rel (%p120) target = $region12
      $region11: #{_lambda_.30} parent=5 // pred_region
        %s124 = ssub.s32 %s16, 1
        // Predicated region
        $region13: #{_lambda_.30} parent=11 // pred_check
          %p125 = pneg %p63
        $region14: #{_lambda_.30} parent=11 // pred_check_branch
          %127 = sbr.rel (%p125) target = $region16
        $region15: #{_lambda_.30} parent=11 // pred_region
          %s129 = ssub.s32 3072, 3072
          %130 = vsyncadd [#allocation6], %s129
          %s131 = sshll.u32 [#allocation5], 4
          %s132 = int_to_ptr.vmem [resolvable:$true] %s131
          %137 = dma.hbm_to_vmem [thread:$0]  %s1, 3072, %s132, [#allocation6], 192, 192, 12
        $region16: #{_lambda_.30} parent=11 // pred_fallthru
          _
        // Predicated region
        $region17: #{_lambda_.30} parent=11 // pred_check
          %p138 = pneg %p84
        $region18: #{_lambda_.30} parent=11 // pred_check_branch
          %140 = sbr.rel (%p138) target = $region20
        $region19: #{_lambda_.30} parent=11 // pred_region
          %s142 = ssub.s32 48, 48
          %143 = vsyncadd [#allocation6], %s142
          %s145 = sshll.u32 [#allocation7], 4
          %s146 = int_to_ptr.vmem [resolvable:$true] %s145
          %148 = dma.hbm_to_vmem [thread:$0]  %s2, 48, %s146, [#allocation6]
        $region20: #{_lambda_.30} parent=11 // pred_fallthru
          _
      $region12: #{_lambda_.30} parent=5 // pred_fallthru
        _
      %p149 = scmp.lt.s32.totalorder %s16, 2
      // Predicated region
      $region21: #{_lambda_.30} parent=5 // pred_check
        %p150 = pneg %p149
      $region22: #{_lambda_.30} parent=5 // pred_check_branch
        %152 = sbr.rel (%p150) target = $region24
      $region23: #{_lambda_.30} parent=5 // pred_region
        // Predicated region
        $region25: #{_lambda_.30} parent=23 // pred_check
          %p153 = pneg %p36
        $region26: #{_lambda_.30} parent=23 // pred_check_branch
          %155 = sbr.rel (%p153) target = $region28
        $region27: #{_lambda_.30} parent=23 // pred_region
          %s156 = sand.u32 %s26, 1
          %s157 = scalar_lea.sflag [#allocation3], %s156
          %s158 = sand.u32 %s26, 1
          %s159 = smul.addr %s158, 16
          %s160 = scalar_lea.vmem [#allocation2], %s159
          %s161 = smul.u32 2, %s16
          %s163 = ssub.s32 256, 256
          %164 = vsyncadd %s157, %s163
          %s165 = smul.addr %s161, 128
          %s166 = scalar_lea.hbm %s0, %s165
          %s167 = sshll.u32 %s160, 4
          %s168 = int_to_ptr.vmem [resolvable:$true] %s167
          %173 = dma.hbm_to_vmem [thread:$0]  %s166, 256, %s168, %s157, 128, 128, 8
        $region28: #{_lambda_.30} parent=23 // pred_fallthru
          _
      $region24: #{_lambda_.30} parent=5 // pred_fallthru
        _
      %p174 = scmp.le.s32.totalorder 1, %s16
      %p175 = scmp.lt.s32.totalorder %s16, 3
      %p176 = pnand %p174, %p175
      %p177 = pneg %p176
      // Predicated region
      $region29: #{_lambda_.30} parent=5 // pred_check
        _
      $region30: #{_lambda_.30} parent=5 // pred_check_branch
        %179 = sbr.rel (%p176) target = $region32
      $region31: #{_lambda_.30} parent=5 // pred_region
        %s180 = ssub.s32 %s16, 1
        %s181 = sand.u32 %s29, 1
        %s182 = scalar_lea.sflag [#allocation3], %s181
        %s183 = sand.u32 %s29, 1
        %s184 = smul.addr %s183, 16
        %s185 = scalar_lea.vmem [#allocation2], %s184
        // Predicated region
        $region33: #{_lambda_.30} parent=31 // pred_check
          %p186 = pneg %p42
        $region34: #{_lambda_.30} parent=31 // pred_check_branch
          %188 = sbr.rel (%p186) target = $region36
        $region35: #{_lambda_.30} parent=31 // pred_region
          %189 = dma.done %s182, 256
        $region36: #{_lambda_.30} parent=31 // pred_fallthru
          _
        // Predicated region
        $region37: #{_lambda_.30} parent=31 // pred_check
          %p190 = pneg %p63
        $region38: #{_lambda_.30} parent=31 // pred_check_branch
          %192 = sbr.rel (%p190) target = $region40
        $region39: #{_lambda_.30} parent=31 // pred_region
          %193 = dma.done [#allocation6], 3072
        $region40: #{_lambda_.30} parent=31 // pred_fallthru
          _
        // Predicated region
        $region41: #{_lambda_.30} parent=31 // pred_check
          %p194 = pneg %p84
        $region42: #{_lambda_.30} parent=31 // pred_check_branch
          %196 = sbr.rel (%p194) target = $region44
        $region43: #{_lambda_.30} parent=31 // pred_region
          %197 = dma.done [#allocation6], 48
        $region44: #{_lambda_.30} parent=31 // pred_fallthru
          _
        %s198 = sand.u32 %s29, 1
        %s199 = scalar_lea.sflag [#allocation3], %s198
        %s200 = sand.u32 %s29, 1
        %s201 = smul.addr %s200, 16
        %s202 = scalar_lea.vmem [#allocation2], %s201
        %p203 = pneg %p42
        %p204 = pneg %p39
        %p205 = pneg %p63
        %p206 = pneg %p60
        %p207 = pneg %p84
        %p208 = pneg %p81
        %p209 = pneg %p110
        %p210 = pneg %p107
        %s211 = sand.u32 %s97, 1
        %s212 = scalar_lea.sflag [#allocation4], %s211
        %s213 = sand.u32 %s97, 1
        %s214 = smul.addr %s213, 48
        %s215 = scalar_lea.vmem [#allocation8], %s214
        %s216 = smul.u32 2, %s21
        %s217 = smul.u32 2, %s21
        %v219 = vld [vmem:[%s185] sm:$0xff]
        %v220 = vld [vmem:[%s185 + $0x8] sm:$0xff]
        %v221 = vpack.c.bf16 %v220, %v219
        %v222 = vld [vmem:[#allocation5] sm:$0xff]
        %v223 = vld [vmem:[#allocation5 + $0x8] sm:$0xf]
        %v224 = vld [vmem:[#allocation5 + $0xc] sm:$0xff]
        %v225 = vld [vmem:[#allocation5 + $0x14] sm:$0xf]
        %v226 = vld [vmem:[#allocation5 + $0x18] sm:$0xff]
        %v227 = vld [vmem:[#allocation5 + $0x20] sm:$0xf]
        %v228 = vld [vmem:[#allocation5 + $0x24] sm:$0xff]
        %v229 = vld [vmem:[#allocation5 + $0x2c] sm:$0xf]
        %v230 = vld [vmem:[#allocation5 + $0x30] sm:$0xff]
        %v231 = vld [vmem:[#allocation5 + $0x38] sm:$0xf]
        %v232 = vld [vmem:[#allocation5 + $0x3c] sm:$0xff]
        %v233 = vld [vmem:[#allocation5 + $0x44] sm:$0xf]
        %v234 = vld [vmem:[#allocation5 + $0x48] sm:$0xff]
        %v235 = vld [vmem:[#allocation5 + $0x50] sm:$0xf]
        %v236 = vld [vmem:[#allocation5 + $0x54] sm:$0xff]
        %v237 = vld [vmem:[#allocation5 + $0x5c] sm:$0xf]
        %v238 = vld [vmem:[#allocation5 + $0x60] sm:$0xff]
        %v239 = vld [vmem:[#allocation5 + $0x68] sm:$0xf]
        %v240 = vld [vmem:[#allocation5 + $0x6c] sm:$0xff]
        %v241 = vld [vmem:[#allocation5 + $0x74] sm:$0xf]
        %v242 = vld [vmem:[#allocation5 + $0x78] sm:$0xff]
        %v243 = vld [vmem:[#allocation5 + $0x80] sm:$0xf]
        %v244 = vld [vmem:[#allocation5 + $0x84] sm:$0xff]
        %v245 = vld [vmem:[#allocation5 + $0x8c] sm:$0xf]
        %v246 = vld [vmem:[#allocation5 + $0x90] sm:$0xff]
        %v247 = vld [vmem:[#allocation5 + $0x98] sm:$0xf]
        %v248 = vld [vmem:[#allocation5 + $0x9c] sm:$0xff]
        %v249 = vld [vmem:[#allocation5 + $0xa4] sm:$0xf]
        %v250 = vld [vmem:[#allocation5 + $0xa8] sm:$0xff]
        %v251 = vld [vmem:[#allocation5 + $0xb0] sm:$0xf]
        %v252 = vld [vmem:[#allocation5 + $0xb4] sm:$0xff]
        %v253 = vld [vmem:[#allocation5 + $0xbc] sm:$0xf]
        %v254 = vld [vmem:[#allocation7] sm:$0x7]
        %v256 = vlaneseq
        %v257 = vshrl.u32 %v256, 7
        %v258 = vsub.s32 0, %v257
        %v259 = vrot.slane %v254, %v258
        %v260 = vlaneseq
        %v261 = vshrl.u32 %v260, 7
        %v262 = vsub.s32 1, %v261
        %v263 = vrot.slane %v254, %v262
        %v264 = vlaneseq
        %v265 = vshrl.u32 %v264, 7
        %v266 = vsub.s32 2, %v265
        %v267 = vrot.slane %v254, %v266
        %v303 = vunpack.c.l.b16 %v222
        %v304 = vunpack.c.h.b16 %v222
        %v305 = vunpack.c.l.b16 %v223
        %v306 = vunpack.c.l.b16 %v224
        %v307 = vunpack.c.h.b16 %v224
        %v308 = vunpack.c.l.b16 %v225
        %v309 = vunpack.c.l.b16 %v226
        %v310 = vunpack.c.h.b16 %v226
        %v311 = vunpack.c.l.b16 %v227
        %v312 = vunpack.c.l.b16 %v228
        %v313 = vunpack.c.h.b16 %v228
        %v314 = vunpack.c.l.b16 %v229
        %v315 = vunpack.c.l.b16 %v230
        %v316 = vunpack.c.h.b16 %v230
        %v317 = vunpack.c.l.b16 %v231
        %v318 = vunpack.c.l.b16 %v232
        %v319 = vunpack.c.h.b16 %v232
        %v320 = vunpack.c.l.b16 %v233
        %v321 = vunpack.c.l.b16 %v234
        %v322 = vunpack.c.h.b16 %v234
        %v323 = vunpack.c.l.b16 %v235
        %v324 = vunpack.c.l.b16 %v236
        %v325 = vunpack.c.h.b16 %v236
        %v326 = vunpack.c.l.b16 %v237
        %v327 = vunpack.c.l.b16 %v238
        %v328 = vunpack.c.h.b16 %v238
        %v329 = vunpack.c.l.b16 %v239
        %v330 = vunpack.c.l.b16 %v240
        %v331 = vunpack.c.h.b16 %v240
        %v332 = vunpack.c.l.b16 %v241
        %v333 = vunpack.c.l.b16 %v242
        %v334 = vunpack.c.h.b16 %v242
        %v335 = vunpack.c.l.b16 %v243
        %v336 = vunpack.c.l.b16 %v244
        %v337 = vunpack.c.h.b16 %v244
        %v338 = vunpack.c.l.b16 %v245
        %v339 = vunpack.c.l.b16 %v246
        %v340 = vunpack.c.h.b16 %v246
        %v341 = vunpack.c.l.b16 %v247
        %v342 = vunpack.c.l.b16 %v248
        %v343 = vunpack.c.h.b16 %v248
        %v344 = vunpack.c.l.b16 %v249
        %v345 = vunpack.c.l.b16 %v250
        %v346 = vunpack.c.h.b16 %v250
        %v347 = vunpack.c.l.b16 %v251
        %v348 = vunpack.c.l.b16 %v252
        %v349 = vunpack.c.h.b16 %v252
        %v350 = vunpack.c.l.b16 %v253
        %v351 = vpack.c.b16 %v306, %v303
        %v352 = vpack.c.b16 %v307, %v304
        %v353 = vpack.c.b16 %v308, %v305
        %v354 = vpack.c.b16 %v312, %v309
        %v355 = vpack.c.b16 %v313, %v310
        %v356 = vpack.c.b16 %v314, %v311
        %v357 = vpack.c.b16 %v318, %v315
        %v358 = vpack.c.b16 %v319, %v316
        %v359 = vpack.c.b16 %v320, %v317
        %v360 = vpack.c.b16 %v324, %v321
        %v361 = vpack.c.b16 %v325, %v322
        %v362 = vpack.c.b16 %v326, %v323
        %v363 = vpack.c.b16 %v330, %v327
        %v364 = vpack.c.b16 %v331, %v328
        %v365 = vpack.c.b16 %v332, %v329
        %v366 = vpack.c.b16 %v336, %v333
        %v367 = vpack.c.b16 %v337, %v334
        %v368 = vpack.c.b16 %v338, %v335
        %v369 = vpack.c.b16 %v342, %v339
        %v370 = vpack.c.b16 %v343, %v340
        %v371 = vpack.c.b16 %v344, %v341
        %v372 = vpack.c.b16 %v348, %v345
        %v373 = vpack.c.b16 %v349, %v346
        %v374 = vpack.c.b16 %v350, %v347
        %399 = vmatprep.subr.bf16.mxu0 %v352
        %400 = vmatpush1.bf16.msra.mxu0 %v351
        %401 = vmatprep.subr.bf16.mxu0 %v355
        %402 = vmatpush1.bf16.msra.mxu0 %v354
        %403 = vmatprep.subr.bf16.mxu0 %v358
        %404 = vmatpush1.bf16.msra.mxu0 %v357
        %405 = vmatprep.subr.bf16.mxu0 %v361
        %406 = vmatpush1.bf16.msra.mxu0 %v360
        %407 = vmatprep.subr.bf16.mxu0 %v364
        %408 = vmatpush1.bf16.msra.mxu0 %v363
        %409 = vmatprep.subr.bf16.mxu0 %v367
        %410 = vmatpush1.bf16.msra.mxu0 %v366
        %411 = vmatprep.subr.bf16.mxu0 %v370
        %412 = vmatpush1.bf16.msra.mxu0 %v369
        %413 = vmatprep.subr.bf16.mxu0 %v373
        %414 = vmatpush1.bf16.msra.mxu0 %v372
        %415 = vmatprep.subr.bf16.mxu0 0
        %416 = vmatpush1.bf16.msra.mxu0 0
        %417 = vmatprep.subr.bf16.mxu0 0
        %418 = vmatpush1.bf16.msra.mxu0 0
        %419 = vmatprep.subr.bf16.mxu0 0
        %420 = vmatpush1.bf16.msra.mxu0 0
        %421 = vmatprep.subr.bf16.mxu0 0
        %422 = vmatpush1.bf16.msra.mxu0 0
        %423 = vmatprep.subr.bf16.mxu0 0
        %424 = vmatpush1.bf16.msra.mxu0 0
        %425 = vmatprep.subr.bf16.mxu0 0
        %426 = vmatpush1.bf16.msra.mxu0 0
        %427 = vmatprep.subr.bf16.mxu0 0
        %428 = vmatpush1.bf16.msra.mxu0 0
        %429 = vmatprep.subr.bf16.mxu0 0
        %430 = vmatpush1.bf16.msra.mxu0 0
        %431 = vmatprep.mubr.bf16.mxu0 0
        %432 = vmatmul.mubr.bf16.gmra.mrb[0].mxu0 %v221
        %v433 = vpop.f32.mrb[0].mxu0
        %v434 = vadd.f32 %v259, %v433
        %v435 = vpop.f32.mrb[0].mxu0
        %v436 = vadd.f32 %v263, %v435
        %v437 = vpop.f32.mrb[0].mxu0
        %v438 = vadd.f32 %v259, %v437
        %v439 = vpop.f32.mrb[0].mxu0
        %v440 = vadd.f32 %v263, %v439
        %441 = vdwg.mxu0
        %442 = vmatprep.subr.bf16.mxu0 0
        %443 = vmatpush1.bf16.msra.mxu0 %v353
        %444 = vmatprep.subr.bf16.mxu0 0
        %445 = vmatpush1.bf16.msra.mxu0 %v356
        %446 = vmatprep.subr.bf16.mxu0 0
        %447 = vmatpush1.bf16.msra.mxu0 %v359
        %448 = vmatprep.subr.bf16.mxu0 0
        %449 = vmatpush1.bf16.msra.mxu0 %v362
        %450 = vmatprep.subr.bf16.mxu0 0
        %451 = vmatpush1.bf16.msra.mxu0 %v365
        %452 = vmatprep.subr.bf16.mxu0 0
        %453 = vmatpush1.bf16.msra.mxu0 %v368
        %454 = vmatprep.subr.bf16.mxu0 0
        %455 = vmatpush1.bf16.msra.mxu0 %v371
        %456 = vmatprep.subr.bf16.mxu0 0
        %457 = vmatpush1.bf16.msra.mxu0 %v374
        %458 = vmatprep.subr.bf16.mxu0 0
        %459 = vmatpush1.bf16.msra.mxu0 0
        %460 = vmatprep.subr.bf16.mxu0 0
        %461 = vmatpush1.bf16.msra.mxu0 0
        %462 = vmatprep.subr.bf16.mxu0 0
        %463 = vmatpush1.bf16.msra.mxu0 0
        %464 = vmatprep.subr.bf16.mxu0 0
        %465 = vmatpush1.bf16.msra.mxu0 0
        %466 = vmatprep.subr.bf16.mxu0 0
        %467 = vmatpush1.bf16.msra.mxu0 0
        %468 = vmatprep.subr.bf16.mxu0 0
        %469 = vmatpush1.bf16.msra.mxu0 0
        %470 = vmatprep.subr.bf16.mxu0 0
        %471 = vmatpush1.bf16.msra.mxu0 0
        %472 = vmatprep.subr.bf16.mxu0 0
        %473 = vmatpush1.bf16.msra.mxu0 0
        %474 = vmatprep.mubr.bf16.mxu0 0
        %475 = vmatmul.mubr.bf16.gmra.mrb[0].mxu0 %v221
        %v476 = vpop.f32.mrb[0].mxu0
        %v477 = vadd.f32 %v267, %v476
        %v478 = vpop.f32.mrb[0].mxu0
        %v479 = vpop.f32.mrb[0].mxu0
        %v480 = vadd.f32 %v267, %v479
        %v481 = vpop.f32.mrb[0].mxu0
        %482 = vdwg.mxu0
        %483 = vst [vmem:[%s215] sm:$0xff] %v434
        %484 = vst [vmem:[%s215 + $0x8] sm:$0xff] %v436
        %485 = vst [vmem:[%s215 + $0x10] sm:$0xff] %v477
        %486 = vst [vmem:[%s215 + $0x18] sm:$0xff] %v438
        %487 = vst [vmem:[%s215 + $0x20] sm:$0xff] %v440
        %488 = vst [vmem:[%s215 + $0x28] sm:$0xff] %v480
        %s489 = sand.u32 %s97, 1
        %s490 = scalar_lea.sflag [#allocation4], %s489
        %s491 = sand.u32 %s97, 1
        %s492 = smul.addr %s491, 48
        %s493 = scalar_lea.vmem [#allocation8], %s492
        // Predicated region
        $region45: #{_lambda_.30} parent=31 // pred_check
          %p494 = pneg %p107
        $region46: #{_lambda_.30} parent=31 // pred_check_branch
          %496 = sbr.rel (%p494) target = $region48
        $region47: #{_lambda_.30} parent=31 // pred_region
          %s497 = smul.u32 2, %s21
          %s499 = ssub.s32 768, 768
          %500 = vsyncadd %s490, %s499
          %s501 = smul.addr %s497, 3
          %s502 = smul.addr %s501, 128
          %s503 = scalar_lea.hbm %s3, %s502
          %s504 = sshll.u32 %s493, 4
          %s505 = int_to_ptr.vmem [resolvable:$true] %s504
          %510 = dma.vmem_to_hbm [thread:$0]  %s505, 768, %s503, %s490, 384, 384, 24
        $region48: #{_lambda_.30} parent=31 // pred_fallthru
          _
      $region32: #{_lambda_.30} parent=5 // pred_fallthru
        _
      %p511 = scmp.le.s32.totalorder 2, %s16
      // Predicated region
      $region49: #{_lambda_.30} parent=5 // pred_check
        %p512 = pneg %p511
      $region50: #{_lambda_.30} parent=5 // pred_check_branch
        %514 = sbr.rel (%p512) target = $region52
      $region51: #{_lambda_.30} parent=5 // pred_region
        %s515 = ssub.s32 %s16, 2
        // Predicated region
        $region53: #{_lambda_.30} parent=51 // pred_check
          %p516 = pneg %p113
        $region54: #{_lambda_.30} parent=51 // pred_check_branch
          %518 = sbr.rel (%p516) target = $region56
        $region55: #{_lambda_.30} parent=51 // pred_region
          %s519 = sand.u32 %s98, 1
          %s520 = scalar_lea.sflag [#allocation4], %s519
          %s521 = sand.u32 %s98, 1
          %s522 = smul.addr %s521, 48
          %s523 = scalar_lea.vmem [#allocation8], %s522
          %524 = dma.done %s520, 768
        $region56: #{_lambda_.30} parent=51 // pred_fallthru
          _
      $region52: #{_lambda_.30} parent=5 // pred_fallthru
        _
    $region6: #{_lambda_.30} parent=1 // loop_footer
      %s20 = sadd.s32 1, %s16
    $region7: #{_lambda_.30} parent=1 // loop_footer_branch
      %15 = sbr.rel target = $region3
    $region8: #{_lambda_.30} parent=1 // loop_exit
      _
    %525 = vsyncpa [#allocation3], 1
    %s526 = scalar_lea.sflag [#allocation3], 1
    %527 = vsyncpa %s526, 1
    %528 = vsyncpa [#allocation6], 1
    %529 = vsyncpa [#allocation4], 1
    %s530 = scalar_lea.sflag [#allocation4], 1
    %531 = vsyncpa %s530, 1

// kernel: _lambda_.31
$region0: #{_lambda_.31}
  #allocation0 [shape = 'u32[]', space=smem, size = 0x4, offset = 0x4, fixed_abs, tag = 'smem constant byte address 0x4 - core index']
  #allocation1 [shape = 'u32[144,128]{1,0:T(1,128)}', space=vmem, size = 0x12000, scoped, tag = 'internal scratch']
  %s0 = inlined_call_operand.hbm [shape: f32[2,16,384], index: 0, kind: input, shape index: {}]
  %s1 = inlined_call_operand.hbm [shape: bf16[128,128], index: 1, kind: input, shape index: {}]
  %s2 = inlined_call_operand.hbm [shape: f32[1,128], index: 2, kind: input, shape index: {}]
  %s3 = inlined_call_operand.hbm [shape: f32[2,16,128], index: 3, kind: output, shape index: {}]
  %s4 = sld [smem:[#allocation0]]
  $region57: #{_lambda_.31} parent=0
    _
  %s6 = ssub.s32 1, %s4
  %s7 = scalar_select 0, %s6, %s4
  $region1: #{_lambda_.31} parent=0
    #allocation2 [shape = 'u8[49152]{0}', space=vmem, size = 0xc000, scoped, tag = 'input window, operand 0']
    #allocation3 [shape = 's32[2]{0}', space=sflag, size = 0x8, scoped, tag = 'scoped memory for _lambda_.31']
    #allocation4 [shape = 's32[2]{0}', space=sflag, size = 0x8, scoped, tag = 'scoped memory for _lambda_.31']
    #allocation5 [shape = 'u8[32768]{0}', space=vmem, size = 0x8000, scoped, tag = 'input window, operand 1, single buffered']
    #allocation6 [shape = 's32[1]{0}', space=sflag, size = 0x4, scoped, tag = 'scoped memory for _lambda_.31']
    #allocation7 [shape = 'u8[512]{0}', space=vmem, size = 0x400, scoped, tag = 'input window, operand 2, single buffered']
    #allocation8 [shape = 'u8[16384]{0}', space=vmem, size = 0x4000, scoped, tag = 'output window, operand 0']
    %8 = vsyncpa [#allocation3], 0
    %s9 = scalar_lea.sflag [#allocation3], 1
    %10 = vsyncpa %s9, 0
    %11 = vsyncpa [#allocation6], 0
    %12 = vsyncpa [#allocation4], 0
    %s13 = scalar_lea.sflag [#allocation4], 1
    %14 = vsyncpa %s13, 0
    loop: start=0, step=1, limit=4
    $region2: #{_lambda_.31} parent=1 // loop_pre_header
      _
    $region3: #{_lambda_.31} parent=1 // loop_header
      %s16 = sphi 0, %s20
      %p17 = scmp.ge.s32.totalorder %s16, 4
      %s26 = sphi 0, %s28
      %s29 = sphi 0, %s26
      %s30 = sphi 0, %s29
      %s46 = sphi 0, %s30
      %s50 = sphi 0, %s50
      %s52 = sphi 0, %s50
      %s53 = sphi 0, %s52
      %s67 = sphi 0, %s53
      %s71 = sphi 0, %s71
      %s73 = sphi 0, %s71
      %s74 = sphi 0, %s73
      %s88 = sphi 0, %s74
      %s94 = sphi 0, %s96
      %s97 = sphi 0, %s94
      %s98 = sphi 0, %s97
      %s114 = sphi 0, %s98
    $region4: #{_lambda_.31} parent=1 // loop_header_branch
      %19 = sbr.rel (%p17) target = $region8
    $region5: #{_lambda_.31} parent=1 // loop_body
      %s21 = ssub.s32 %s16, 1
      %s22 = ssub.s32 %s16, 2
      %s23 = sadd.s32 %s16, 1
      %s24 = ssub.s32 %s16, %s23
      %p25 = scmp.eq.s32.totalorder %s24, 0
      %s27 = sadd.s32 %s26, 1
      %s28 = scalar_select %p25, %s26, %s27
      %p31 = pneg %p25
      %p32 = scmp.eq.s32.totalorder %s16, 1
      %p33 = por %p31, %p32
      %p34 = scmp.ne.s32.totalorder %s26, %s29
      %p35 = scmp.eq.s32.totalorder %s16, 0
      %p36 = por %p34, %p35
      %p37 = scmp.ne.s32.totalorder %s26, %s29
      %p38 = scmp.eq.s32.totalorder %s21, 1
      %p39 = por %p37, %p38
      %p40 = scmp.ne.s32.totalorder %s29, %s30
      %p41 = scmp.eq.s32.totalorder %s21, 0
      %p42 = por %p40, %p41
      %p43 = scmp.ne.s32.totalorder %s29, %s30
      %p44 = scmp.eq.s32.totalorder %s22, 1
      %p45 = por %p43, %p44
      %p47 = scmp.ne.s32.totalorder %s30, %s46
      %p48 = scmp.eq.s32.totalorder %s22, 0
      %p49 = por %p47, %p48
      %s51 = sadd.s32 %s50, 1
      %p54 = scmp.eq.s32.totalorder %s16, 1
      %p55 = scmp.ne.s32.totalorder %s50, %s52
      %p56 = scmp.eq.s32.totalorder %s16, 0
      %p57 = por %p55, %p56
      %p58 = scmp.ne.s32.totalorder %s50, %s52
      %p59 = scmp.eq.s32.totalorder %s21, 1
      %p60 = por %p58, %p59
      %p61 = scmp.ne.s32.totalorder %s52, %s53
      %p62 = scmp.eq.s32.totalorder %s21, 0
      %p63 = por %p61, %p62
      %p64 = scmp.ne.s32.totalorder %s52, %s53
      %p65 = scmp.eq.s32.totalorder %s22, 1
      %p66 = por %p64, %p65
      %p68 = scmp.ne.s32.totalorder %s53, %s67
      %p69 = scmp.eq.s32.totalorder %s22, 0
      %p70 = por %p68, %p69
      %s72 = sadd.s32 %s71, 1
      %p75 = scmp.eq.s32.totalorder %s16, 1
      %p76 = scmp.ne.s32.totalorder %s71, %s73
      %p77 = scmp.eq.s32.totalorder %s16, 0
      %p78 = por %p76, %p77
      %p79 = scmp.ne.s32.totalorder %s71, %s73
      %p80 = scmp.eq.s32.totalorder %s21, 1
      %p81 = por %p79, %p80
      %p82 = scmp.ne.s32.totalorder %s73, %s74
      %p83 = scmp.eq.s32.totalorder %s21, 0
      %p84 = por %p82, %p83
      %p85 = scmp.ne.s32.totalorder %s73, %s74
      %p86 = scmp.eq.s32.totalorder %s22, 1
      %p87 = por %p85, %p86
      %p89 = scmp.ne.s32.totalorder %s74, %s88
      %p90 = scmp.eq.s32.totalorder %s22, 0
      %p91 = por %p89, %p90
      %s92 = ssub.s32 %s16, %s23
      %p93 = scmp.eq.s32.totalorder %s92, 0
      %s95 = sadd.s32 %s94, 1
      %s96 = scalar_select %p93, %s94, %s95
      %p99 = pneg %p93
      %p100 = scmp.eq.s32.totalorder %s16, 1
      %p101 = por %p99, %p100
      %p102 = scmp.ne.s32.totalorder %s94, %s97
      %p103 = scmp.eq.s32.totalorder %s16, 0
      %p104 = por %p102, %p103
      %p105 = scmp.ne.s32.totalorder %s94, %s97
      %p106 = scmp.eq.s32.totalorder %s21, 1
      %p107 = por %p105, %p106
      %p108 = scmp.ne.s32.totalorder %s97, %s98
      %p109 = scmp.eq.s32.totalorder %s21, 0
      %p110 = por %p108, %p109
      %p111 = scmp.ne.s32.totalorder %s97, %s98
      %p112 = scmp.eq.s32.totalorder %s22, 1
      %p113 = por %p111, %p112
      %p115 = scmp.ne.s32.totalorder %s98, %s114
      %p116 = scmp.eq.s32.totalorder %s22, 0
      %p117 = por %p115, %p116
      %p118 = scmp.le.s32.totalorder 1, %s16
      %p119 = scmp.lt.s32.totalorder %s16, 3
      %p120 = pnand %p118, %p119
      %p121 = pneg %p120
      // Predicated region
      $region9: #{_lambda_.31} parent=5 // pred_check
        _
      $region10: #{_lambda_.31} parent=5 // pred_check_branch
        %123 = sbr.rel (%p120) target = $region12
      $region11: #{_lambda_.31} parent=5 // pred_region
        %s124 = ssub.s32 %s16, 1
        // Predicated region
        $region13: #{_lambda_.31} parent=11 // pred_check
          %p125 = pneg %p63
        $region14: #{_lambda_.31} parent=11 // pred_check_branch
          %127 = sbr.rel (%p125) target = $region16
        $region15: #{_lambda_.31} parent=11 // pred_region
          %s129 = ssub.s32 1024, 1024
          %130 = vsyncadd [#allocation6], %s129
          %s131 = sshll.u32 [#allocation5], 4
          %s132 = int_to_ptr.vmem [resolvable:$true] %s131
          %137 = dma.hbm_to_vmem [thread:$0]  %s1, 1024, %s132, [#allocation6], 64, 64, 4
        $region16: #{_lambda_.31} parent=11 // pred_fallthru
          _
        // Predicated region
        $region17: #{_lambda_.31} parent=11 // pred_check
          %p138 = pneg %p84
        $region18: #{_lambda_.31} parent=11 // pred_check_branch
          %140 = sbr.rel (%p138) target = $region20
        $region19: #{_lambda_.31} parent=11 // pred_region
          %s142 = ssub.s32 16, 16
          %143 = vsyncadd [#allocation6], %s142
          %s145 = sshll.u32 [#allocation7], 4
          %s146 = int_to_ptr.vmem [resolvable:$true] %s145
          %148 = dma.hbm_to_vmem [thread:$0]  %s2, 16, %s146, [#allocation6]
        $region20: #{_lambda_.31} parent=11 // pred_fallthru
          _
      $region12: #{_lambda_.31} parent=5 // pred_fallthru
        _
      %p149 = scmp.lt.s32.totalorder %s16, 2
      // Predicated region
      $region21: #{_lambda_.31} parent=5 // pred_check
        %p150 = pneg %p149
      $region22: #{_lambda_.31} parent=5 // pred_check_branch
        %152 = sbr.rel (%p150) target = $region24
      $region23: #{_lambda_.31} parent=5 // pred_region
        // Predicated region
        $region25: #{_lambda_.31} parent=23 // pred_check
          %p153 = pneg %p36
        $region26: #{_lambda_.31} parent=23 // pred_check_branch
          %155 = sbr.rel (%p153) target = $region28
        $region27: #{_lambda_.31} parent=23 // pred_region
          %s156 = sand.u32 %s26, 1
          %s157 = scalar_lea.sflag [#allocation3], %s156
          %s158 = sand.u32 %s26, 1
          %s159 = smul.addr %s158, 48
          %s160 = scalar_lea.vmem [#allocation2], %s159
          %s162 = ssub.s32 768, 768
          %163 = vsyncadd %s157, %s162
          %s164 = smul.addr %s16, 6
          %s165 = smul.addr %s164, 128
          %s166 = scalar_lea.hbm %s0, %s165
          %s167 = sshll.u32 %s160, 4
          %s168 = int_to_ptr.vmem [resolvable:$true] %s167
          %173 = dma.hbm_to_vmem [thread:$0]  %s166, 768, %s168, %s157, 384, 384, 24
        $region28: #{_lambda_.31} parent=23 // pred_fallthru
          _
      $region24: #{_lambda_.31} parent=5 // pred_fallthru
        _
      %p174 = scmp.le.s32.totalorder 1, %s16
      %p175 = scmp.lt.s32.totalorder %s16, 3
      %p176 = pnand %p174, %p175
      %p177 = pneg %p176
      // Predicated region
      $region29: #{_lambda_.31} parent=5 // pred_check
        _
      $region30: #{_lambda_.31} parent=5 // pred_check_branch
        %179 = sbr.rel (%p176) target = $region32
      $region31: #{_lambda_.31} parent=5 // pred_region
        %s180 = ssub.s32 %s16, 1
        %s181 = sand.u32 %s29, 1
        %s182 = scalar_lea.sflag [#allocation3], %s181
        %s183 = sand.u32 %s29, 1
        %s184 = smul.addr %s183, 48
        %s185 = scalar_lea.vmem [#allocation2], %s184
        // Predicated region
        $region33: #{_lambda_.31} parent=31 // pred_check
          %p186 = pneg %p42
        $region34: #{_lambda_.31} parent=31 // pred_check_branch
          %188 = sbr.rel (%p186) target = $region36
        $region35: #{_lambda_.31} parent=31 // pred_region
          %189 = dma.done %s182, 768
        $region36: #{_lambda_.31} parent=31 // pred_fallthru
          _
        // Predicated region
        $region37: #{_lambda_.31} parent=31 // pred_check
          %p190 = pneg %p63
        $region38: #{_lambda_.31} parent=31 // pred_check_branch
          %192 = sbr.rel (%p190) target = $region40
        $region39: #{_lambda_.31} parent=31 // pred_region
          %193 = dma.done [#allocation6], 1024
        $region40: #{_lambda_.31} parent=31 // pred_fallthru
          _
        // Predicated region
        $region41: #{_lambda_.31} parent=31 // pred_check
          %p194 = pneg %p84
        $region42: #{_lambda_.31} parent=31 // pred_check_branch
          %196 = sbr.rel (%p194) target = $region44
        $region43: #{_lambda_.31} parent=31 // pred_region
          %197 = dma.done [#allocation6], 16
        $region44: #{_lambda_.31} parent=31 // pred_fallthru
          _
        %s198 = sand.u32 %s29, 1
        %s199 = scalar_lea.sflag [#allocation3], %s198
        %s200 = sand.u32 %s29, 1
        %s201 = smul.addr %s200, 48
        %s202 = scalar_lea.vmem [#allocation2], %s201
        %p203 = pneg %p42
        %p204 = pneg %p39
        %p205 = pneg %p63
        %p206 = pneg %p60
        %p207 = pneg %p84
        %p208 = pneg %p81
        %p209 = pneg %p110
        %p210 = pneg %p107
        %s211 = sand.u32 %s97, 1
        %s212 = scalar_lea.sflag [#allocation4], %s211
        %s213 = sand.u32 %s97, 1
        %s214 = smul.addr %s213, 16
        %s215 = scalar_lea.vmem [#allocation8], %s214
        %v217 = vld [vmem:[%s185] sm:$0xff]
        %v218 = vld [vmem:[%s185 + $0x8] sm:$0xff]
        %v219 = vld [vmem:[%s185 + $0x10] sm:$0xff]
        %v220 = vld [vmem:[%s185 + $0x18] sm:$0xff]
        %v221 = vld [vmem:[%s185 + $0x20] sm:$0xff]
        %v222 = vld [vmem:[%s185 + $0x28] sm:$0xff]
        %v223 = vpack.c.bf16 %v221, %v218
        %224 = vxpose.xlu0.b32.start [1/16] %v217, 128
        %225 = vxpose.xlu0.b32.cont [2/16] %v220, 128
        %226 = vxpose.xlu0.b32.cont [3/16] 0.0, 128
        %227 = vxpose.xlu0.b32.cont [4/16] 0.0, 128
        %228 = vxpose.xlu0.b32.cont [5/16] 0.0, 128
        %229 = vxpose.xlu0.b32.cont [6/16] 0.0, 128
        %230 = vxpose.xlu0.b32.cont [7/16] 0.0, 128
        %231 = vxpose.xlu0.b32.cont [8/16] 0.0, 128
        %232 = vxpose.xlu0.b32.cont [9/16] 0.0, 128
        %233 = vxpose.xlu0.b32.cont [10/16] 0.0, 128
        %234 = vxpose.xlu0.b32.cont [11/16] 0.0, 128
        %235 = vxpose.xlu0.b32.cont [12/16] 0.0, 128
        %236 = vxpose.xlu0.b32.cont [13/16] 0.0, 128
        %237 = vxpose.xlu0.b32.cont [14/16] 0.0, 128
        %238 = vxpose.xlu0.b32.cont [15/16] 0.0, 128
        %239 = vxpose.xlu0.b32.end [16/16] 0.0, 128
        %v240 = vpop.trf.xlu0
        %v241 = vpop.trf.xlu0
        %v242 = vpop.trf.xlu0
        %v243 = vpop.trf.xlu0
        %v244 = vpop.trf.xlu0
        %v245 = vpop.trf.xlu0
        %v246 = vpop.trf.xlu0
        %v247 = vpop.trf.xlu0
        %v248 = vpop.trf.xlu0
        %v249 = vpop.trf.xlu0
        %v250 = vpop.trf.xlu0
        %v251 = vpop.trf.xlu0
        %v252 = vpop.trf.xlu0
        %v253 = vpop.trf.xlu0
        %v254 = vpop.trf.xlu0
        %v255 = vpop.trf.xlu0
        %v256 = vpack.c.bf16 %v241, %v240
        %v257 = vpack.c.bf16 %v243, %v242
        %v258 = vpack.c.bf16 %v245, %v244
        %v259 = vpack.c.bf16 %v247, %v246
        %v260 = vpack.c.bf16 %v249, %v248
        %v261 = vpack.c.bf16 %v251, %v250
        %v262 = vpack.c.bf16 %v253, %v252
        %v263 = vpack.c.bf16 %v255, %v254
        %264 = vmatprep.subr.bf16.mxu0 0
        %265 = vmatpush1.bf16.msra.mxu0 %v256
        %266 = vmatprep.subr.bf16.mxu0 0
        %267 = vmatpush1.bf16.msra.mxu0 %v257
        %268 = vmatprep.subr.bf16.mxu0 0
        %269 = vmatpush1.bf16.msra.mxu0 %v258
        %270 = vmatprep.subr.bf16.mxu0 0
        %271 = vmatpush1.bf16.msra.mxu0 %v259
        %272 = vmatprep.subr.bf16.mxu0 0
        %273 = vmatpush1.bf16.msra.mxu0 %v260
        %274 = vmatprep.subr.bf16.mxu0 0
        %275 = vmatpush1.bf16.msra.mxu0 %v261
        %276 = vmatprep.subr.bf16.mxu0 0
        %277 = vmatpush1.bf16.msra.mxu0 %v262
        %278 = vmatprep.subr.bf16.mxu0 0
        %279 = vmatpush1.bf16.msra.mxu0 %v263
        %280 = vmatprep.subr.bf16.mxu0 0
        %281 = vmatpush1.bf16.msra.mxu0 0
        %282 = vmatprep.subr.bf16.mxu0 0
        %283 = vmatpush1.bf16.msra.mxu0 0
        %284 = vmatprep.subr.bf16.mxu0 0
        %285 = vmatpush1.bf16.msra.mxu0 0
        %286 = vmatprep.subr.bf16.mxu0 0
        %287 = vmatpush1.bf16.msra.mxu0 0
        %288 = vmatprep.subr.bf16.mxu0 0
        %289 = vmatpush1.bf16.msra.mxu0 0
        %290 = vmatprep.subr.bf16.mxu0 0
        %291 = vmatpush1.bf16.msra.mxu0 0
        %292 = vmatprep.subr.bf16.mxu0 0
        %293 = vmatpush1.bf16.msra.mxu0 0
        %294 = vmatprep.subr.bf16.mxu0 0
        %295 = vmatpush1.bf16.msra.mxu0 0
        %296 = vmatprep.mubr.bf16.mxu0 0
        %297 = vmatmul.mubr.bf16.gmra.mrb[0].mxu0 %v223
        %v298 = vpop.f32.mrb[0].mxu0
        %v299 = vadd.f32 0.0, %v298
        %v300 = vpop.f32.mrb[0].mxu0
        %v301 = vpop.f32.mrb[0].mxu0
        %v302 = vadd.f32 0.0, %v301
        %v303 = vpop.f32.mrb[0].mxu0
        %304 = vdwg.mxu0
        %v305 = vlaneseq
        %v306 = vshrl.u32 %v305, 7
        %v307 = vadd.s32 %v306, 8
        %310 = vrot.lane.b32.xlu0 %v299, 127
        %v311 = vpop.permute.xlu0 %310
        %312 = vrot.lane.b32.xlu0 %v302, 127
        %v313 = vpop.permute.xlu0 %312
        %316 = vrot.lane.b32.xlu0 %v299, 15
        %v317 = vpop.permute.xlu0 %316
        %318 = vrot.lane.b32.xlu0 %v302, 15
        %v319 = vpop.permute.xlu0 %318
        %vm322 = vcmask 121856
        %v323 = vsel %vm322, %v311, %v317
        %v324 = vsel %vm322, %v313, %v319
        %v325 = vand.u32 %v306, 1
        %v326 = vand.u32 %v307, 1
        %vm327 = vcmp.ne.s32.totalorder %v325, 0
        %vm328 = vcmp.ne.s32.totalorder %v326, 0
        %v329 = vsel %vm327, 1, 0
        %v330 = vsel %vm328, 1, 0
        %vm331 = vcmp.eq.s32.totalorder %v329, 1
        %vm332 = vcmp.eq.s32.totalorder %v330, 1
        %v333 = vsel %vm331, %v323, %v299
        %v334 = vsel %vm332, %v324, %v302
        %337 = vrot.lane.b32.xlu0 %v333, 126
        %v338 = vpop.permute.xlu0 %337
        %339 = vrot.lane.b32.xlu0 %v334, 126
        %v340 = vpop.permute.xlu0 %339
        %343 = vrot.lane.b32.xlu0 %v333, 14
        %v344 = vpop.permute.xlu0 %343
        %345 = vrot.lane.b32.xlu0 %v334, 14
        %v346 = vpop.permute.xlu0 %345
        %vm349 = vcmask 113664
        %v350 = vsel %vm349, %v338, %v344
        %v351 = vsel %vm349, %v340, %v346
        %v352 = vand.u32 %v306, 2
        %v353 = vand.u32 %v307, 2
        %vm354 = vcmp.ne.s32.totalorder %v352, 0
        %vm355 = vcmp.ne.s32.totalorder %v353, 0
        %v356 = vsel %vm354, 1, 0
        %v357 = vsel %vm355, 1, 0
        %vm358 = vcmp.eq.s32.totalorder %v356, 1
        %vm359 = vcmp.eq.s32.totalorder %v357, 1
        %v360 = vsel %vm358, %v350, %v333
        %v361 = vsel %vm359, %v351, %v334
        %364 = vrot.lane.b32.xlu0 %v360, 124
        %v365 = vpop.permute.xlu0 %364
        %366 = vrot.lane.b32.xlu0 %v361, 124
        %v367 = vpop.permute.xlu0 %366
        %370 = vrot.lane.b32.xlu0 %v360, 12
        %v371 = vpop.permute.xlu0 %370
        %372 = vrot.lane.b32.xlu0 %v361, 12
        %v373 = vpop.permute.xlu0 %372
        %vm376 = vcmask 97280
        %v377 = vsel %vm376, %v365, %v371
        %v378 = vsel %vm376, %v367, %v373
        %v379 = vand.u32 %v306, 4
        %v380 = vand.u32 %v307, 4
        %vm381 = vcmp.ne.s32.totalorder %v379, 0
        %vm382 = vcmp.ne.s32.totalorder %v380, 0
        %v383 = vsel %vm381, 1, 0
        %v384 = vsel %vm382, 1, 0
        %vm385 = vcmp.eq.s32.totalorder %v383, 1
        %vm386 = vcmp.eq.s32.totalorder %v384, 1
        %v387 = vsel %vm385, %v377, %v360
        %v388 = vsel %vm386, %v378, %v361
        %391 = vrot.lane.b32.xlu0 %v387, 120
        %v392 = vpop.permute.xlu0 %391
        %393 = vrot.lane.b32.xlu0 %v388, 120
        %v394 = vpop.permute.xlu0 %393
        %397 = vrot.lane.b32.xlu0 %v387, 8
        %v398 = vpop.permute.xlu0 %397
        %399 = vrot.lane.b32.xlu0 %v388, 8
        %v400 = vpop.permute.xlu0 %399
        %vm403 = vcmask 64512
        %v404 = vsel %vm403, %v392, %v398
        %v405 = vsel %vm403, %v394, %v400
        %v406 = vand.u32 %v306, 8
        %v407 = vand.u32 %v307, 8
        %vm408 = vcmp.ne.s32.totalorder %v406, 0
        %vm409 = vcmp.ne.s32.totalorder %v407, 0
        %v410 = vsel %vm408, 1, 0
        %v411 = vsel %vm409, 1, 0
        %vm412 = vcmp.eq.s32.totalorder %v410, 1
        %vm413 = vcmp.eq.s32.totalorder %v411, 1
        %v414 = vsel %vm412, %v404, %v387
        %v415 = vsel %vm413, %v405, %v388
        %vm416 = vcmask 130048
        %v417 = vsel %vm416, %v414, 0.0
        %v418 = vsel %vm416, %v415, 0.0
        %v419 = vadd.f32 %v417, %v418
        %v420 = vrot.slane %v419, 4
        %v421 = vadd.f32 %v419, %v420
        %v422 = vrot.slane %v421, 2
        %v423 = vadd.f32 %v421, %v422
        %v424 = vrot.slane %v423, 1
        %v425 = vadd.f32 %v423, %v424
        %v426 = vmul.f32 %v425, 0.0078125
        %v427 = vlaneseq
        %v428 = vand.u32 %v427, 127
        %v429 = vcvt.s32.f32 %v428
        %v430 = vsel %vm416, %v426, -inf
        %431 = vmax.xlane.f32.xlu0 %v430
        %v432 = vpop.xlane.xlu0 %431
        %vm433 = vcmp.ge.f32.partialorder %v426, %v432
        %v434 = vsel %vm433, %v429, 16.0
        %v435 = vsel %vm416, %v434, inf
        %436 = vmin.xlane.f32.xlu0 %v435
        %v437 = vpop.xlane.xlu0 %436
        %vm438 = vcmp.eq.f32.partialorder %v429, %v437
        %v439 = vsel %vm438, -3e+38, %v426
        %v440 = vsel %vm416, %v439, -inf
        %441 = vmax.xlane.f32.xlu0 %v440
        %v442 = vpop.xlane.xlu0 %441
        %vm443 = vcmp.ge.f32.partialorder %v439, %v442
        %v444 = vsel %vm443, %v429, 16.0
        %v445 = vsel %vm416, %v444, inf
        %446 = vmin.xlane.f32.xlu0 %v445
        %v447 = vpop.xlane.xlu0 %446
        %v448 = vmax.f32 %v432, %v442
        %v449 = vsub.f32 %v432, %v448
        %v450 = vmul.f32 %v449, 1.442695
        %v451 = vpow.pop %v450
        %v452 = vsub.f32 %v442, %v448
        %v453 = vmul.f32 %v452, 1.442695
        %v454 = vpow.pop %v453
        %v455 = vadd.f32 %v451, %v454
        %v456 = vrcp.pop %v455
        %v457 = vmul.f32 %v451, %v456
        %v458 = vmul.f32 %v454, %v456
        %v459 = vsub.s32 %v428, %v306
        %v460 = vsub.s32 %v428, %v307
        %vm461 = vcmp.lt.s32.totalorder %v459, 0
        %vm462 = vcmp.lt.s32.totalorder %v460, 0
        %v463 = vadd.s32 %v459, 16
        %v464 = vadd.s32 %v460, 16
        %v465 = vsel %vm461, %v463, %v459
        %v466 = vsel %vm462, %v464, %v460
        %v467 = vcvt.s32.f32 %v465
        %v468 = vcvt.s32.f32 %v466
        %vm469 = vcmp.eq.f32.partialorder %v467, %v437
        %vm470 = vcmp.eq.f32.partialorder %v468, %v437
        %v471 = vsel %vm469, %v457, 0.0
        %v472 = vsel %vm470, %v457, 0.0
        %v473 = vadd.f32 %v471, 0.0
        %v474 = vadd.f32 %v472, 0.0
        %vm475 = vcmp.eq.f32.partialorder %v467, %v447
        %vm476 = vcmp.eq.f32.partialorder %v468, %v447
        %v477 = vsel %vm475, %v458, 0.0
        %v478 = vsel %vm476, %v458, 0.0
        %v479 = vadd.f32 %v473, %v477
        %v480 = vadd.f32 %v474, %v478
        %v481 = vpack.c.bf16 %v480, %v479
        %v482 = vpack.c.bf16 %v222, %v219
        %v484 = vsel %vm416, %v481, 0
        %486 = vmatprep.subr.bf16.mxu0 0
        %487 = vmatpush1.bf16.msra.mxu0 %v482
        %488 = vmatprep.subr.bf16.mxu0 0
        %489 = vmatpush1.bf16.msra.mxu0 0
        %490 = vmatprep.subr.bf16.mxu0 0
        %491 = vmatpush1.bf16.msra.mxu0 0
        %492 = vmatprep.subr.bf16.mxu0 0
        %493 = vmatpush1.bf16.msra.mxu0 0
        %494 = vmatprep.subr.bf16.mxu0 0
        %495 = vmatpush1.bf16.msra.mxu0 0
        %496 = vmatprep.subr.bf16.mxu0 0
        %497 = vmatpush1.bf16.msra.mxu0 0
        %498 = vmatprep.subr.bf16.mxu0 0
        %499 = vmatpush1.bf16.msra.mxu0 0
        %500 = vmatprep.subr.bf16.mxu0 0
        %501 = vmatpush1.bf16.msra.mxu0 0
        %502 = vmatprep.subr.bf16.mxu0 0
        %503 = vmatpush1.bf16.msra.mxu0 0
        %504 = vmatprep.subr.bf16.mxu0 0
        %505 = vmatpush1.bf16.msra.mxu0 0
        %506 = vmatprep.subr.bf16.mxu0 0
        %507 = vmatpush1.bf16.msra.mxu0 0
        %508 = vmatprep.subr.bf16.mxu0 0
        %509 = vmatpush1.bf16.msra.mxu0 0
        %510 = vmatprep.subr.bf16.mxu0 0
        %511 = vmatpush1.bf16.msra.mxu0 0
        %512 = vmatprep.subr.bf16.mxu0 0
        %513 = vmatpush1.bf16.msra.mxu0 0
        %514 = vmatprep.subr.bf16.mxu0 0
        %515 = vmatpush1.bf16.msra.mxu0 0
        %516 = vmatprep.subr.bf16.mxu0 0
        %517 = vmatpush1.bf16.msra.mxu0 0
        %518 = vmatprep.mubr.bf16.mxu0 0
        %519 = vmatmul.mubr.bf16.gmra.mrb[0].mxu0 %v484
        %v520 = vpop.f32.mrb[0].mxu0
        %v521 = vadd.f32 0.0, %v520
        %v522 = vpop.f32.mrb[0].mxu0
        %v523 = vpop.f32.mrb[0].mxu0
        %v524 = vadd.f32 0.0, %v523
        %v525 = vpop.f32.mrb[0].mxu0
        %526 = vdwg.mxu0
        %v527 = vpack.c.bf16 %v524, %v521
        %v528 = vld [vmem:[#allocation5] sm:$0xf]
        %v529 = vld [vmem:[#allocation5 + $0x4] sm:$0xf]
        %v530 = vld [vmem:[#allocation5 + $0x8] sm:$0xf]
        %v531 = vld [vmem:[#allocation5 + $0xc] sm:$0xf]
        %v532 = vld [vmem:[#allocation5 + $0x10] sm:$0xf]
        %v533 = vld [vmem:[#allocation5 + $0x14] sm:$0xf]
        %v534 = vld [vmem:[#allocation5 + $0x18] sm:$0xf]
        %v535 = vld [vmem:[#allocation5 + $0x1c] sm:$0xf]
        %v536 = vld [vmem:[#allocation5 + $0x20] sm:$0xf]
        %v537 = vld [vmem:[#allocation5 + $0x24] sm:$0xf]
        %v538 = vld [vmem:[#allocation5 + $0x28] sm:$0xf]
        %v539 = vld [vmem:[#allocation5 + $0x2c] sm:$0xf]
        %v540 = vld [vmem:[#allocation5 + $0x30] sm:$0xf]
        %v541 = vld [vmem:[#allocation5 + $0x34] sm:$0xf]
        %v542 = vld [vmem:[#allocation5 + $0x38] sm:$0xf]
        %v543 = vld [vmem:[#allocation5 + $0x3c] sm:$0xf]
        %v544 = vld [vmem:[#allocation7] sm:$0x1]
        %v546 = vlaneseq
        %v547 = vshrl.u32 %v546, 7
        %v548 = vsub.s32 0, %v547
        %v549 = vrot.slane %v544, %v548
        %v567 = vunpack.c.l.b16 %v528
        %v568 = vunpack.c.l.b16 %v529
        %v569 = vunpack.c.l.b16 %v530
        %v570 = vunpack.c.l.b16 %v531
        %v571 = vunpack.c.l.b16 %v532
        %v572 = vunpack.c.l.b16 %v533
        %v573 = vunpack.c.l.b16 %v534
        %v574 = vunpack.c.l.b16 %v535
        %v575 = vunpack.c.l.b16 %v536
        %v576 = vunpack.c.l.b16 %v537
        %v577 = vunpack.c.l.b16 %v538
        %v578 = vunpack.c.l.b16 %v539
        %v579 = vunpack.c.l.b16 %v540
        %v580 = vunpack.c.l.b16 %v541
        %v581 = vunpack.c.l.b16 %v542
        %v582 = vunpack.c.l.b16 %v543
        %v583 = vpack.c.b16 %v568, %v567
        %v584 = vpack.c.b16 %v570, %v569
        %v585 = vpack.c.b16 %v572, %v571
        %v586 = vpack.c.b16 %v574, %v573
        %v587 = vpack.c.b16 %v576, %v575
        %v588 = vpack.c.b16 %v578, %v577
        %v589 = vpack.c.b16 %v580, %v579
        %v590 = vpack.c.b16 %v582, %v581
        %599 = vmatprep.subr.bf16.mxu0 0
        %600 = vmatpush1.bf16.msra.mxu0 %v583
        %601 = vmatprep.subr.bf16.mxu0 0
        %602 = vmatpush1.bf16.msra.mxu0 %v584
        %603 = vmatprep.subr.bf16.mxu0 0
        %604 = vmatpush1.bf16.msra.mxu0 %v585
        %605 = vmatprep.subr.bf16.mxu0 0
        %606 = vmatpush1.bf16.msra.mxu0 %v586
        %607 = vmatprep.subr.bf16.mxu0 0
        %608 = vmatpush1.bf16.msra.mxu0 %v587
        %609 = vmatprep.subr.bf16.mxu0 0
        %610 = vmatpush1.bf16.msra.mxu0 %v588
        %611 = vmatprep.subr.bf16.mxu0 0
        %612 = vmatpush1.bf16.msra.mxu0 %v589
        %613 = vmatprep.subr.bf16.mxu0 0
        %614 = vmatpush1.bf16.msra.mxu0 %v590
        %615 = vmatprep.subr.bf16.mxu0 0
        %616 = vmatpush1.bf16.msra.mxu0 0
        %617 = vmatprep.subr.bf16.mxu0 0
        %618 = vmatpush1.bf16.msra.mxu0 0
        %619 = vmatprep.subr.bf16.mxu0 0
        %620 = vmatpush1.bf16.msra.mxu0 0
        %621 = vmatprep.subr.bf16.mxu0 0
        %622 = vmatpush1.bf16.msra.mxu0 0
        %623 = vmatprep.subr.bf16.mxu0 0
        %624 = vmatpush1.bf16.msra.mxu0 0
        %625 = vmatprep.subr.bf16.mxu0 0
        %626 = vmatpush1.bf16.msra.mxu0 0
        %627 = vmatprep.subr.bf16.mxu0 0
        %628 = vmatpush1.bf16.msra.mxu0 0
        %629 = vmatprep.subr.bf16.mxu0 0
        %630 = vmatpush1.bf16.msra.mxu0 0
        %631 = vmatprep.mubr.bf16.mxu0 0
        %632 = vmatmul.mubr.bf16.gmra.mrb[0].mxu0 %v527
        %v633 = vpop.f32.mrb[0].mxu0
        %v634 = vadd.f32 %v549, %v633
        %v635 = vpop.f32.mrb[0].mxu0
        %v636 = vpop.f32.mrb[0].mxu0
        %v637 = vadd.f32 %v549, %v636
        %v638 = vpop.f32.mrb[0].mxu0
        %639 = vdwg.mxu0
        %640 = vst [vmem:[%s215] sm:$0xff] %v634
        %641 = vst [vmem:[%s215 + $0x8] sm:$0xff] %v637
        %s642 = sand.u32 %s97, 1
        %s643 = scalar_lea.sflag [#allocation4], %s642
        %s644 = sand.u32 %s97, 1
        %s645 = smul.addr %s644, 16
        %s646 = scalar_lea.vmem [#allocation8], %s645
        // Predicated region
        $region45: #{_lambda_.31} parent=31 // pred_check
          %p647 = pneg %p107
        $region46: #{_lambda_.31} parent=31 // pred_check_branch
          %649 = sbr.rel (%p647) target = $region48
        $region47: #{_lambda_.31} parent=31 // pred_region
          %s651 = ssub.s32 256, 256
          %652 = vsyncadd %s643, %s651
          %s653 = smul.addr %s21, 2
          %s654 = smul.addr %s653, 128
          %s655 = scalar_lea.hbm %s3, %s654
          %s656 = sshll.u32 %s646, 4
          %s657 = int_to_ptr.vmem [resolvable:$true] %s656
          %662 = dma.vmem_to_hbm [thread:$0]  %s657, 256, %s655, %s643, 128, 128, 8
        $region48: #{_lambda_.31} parent=31 // pred_fallthru
          _
      $region32: #{_lambda_.31} parent=5 // pred_fallthru
        _
      %p663 = scmp.le.s32.totalorder 2, %s16
      // Predicated region
      $region49: #{_lambda_.31} parent=5 // pred_check
        %p664 = pneg %p663
      $region50: #{_lambda_.31} parent=5 // pred_check_branch
        %666 = sbr.rel (%p664) target = $region52
      $region51: #{_lambda_.31} parent=5 // pred_region
        %s667 = ssub.s32 %s16, 2
        // Predicated region
        $region53: #{_lambda_.31} parent=51 // pred_check
          %p668 = pneg %p113
        $region54: #{_lambda_.31} parent=51 // pred_check_branch
          %670 = sbr.rel (%p668) target = $region56
        $region55: #{_lambda_.31} parent=51 // pred_region
          %s671 = sand.u32 %s98, 1
          %s672 = scalar_lea.sflag [#allocation4], %s671
          %s673 = sand.u32 %s98, 1
          %s674 = smul.addr %s673, 16
          %s675 = scalar_lea.vmem [#allocation8], %s674
          %676 = dma.done %s672, 256
        $region56: #{_lambda_.31} parent=51 // pred_fallthru
          _
      $region52: #{_lambda_.31} parent=5 // pred_fallthru
        _
    $region6: #{_lambda_.31} parent=1 // loop_footer
      %s20 = sadd.s32 1, %s16
    $region7: #{_lambda_.31} parent=1 // loop_footer_branch
      %15 = sbr.rel target = $region3
    $region8: #{_lambda_.31} parent=1 // loop_exit
      _
    %677 = vsyncpa [#allocation3], 1
    %s678 = scalar_lea.sflag [#allocation3], 1
    %679 = vsyncpa %s678, 1
    %680 = vsyncpa [#allocation6], 1
    %681 = vsyncpa [#allocation4], 1
    %s682 = scalar_lea.sflag [#allocation4], 1
    %683 = vsyncpa %s682, 1

// kernel: _lambda_.33
$region0: #{_lambda_.33}
  #allocation0 [shape = 'u32[]', space=smem, size = 0x4, offset = 0x4, fixed_abs, tag = 'smem constant byte address 0x4 - core index']
  #allocation1 [shape = 'u32[144,128]{1,0:T(1,128)}', space=vmem, size = 0x12000, scoped, tag = 'internal scratch']
  %s0 = inlined_call_operand.hbm [shape: f32[32,128], index: 0, kind: input, shape index: {}]
  %s1 = inlined_call_operand.hbm [shape: bf16[128,128], index: 1, kind: input, shape index: {}]
  %s2 = inlined_call_operand.hbm [shape: f32[1,128], index: 2, kind: input, shape index: {}]
  %s3 = inlined_call_operand.hbm [shape: f32[32,128], index: 3, kind: output, shape index: {}]
  %s4 = sld [smem:[#allocation0]]
  $region57: #{_lambda_.33} parent=0
    _
  %s6 = ssub.s32 1, %s4
  %s7 = scalar_select 0, %s6, %s4
  $region1: #{_lambda_.33} parent=0
    #allocation2 [shape = 'u8[16384]{0}', space=vmem, size = 0x4000, scoped, tag = 'input window, operand 0']
    #allocation3 [shape = 's32[2]{0}', space=sflag, size = 0x8, scoped, tag = 'scoped memory for _lambda_.33']
    #allocation4 [shape = 's32[2]{0}', space=sflag, size = 0x8, scoped, tag = 'scoped memory for _lambda_.33']
    #allocation5 [shape = 'u8[32768]{0}', space=vmem, size = 0x8000, scoped, tag = 'input window, operand 1, single buffered']
    #allocation6 [shape = 's32[1]{0}', space=sflag, size = 0x4, scoped, tag = 'scoped memory for _lambda_.33']
    #allocation7 [shape = 'u8[512]{0}', space=vmem, size = 0x400, scoped, tag = 'input window, operand 2, single buffered']
    #allocation8 [shape = 'u8[16384]{0}', space=vmem, size = 0x4000, scoped, tag = 'output window, operand 0']
    %8 = vsyncpa [#allocation3], 0
    %s9 = scalar_lea.sflag [#allocation3], 1
    %10 = vsyncpa %s9, 0
    %11 = vsyncpa [#allocation6], 0
    %12 = vsyncpa [#allocation4], 0
    %s13 = scalar_lea.sflag [#allocation4], 1
    %14 = vsyncpa %s13, 0
    loop: start=0, step=1, limit=4
    $region2: #{_lambda_.33} parent=1 // loop_pre_header
      _
    $region3: #{_lambda_.33} parent=1 // loop_header
      %s16 = sphi 0, %s20
      %p17 = scmp.ge.s32.totalorder %s16, 4
      %s26 = sphi 0, %s28
      %s29 = sphi 0, %s26
      %s30 = sphi 0, %s29
      %s46 = sphi 0, %s30
      %s50 = sphi 0, %s50
      %s52 = sphi 0, %s50
      %s53 = sphi 0, %s52
      %s67 = sphi 0, %s53
      %s71 = sphi 0, %s71
      %s73 = sphi 0, %s71
      %s74 = sphi 0, %s73
      %s88 = sphi 0, %s74
      %s94 = sphi 0, %s96
      %s97 = sphi 0, %s94
      %s98 = sphi 0, %s97
      %s114 = sphi 0, %s98
    $region4: #{_lambda_.33} parent=1 // loop_header_branch
      %19 = sbr.rel (%p17) target = $region8
    $region5: #{_lambda_.33} parent=1 // loop_body
      %s21 = ssub.s32 %s16, 1
      %s22 = ssub.s32 %s16, 2
      %s23 = sadd.s32 %s16, 1
      %s24 = ssub.s32 %s16, %s23
      %p25 = scmp.eq.s32.totalorder %s24, 0
      %s27 = sadd.s32 %s26, 1
      %s28 = scalar_select %p25, %s26, %s27
      %p31 = pneg %p25
      %p32 = scmp.eq.s32.totalorder %s16, 1
      %p33 = por %p31, %p32
      %p34 = scmp.ne.s32.totalorder %s26, %s29
      %p35 = scmp.eq.s32.totalorder %s16, 0
      %p36 = por %p34, %p35
      %p37 = scmp.ne.s32.totalorder %s26, %s29
      %p38 = scmp.eq.s32.totalorder %s21, 1
      %p39 = por %p37, %p38
      %p40 = scmp.ne.s32.totalorder %s29, %s30
      %p41 = scmp.eq.s32.totalorder %s21, 0
      %p42 = por %p40, %p41
      %p43 = scmp.ne.s32.totalorder %s29, %s30
      %p44 = scmp.eq.s32.totalorder %s22, 1
      %p45 = por %p43, %p44
      %p47 = scmp.ne.s32.totalorder %s30, %s46
      %p48 = scmp.eq.s32.totalorder %s22, 0
      %p49 = por %p47, %p48
      %s51 = sadd.s32 %s50, 1
      %p54 = scmp.eq.s32.totalorder %s16, 1
      %p55 = scmp.ne.s32.totalorder %s50, %s52
      %p56 = scmp.eq.s32.totalorder %s16, 0
      %p57 = por %p55, %p56
      %p58 = scmp.ne.s32.totalorder %s50, %s52
      %p59 = scmp.eq.s32.totalorder %s21, 1
      %p60 = por %p58, %p59
      %p61 = scmp.ne.s32.totalorder %s52, %s53
      %p62 = scmp.eq.s32.totalorder %s21, 0
      %p63 = por %p61, %p62
      %p64 = scmp.ne.s32.totalorder %s52, %s53
      %p65 = scmp.eq.s32.totalorder %s22, 1
      %p66 = por %p64, %p65
      %p68 = scmp.ne.s32.totalorder %s53, %s67
      %p69 = scmp.eq.s32.totalorder %s22, 0
      %p70 = por %p68, %p69
      %s72 = sadd.s32 %s71, 1
      %p75 = scmp.eq.s32.totalorder %s16, 1
      %p76 = scmp.ne.s32.totalorder %s71, %s73
      %p77 = scmp.eq.s32.totalorder %s16, 0
      %p78 = por %p76, %p77
      %p79 = scmp.ne.s32.totalorder %s71, %s73
      %p80 = scmp.eq.s32.totalorder %s21, 1
      %p81 = por %p79, %p80
      %p82 = scmp.ne.s32.totalorder %s73, %s74
      %p83 = scmp.eq.s32.totalorder %s21, 0
      %p84 = por %p82, %p83
      %p85 = scmp.ne.s32.totalorder %s73, %s74
      %p86 = scmp.eq.s32.totalorder %s22, 1
      %p87 = por %p85, %p86
      %p89 = scmp.ne.s32.totalorder %s74, %s88
      %p90 = scmp.eq.s32.totalorder %s22, 0
      %p91 = por %p89, %p90
      %s92 = ssub.s32 %s16, %s23
      %p93 = scmp.eq.s32.totalorder %s92, 0
      %s95 = sadd.s32 %s94, 1
      %s96 = scalar_select %p93, %s94, %s95
      %p99 = pneg %p93
      %p100 = scmp.eq.s32.totalorder %s16, 1
      %p101 = por %p99, %p100
      %p102 = scmp.ne.s32.totalorder %s94, %s97
      %p103 = scmp.eq.s32.totalorder %s16, 0
      %p104 = por %p102, %p103
      %p105 = scmp.ne.s32.totalorder %s94, %s97
      %p106 = scmp.eq.s32.totalorder %s21, 1
      %p107 = por %p105, %p106
      %p108 = scmp.ne.s32.totalorder %s97, %s98
      %p109 = scmp.eq.s32.totalorder %s21, 0
      %p110 = por %p108, %p109
      %p111 = scmp.ne.s32.totalorder %s97, %s98
      %p112 = scmp.eq.s32.totalorder %s22, 1
      %p113 = por %p111, %p112
      %p115 = scmp.ne.s32.totalorder %s98, %s114
      %p116 = scmp.eq.s32.totalorder %s22, 0
      %p117 = por %p115, %p116
      %p118 = scmp.le.s32.totalorder 1, %s16
      %p119 = scmp.lt.s32.totalorder %s16, 3
      %p120 = pnand %p118, %p119
      %p121 = pneg %p120
      // Predicated region
      $region9: #{_lambda_.33} parent=5 // pred_check
        _
      $region10: #{_lambda_.33} parent=5 // pred_check_branch
        %123 = sbr.rel (%p120) target = $region12
      $region11: #{_lambda_.33} parent=5 // pred_region
        %s124 = ssub.s32 %s16, 1
        // Predicated region
        $region13: #{_lambda_.33} parent=11 // pred_check
          %p125 = pneg %p63
        $region14: #{_lambda_.33} parent=11 // pred_check_branch
          %127 = sbr.rel (%p125) target = $region16
        $region15: #{_lambda_.33} parent=11 // pred_region
          %s129 = ssub.s32 1024, 1024
          %130 = vsyncadd [#allocation6], %s129
          %s131 = sshll.u32 [#allocation5], 4
          %s132 = int_to_ptr.vmem [resolvable:$true] %s131
          %137 = dma.hbm_to_vmem [thread:$0]  %s1, 1024, %s132, [#allocation6], 64, 64, 4
        $region16: #{_lambda_.33} parent=11 // pred_fallthru
          _
        // Predicated region
        $region17: #{_lambda_.33} parent=11 // pred_check
          %p138 = pneg %p84
        $region18: #{_lambda_.33} parent=11 // pred_check_branch
          %140 = sbr.rel (%p138) target = $region20
        $region19: #{_lambda_.33} parent=11 // pred_region
          %s142 = ssub.s32 16, 16
          %143 = vsyncadd [#allocation6], %s142
          %s145 = sshll.u32 [#allocation7], 4
          %s146 = int_to_ptr.vmem [resolvable:$true] %s145
          %148 = dma.hbm_to_vmem [thread:$0]  %s2, 16, %s146, [#allocation6]
        $region20: #{_lambda_.33} parent=11 // pred_fallthru
          _
      $region12: #{_lambda_.33} parent=5 // pred_fallthru
        _
      %p149 = scmp.lt.s32.totalorder %s16, 2
      // Predicated region
      $region21: #{_lambda_.33} parent=5 // pred_check
        %p150 = pneg %p149
      $region22: #{_lambda_.33} parent=5 // pred_check_branch
        %152 = sbr.rel (%p150) target = $region24
      $region23: #{_lambda_.33} parent=5 // pred_region
        // Predicated region
        $region25: #{_lambda_.33} parent=23 // pred_check
          %p153 = pneg %p36
        $region26: #{_lambda_.33} parent=23 // pred_check_branch
          %155 = sbr.rel (%p153) target = $region28
        $region27: #{_lambda_.33} parent=23 // pred_region
          %s156 = sand.u32 %s26, 1
          %s157 = scalar_lea.sflag [#allocation3], %s156
          %s158 = sand.u32 %s26, 1
          %s159 = smul.addr %s158, 16
          %s160 = scalar_lea.vmem [#allocation2], %s159
          %s161 = smul.u32 2, %s16
          %s163 = ssub.s32 256, 256
          %164 = vsyncadd %s157, %s163
          %s165 = smul.addr %s161, 128
          %s166 = scalar_lea.hbm %s0, %s165
          %s167 = sshll.u32 %s160, 4
          %s168 = int_to_ptr.vmem [resolvable:$true] %s167
          %173 = dma.hbm_to_vmem [thread:$0]  %s166, 256, %s168, %s157, 128, 128, 8
        $region28: #{_lambda_.33} parent=23 // pred_fallthru
          _
      $region24: #{_lambda_.33} parent=5 // pred_fallthru
        _
      %p174 = scmp.le.s32.totalorder 1, %s16
      %p175 = scmp.lt.s32.totalorder %s16, 3
      %p176 = pnand %p174, %p175
      %p177 = pneg %p176
      // Predicated region
      $region29: #{_lambda_.33} parent=5 // pred_check
        _
      $region30: #{_lambda_.33} parent=5 // pred_check_branch
        %179 = sbr.rel (%p176) target = $region32
      $region31: #{_lambda_.33} parent=5 // pred_region
        %s180 = ssub.s32 %s16, 1
        %s181 = sand.u32 %s29, 1
        %s182 = scalar_lea.sflag [#allocation3], %s181
        %s183 = sand.u32 %s29, 1
        %s184 = smul.addr %s183, 16
        %s185 = scalar_lea.vmem [#allocation2], %s184
        // Predicated region
        $region33: #{_lambda_.33} parent=31 // pred_check
          %p186 = pneg %p42
        $region34: #{_lambda_.33} parent=31 // pred_check_branch
          %188 = sbr.rel (%p186) target = $region36
        $region35: #{_lambda_.33} parent=31 // pred_region
          %189 = dma.done %s182, 256
        $region36: #{_lambda_.33} parent=31 // pred_fallthru
          _
        // Predicated region
        $region37: #{_lambda_.33} parent=31 // pred_check
          %p190 = pneg %p63
        $region38: #{_lambda_.33} parent=31 // pred_check_branch
          %192 = sbr.rel (%p190) target = $region40
        $region39: #{_lambda_.33} parent=31 // pred_region
          %193 = dma.done [#allocation6], 1024
        $region40: #{_lambda_.33} parent=31 // pred_fallthru
          _
        // Predicated region
        $region41: #{_lambda_.33} parent=31 // pred_check
          %p194 = pneg %p84
        $region42: #{_lambda_.33} parent=31 // pred_check_branch
          %196 = sbr.rel (%p194) target = $region44
        $region43: #{_lambda_.33} parent=31 // pred_region
          %197 = dma.done [#allocation6], 16
        $region44: #{_lambda_.33} parent=31 // pred_fallthru
          _
        %s198 = sand.u32 %s29, 1
        %s199 = scalar_lea.sflag [#allocation3], %s198
        %s200 = sand.u32 %s29, 1
        %s201 = smul.addr %s200, 16
        %s202 = scalar_lea.vmem [#allocation2], %s201
        %p203 = pneg %p42
        %p204 = pneg %p39
        %p205 = pneg %p63
        %p206 = pneg %p60
        %p207 = pneg %p84
        %p208 = pneg %p81
        %p209 = pneg %p110
        %p210 = pneg %p107
        %s211 = sand.u32 %s97, 1
        %s212 = scalar_lea.sflag [#allocation4], %s211
        %s213 = sand.u32 %s97, 1
        %s214 = smul.addr %s213, 16
        %s215 = scalar_lea.vmem [#allocation8], %s214
        %s216 = smul.u32 2, %s21
        %s217 = smul.u32 2, %s21
        %v219 = vld [vmem:[%s185] sm:$0xff]
        %v220 = vld [vmem:[%s185 + $0x8] sm:$0xff]
        %v221 = vpack.c.bf16 %v220, %v219
        %v222 = vld [vmem:[#allocation5] sm:$0xf]
        %v223 = vld [vmem:[#allocation5 + $0x4] sm:$0xf]
        %v224 = vld [vmem:[#allocation5 + $0x8] sm:$0xf]
        %v225 = vld [vmem:[#allocation5 + $0xc] sm:$0xf]
        %v226 = vld [vmem:[#allocation5 + $0x10] sm:$0xf]
        %v227 = vld [vmem:[#allocation5 + $0x14] sm:$0xf]
        %v228 = vld [vmem:[#allocation5 + $0x18] sm:$0xf]
        %v229 = vld [vmem:[#allocation5 + $0x1c] sm:$0xf]
        %v230 = vld [vmem:[#allocation5 + $0x20] sm:$0xf]
        %v231 = vld [vmem:[#allocation5 + $0x24] sm:$0xf]
        %v232 = vld [vmem:[#allocation5 + $0x28] sm:$0xf]
        %v233 = vld [vmem:[#allocation5 + $0x2c] sm:$0xf]
        %v234 = vld [vmem:[#allocation5 + $0x30] sm:$0xf]
        %v235 = vld [vmem:[#allocation5 + $0x34] sm:$0xf]
        %v236 = vld [vmem:[#allocation5 + $0x38] sm:$0xf]
        %v237 = vld [vmem:[#allocation5 + $0x3c] sm:$0xf]
        %v238 = vld [vmem:[#allocation7] sm:$0x1]
        %v240 = vlaneseq
        %v241 = vshrl.u32 %v240, 7
        %v242 = vsub.s32 0, %v241
        %v243 = vrot.slane %v238, %v242
        %v261 = vunpack.c.l.b16 %v222
        %v262 = vunpack.c.l.b16 %v223
        %v263 = vunpack.c.l.b16 %v224
        %v264 = vunpack.c.l.b16 %v225
        %v265 = vunpack.c.l.b16 %v226
        %v266 = vunpack.c.l.b16 %v227
        %v267 = vunpack.c.l.b16 %v228
        %v268 = vunpack.c.l.b16 %v229
        %v269 = vunpack.c.l.b16 %v230
        %v270 = vunpack.c.l.b16 %v231
        %v271 = vunpack.c.l.b16 %v232
        %v272 = vunpack.c.l.b16 %v233
        %v273 = vunpack.c.l.b16 %v234
        %v274 = vunpack.c.l.b16 %v235
        %v275 = vunpack.c.l.b16 %v236
        %v276 = vunpack.c.l.b16 %v237
        %v277 = vpack.c.b16 %v262, %v261
        %v278 = vpack.c.b16 %v264, %v263
        %v279 = vpack.c.b16 %v266, %v265
        %v280 = vpack.c.b16 %v268, %v267
        %v281 = vpack.c.b16 %v270, %v269
        %v282 = vpack.c.b16 %v272, %v271
        %v283 = vpack.c.b16 %v274, %v273
        %v284 = vpack.c.b16 %v276, %v275
        %293 = vmatprep.subr.bf16.mxu0 0
        %294 = vmatpush1.bf16.msra.mxu0 %v277
        %295 = vmatprep.subr.bf16.mxu0 0
        %296 = vmatpush1.bf16.msra.mxu0 %v278
        %297 = vmatprep.subr.bf16.mxu0 0
        %298 = vmatpush1.bf16.msra.mxu0 %v279
        %299 = vmatprep.subr.bf16.mxu0 0
        %300 = vmatpush1.bf16.msra.mxu0 %v280
        %301 = vmatprep.subr.bf16.mxu0 0
        %302 = vmatpush1.bf16.msra.mxu0 %v281
        %303 = vmatprep.subr.bf16.mxu0 0
        %304 = vmatpush1.bf16.msra.mxu0 %v282
        %305 = vmatprep.subr.bf16.mxu0 0
        %306 = vmatpush1.bf16.msra.mxu0 %v283
        %307 = vmatprep.subr.bf16.mxu0 0
        %308 = vmatpush1.bf16.msra.mxu0 %v284
        %309 = vmatprep.subr.bf16.mxu0 0
        %310 = vmatpush1.bf16.msra.mxu0 0
        %311 = vmatprep.subr.bf16.mxu0 0
        %312 = vmatpush1.bf16.msra.mxu0 0
        %313 = vmatprep.subr.bf16.mxu0 0
        %314 = vmatpush1.bf16.msra.mxu0 0
        %315 = vmatprep.subr.bf16.mxu0 0
        %316 = vmatpush1.bf16.msra.mxu0 0
        %317 = vmatprep.subr.bf16.mxu0 0
        %318 = vmatpush1.bf16.msra.mxu0 0
        %319 = vmatprep.subr.bf16.mxu0 0
        %320 = vmatpush1.bf16.msra.mxu0 0
        %321 = vmatprep.subr.bf16.mxu0 0
        %322 = vmatpush1.bf16.msra.mxu0 0
        %323 = vmatprep.subr.bf16.mxu0 0
        %324 = vmatpush1.bf16.msra.mxu0 0
        %325 = vmatprep.mubr.bf16.mxu0 0
        %326 = vmatmul.mubr.bf16.gmra.mrb[0].mxu0 %v221
        %v327 = vpop.f32.mrb[0].mxu0
        %v328 = vadd.f32 %v243, %v327
        %v329 = vpop.f32.mrb[0].mxu0
        %v330 = vpop.f32.mrb[0].mxu0
        %v331 = vadd.f32 %v243, %v330
        %v332 = vpop.f32.mrb[0].mxu0
        %333 = vdwg.mxu0
        %334 = vst [vmem:[%s215] sm:$0xff] %v328
        %335 = vst [vmem:[%s215 + $0x8] sm:$0xff] %v331
        %s336 = sand.u32 %s97, 1
        %s337 = scalar_lea.sflag [#allocation4], %s336
        %s338 = sand.u32 %s97, 1
        %s339 = smul.addr %s338, 16
        %s340 = scalar_lea.vmem [#allocation8], %s339
        // Predicated region
        $region45: #{_lambda_.33} parent=31 // pred_check
          %p341 = pneg %p107
        $region46: #{_lambda_.33} parent=31 // pred_check_branch
          %343 = sbr.rel (%p341) target = $region48
        $region47: #{_lambda_.33} parent=31 // pred_region
          %s344 = smul.u32 2, %s21
          %s346 = ssub.s32 256, 256
          %347 = vsyncadd %s337, %s346
          %s348 = smul.addr %s344, 128
          %s349 = scalar_lea.hbm %s3, %s348
          %s350 = sshll.u32 %s340, 4
          %s351 = int_to_ptr.vmem [resolvable:$true] %s350
          %356 = dma.vmem_to_hbm [thread:$0]  %s351, 256, %s349, %s337, 128, 128, 8
        $region48: #{_lambda_.33} parent=31 // pred_fallthru
          _
      $region32: #{_lambda_.33} parent=5 // pred_fallthru
        _
      %p357 = scmp.le.s32.totalorder 2, %s16
      // Predicated region
      $region49: #{_lambda_.33} parent=5 // pred_check
        %p358 = pneg %p357
      $region50: #{_lambda_.33} parent=5 // pred_check_branch
        %360 = sbr.rel (%p358) target = $region52
      $region51: #{_lambda_.33} parent=5 // pred_region
        %s361 = ssub.s32 %s16, 2
        // Predicated region
        $region53: #{_lambda_.33} parent=51 // pred_check
          %p362 = pneg %p113
        $region54: #{_lambda_.33} parent=51 // pred_check_branch
          %364 = sbr.rel (%p362) target = $region56
        $region55: #{_lambda_.33} parent=51 // pred_region
          %s365 = sand.u32 %s98, 1
          %s366 = scalar_lea.sflag [#allocation4], %s365
          %s367 = sand.u32 %s98, 1
          %s368 = smul.addr %s367, 16
          %s369 = scalar_lea.vmem [#allocation8], %s368
          %370 = dma.done %s366, 256
        $region56: #{_lambda_.33} parent=51 // pred_fallthru
          _
      $region52: #{_lambda_.33} parent=5 // pred_fallthru
        _
    $region6: #{_lambda_.33} parent=1 // loop_footer
      %s20 = sadd.s32 1, %s16
    $region7: #{_lambda_.33} parent=1 // loop_footer_branch
      %15 = sbr.rel target = $region3
    $region8: #{_lambda_.33} parent=1 // loop_exit
      _
    %371 = vsyncpa [#allocation3], 1
    %s372 = scalar_lea.sflag [#allocation3], 1
    %373 = vsyncpa %s372, 1
    %374 = vsyncpa [#allocation6], 1
    %375 = vsyncpa [#allocation4], 1
    %s376 = scalar_lea.sflag [#allocation4], 1
    %377 = vsyncpa %s376, 1

// kernel: _lambda_.32
$region0: #{_lambda_.32}
  #allocation0 [shape = 'u32[]', space=smem, size = 0x4, offset = 0x4, fixed_abs, tag = 'smem constant byte address 0x4 - core index']
  #allocation1 [shape = 'u32[144,128]{1,0:T(1,128)}', space=vmem, size = 0x12000, scoped, tag = 'internal scratch']
  %s0 = inlined_call_operand.hbm [shape: f32[2,16,128], index: 0, kind: input, shape index: {}]
  %s1 = inlined_call_operand.hbm [shape: f32[2,16,128], index: 1, kind: input, shape index: {}]
  %s2 = inlined_call_operand.hbm [shape: f32[2,16,128], index: 2, kind: output, shape index: {0}]
  %s3 = inlined_call_operand.hbm [shape: f32[2,16,128], index: 3, kind: output, shape index: {1}]
  %4 = xla_tuple %s2, %s3
  %s5 = sld [smem:[#allocation0]]
  $region57: #{_lambda_.32} parent=0
    _
  %s7 = ssub.s32 1, %s5
  %s8 = scalar_select 0, %s7, %s5
  $region1: #{_lambda_.32} parent=0
    #allocation2 [shape = 'u8[16384]{0}', space=vmem, size = 0x4000, scoped, tag = 'input window, operand 0']
    #allocation3 [shape = 's32[2]{0}', space=sflag, size = 0x8, scoped, tag = 'scoped memory for _lambda_.32']
    #allocation4 [shape = 's32[2]{0}', space=sflag, size = 0x8, scoped, tag = 'scoped memory for _lambda_.32']
    #allocation5 [shape = 'u8[16384]{0}', space=vmem, size = 0x4000, scoped, tag = 'input window, operand 1']
    #allocation6 [shape = 's32[2]{0}', space=sflag, size = 0x8, scoped, tag = 'scoped memory for _lambda_.32']
    #allocation7 [shape = 'u8[16384]{0}', space=vmem, size = 0x4000, scoped, tag = 'output window, operand 0']
    #allocation8 [shape = 'u8[16384]{0}', space=vmem, size = 0x4000, scoped, tag = 'output window, operand 1']
    #allocation9 [shape = 's32[2]{0}', space=sflag, size = 0x8, scoped, tag = 'scoped memory for _lambda_.32']
    %9 = vsyncpa [#allocation3], 0
    %s10 = scalar_lea.sflag [#allocation3], 1
    %11 = vsyncpa %s10, 0
    %12 = vsyncpa [#allocation6], 0
    %s13 = scalar_lea.sflag [#allocation6], 1
    %14 = vsyncpa %s13, 0
    %15 = vsyncpa [#allocation4], 0
    %s16 = scalar_lea.sflag [#allocation4], 1
    %17 = vsyncpa %s16, 0
    %18 = vsyncpa [#allocation9], 0
    %s19 = scalar_lea.sflag [#allocation9], 1
    %20 = vsyncpa %s19, 0
    loop: start=0, step=1, limit=4
    $region2: #{_lambda_.32} parent=1 // loop_pre_header
      _
    $region3: #{_lambda_.32} parent=1 // loop_header
      %s22 = sphi 0, %s26
      %p23 = scmp.ge.s32.totalorder %s22, 4
      %s32 = sphi 0, %s34
      %s35 = sphi 0, %s32
      %s36 = sphi 0, %s35
      %s52 = sphi 0, %s36
      %s58 = sphi 0, %s60
      %s61 = sphi 0, %s58
      %s62 = sphi 0, %s61
      %s78 = sphi 0, %s62
      %s84 = sphi 0, %s86
      %s87 = sphi 0, %s84
      %s88 = sphi 0, %s87
      %s104 = sphi 0, %s88
      %s110 = sphi 0, %s112
      %s113 = sphi 0, %s110
      %s114 = sphi 0, %s113
      %s130 = sphi 0, %s114
    $region4: #{_lambda_.32} parent=1 // loop_header_branch
      %25 = sbr.rel (%p23) target = $region8
    $region5: #{_lambda_.32} parent=1 // loop_body
      %s27 = ssub.s32 %s22, 1
      %s28 = ssub.s32 %s22, 2
      %s29 = sadd.s32 %s22, 1
      %s30 = ssub.s32 %s22, %s29
      %p31 = scmp.eq.s32.totalorder %s30, 0
      %s33 = sadd.s32 %s32, 1
      %s34 = scalar_select %p31, %s32, %s33
      %p37 = pneg %p31
      %p38 = scmp.eq.s32.totalorder %s22, 1
      %p39 = por %p37, %p38
      %p40 = scmp.ne.s32.totalorder %s32, %s35
      %p41 = scmp.eq.s32.totalorder %s22, 0
      %p42 = por %p40, %p41
      %p43 = scmp.ne.s32.totalorder %s32, %s35
      %p44 = scmp.eq.s32.totalorder %s27, 1
      %p45 = por %p43, %p44
      %p46 = scmp.ne.s32.totalorder %s35, %s36
      %p47 = scmp.eq.s32.totalorder %s27, 0
      %p48 = por %p46, %p47
      %p49 = scmp.ne.s32.totalorder %s35, %s36
      %p50 = scmp.eq.s32.totalorder %s28, 1
      %p51 = por %p49, %p50
      %p53 = scmp.ne.s32.totalorder %s36, %s52
      %p54 = scmp.eq.s32.totalorder %s28, 0
      %p55 = por %p53, %p54
      %s56 = ssub.s32 %s22, %s29
      %p57 = scmp.eq.s32.totalorder %s56, 0
      %s59 = sadd.s32 %s58, 1
      %s60 = scalar_select %p57, %s58, %s59
      %p63 = pneg %p57
      %p64 = scmp.eq.s32.totalorder %s22, 1
      %p65 = por %p63, %p64
      %p66 = scmp.ne.s32.totalorder %s58, %s61
      %p67 = scmp.eq.s32.totalorder %s22, 0
      %p68 = por %p66, %p67
      %p69 = scmp.ne.s32.totalorder %s58, %s61
      %p70 = scmp.eq.s32.totalorder %s27, 1
      %p71 = por %p69, %p70
      %p72 = scmp.ne.s32.totalorder %s61, %s62
      %p73 = scmp.eq.s32.totalorder %s27, 0
      %p74 = por %p72, %p73
      %p75 = scmp.ne.s32.totalorder %s61, %s62
      %p76 = scmp.eq.s32.totalorder %s28, 1
      %p77 = por %p75, %p76
      %p79 = scmp.ne.s32.totalorder %s62, %s78
      %p80 = scmp.eq.s32.totalorder %s28, 0
      %p81 = por %p79, %p80
      %s82 = ssub.s32 %s22, %s29
      %p83 = scmp.eq.s32.totalorder %s82, 0
      %s85 = sadd.s32 %s84, 1
      %s86 = scalar_select %p83, %s84, %s85
      %p89 = pneg %p83
      %p90 = scmp.eq.s32.totalorder %s22, 1
      %p91 = por %p89, %p90
      %p92 = scmp.ne.s32.totalorder %s84, %s87
      %p93 = scmp.eq.s32.totalorder %s22, 0
      %p94 = por %p92, %p93
      %p95 = scmp.ne.s32.totalorder %s84, %s87
      %p96 = scmp.eq.s32.totalorder %s27, 1
      %p97 = por %p95, %p96
      %p98 = scmp.ne.s32.totalorder %s87, %s88
      %p99 = scmp.eq.s32.totalorder %s27, 0
      %p100 = por %p98, %p99
      %p101 = scmp.ne.s32.totalorder %s87, %s88
      %p102 = scmp.eq.s32.totalorder %s28, 1
      %p103 = por %p101, %p102
      %p105 = scmp.ne.s32.totalorder %s88, %s104
      %p106 = scmp.eq.s32.totalorder %s28, 0
      %p107 = por %p105, %p106
      %s108 = ssub.s32 %s22, %s29
      %p109 = scmp.eq.s32.totalorder %s108, 0
      %s111 = sadd.s32 %s110, 1
      %s112 = scalar_select %p109, %s110, %s111
      %p115 = pneg %p109
      %p116 = scmp.eq.s32.totalorder %s22, 1
      %p117 = por %p115, %p116
      %p118 = scmp.ne.s32.totalorder %s110, %s113
      %p119 = scmp.eq.s32.totalorder %s22, 0
      %p120 = por %p118, %p119
      %p121 = scmp.ne.s32.totalorder %s110, %s113
      %p122 = scmp.eq.s32.totalorder %s27, 1
      %p123 = por %p121, %p122
      %p124 = scmp.ne.s32.totalorder %s113, %s114
      %p125 = scmp.eq.s32.totalorder %s27, 0
      %p126 = por %p124, %p125
      %p127 = scmp.ne.s32.totalorder %s113, %s114
      %p128 = scmp.eq.s32.totalorder %s28, 1
      %p129 = por %p127, %p128
      %p131 = scmp.ne.s32.totalorder %s114, %s130
      %p132 = scmp.eq.s32.totalorder %s28, 0
      %p133 = por %p131, %p132
      %p134 = scmp.le.s32.totalorder 1, %s22
      %p135 = scmp.lt.s32.totalorder %s22, 3
      %p136 = pnand %p134, %p135
      %p137 = pneg %p136
      // Predicated region
      $region9: #{_lambda_.32} parent=5 // pred_check
        _
      $region10: #{_lambda_.32} parent=5 // pred_check_branch
        %139 = sbr.rel (%p136) target = $region12
      $region11: #{_lambda_.32} parent=5 // pred_region
        %s140 = ssub.s32 %s22, 1
      $region12: #{_lambda_.32} parent=5 // pred_fallthru
        _
      %p141 = scmp.lt.s32.totalorder %s22, 2
      // Predicated region
      $region13: #{_lambda_.32} parent=5 // pred_check
        %p142 = pneg %p141
      $region14: #{_lambda_.32} parent=5 // pred_check_branch
        %144 = sbr.rel (%p142) target = $region16
      $region15: #{_lambda_.32} parent=5 // pred_region
        // Predicated region
        $region17: #{_lambda_.32} parent=15 // pred_check
          %p145 = pneg %p42
        $region18: #{_lambda_.32} parent=15 // pred_check_branch
          %147 = sbr.rel (%p145) target = $region20
        $region19: #{_lambda_.32} parent=15 // pred_region
          %s148 = sand.u32 %s32, 1
          %s149 = scalar_lea.sflag [#allocation3], %s148
          %s150 = sand.u32 %s32, 1
          %s151 = smul.addr %s150, 16
          %s152 = scalar_lea.vmem [#allocation2], %s151
          %s154 = ssub.s32 256, 256
          %155 = vsyncadd %s149, %s154
          %s156 = smul.addr %s22, 2
          %s157 = smul.addr %s156, 128
          %s158 = scalar_lea.hbm %s0, %s157
          %s159 = sshll.u32 %s152, 4
          %s160 = int_to_ptr.vmem [resolvable:$true] %s159
          %165 = dma.hbm_to_vmem [thread:$0]  %s158, 256, %s160, %s149, 128, 128, 8
        $region20: #{_lambda_.32} parent=15 // pred_fallthru
          _
        // Predicated region
        $region21: #{_lambda_.32} parent=15 // pred_check
          %p166 = pneg %p68
        $region22: #{_lambda_.32} parent=15 // pred_check_branch
          %168 = sbr.rel (%p166) target = $region24
        $region23: #{_lambda_.32} parent=15 // pred_region
          %s169 = sand.u32 %s58, 1
          %s170 = scalar_lea.sflag [#allocation6], %s169
          %s171 = sand.u32 %s58, 1
          %s172 = smul.addr %s171, 16
          %s173 = scalar_lea.vmem [#allocation5], %s172
          %s175 = ssub.s32 256, 256
          %176 = vsyncadd %s170, %s175
          %s177 = smul.addr %s22, 2
          %s178 = smul.addr %s177, 128
          %s179 = scalar_lea.hbm %s1, %s178
          %s180 = sshll.u32 %s173, 4
          %s181 = int_to_ptr.vmem [resolvable:$true] %s180
          %186 = dma.hbm_to_vmem [thread:$0]  %s179, 256, %s181, %s170, 128, 128, 8
        $region24: #{_lambda_.32} parent=15 // pred_fallthru
          _
      $region16: #{_lambda_.32} parent=5 // pred_fallthru
        _
      %p187 = scmp.le.s32.totalorder 1, %s22
      %p188 = scmp.lt.s32.totalorder %s22, 3
      %p189 = pnand %p187, %p188
      %p190 = pneg %p189
      // Predicated region
      $region25: #{_lambda_.32} parent=5 // pred_check
        _
      $region26: #{_lambda_.32} parent=5 // pred_check_branch
        %192 = sbr.rel (%p189) target = $region28
      $region27: #{_lambda_.32} parent=5 // pred_region
        %s193 = ssub.s32 %s22, 1
        %s194 = sand.u32 %s35, 1
        %s195 = scalar_lea.sflag [#allocation3], %s194
        %s196 = sand.u32 %s35, 1
        %s197 = smul.addr %s196, 16
        %s198 = scalar_lea.vmem [#allocation2], %s197
        // Predicated region
        $region29: #{_lambda_.32} parent=27 // pred_check
          %p199 = pneg %p48
        $region30: #{_lambda_.32} parent=27 // pred_check_branch
          %201 = sbr.rel (%p199) target = $region32
        $region31: #{_lambda_.32} parent=27 // pred_region
          %202 = dma.done %s195, 256
        $region32: #{_lambda_.32} parent=27 // pred_fallthru
          _
        %s203 = sand.u32 %s61, 1
        %s204 = scalar_lea.sflag [#allocation6], %s203
        %s205 = sand.u32 %s61, 1
        %s206 = smul.addr %s205, 16
        %s207 = scalar_lea.vmem [#allocation5], %s206
        // Predicated region
        $region33: #{_lambda_.32} parent=27 // pred_check
          %p208 = pneg %p74
        $region34: #{_lambda_.32} parent=27 // pred_check_branch
          %210 = sbr.rel (%p208) target = $region36
        $region35: #{_lambda_.32} parent=27 // pred_region
          %211 = dma.done %s204, 256
        $region36: #{_lambda_.32} parent=27 // pred_fallthru
          _
        %s212 = sand.u32 %s35, 1
        %s213 = scalar_lea.sflag [#allocation3], %s212
        %s214 = sand.u32 %s35, 1
        %s215 = smul.addr %s214, 16
        %s216 = scalar_lea.vmem [#allocation2], %s215
        %p217 = pneg %p48
        %p218 = pneg %p45
        %s219 = sand.u32 %s61, 1
        %s220 = scalar_lea.sflag [#allocation6], %s219
        %s221 = sand.u32 %s61, 1
        %s222 = smul.addr %s221, 16
        %s223 = scalar_lea.vmem [#allocation5], %s222
        %p224 = pneg %p74
        %p225 = pneg %p71
        %p226 = pneg %p100
        %p227 = pneg %p97
        %s228 = sand.u32 %s87, 1
        %s229 = scalar_lea.sflag [#allocation4], %s228
        %s230 = sand.u32 %s87, 1
        %s231 = smul.addr %s230, 16
        %s232 = scalar_lea.vmem [#allocation7], %s231
        %p233 = pneg %p126
        %p234 = pneg %p123
        %s235 = sand.u32 %s113, 1
        %s236 = scalar_lea.sflag [#allocation9], %s235
        %s237 = sand.u32 %s113, 1
        %s238 = smul.addr %s237, 16
        %s239 = scalar_lea.vmem [#allocation8], %s238
        %v240 = vld [vmem:[%s198] sm:$0xff]
        %v241 = vld [vmem:[%s198 + $0x8] sm:$0xff]
        %v242 = vld [vmem:[%s207] sm:$0xff]
        %v243 = vld [vmem:[%s207 + $0x8] sm:$0xff]
        %v244 = vadd.f32 %v240, %v242
        %v245 = vadd.f32 %v241, %v243
        %v246 = vlaneseq
        %v247 = vshrl.u32 %v246, 7
        %v248 = vadd.s32 %v247, 8
        %v249 = vlaneseq
        %v250 = vand.u32 %v249, 127
        %v251 = vsub.s32 %v247, %v250
        %v252 = vsub.s32 %v248, %v250
        %vm253 = vcmp.lt.s32.totalorder %v251, 0
        %v254 = vsub.s32 0, %v251
        %v255 = vsel %vm253, %v254, %v251
        %vm256 = vcmp.lt.s32.totalorder %v252, 0
        %v257 = vsub.s32 0, %v252
        %v258 = vsel %vm256, %v257, %v252
        %vm259 = vcmp.le.s32.totalorder %v255, 2
        %vm260 = vcmp.le.s32.totalorder %v258, 2
        %vm261 = vcmp.gt.s32.totalorder %v250, 0
        %vm262 = vmand %vm259, %vm261
        %vm263 = vmand %vm260, %vm261
        %vm264 = vcmp.lt.s32.totalorder %v250, 15
        %vm265 = vmand %vm262, %vm264
        %vm266 = vmand %vm263, %vm264
        %v267 = vsel %vm265, 1, 0
        %v268 = vsel %vm266, 1, 0
        %v269 = vcvt.s32.f32 %v267
        %v270 = vcvt.s32.f32 %v268
        %vm271 = vcmp.eq.s32.totalorder %v250, 0
        %v272 = vsub.s32 2, %v247
        %v273 = vsub.s32 2, %v248
        %v274 = vadd.s32 %v272, 1
        %v275 = vadd.s32 %v273, 1
        %vm276 = vcmp.gt.s32.totalorder %v274, 0
        %v277 = vsel %vm276, %v274, 0
        %vm278 = vcmp.gt.s32.totalorder %v275, 0
        %v279 = vsel %vm278, %v275, 0
        %v280 = vcvt.s32.f32 %v277
        %v281 = vcvt.s32.f32 %v279
        %v282 = vsel %vm271, %v280, 0.0
        %v283 = vsel %vm271, %v281, 0.0
        %vm284 = vcmp.eq.s32.totalorder %v250, 15
        %v285 = vadd.s32 %v247, 2
        %v286 = vadd.s32 %v248, 2
        %v287 = vsub.s32 %v285, 14
        %v288 = vsub.s32 %v286, 14
        %vm289 = vcmp.gt.s32.totalorder %v287, 0
        %v290 = vsel %vm289, %v287, 0
        %vm291 = vcmp.gt.s32.totalorder %v288, 0
        %v292 = vsel %vm291, %v288, 0
        %v293 = vcvt.s32.f32 %v290
        %v294 = vcvt.s32.f32 %v292
        %v295 = vsel %vm284, %v293, 0.0
        %v296 = vsel %vm284, %v294, 0.0
        %v297 = vadd.f32 %v269, %v282
        %v298 = vadd.f32 %v270, %v283
        %v299 = vadd.f32 %v297, %v295
        %v300 = vadd.f32 %v298, %v296
        %v301 = vmul.f32 %v299, 0.2
        %v302 = vmul.f32 %v300, 0.2
        %vm303 = vcmask 130048
        %v305 = vsel %vm303, %v301, 0
        %v308 = vsel %vm303, %v302, 0
        %310 = vmatprep.subr.mxu0 0.0
        %311 = vmatpush1.msra.mxu0 %v244
        %312 = vmatprep.subr.mxu0 0.0
        %313 = vmatpush1.msra.mxu0 %v245
        %314 = vmatprep.subr.mxu0 0.0
        %315 = vmatpush1.msra.mxu0 0.0
        %316 = vmatprep.subr.mxu0 0.0
        %317 = vmatpush1.msra.mxu0 0.0
        %318 = vmatprep.subr.mxu0 0.0
        %319 = vmatpush1.msra.mxu0 0.0
        %320 = vmatprep.subr.mxu0 0.0
        %321 = vmatpush1.msra.mxu0 0.0
        %322 = vmatprep.subr.mxu0 0.0
        %323 = vmatpush1.msra.mxu0 0.0
        %324 = vmatprep.subr.mxu0 0.0
        %325 = vmatpush1.msra.mxu0 0.0
        %326 = vmatprep.subr.mxu0 0.0
        %327 = vmatpush1.msra.mxu0 0.0
        %328 = vmatprep.subr.mxu0 0.0
        %329 = vmatpush1.msra.mxu0 0.0
        %330 = vmatprep.subr.mxu0 0.0
        %331 = vmatpush1.msra.mxu0 0.0
        %332 = vmatprep.subr.mxu0 0.0
        %333 = vmatpush1.msra.mxu0 0.0
        %334 = vmatprep.subr.mxu0 0.0
        %335 = vmatpush1.msra.mxu0 0.0
        %336 = vmatprep.subr.mxu0 0.0
        %337 = vmatpush1.msra.mxu0 0.0
        %338 = vmatprep.subr.mxu0 0.0
        %339 = vmatpush1.msra.mxu0 0.0
        %340 = vmatprep.subr.mxu0 0.0
        %341 = vmatpush1.msra.mxu0 0.0
        %342 = vmatprep.subr.mxu0 0.0
        %343 = vmatpush1.msra.mxu0 0.0
        %344 = vmatprep.subr.mxu0 0.0
        %345 = vmatpush1.msra.mxu0 0.0
        %346 = vmatprep.subr.mxu0 0.0
        %347 = vmatpush1.msra.mxu0 0.0
        %348 = vmatprep.subr.mxu0 0.0
        %349 = vmatpush1.msra.mxu0 0.0
        %350 = vmatprep.subr.mxu0 0.0
        %351 = vmatpush1.msra.mxu0 0.0
        %352 = vmatprep.subr.mxu0 0.0
        %353 = vmatpush1.msra.mxu0 0.0
        %354 = vmatprep.subr.mxu0 0.0
        %355 = vmatpush1.msra.mxu0 0.0
        %356 = vmatprep.subr.mxu0 0.0
        %357 = vmatpush1.msra.mxu0 0.0
        %358 = vmatprep.subr.mxu0 0.0
        %359 = vmatpush1.msra.mxu0 0.0
        %360 = vmatprep.subr.mxu0 0.0
        %361 = vmatpush1.msra.mxu0 0.0
        %362 = vmatprep.subr.mxu0 0.0
        %363 = vmatpush1.msra.mxu0 0.0
        %364 = vmatprep.subr.mxu0 0.0
        %365 = vmatpush1.msra.mxu0 0.0
        %366 = vmatprep.subr.mxu0 0.0
        %367 = vmatpush1.msra.mxu0 0.0
        %368 = vmatprep.subr.mxu0 0.0
        %369 = vmatpush1.msra.mxu0 0.0
        %370 = vmatprep.subr.mxu0 0.0
        %371 = vmatpush1.msra.mxu0 0.0
        %372 = vmatprep.subr.mxu0 0.0
        %373 = vmatpush1.msra.mxu0 0.0
        %374 = vmatprep.mubr.f32.mxu0 0.0
        %375 = vmatmul.mubr.f32.gmra.mrb[0].mxu0 %v305
        %v376 = vpop.f32.mrb[0].mxu0
        %v377 = vadd.f32 0.0, %v376
        %v378 = vpop.f32.mrb[0].mxu0
        %379 = vmatprep.mubr.f32.mxu0 0.0
        %380 = vmatmul.mubr.f32.gmra.mrb[0].mxu0 %v308
        %v381 = vpop.f32.mrb[0].mxu0
        %v382 = vadd.f32 0.0, %v381
        %v383 = vpop.f32.mrb[0].mxu0
        %384 = vdwg.mxu0
        %385 = vst [vmem:[%s239] sm:$0xff] %v377
        %386 = vst [vmem:[%s239 + $0x8] sm:$0xff] %v382
        %v387 = vsub.f32 %v244, %v377
        %v388 = vsub.f32 %v245, %v382
        %389 = vst [vmem:[%s232] sm:$0xff] %v387
        %390 = vst [vmem:[%s232 + $0x8] sm:$0xff] %v388
        %s391 = sand.u32 %s87, 1
        %s392 = scalar_lea.sflag [#allocation4], %s391
        %s393 = sand.u32 %s87, 1
        %s394 = smul.addr %s393, 16
        %s395 = scalar_lea.vmem [#allocation7], %s394
        %s396 = sand.u32 %s113, 1
        %s397 = scalar_lea.sflag [#allocation9], %s396
        %s398 = sand.u32 %s113, 1
        %s399 = smul.addr %s398, 16
        %s400 = scalar_lea.vmem [#allocation8], %s399
        // Predicated region
        $region37: #{_lambda_.32} parent=27 // pred_check
          %p401 = pneg %p97
        $region38: #{_lambda_.32} parent=27 // pred_check_branch
          %403 = sbr.rel (%p401) target = $region40
        $region39: #{_lambda_.32} parent=27 // pred_region
          %s405 = ssub.s32 256, 256
          %406 = vsyncadd %s392, %s405
          %s407 = smul.addr %s27, 2
          %s408 = smul.addr %s407, 128
          %s409 = scalar_lea.hbm %s2, %s408
          %s410 = sshll.u32 %s395, 4
          %s411 = int_to_ptr.vmem [resolvable:$true] %s410
          %416 = dma.vmem_to_hbm [thread:$0]  %s411, 256, %s409, %s392, 128, 128, 8
        $region40: #{_lambda_.32} parent=27 // pred_fallthru
          _
        // Predicated region
        $region41: #{_lambda_.32} parent=27 // pred_check
          %p417 = pneg %p123
        $region42: #{_lambda_.32} parent=27 // pred_check_branch
          %419 = sbr.rel (%p417) target = $region44
        $region43: #{_lambda_.32} parent=27 // pred_region
          %s421 = ssub.s32 256, 256
          %422 = vsyncadd %s397, %s421
          %s423 = smul.addr %s27, 2
          %s424 = smul.addr %s423, 128
          %s425 = scalar_lea.hbm %s3, %s424
          %s426 = sshll.u32 %s400, 4
          %s427 = int_to_ptr.vmem [resolvable:$true] %s426
          %432 = dma.vmem_to_hbm [thread:$0]  %s427, 256, %s425, %s397, 128, 128, 8
        $region44: #{_lambda_.32} parent=27 // pred_fallthru
          _
      $region28: #{_lambda_.32} parent=5 // pred_fallthru
        _
      %p433 = scmp.le.s32.totalorder 2, %s22
      // Predicated region
      $region45: #{_lambda_.32} parent=5 // pred_check
        %p434 = pneg %p433
      $region46: #{_lambda_.32} parent=5 // pred_check_branch
        %436 = sbr.rel (%p434) target = $region48
      $region47: #{_lambda_.32} parent=5 // pred_region
        %s437 = ssub.s32 %s22, 2
        // Predicated region
        $region49: #{_lambda_.32} parent=47 // pred_check
          %p438 = pneg %p103
        $region50: #{_lambda_.32} parent=47 // pred_check_branch
          %440 = sbr.rel (%p438) target = $region52
        $region51: #{_lambda_.32} parent=47 // pred_region
          %s441 = sand.u32 %s88, 1
          %s442 = scalar_lea.sflag [#allocation4], %s441
          %s443 = sand.u32 %s88, 1
          %s444 = smul.addr %s443, 16
          %s445 = scalar_lea.vmem [#allocation7], %s444
          %446 = dma.done %s442, 256
        $region52: #{_lambda_.32} parent=47 // pred_fallthru
          _
        // Predicated region
        $region53: #{_lambda_.32} parent=47 // pred_check
          %p447 = pneg %p129
        $region54: #{_lambda_.32} parent=47 // pred_check_branch
          %449 = sbr.rel (%p447) target = $region56
        $region55: #{_lambda_.32} parent=47 // pred_region
          %s450 = sand.u32 %s114, 1
          %s451 = scalar_lea.sflag [#allocation9], %s450
          %s452 = sand.u32 %s114, 1
          %s453 = smul.addr %s452, 16
          %s454 = scalar_lea.vmem [#allocation8], %s453
          %455 = dma.done %s451, 256
        $region56: #{_lambda_.32} parent=47 // pred_fallthru
          _
      $region48: #{_lambda_.32} parent=5 // pred_fallthru
        _
    $region6: #{_lambda_.32} parent=1 // loop_footer
      %s26 = sadd.s32 1, %s22
    $region7: #{_lambda_.32} parent=1 // loop_footer_branch
      %21 = sbr.rel target = $region3
    $region8: #{_lambda_.32} parent=1 // loop_exit
      _
    %456 = vsyncpa [#allocation3], 1
    %s457 = scalar_lea.sflag [#allocation3], 1
    %458 = vsyncpa %s457, 1
    %459 = vsyncpa [#allocation6], 1
    %s460 = scalar_lea.sflag [#allocation6], 1
    %461 = vsyncpa %s460, 1
    %462 = vsyncpa [#allocation4], 1
    %s463 = scalar_lea.sflag [#allocation4], 1
    %464 = vsyncpa %s463, 1
    %465 = vsyncpa [#allocation9], 1
    %s466 = scalar_lea.sflag [#allocation9], 1
    %467 = vsyncpa %s466, 1

// kernel: _lambda_.28
$region0: #{_lambda_.28}
  #allocation0 [shape = 'u32[]', space=smem, size = 0x4, offset = 0x4, fixed_abs, tag = 'smem constant byte address 0x4 - core index']
  #allocation1 [shape = 'u32[144,128]{1,0:T(1,128)}', space=vmem, size = 0x12000, scoped, tag = 'internal scratch']
  %s0 = inlined_call_operand.hbm [shape: f32[2,16,128], index: 0, kind: input, shape index: {}]
  %s1 = inlined_call_operand.hbm [shape: f32[1,128], index: 1, kind: input, shape index: {}]
  %s2 = inlined_call_operand.hbm [shape: f32[1,128], index: 2, kind: input, shape index: {}]
  %s3 = inlined_call_operand.hbm [shape: f32[2,16,128], index: 3, kind: output, shape index: {}]
  %s4 = sld [smem:[#allocation0]]
  $region57: #{_lambda_.28} parent=0
    _
  %s6 = ssub.s32 1, %s4
  %s7 = scalar_select 0, %s6, %s4
  $region1: #{_lambda_.28} parent=0
    #allocation2 [shape = 'u8[16384]{0}', space=vmem, size = 0x4000, scoped, tag = 'input window, operand 0']
    #allocation3 [shape = 's32[2]{0}', space=sflag, size = 0x8, scoped, tag = 'scoped memory for _lambda_.28']
    #allocation4 [shape = 's32[2]{0}', space=sflag, size = 0x8, scoped, tag = 'scoped memory for _lambda_.28']
    #allocation5 [shape = 'u8[512]{0}', space=vmem, size = 0x400, scoped, tag = 'input window, operand 1, single buffered']
    #allocation6 [shape = 's32[1]{0}', space=sflag, size = 0x4, scoped, tag = 'scoped memory for _lambda_.28']
    #allocation7 [shape = 'u8[512]{0}', space=vmem, size = 0x400, scoped, tag = 'input window, operand 2, single buffered']
    #allocation8 [shape = 'u8[16384]{0}', space=vmem, size = 0x4000, scoped, tag = 'output window, operand 0']
    %8 = vsyncpa [#allocation3], 0
    %s9 = scalar_lea.sflag [#allocation3], 1
    %10 = vsyncpa %s9, 0
    %11 = vsyncpa [#allocation6], 0
    %12 = vsyncpa [#allocation4], 0
    %s13 = scalar_lea.sflag [#allocation4], 1
    %14 = vsyncpa %s13, 0
    loop: start=0, step=1, limit=4
    $region2: #{_lambda_.28} parent=1 // loop_pre_header
      _
    $region3: #{_lambda_.28} parent=1 // loop_header
      %s16 = sphi 0, %s20
      %p17 = scmp.ge.s32.totalorder %s16, 4
      %s26 = sphi 0, %s28
      %s29 = sphi 0, %s26
      %s30 = sphi 0, %s29
      %s46 = sphi 0, %s30
      %s50 = sphi 0, %s50
      %s52 = sphi 0, %s50
      %s53 = sphi 0, %s52
      %s67 = sphi 0, %s53
      %s71 = sphi 0, %s71
      %s73 = sphi 0, %s71
      %s74 = sphi 0, %s73
      %s88 = sphi 0, %s74
      %s94 = sphi 0, %s96
      %s97 = sphi 0, %s94
      %s98 = sphi 0, %s97
      %s114 = sphi 0, %s98
    $region4: #{_lambda_.28} parent=1 // loop_header_branch
      %19 = sbr.rel (%p17) target = $region8
    $region5: #{_lambda_.28} parent=1 // loop_body
      %s21 = ssub.s32 %s16, 1
      %s22 = ssub.s32 %s16, 2
      %s23 = sadd.s32 %s16, 1
      %s24 = ssub.s32 %s16, %s23
      %p25 = scmp.eq.s32.totalorder %s24, 0
      %s27 = sadd.s32 %s26, 1
      %s28 = scalar_select %p25, %s26, %s27
      %p31 = pneg %p25
      %p32 = scmp.eq.s32.totalorder %s16, 1
      %p33 = por %p31, %p32
      %p34 = scmp.ne.s32.totalorder %s26, %s29
      %p35 = scmp.eq.s32.totalorder %s16, 0
      %p36 = por %p34, %p35
      %p37 = scmp.ne.s32.totalorder %s26, %s29
      %p38 = scmp.eq.s32.totalorder %s21, 1
      %p39 = por %p37, %p38
      %p40 = scmp.ne.s32.totalorder %s29, %s30
      %p41 = scmp.eq.s32.totalorder %s21, 0
      %p42 = por %p40, %p41
      %p43 = scmp.ne.s32.totalorder %s29, %s30
      %p44 = scmp.eq.s32.totalorder %s22, 1
      %p45 = por %p43, %p44
      %p47 = scmp.ne.s32.totalorder %s30, %s46
      %p48 = scmp.eq.s32.totalorder %s22, 0
      %p49 = por %p47, %p48
      %s51 = sadd.s32 %s50, 1
      %p54 = scmp.eq.s32.totalorder %s16, 1
      %p55 = scmp.ne.s32.totalorder %s50, %s52
      %p56 = scmp.eq.s32.totalorder %s16, 0
      %p57 = por %p55, %p56
      %p58 = scmp.ne.s32.totalorder %s50, %s52
      %p59 = scmp.eq.s32.totalorder %s21, 1
      %p60 = por %p58, %p59
      %p61 = scmp.ne.s32.totalorder %s52, %s53
      %p62 = scmp.eq.s32.totalorder %s21, 0
      %p63 = por %p61, %p62
      %p64 = scmp.ne.s32.totalorder %s52, %s53
      %p65 = scmp.eq.s32.totalorder %s22, 1
      %p66 = por %p64, %p65
      %p68 = scmp.ne.s32.totalorder %s53, %s67
      %p69 = scmp.eq.s32.totalorder %s22, 0
      %p70 = por %p68, %p69
      %s72 = sadd.s32 %s71, 1
      %p75 = scmp.eq.s32.totalorder %s16, 1
      %p76 = scmp.ne.s32.totalorder %s71, %s73
      %p77 = scmp.eq.s32.totalorder %s16, 0
      %p78 = por %p76, %p77
      %p79 = scmp.ne.s32.totalorder %s71, %s73
      %p80 = scmp.eq.s32.totalorder %s21, 1
      %p81 = por %p79, %p80
      %p82 = scmp.ne.s32.totalorder %s73, %s74
      %p83 = scmp.eq.s32.totalorder %s21, 0
      %p84 = por %p82, %p83
      %p85 = scmp.ne.s32.totalorder %s73, %s74
      %p86 = scmp.eq.s32.totalorder %s22, 1
      %p87 = por %p85, %p86
      %p89 = scmp.ne.s32.totalorder %s74, %s88
      %p90 = scmp.eq.s32.totalorder %s22, 0
      %p91 = por %p89, %p90
      %s92 = ssub.s32 %s16, %s23
      %p93 = scmp.eq.s32.totalorder %s92, 0
      %s95 = sadd.s32 %s94, 1
      %s96 = scalar_select %p93, %s94, %s95
      %p99 = pneg %p93
      %p100 = scmp.eq.s32.totalorder %s16, 1
      %p101 = por %p99, %p100
      %p102 = scmp.ne.s32.totalorder %s94, %s97
      %p103 = scmp.eq.s32.totalorder %s16, 0
      %p104 = por %p102, %p103
      %p105 = scmp.ne.s32.totalorder %s94, %s97
      %p106 = scmp.eq.s32.totalorder %s21, 1
      %p107 = por %p105, %p106
      %p108 = scmp.ne.s32.totalorder %s97, %s98
      %p109 = scmp.eq.s32.totalorder %s21, 0
      %p110 = por %p108, %p109
      %p111 = scmp.ne.s32.totalorder %s97, %s98
      %p112 = scmp.eq.s32.totalorder %s22, 1
      %p113 = por %p111, %p112
      %p115 = scmp.ne.s32.totalorder %s98, %s114
      %p116 = scmp.eq.s32.totalorder %s22, 0
      %p117 = por %p115, %p116
      %p118 = scmp.le.s32.totalorder 1, %s16
      %p119 = scmp.lt.s32.totalorder %s16, 3
      %p120 = pnand %p118, %p119
      %p121 = pneg %p120
      // Predicated region
      $region9: #{_lambda_.28} parent=5 // pred_check
        _
      $region10: #{_lambda_.28} parent=5 // pred_check_branch
        %123 = sbr.rel (%p120) target = $region12
      $region11: #{_lambda_.28} parent=5 // pred_region
        %s124 = ssub.s32 %s16, 1
        // Predicated region
        $region13: #{_lambda_.28} parent=11 // pred_check
          %p125 = pneg %p63
        $region14: #{_lambda_.28} parent=11 // pred_check_branch
          %127 = sbr.rel (%p125) target = $region16
        $region15: #{_lambda_.28} parent=11 // pred_region
          %s129 = ssub.s32 16, 16
          %130 = vsyncadd [#allocation6], %s129
          %s132 = sshll.u32 [#allocation5], 4
          %s133 = int_to_ptr.vmem [resolvable:$true] %s132
          %135 = dma.hbm_to_vmem [thread:$0]  %s1, 16, %s133, [#allocation6]
        $region16: #{_lambda_.28} parent=11 // pred_fallthru
          _
        // Predicated region
        $region17: #{_lambda_.28} parent=11 // pred_check
          %p136 = pneg %p84
        $region18: #{_lambda_.28} parent=11 // pred_check_branch
          %138 = sbr.rel (%p136) target = $region20
        $region19: #{_lambda_.28} parent=11 // pred_region
          %s140 = ssub.s32 16, 16
          %141 = vsyncadd [#allocation6], %s140
          %s143 = sshll.u32 [#allocation7], 4
          %s144 = int_to_ptr.vmem [resolvable:$true] %s143
          %146 = dma.hbm_to_vmem [thread:$0]  %s2, 16, %s144, [#allocation6]
        $region20: #{_lambda_.28} parent=11 // pred_fallthru
          _
      $region12: #{_lambda_.28} parent=5 // pred_fallthru
        _
      %p147 = scmp.lt.s32.totalorder %s16, 2
      // Predicated region
      $region21: #{_lambda_.28} parent=5 // pred_check
        %p148 = pneg %p147
      $region22: #{_lambda_.28} parent=5 // pred_check_branch
        %150 = sbr.rel (%p148) target = $region24
      $region23: #{_lambda_.28} parent=5 // pred_region
        // Predicated region
        $region25: #{_lambda_.28} parent=23 // pred_check
          %p151 = pneg %p36
        $region26: #{_lambda_.28} parent=23 // pred_check_branch
          %153 = sbr.rel (%p151) target = $region28
        $region27: #{_lambda_.28} parent=23 // pred_region
          %s154 = sand.u32 %s26, 1
          %s155 = scalar_lea.sflag [#allocation3], %s154
          %s156 = sand.u32 %s26, 1
          %s157 = smul.addr %s156, 16
          %s158 = scalar_lea.vmem [#allocation2], %s157
          %s160 = ssub.s32 256, 256
          %161 = vsyncadd %s155, %s160
          %s162 = smul.addr %s16, 2
          %s163 = smul.addr %s162, 128
          %s164 = scalar_lea.hbm %s0, %s163
          %s165 = sshll.u32 %s158, 4
          %s166 = int_to_ptr.vmem [resolvable:$true] %s165
          %171 = dma.hbm_to_vmem [thread:$0]  %s164, 256, %s166, %s155, 128, 128, 8
        $region28: #{_lambda_.28} parent=23 // pred_fallthru
          _
      $region24: #{_lambda_.28} parent=5 // pred_fallthru
        _
      %p172 = scmp.le.s32.totalorder 1, %s16
      %p173 = scmp.lt.s32.totalorder %s16, 3
      %p174 = pnand %p172, %p173
      %p175 = pneg %p174
      // Predicated region
      $region29: #{_lambda_.28} parent=5 // pred_check
        _
      $region30: #{_lambda_.28} parent=5 // pred_check_branch
        %177 = sbr.rel (%p174) target = $region32
      $region31: #{_lambda_.28} parent=5 // pred_region
        %s178 = ssub.s32 %s16, 1
        %s179 = sand.u32 %s29, 1
        %s180 = scalar_lea.sflag [#allocation3], %s179
        %s181 = sand.u32 %s29, 1
        %s182 = smul.addr %s181, 16
        %s183 = scalar_lea.vmem [#allocation2], %s182
        // Predicated region
        $region33: #{_lambda_.28} parent=31 // pred_check
          %p184 = pneg %p42
        $region34: #{_lambda_.28} parent=31 // pred_check_branch
          %186 = sbr.rel (%p184) target = $region36
        $region35: #{_lambda_.28} parent=31 // pred_region
          %187 = dma.done %s180, 256
        $region36: #{_lambda_.28} parent=31 // pred_fallthru
          _
        // Predicated region
        $region37: #{_lambda_.28} parent=31 // pred_check
          %p188 = pneg %p63
        $region38: #{_lambda_.28} parent=31 // pred_check_branch
          %190 = sbr.rel (%p188) target = $region40
        $region39: #{_lambda_.28} parent=31 // pred_region
          %191 = dma.done [#allocation6], 16
        $region40: #{_lambda_.28} parent=31 // pred_fallthru
          _
        // Predicated region
        $region41: #{_lambda_.28} parent=31 // pred_check
          %p192 = pneg %p84
        $region42: #{_lambda_.28} parent=31 // pred_check_branch
          %194 = sbr.rel (%p192) target = $region44
        $region43: #{_lambda_.28} parent=31 // pred_region
          %195 = dma.done [#allocation6], 16
        $region44: #{_lambda_.28} parent=31 // pred_fallthru
          _
        %s196 = sand.u32 %s29, 1
        %s197 = scalar_lea.sflag [#allocation3], %s196
        %s198 = sand.u32 %s29, 1
        %s199 = smul.addr %s198, 16
        %s200 = scalar_lea.vmem [#allocation2], %s199
        %p201 = pneg %p42
        %p202 = pneg %p39
        %p203 = pneg %p63
        %p204 = pneg %p60
        %p205 = pneg %p84
        %p206 = pneg %p81
        %p207 = pneg %p110
        %p208 = pneg %p107
        %s209 = sand.u32 %s97, 1
        %s210 = scalar_lea.sflag [#allocation4], %s209
        %s211 = sand.u32 %s97, 1
        %s212 = smul.addr %s211, 16
        %s213 = scalar_lea.vmem [#allocation8], %s212
        %v214 = vld [vmem:[%s183] sm:$0xff]
        %v215 = vld [vmem:[%s183 + $0x8] sm:$0xff]
        %v216 = vld [vmem:[#allocation5] sm:$0x1]
        %v217 = vld [vmem:[#allocation7] sm:$0x1]
        %218 = vadd.xlane.f32.xlu0 %v214
        %v219 = vpop.xlane.xlu0 %218
        %220 = vadd.xlane.f32.xlu0 %v215
        %v221 = vpop.xlane.xlu0 %220
        %v222 = vrcp.pop 128.0
        %v223 = vmul.f32 %v219, %v222
        %v224 = vmul.f32 %v221, %v222
        %v225 = vsub.f32 %v214, %v223
        %v226 = vsub.f32 %v215, %v224
        %v227 = vmul.f32 %v225, %v225
        %v228 = vmul.f32 %v226, %v226
        %229 = vadd.xlane.f32.xlu0 %v227
        %v230 = vpop.xlane.xlu0 %229
        %231 = vadd.xlane.f32.xlu0 %v228
        %v232 = vpop.xlane.xlu0 %231
        %v233 = vmul.f32 %v230, %v222
        %v234 = vmul.f32 %v232, %v222
        %v235 = vadd.f32 %v233, 1e-05
        %v236 = vadd.f32 %v234, 1e-05
        %v237 = vrsqrt.pop %v235
        %v238 = vrsqrt.pop %v236
        %v239 = vmul.f32 %v225, %v237
        %v240 = vmul.f32 %v226, %v238
        %v242 = vlaneseq
        %v243 = vshrl.u32 %v242, 7
        %v244 = vsub.s32 0, %v243
        %v245 = vrot.slane %v216, %v244
        %v247 = vmul.f32 %v239, %v245
        %v248 = vmul.f32 %v240, %v245
        %v250 = vlaneseq
        %v251 = vshrl.u32 %v250, 7
        %v252 = vsub.s32 0, %v251
        %v253 = vrot.slane %v217, %v252
        %v255 = vadd.f32 %v247, %v253
        %v256 = vadd.f32 %v248, %v253
        %v257 = vadd.f32 %v255, %v256
        %v258 = vrot.slane %v257, 4
        %v259 = vadd.f32 %v257, %v258
        %v260 = vrot.slane %v259, 2
        %v261 = vadd.f32 %v259, %v260
        %v262 = vrot.slane %v261, 1
        %v263 = vadd.f32 %v261, %v262
        %v264 = vrcp.pop 16.0
        %v265 = vmul.f32 %v263, %v264
        %v266 = vsub.f32 %v255, %v265
        %v267 = vsub.f32 %v256, %v265
        %268 = vst [vmem:[%s213] sm:$0xff] %v266
        %269 = vst [vmem:[%s213 + $0x8] sm:$0xff] %v267
        %s270 = sand.u32 %s97, 1
        %s271 = scalar_lea.sflag [#allocation4], %s270
        %s272 = sand.u32 %s97, 1
        %s273 = smul.addr %s272, 16
        %s274 = scalar_lea.vmem [#allocation8], %s273
        // Predicated region
        $region45: #{_lambda_.28} parent=31 // pred_check
          %p275 = pneg %p107
        $region46: #{_lambda_.28} parent=31 // pred_check_branch
          %277 = sbr.rel (%p275) target = $region48
        $region47: #{_lambda_.28} parent=31 // pred_region
          %s279 = ssub.s32 256, 256
          %280 = vsyncadd %s271, %s279
          %s281 = smul.addr %s21, 2
          %s282 = smul.addr %s281, 128
          %s283 = scalar_lea.hbm %s3, %s282
          %s284 = sshll.u32 %s274, 4
          %s285 = int_to_ptr.vmem [resolvable:$true] %s284
          %290 = dma.vmem_to_hbm [thread:$0]  %s285, 256, %s283, %s271, 128, 128, 8
        $region48: #{_lambda_.28} parent=31 // pred_fallthru
          _
      $region32: #{_lambda_.28} parent=5 // pred_fallthru
        _
      %p291 = scmp.le.s32.totalorder 2, %s16
      // Predicated region
      $region49: #{_lambda_.28} parent=5 // pred_check
        %p292 = pneg %p291
      $region50: #{_lambda_.28} parent=5 // pred_check_branch
        %294 = sbr.rel (%p292) target = $region52
      $region51: #{_lambda_.28} parent=5 // pred_region
        %s295 = ssub.s32 %s16, 2
        // Predicated region
        $region53: #{_lambda_.28} parent=51 // pred_check
          %p296 = pneg %p113
        $region54: #{_lambda_.28} parent=51 // pred_check_branch
          %298 = sbr.rel (%p296) target = $region56
        $region55: #{_lambda_.28} parent=51 // pred_region
          %s299 = sand.u32 %s98, 1
          %s300 = scalar_lea.sflag [#allocation4], %s299
          %s301 = sand.u32 %s98, 1
          %s302 = smul.addr %s301, 16
          %s303 = scalar_lea.vmem [#allocation8], %s302
          %304 = dma.done %s300, 256
        $region56: #{_lambda_.28} parent=51 // pred_fallthru
          _
      $region52: #{_lambda_.28} parent=5 // pred_fallthru
        _
    $region6: #{_lambda_.28} parent=1 // loop_footer
      %s20 = sadd.s32 1, %s16
    $region7: #{_lambda_.28} parent=1 // loop_footer_branch
      %15 = sbr.rel target = $region3
    $region8: #{_lambda_.28} parent=1 // loop_exit
      _
    %305 = vsyncpa [#allocation3], 1
    %s306 = scalar_lea.sflag [#allocation3], 1
    %307 = vsyncpa %s306, 1
    %308 = vsyncpa [#allocation6], 1
    %309 = vsyncpa [#allocation4], 1
    %s310 = scalar_lea.sflag [#allocation4], 1
    %311 = vsyncpa %s310, 1

// kernel: _lambda_.26
$region0: #{_lambda_.26}
  #allocation0 [shape = 'u32[]', space=smem, size = 0x4, offset = 0x4, fixed_abs, tag = 'smem constant byte address 0x4 - core index']
  #allocation1 [shape = 'u32[144,128]{1,0:T(1,128)}', space=vmem, size = 0x12000, scoped, tag = 'internal scratch']
  %s0 = inlined_call_operand.hbm [shape: f32[32,128], index: 0, kind: input, shape index: {}]
  %s1 = inlined_call_operand.hbm [shape: bf16[128,256], index: 1, kind: input, shape index: {}]
  %s2 = inlined_call_operand.hbm [shape: bf16[256,128], index: 2, kind: input, shape index: {}]
  %s3 = inlined_call_operand.hbm [shape: f32[32,128], index: 3, kind: output, shape index: {}]
  %s4 = sld [smem:[#allocation0]]
  $region57: #{_lambda_.26} parent=0
    _
  %s6 = ssub.s32 1, %s4
  %s7 = scalar_select 0, %s6, %s4
  $region1: #{_lambda_.26} parent=0
    #allocation2 [shape = 'u8[16384]{0}', space=vmem, size = 0x4000, scoped, tag = 'input window, operand 0']
    #allocation3 [shape = 's32[2]{0}', space=sflag, size = 0x8, scoped, tag = 'scoped memory for _lambda_.26']
    #allocation4 [shape = 's32[2]{0}', space=sflag, size = 0x8, scoped, tag = 'scoped memory for _lambda_.26']
    #allocation5 [shape = 'u8[65536]{0}', space=vmem, size = 0x10000, scoped, tag = 'input window, operand 1, single buffered']
    #allocation6 [shape = 's32[1]{0}', space=sflag, size = 0x4, scoped, tag = 'scoped memory for _lambda_.26']
    #allocation7 [shape = 'u8[65536]{0}', space=vmem, size = 0x10000, scoped, tag = 'input window, operand 2, single buffered']
    #allocation8 [shape = 'u8[16384]{0}', space=vmem, size = 0x4000, scoped, tag = 'output window, operand 0']
    %8 = vsyncpa [#allocation3], 0
    %s9 = scalar_lea.sflag [#allocation3], 1
    %10 = vsyncpa %s9, 0
    %11 = vsyncpa [#allocation6], 0
    %12 = vsyncpa [#allocation4], 0
    %s13 = scalar_lea.sflag [#allocation4], 1
    %14 = vsyncpa %s13, 0
    loop: start=0, step=1, limit=4
    $region2: #{_lambda_.26} parent=1 // loop_pre_header
      _
    $region3: #{_lambda_.26} parent=1 // loop_header
      %s16 = sphi 0, %s20
      %p17 = scmp.ge.s32.totalorder %s16, 4
      %s26 = sphi 0, %s28
      %s29 = sphi 0, %s26
      %s30 = sphi 0, %s29
      %s46 = sphi 0, %s30
      %s50 = sphi 0, %s50
      %s52 = sphi 0, %s50
      %s53 = sphi 0, %s52
      %s67 = sphi 0, %s53
      %s71 = sphi 0, %s71
      %s73 = sphi 0, %s71
      %s74 = sphi 0, %s73
      %s88 = sphi 0, %s74
      %s94 = sphi 0, %s96
      %s97 = sphi 0, %s94
      %s98 = sphi 0, %s97
      %s114 = sphi 0, %s98
    $region4: #{_lambda_.26} parent=1 // loop_header_branch
      %19 = sbr.rel (%p17) target = $region8
    $region5: #{_lambda_.26} parent=1 // loop_body
      %s21 = ssub.s32 %s16, 1
      %s22 = ssub.s32 %s16, 2
      %s23 = sadd.s32 %s16, 1
      %s24 = ssub.s32 %s16, %s23
      %p25 = scmp.eq.s32.totalorder %s24, 0
      %s27 = sadd.s32 %s26, 1
      %s28 = scalar_select %p25, %s26, %s27
      %p31 = pneg %p25
      %p32 = scmp.eq.s32.totalorder %s16, 1
      %p33 = por %p31, %p32
      %p34 = scmp.ne.s32.totalorder %s26, %s29
      %p35 = scmp.eq.s32.totalorder %s16, 0
      %p36 = por %p34, %p35
      %p37 = scmp.ne.s32.totalorder %s26, %s29
      %p38 = scmp.eq.s32.totalorder %s21, 1
      %p39 = por %p37, %p38
      %p40 = scmp.ne.s32.totalorder %s29, %s30
      %p41 = scmp.eq.s32.totalorder %s21, 0
      %p42 = por %p40, %p41
      %p43 = scmp.ne.s32.totalorder %s29, %s30
      %p44 = scmp.eq.s32.totalorder %s22, 1
      %p45 = por %p43, %p44
      %p47 = scmp.ne.s32.totalorder %s30, %s46
      %p48 = scmp.eq.s32.totalorder %s22, 0
      %p49 = por %p47, %p48
      %s51 = sadd.s32 %s50, 1
      %p54 = scmp.eq.s32.totalorder %s16, 1
      %p55 = scmp.ne.s32.totalorder %s50, %s52
      %p56 = scmp.eq.s32.totalorder %s16, 0
      %p57 = por %p55, %p56
      %p58 = scmp.ne.s32.totalorder %s50, %s52
      %p59 = scmp.eq.s32.totalorder %s21, 1
      %p60 = por %p58, %p59
      %p61 = scmp.ne.s32.totalorder %s52, %s53
      %p62 = scmp.eq.s32.totalorder %s21, 0
      %p63 = por %p61, %p62
      %p64 = scmp.ne.s32.totalorder %s52, %s53
      %p65 = scmp.eq.s32.totalorder %s22, 1
      %p66 = por %p64, %p65
      %p68 = scmp.ne.s32.totalorder %s53, %s67
      %p69 = scmp.eq.s32.totalorder %s22, 0
      %p70 = por %p68, %p69
      %s72 = sadd.s32 %s71, 1
      %p75 = scmp.eq.s32.totalorder %s16, 1
      %p76 = scmp.ne.s32.totalorder %s71, %s73
      %p77 = scmp.eq.s32.totalorder %s16, 0
      %p78 = por %p76, %p77
      %p79 = scmp.ne.s32.totalorder %s71, %s73
      %p80 = scmp.eq.s32.totalorder %s21, 1
      %p81 = por %p79, %p80
      %p82 = scmp.ne.s32.totalorder %s73, %s74
      %p83 = scmp.eq.s32.totalorder %s21, 0
      %p84 = por %p82, %p83
      %p85 = scmp.ne.s32.totalorder %s73, %s74
      %p86 = scmp.eq.s32.totalorder %s22, 1
      %p87 = por %p85, %p86
      %p89 = scmp.ne.s32.totalorder %s74, %s88
      %p90 = scmp.eq.s32.totalorder %s22, 0
      %p91 = por %p89, %p90
      %s92 = ssub.s32 %s16, %s23
      %p93 = scmp.eq.s32.totalorder %s92, 0
      %s95 = sadd.s32 %s94, 1
      %s96 = scalar_select %p93, %s94, %s95
      %p99 = pneg %p93
      %p100 = scmp.eq.s32.totalorder %s16, 1
      %p101 = por %p99, %p100
      %p102 = scmp.ne.s32.totalorder %s94, %s97
      %p103 = scmp.eq.s32.totalorder %s16, 0
      %p104 = por %p102, %p103
      %p105 = scmp.ne.s32.totalorder %s94, %s97
      %p106 = scmp.eq.s32.totalorder %s21, 1
      %p107 = por %p105, %p106
      %p108 = scmp.ne.s32.totalorder %s97, %s98
      %p109 = scmp.eq.s32.totalorder %s21, 0
      %p110 = por %p108, %p109
      %p111 = scmp.ne.s32.totalorder %s97, %s98
      %p112 = scmp.eq.s32.totalorder %s22, 1
      %p113 = por %p111, %p112
      %p115 = scmp.ne.s32.totalorder %s98, %s114
      %p116 = scmp.eq.s32.totalorder %s22, 0
      %p117 = por %p115, %p116
      %p118 = scmp.le.s32.totalorder 1, %s16
      %p119 = scmp.lt.s32.totalorder %s16, 3
      %p120 = pnand %p118, %p119
      %p121 = pneg %p120
      // Predicated region
      $region9: #{_lambda_.26} parent=5 // pred_check
        _
      $region10: #{_lambda_.26} parent=5 // pred_check_branch
        %123 = sbr.rel (%p120) target = $region12
      $region11: #{_lambda_.26} parent=5 // pred_region
        %s124 = ssub.s32 %s16, 1
        // Predicated region
        $region13: #{_lambda_.26} parent=11 // pred_check
          %p125 = pneg %p63
        $region14: #{_lambda_.26} parent=11 // pred_check_branch
          %127 = sbr.rel (%p125) target = $region16
        $region15: #{_lambda_.26} parent=11 // pred_region
          %s129 = ssub.s32 2048, 2048
          %130 = vsyncadd [#allocation6], %s129
          %s131 = sshll.u32 [#allocation5], 4
          %s132 = int_to_ptr.vmem [resolvable:$true] %s131
          %137 = dma.hbm_to_vmem [thread:$0]  %s1, 2048, %s132, [#allocation6], 128, 128, 8
        $region16: #{_lambda_.26} parent=11 // pred_fallthru
          _
        // Predicated region
        $region17: #{_lambda_.26} parent=11 // pred_check
          %p138 = pneg %p84
        $region18: #{_lambda_.26} parent=11 // pred_check_branch
          %140 = sbr.rel (%p138) target = $region20
        $region19: #{_lambda_.26} parent=11 // pred_region
          %s142 = ssub.s32 2048, 2048
          %143 = vsyncadd [#allocation6], %s142
          %s144 = sshll.u32 [#allocation7], 4
          %s145 = int_to_ptr.vmem [resolvable:$true] %s144
          %150 = dma.hbm_to_vmem [thread:$0]  %s2, 2048, %s145, [#allocation6], 64, 64, 4
        $region20: #{_lambda_.26} parent=11 // pred_fallthru
          _
      $region12: #{_lambda_.26} parent=5 // pred_fallthru
        _
      %p151 = scmp.lt.s32.totalorder %s16, 2
      // Predicated region
      $region21: #{_lambda_.26} parent=5 // pred_check
        %p152 = pneg %p151
      $region22: #{_lambda_.26} parent=5 // pred_check_branch
        %154 = sbr.rel (%p152) target = $region24
      $region23: #{_lambda_.26} parent=5 // pred_region
        // Predicated region
        $region25: #{_lambda_.26} parent=23 // pred_check
          %p155 = pneg %p36
        $region26: #{_lambda_.26} parent=23 // pred_check_branch
          %157 = sbr.rel (%p155) target = $region28
        $region27: #{_lambda_.26} parent=23 // pred_region
          %s158 = sand.u32 %s26, 1
          %s159 = scalar_lea.sflag [#allocation3], %s158
          %s160 = sand.u32 %s26, 1
          %s161 = smul.addr %s160, 16
          %s162 = scalar_lea.vmem [#allocation2], %s161
          %s163 = smul.u32 2, %s16
          %s165 = ssub.s32 256, 256
          %166 = vsyncadd %s159, %s165
          %s167 = smul.addr %s163, 128
          %s168 = scalar_lea.hbm %s0, %s167
          %s169 = sshll.u32 %s162, 4
          %s170 = int_to_ptr.vmem [resolvable:$true] %s169
          %175 = dma.hbm_to_vmem [thread:$0]  %s168, 256, %s170, %s159, 128, 128, 8
        $region28: #{_lambda_.26} parent=23 // pred_fallthru
          _
      $region24: #{_lambda_.26} parent=5 // pred_fallthru
        _
      %p176 = scmp.le.s32.totalorder 1, %s16
      %p177 = scmp.lt.s32.totalorder %s16, 3
      %p178 = pnand %p176, %p177
      %p179 = pneg %p178
      // Predicated region
      $region29: #{_lambda_.26} parent=5 // pred_check
        _
      $region30: #{_lambda_.26} parent=5 // pred_check_branch
        %181 = sbr.rel (%p178) target = $region32
      $region31: #{_lambda_.26} parent=5 // pred_region
        %s182 = ssub.s32 %s16, 1
        %s183 = sand.u32 %s29, 1
        %s184 = scalar_lea.sflag [#allocation3], %s183
        %s185 = sand.u32 %s29, 1
        %s186 = smul.addr %s185, 16
        %s187 = scalar_lea.vmem [#allocation2], %s186
        // Predicated region
        $region33: #{_lambda_.26} parent=31 // pred_check
          %p188 = pneg %p42
        $region34: #{_lambda_.26} parent=31 // pred_check_branch
          %190 = sbr.rel (%p188) target = $region36
        $region35: #{_lambda_.26} parent=31 // pred_region
          %191 = dma.done %s184, 256
        $region36: #{_lambda_.26} parent=31 // pred_fallthru
          _
        // Predicated region
        $region37: #{_lambda_.26} parent=31 // pred_check
          %p192 = pneg %p63
        $region38: #{_lambda_.26} parent=31 // pred_check_branch
          %194 = sbr.rel (%p192) target = $region40
        $region39: #{_lambda_.26} parent=31 // pred_region
          %195 = dma.done [#allocation6], 2048
        $region40: #{_lambda_.26} parent=31 // pred_fallthru
          _
        // Predicated region
        $region41: #{_lambda_.26} parent=31 // pred_check
          %p196 = pneg %p84
        $region42: #{_lambda_.26} parent=31 // pred_check_branch
          %198 = sbr.rel (%p196) target = $region44
        $region43: #{_lambda_.26} parent=31 // pred_region
          %199 = dma.done [#allocation6], 2048
        $region44: #{_lambda_.26} parent=31 // pred_fallthru
          _
        %s200 = sand.u32 %s29, 1
        %s201 = scalar_lea.sflag [#allocation3], %s200
        %s202 = sand.u32 %s29, 1
        %s203 = smul.addr %s202, 16
        %s204 = scalar_lea.vmem [#allocation2], %s203
        %p205 = pneg %p42
        %p206 = pneg %p39
        %p207 = pneg %p63
        %p208 = pneg %p60
        %p209 = pneg %p84
        %p210 = pneg %p81
        %p211 = pneg %p110
        %p212 = pneg %p107
        %s213 = sand.u32 %s97, 1
        %s214 = scalar_lea.sflag [#allocation4], %s213
        %s215 = sand.u32 %s97, 1
        %s216 = smul.addr %s215, 16
        %s217 = scalar_lea.vmem [#allocation8], %s216
        %s218 = smul.u32 2, %s21
        %s219 = smul.u32 2, %s21
        %v221 = vld [vmem:[%s187] sm:$0xff]
        %v222 = vld [vmem:[%s187 + $0x8] sm:$0xff]
        %v223 = vpack.c.bf16 %v222, %v221
        %v224 = vld [vmem:[#allocation5] sm:$0xff]
        %v225 = vld [vmem:[#allocation5 + $0x8] sm:$0xff]
        %v226 = vld [vmem:[#allocation5 + $0x10] sm:$0xff]
        %v227 = vld [vmem:[#allocation5 + $0x18] sm:$0xff]
        %v228 = vld [vmem:[#allocation5 + $0x20] sm:$0xff]
        %v229 = vld [vmem:[#allocation5 + $0x28] sm:$0xff]
        %v230 = vld [vmem:[#allocation5 + $0x30] sm:$0xff]
        %v231 = vld [vmem:[#allocation5 + $0x38] sm:$0xff]
        %v232 = vld [vmem:[#allocation5 + $0x40] sm:$0xff]
        %v233 = vld [vmem:[#allocation5 + $0x48] sm:$0xff]
        %v234 = vld [vmem:[#allocation5 + $0x50] sm:$0xff]
        %v235 = vld [vmem:[#allocation5 + $0x58] sm:$0xff]
        %v236 = vld [vmem:[#allocation5 + $0x60] sm:$0xff]
        %v237 = vld [vmem:[#allocation5 + $0x68] sm:$0xff]
        %v238 = vld [vmem:[#allocation5 + $0x70] sm:$0xff]
        %v239 = vld [vmem:[#allocation5 + $0x78] sm:$0xff]
        %v256 = vunpack.c.l.b16 %v224
        %v257 = vunpack.c.h.b16 %v224
        %v258 = vunpack.c.l.b16 %v225
        %v259 = vunpack.c.h.b16 %v225
        %v260 = vunpack.c.l.b16 %v226
        %v261 = vunpack.c.h.b16 %v226
        %v262 = vunpack.c.l.b16 %v227
        %v263 = vunpack.c.h.b16 %v227
        %v264 = vunpack.c.l.b16 %v228
        %v265 = vunpack.c.h.b16 %v228
        %v266 = vunpack.c.l.b16 %v229
        %v267 = vunpack.c.h.b16 %v229
        %v268 = vunpack.c.l.b16 %v230
        %v269 = vunpack.c.h.b16 %v230
        %v270 = vunpack.c.l.b16 %v231
        %v271 = vunpack.c.h.b16 %v231
        %v272 = vunpack.c.l.b16 %v232
        %v273 = vunpack.c.h.b16 %v232
        %v274 = vunpack.c.l.b16 %v233
        %v275 = vunpack.c.h.b16 %v233
        %v276 = vunpack.c.l.b16 %v234
        %v277 = vunpack.c.h.b16 %v234
        %v278 = vunpack.c.l.b16 %v235
        %v279 = vunpack.c.h.b16 %v235
        %v280 = vunpack.c.l.b16 %v236
        %v281 = vunpack.c.h.b16 %v236
        %v282 = vunpack.c.l.b16 %v237
        %v283 = vunpack.c.h.b16 %v237
        %v284 = vunpack.c.l.b16 %v238
        %v285 = vunpack.c.h.b16 %v238
        %v286 = vunpack.c.l.b16 %v239
        %v287 = vunpack.c.h.b16 %v239
        %v288 = vpack.c.b16 %v258, %v256
        %v289 = vpack.c.b16 %v259, %v257
        %v290 = vpack.c.b16 %v262, %v260
        %v291 = vpack.c.b16 %v263, %v261
        %v292 = vpack.c.b16 %v266, %v264
        %v293 = vpack.c.b16 %v267, %v265
        %v294 = vpack.c.b16 %v270, %v268
        %v295 = vpack.c.b16 %v271, %v269
        %v296 = vpack.c.b16 %v274, %v272
        %v297 = vpack.c.b16 %v275, %v273
        %v298 = vpack.c.b16 %v278, %v276
        %v299 = vpack.c.b16 %v279, %v277
        %v300 = vpack.c.b16 %v282, %v280
        %v301 = vpack.c.b16 %v283, %v281
        %v302 = vpack.c.b16 %v286, %v284
        %v303 = vpack.c.b16 %v287, %v285
        %320 = vmatprep.subr.bf16.mxu0 %v289
        %321 = vmatpush1.bf16.msra.mxu0 %v288
        %322 = vmatprep.subr.bf16.mxu0 %v291
        %323 = vmatpush1.bf16.msra.mxu0 %v290
        %324 = vmatprep.subr.bf16.mxu0 %v293
        %325 = vmatpush1.bf16.msra.mxu0 %v292
        %326 = vmatprep.subr.bf16.mxu0 %v295
        %327 = vmatpush1.bf16.msra.mxu0 %v294
        %328 = vmatprep.subr.bf16.mxu0 %v297
        %329 = vmatpush1.bf16.msra.mxu0 %v296
        %330 = vmatprep.subr.bf16.mxu0 %v299
        %331 = vmatpush1.bf16.msra.mxu0 %v298
        %332 = vmatprep.subr.bf16.mxu0 %v301
        %333 = vmatpush1.bf16.msra.mxu0 %v300
        %334 = vmatprep.subr.bf16.mxu0 %v303
        %335 = vmatpush1.bf16.msra.mxu0 %v302
        %336 = vmatprep.subr.bf16.mxu0 0
        %337 = vmatpush1.bf16.msra.mxu0 0
        %338 = vmatprep.subr.bf16.mxu0 0
        %339 = vmatpush1.bf16.msra.mxu0 0
        %340 = vmatprep.subr.bf16.mxu0 0
        %341 = vmatpush1.bf16.msra.mxu0 0
        %342 = vmatprep.subr.bf16.mxu0 0
        %343 = vmatpush1.bf16.msra.mxu0 0
        %344 = vmatprep.subr.bf16.mxu0 0
        %345 = vmatpush1.bf16.msra.mxu0 0
        %346 = vmatprep.subr.bf16.mxu0 0
        %347 = vmatpush1.bf16.msra.mxu0 0
        %348 = vmatprep.subr.bf16.mxu0 0
        %349 = vmatpush1.bf16.msra.mxu0 0
        %350 = vmatprep.subr.bf16.mxu0 0
        %351 = vmatpush1.bf16.msra.mxu0 0
        %352 = vmatprep.mubr.bf16.mxu0 0
        %353 = vmatmul.mubr.bf16.gmra.mrb[0].mxu0 %v223
        %v354 = vpop.f32.mrb[0].mxu0
        %v355 = vadd.f32 0.0, %v354
        %v356 = vpop.f32.mrb[0].mxu0
        %v357 = vadd.f32 0.0, %v356
        %v358 = vpop.f32.mrb[0].mxu0
        %v359 = vadd.f32 0.0, %v358
        %v360 = vpop.f32.mrb[0].mxu0
        %v361 = vadd.f32 0.0, %v360
        %362 = vdwg.mxu0
        %v363 = vmax.f32 %v355, 0.0
        %v364 = vmax.f32 %v357, 0.0
        %v365 = vmax.f32 %v359, 0.0
        %v366 = vmax.f32 %v361, 0.0
        %v367 = vpack.c.bf16 %v365, %v363
        %v368 = vpack.c.bf16 %v366, %v364
        %v369 = vld [vmem:[#allocation7] sm:$0xf]
        %v370 = vld [vmem:[#allocation7 + $0x4] sm:$0xf]
        %v371 = vld [vmem:[#allocation7 + $0x8] sm:$0xf]
        %v372 = vld [vmem:[#allocation7 + $0xc] sm:$0xf]
        %v373 = vld [vmem:[#allocation7 + $0x10] sm:$0xf]
        %v374 = vld [vmem:[#allocation7 + $0x14] sm:$0xf]
        %v375 = vld [vmem:[#allocation7 + $0x18] sm:$0xf]
        %v376 = vld [vmem:[#allocation7 + $0x1c] sm:$0xf]
        %v377 = vld [vmem:[#allocation7 + $0x20] sm:$0xf]
        %v378 = vld [vmem:[#allocation7 + $0x24] sm:$0xf]
        %v379 = vld [vmem:[#allocation7 + $0x28] sm:$0xf]
        %v380 = vld [vmem:[#allocation7 + $0x2c] sm:$0xf]
        %v381 = vld [vmem:[#allocation7 + $0x30] sm:$0xf]
        %v382 = vld [vmem:[#allocation7 + $0x34] sm:$0xf]
        %v383 = vld [vmem:[#allocation7 + $0x38] sm:$0xf]
        %v384 = vld [vmem:[#allocation7 + $0x3c] sm:$0xf]
        %v385 = vld [vmem:[#allocation7 + $0x40] sm:$0xf]
        %v386 = vld [vmem:[#allocation7 + $0x44] sm:$0xf]
        %v387 = vld [vmem:[#allocation7 + $0x48] sm:$0xf]
        %v388 = vld [vmem:[#allocation7 + $0x4c] sm:$0xf]
        %v389 = vld [vmem:[#allocation7 + $0x50] sm:$0xf]
        %v390 = vld [vmem:[#allocation7 + $0x54] sm:$0xf]
        %v391 = vld [vmem:[#allocation7 + $0x58] sm:$0xf]
        %v392 = vld [vmem:[#allocation7 + $0x5c] sm:$0xf]
        %v393 = vld [vmem:[#allocation7 + $0x60] sm:$0xf]
        %v394 = vld [vmem:[#allocation7 + $0x64] sm:$0xf]
        %v395 = vld [vmem:[#allocation7 + $0x68] sm:$0xf]
        %v396 = vld [vmem:[#allocation7 + $0x6c] sm:$0xf]
        %v397 = vld [vmem:[#allocation7 + $0x70] sm:$0xf]
        %v398 = vld [vmem:[#allocation7 + $0x74] sm:$0xf]
        %v399 = vld [vmem:[#allocation7 + $0x78] sm:$0xf]
        %v400 = vld [vmem:[#allocation7 + $0x7c] sm:$0xf]
        %v433 = vunpack.c.l.b16 %v369
        %v434 = vunpack.c.l.b16 %v370
        %v435 = vunpack.c.l.b16 %v371
        %v436 = vunpack.c.l.b16 %v372
        %v437 = vunpack.c.l.b16 %v373
        %v438 = vunpack.c.l.b16 %v374
        %v439 = vunpack.c.l.b16 %v375
        %v440 = vunpack.c.l.b16 %v376
        %v441 = vunpack.c.l.b16 %v377
        %v442 = vunpack.c.l.b16 %v378
        %v443 = vunpack.c.l.b16 %v379
        %v444 = vunpack.c.l.b16 %v380
        %v445 = vunpack.c.l.b16 %v381
        %v446 = vunpack.c.l.b16 %v382
        %v447 = vunpack.c.l.b16 %v383
        %v448 = vunpack.c.l.b16 %v384
        %v449 = vunpack.c.l.b16 %v385
        %v450 = vunpack.c.l.b16 %v386
        %v451 = vunpack.c.l.b16 %v387
        %v452 = vunpack.c.l.b16 %v388
        %v453 = vunpack.c.l.b16 %v389
        %v454 = vunpack.c.l.b16 %v390
        %v455 = vunpack.c.l.b16 %v391
        %v456 = vunpack.c.l.b16 %v392
        %v457 = vunpack.c.l.b16 %v393
        %v458 = vunpack.c.l.b16 %v394
        %v459 = vunpack.c.l.b16 %v395
        %v460 = vunpack.c.l.b16 %v396
        %v461 = vunpack.c.l.b16 %v397
        %v462 = vunpack.c.l.b16 %v398
        %v463 = vunpack.c.l.b16 %v399
        %v464 = vunpack.c.l.b16 %v400
        %v465 = vpack.c.b16 %v434, %v433
        %v466 = vpack.c.b16 %v436, %v435
        %v467 = vpack.c.b16 %v438, %v437
        %v468 = vpack.c.b16 %v440, %v439
        %v469 = vpack.c.b16 %v442, %v441
        %v470 = vpack.c.b16 %v444, %v443
        %v471 = vpack.c.b16 %v446, %v445
        %v472 = vpack.c.b16 %v448, %v447
        %v473 = vpack.c.b16 %v450, %v449
        %v474 = vpack.c.b16 %v452, %v451
        %v475 = vpack.c.b16 %v454, %v453
        %v476 = vpack.c.b16 %v456, %v455
        %v477 = vpack.c.b16 %v458, %v457
        %v478 = vpack.c.b16 %v460, %v459
        %v479 = vpack.c.b16 %v462, %v461
        %v480 = vpack.c.b16 %v464, %v463
        %497 = vmatprep.subr.bf16.mxu0 0
        %498 = vmatpush1.bf16.msra.mxu0 %v465
        %499 = vmatprep.subr.bf16.mxu0 0
        %500 = vmatpush1.bf16.msra.mxu0 %v466
        %501 = vmatprep.subr.bf16.mxu0 0
        %502 = vmatpush1.bf16.msra.mxu0 %v467
        %503 = vmatprep.subr.bf16.mxu0 0
        %504 = vmatpush1.bf16.msra.mxu0 %v468
        %505 = vmatprep.subr.bf16.mxu0 0
        %506 = vmatpush1.bf16.msra.mxu0 %v469
        %507 = vmatprep.subr.bf16.mxu0 0
        %508 = vmatpush1.bf16.msra.mxu0 %v470
        %509 = vmatprep.subr.bf16.mxu0 0
        %510 = vmatpush1.bf16.msra.mxu0 %v471
        %511 = vmatprep.subr.bf16.mxu0 0
        %512 = vmatpush1.bf16.msra.mxu0 %v472
        %513 = vmatprep.subr.bf16.mxu0 0
        %514 = vmatpush1.bf16.msra.mxu0 %v473
        %515 = vmatprep.subr.bf16.mxu0 0
        %516 = vmatpush1.bf16.msra.mxu0 %v474
        %517 = vmatprep.subr.bf16.mxu0 0
        %518 = vmatpush1.bf16.msra.mxu0 %v475
        %519 = vmatprep.subr.bf16.mxu0 0
        %520 = vmatpush1.bf16.msra.mxu0 %v476
        %521 = vmatprep.subr.bf16.mxu0 0
        %522 = vmatpush1.bf16.msra.mxu0 %v477
        %523 = vmatprep.subr.bf16.mxu0 0
        %524 = vmatpush1.bf16.msra.mxu0 %v478
        %525 = vmatprep.subr.bf16.mxu0 0
        %526 = vmatpush1.bf16.msra.mxu0 %v479
        %527 = vmatprep.subr.bf16.mxu0 0
        %528 = vmatpush1.bf16.msra.mxu0 %v480
        %529 = vmatprep.mubr.bf16.mxu0 %v368
        %530 = vmatmul.mubr.bf16.gmra.mrb[0].mxu0 %v367
        %v531 = vpop.f32.mrb[0].mxu0
        %v532 = vadd.f32 0.0, %v531
        %v533 = vpop.f32.mrb[0].mxu0
        %v534 = vpop.f32.mrb[0].mxu0
        %v535 = vadd.f32 0.0, %v534
        %v536 = vpop.f32.mrb[0].mxu0
        %537 = vdwg.mxu0
        %538 = vst [vmem:[%s217] sm:$0xff] %v532
        %539 = vst [vmem:[%s217 + $0x8] sm:$0xff] %v535
        %s540 = sand.u32 %s97, 1
        %s541 = scalar_lea.sflag [#allocation4], %s540
        %s542 = sand.u32 %s97, 1
        %s543 = smul.addr %s542, 16
        %s544 = scalar_lea.vmem [#allocation8], %s543
        // Predicated region
        $region45: #{_lambda_.26} parent=31 // pred_check
          %p545 = pneg %p107
        $region46: #{_lambda_.26} parent=31 // pred_check_branch
          %547 = sbr.rel (%p545) target = $region48
        $region47: #{_lambda_.26} parent=31 // pred_region
          %s548 = smul.u32 2, %s21
          %s550 = ssub.s32 256, 256
          %551 = vsyncadd %s541, %s550
          %s552 = smul.addr %s548, 128
          %s553 = scalar_lea.hbm %s3, %s552
          %s554 = sshll.u32 %s544, 4
          %s555 = int_to_ptr.vmem [resolvable:$true] %s554
          %560 = dma.vmem_to_hbm [thread:$0]  %s555, 256, %s553, %s541, 128, 128, 8
        $region48: #{_lambda_.26} parent=31 // pred_fallthru
          _
      $region32: #{_lambda_.26} parent=5 // pred_fallthru
        _
      %p561 = scmp.le.s32.totalorder 2, %s16
      // Predicated region
      $region49: #{_lambda_.26} parent=5 // pred_check
        %p562 = pneg %p561
      $region50: #{_lambda_.26} parent=5 // pred_check_branch
        %564 = sbr.rel (%p562) target = $region52
      $region51: #{_lambda_.26} parent=5 // pred_region
        %s565 = ssub.s32 %s16, 2
        // Predicated region
        $region53: #{_lambda_.26} parent=51 // pred_check
          %p566 = pneg %p113
        $region54: #{_lambda_.26} parent=51 // pred_check_branch
          %568 = sbr.rel (%p566) target = $region56
        $region55: #{_lambda_.26} parent=51 // pred_region
          %s569 = sand.u32 %s98, 1
          %s570 = scalar_lea.sflag [#allocation4], %s569
          %s571 = sand.u32 %s98, 1
          %s572 = smul.addr %s571, 16
          %s573 = scalar_lea.vmem [#allocation8], %s572
          %574 = dma.done %s570, 256
        $region56: #{_lambda_.26} parent=51 // pred_fallthru
          _
      $region52: #{_lambda_.26} parent=5 // pred_fallthru
        _
    $region6: #{_lambda_.26} parent=1 // loop_footer
      %s20 = sadd.s32 1, %s16
    $region7: #{_lambda_.26} parent=1 // loop_footer_branch
      %15 = sbr.rel target = $region3
    $region8: #{_lambda_.26} parent=1 // loop_exit
      _
    %575 = vsyncpa [#allocation3], 1
    %s576 = scalar_lea.sflag [#allocation3], 1
    %577 = vsyncpa %s576, 1
    %578 = vsyncpa [#allocation6], 1
    %579 = vsyncpa [#allocation4], 1
    %s580 = scalar_lea.sflag [#allocation4], 1
    %581 = vsyncpa %s580, 1

// kernel: _lambda_.34
$region0: #{_lambda_.34}
  #allocation0 [shape = 'u32[]', space=smem, size = 0x4, offset = 0x4, fixed_abs, tag = 'smem constant byte address 0x4 - core index']
  #allocation1 [shape = 'u32[144,128]{1,0:T(1,128)}', space=vmem, size = 0x12000, scoped, tag = 'internal scratch']
  %s0 = inlined_call_operand.hbm [shape: f32[32,128], index: 0, kind: input, shape index: {}]
  %s1 = inlined_call_operand.hbm [shape: bf16[128,256], index: 1, kind: input, shape index: {}]
  %s2 = inlined_call_operand.hbm [shape: f32[1,256], index: 2, kind: input, shape index: {}]
  %s3 = inlined_call_operand.hbm [shape: f32[32,256], index: 3, kind: output, shape index: {}]
  %s4 = sld [smem:[#allocation0]]
  $region57: #{_lambda_.34} parent=0
    _
  %s6 = ssub.s32 1, %s4
  %s7 = scalar_select 0, %s6, %s4
  $region1: #{_lambda_.34} parent=0
    #allocation2 [shape = 'u8[16384]{0}', space=vmem, size = 0x4000, scoped, tag = 'input window, operand 0']
    #allocation3 [shape = 's32[2]{0}', space=sflag, size = 0x8, scoped, tag = 'scoped memory for _lambda_.34']
    #allocation4 [shape = 's32[2]{0}', space=sflag, size = 0x8, scoped, tag = 'scoped memory for _lambda_.34']
    #allocation5 [shape = 'u8[65536]{0}', space=vmem, size = 0x10000, scoped, tag = 'input window, operand 1, single buffered']
    #allocation6 [shape = 's32[1]{0}', space=sflag, size = 0x4, scoped, tag = 'scoped memory for _lambda_.34']
    #allocation7 [shape = 'u8[1024]{0}', space=vmem, size = 0x400, scoped, tag = 'input window, operand 2, single buffered']
    #allocation8 [shape = 'u8[32768]{0}', space=vmem, size = 0x8000, scoped, tag = 'output window, operand 0']
    %8 = vsyncpa [#allocation3], 0
    %s9 = scalar_lea.sflag [#allocation3], 1
    %10 = vsyncpa %s9, 0
    %11 = vsyncpa [#allocation6], 0
    %12 = vsyncpa [#allocation4], 0
    %s13 = scalar_lea.sflag [#allocation4], 1
    %14 = vsyncpa %s13, 0
    loop: start=0, step=1, limit=4
    $region2: #{_lambda_.34} parent=1 // loop_pre_header
      _
    $region3: #{_lambda_.34} parent=1 // loop_header
      %s16 = sphi 0, %s20
      %p17 = scmp.ge.s32.totalorder %s16, 4
      %s26 = sphi 0, %s28
      %s29 = sphi 0, %s26
      %s30 = sphi 0, %s29
      %s46 = sphi 0, %s30
      %s50 = sphi 0, %s50
      %s52 = sphi 0, %s50
      %s53 = sphi 0, %s52
      %s67 = sphi 0, %s53
      %s71 = sphi 0, %s71
      %s73 = sphi 0, %s71
      %s74 = sphi 0, %s73
      %s88 = sphi 0, %s74
      %s94 = sphi 0, %s96
      %s97 = sphi 0, %s94
      %s98 = sphi 0, %s97
      %s114 = sphi 0, %s98
    $region4: #{_lambda_.34} parent=1 // loop_header_branch
      %19 = sbr.rel (%p17) target = $region8
    $region5: #{_lambda_.34} parent=1 // loop_body
      %s21 = ssub.s32 %s16, 1
      %s22 = ssub.s32 %s16, 2
      %s23 = sadd.s32 %s16, 1
      %s24 = ssub.s32 %s16, %s23
      %p25 = scmp.eq.s32.totalorder %s24, 0
      %s27 = sadd.s32 %s26, 1
      %s28 = scalar_select %p25, %s26, %s27
      %p31 = pneg %p25
      %p32 = scmp.eq.s32.totalorder %s16, 1
      %p33 = por %p31, %p32
      %p34 = scmp.ne.s32.totalorder %s26, %s29
      %p35 = scmp.eq.s32.totalorder %s16, 0
      %p36 = por %p34, %p35
      %p37 = scmp.ne.s32.totalorder %s26, %s29
      %p38 = scmp.eq.s32.totalorder %s21, 1
      %p39 = por %p37, %p38
      %p40 = scmp.ne.s32.totalorder %s29, %s30
      %p41 = scmp.eq.s32.totalorder %s21, 0
      %p42 = por %p40, %p41
      %p43 = scmp.ne.s32.totalorder %s29, %s30
      %p44 = scmp.eq.s32.totalorder %s22, 1
      %p45 = por %p43, %p44
      %p47 = scmp.ne.s32.totalorder %s30, %s46
      %p48 = scmp.eq.s32.totalorder %s22, 0
      %p49 = por %p47, %p48
      %s51 = sadd.s32 %s50, 1
      %p54 = scmp.eq.s32.totalorder %s16, 1
      %p55 = scmp.ne.s32.totalorder %s50, %s52
      %p56 = scmp.eq.s32.totalorder %s16, 0
      %p57 = por %p55, %p56
      %p58 = scmp.ne.s32.totalorder %s50, %s52
      %p59 = scmp.eq.s32.totalorder %s21, 1
      %p60 = por %p58, %p59
      %p61 = scmp.ne.s32.totalorder %s52, %s53
      %p62 = scmp.eq.s32.totalorder %s21, 0
      %p63 = por %p61, %p62
      %p64 = scmp.ne.s32.totalorder %s52, %s53
      %p65 = scmp.eq.s32.totalorder %s22, 1
      %p66 = por %p64, %p65
      %p68 = scmp.ne.s32.totalorder %s53, %s67
      %p69 = scmp.eq.s32.totalorder %s22, 0
      %p70 = por %p68, %p69
      %s72 = sadd.s32 %s71, 1
      %p75 = scmp.eq.s32.totalorder %s16, 1
      %p76 = scmp.ne.s32.totalorder %s71, %s73
      %p77 = scmp.eq.s32.totalorder %s16, 0
      %p78 = por %p76, %p77
      %p79 = scmp.ne.s32.totalorder %s71, %s73
      %p80 = scmp.eq.s32.totalorder %s21, 1
      %p81 = por %p79, %p80
      %p82 = scmp.ne.s32.totalorder %s73, %s74
      %p83 = scmp.eq.s32.totalorder %s21, 0
      %p84 = por %p82, %p83
      %p85 = scmp.ne.s32.totalorder %s73, %s74
      %p86 = scmp.eq.s32.totalorder %s22, 1
      %p87 = por %p85, %p86
      %p89 = scmp.ne.s32.totalorder %s74, %s88
      %p90 = scmp.eq.s32.totalorder %s22, 0
      %p91 = por %p89, %p90
      %s92 = ssub.s32 %s16, %s23
      %p93 = scmp.eq.s32.totalorder %s92, 0
      %s95 = sadd.s32 %s94, 1
      %s96 = scalar_select %p93, %s94, %s95
      %p99 = pneg %p93
      %p100 = scmp.eq.s32.totalorder %s16, 1
      %p101 = por %p99, %p100
      %p102 = scmp.ne.s32.totalorder %s94, %s97
      %p103 = scmp.eq.s32.totalorder %s16, 0
      %p104 = por %p102, %p103
      %p105 = scmp.ne.s32.totalorder %s94, %s97
      %p106 = scmp.eq.s32.totalorder %s21, 1
      %p107 = por %p105, %p106
      %p108 = scmp.ne.s32.totalorder %s97, %s98
      %p109 = scmp.eq.s32.totalorder %s21, 0
      %p110 = por %p108, %p109
      %p111 = scmp.ne.s32.totalorder %s97, %s98
      %p112 = scmp.eq.s32.totalorder %s22, 1
      %p113 = por %p111, %p112
      %p115 = scmp.ne.s32.totalorder %s98, %s114
      %p116 = scmp.eq.s32.totalorder %s22, 0
      %p117 = por %p115, %p116
      %p118 = scmp.le.s32.totalorder 1, %s16
      %p119 = scmp.lt.s32.totalorder %s16, 3
      %p120 = pnand %p118, %p119
      %p121 = pneg %p120
      // Predicated region
      $region9: #{_lambda_.34} parent=5 // pred_check
        _
      $region10: #{_lambda_.34} parent=5 // pred_check_branch
        %123 = sbr.rel (%p120) target = $region12
      $region11: #{_lambda_.34} parent=5 // pred_region
        %s124 = ssub.s32 %s16, 1
        // Predicated region
        $region13: #{_lambda_.34} parent=11 // pred_check
          %p125 = pneg %p63
        $region14: #{_lambda_.34} parent=11 // pred_check_branch
          %127 = sbr.rel (%p125) target = $region16
        $region15: #{_lambda_.34} parent=11 // pred_region
          %s129 = ssub.s32 2048, 2048
          %130 = vsyncadd [#allocation6], %s129
          %s131 = sshll.u32 [#allocation5], 4
          %s132 = int_to_ptr.vmem [resolvable:$true] %s131
          %137 = dma.hbm_to_vmem [thread:$0]  %s1, 2048, %s132, [#allocation6], 128, 128, 8
        $region16: #{_lambda_.34} parent=11 // pred_fallthru
          _
        // Predicated region
        $region17: #{_lambda_.34} parent=11 // pred_check
          %p138 = pneg %p84
        $region18: #{_lambda_.34} parent=11 // pred_check_branch
          %140 = sbr.rel (%p138) target = $region20
        $region19: #{_lambda_.34} parent=11 // pred_region
          %s142 = ssub.s32 32, 32
          %143 = vsyncadd [#allocation6], %s142
          %s145 = sshll.u32 [#allocation7], 4
          %s146 = int_to_ptr.vmem [resolvable:$true] %s145
          %148 = dma.hbm_to_vmem [thread:$0]  %s2, 32, %s146, [#allocation6]
        $region20: #{_lambda_.34} parent=11 // pred_fallthru
          _
      $region12: #{_lambda_.34} parent=5 // pred_fallthru
        _
      %p149 = scmp.lt.s32.totalorder %s16, 2
      // Predicated region
      $region21: #{_lambda_.34} parent=5 // pred_check
        %p150 = pneg %p149
      $region22: #{_lambda_.34} parent=5 // pred_check_branch
        %152 = sbr.rel (%p150) target = $region24
      $region23: #{_lambda_.34} parent=5 // pred_region
        // Predicated region
        $region25: #{_lambda_.34} parent=23 // pred_check
          %p153 = pneg %p36
        $region26: #{_lambda_.34} parent=23 // pred_check_branch
          %155 = sbr.rel (%p153) target = $region28
        $region27: #{_lambda_.34} parent=23 // pred_region
          %s156 = sand.u32 %s26, 1
          %s157 = scalar_lea.sflag [#allocation3], %s156
          %s158 = sand.u32 %s26, 1
          %s159 = smul.addr %s158, 16
          %s160 = scalar_lea.vmem [#allocation2], %s159
          %s161 = smul.u32 2, %s16
          %s163 = ssub.s32 256, 256
          %164 = vsyncadd %s157, %s163
          %s165 = smul.addr %s161, 128
          %s166 = scalar_lea.hbm %s0, %s165
          %s167 = sshll.u32 %s160, 4
          %s168 = int_to_ptr.vmem [resolvable:$true] %s167
          %173 = dma.hbm_to_vmem [thread:$0]  %s166, 256, %s168, %s157, 128, 128, 8
        $region28: #{_lambda_.34} parent=23 // pred_fallthru
          _
      $region24: #{_lambda_.34} parent=5 // pred_fallthru
        _
      %p174 = scmp.le.s32.totalorder 1, %s16
      %p175 = scmp.lt.s32.totalorder %s16, 3
      %p176 = pnand %p174, %p175
      %p177 = pneg %p176
      // Predicated region
      $region29: #{_lambda_.34} parent=5 // pred_check
        _
      $region30: #{_lambda_.34} parent=5 // pred_check_branch
        %179 = sbr.rel (%p176) target = $region32
      $region31: #{_lambda_.34} parent=5 // pred_region
        %s180 = ssub.s32 %s16, 1
        %s181 = sand.u32 %s29, 1
        %s182 = scalar_lea.sflag [#allocation3], %s181
        %s183 = sand.u32 %s29, 1
        %s184 = smul.addr %s183, 16
        %s185 = scalar_lea.vmem [#allocation2], %s184
        // Predicated region
        $region33: #{_lambda_.34} parent=31 // pred_check
          %p186 = pneg %p42
        $region34: #{_lambda_.34} parent=31 // pred_check_branch
          %188 = sbr.rel (%p186) target = $region36
        $region35: #{_lambda_.34} parent=31 // pred_region
          %189 = dma.done %s182, 256
        $region36: #{_lambda_.34} parent=31 // pred_fallthru
          _
        // Predicated region
        $region37: #{_lambda_.34} parent=31 // pred_check
          %p190 = pneg %p63
        $region38: #{_lambda_.34} parent=31 // pred_check_branch
          %192 = sbr.rel (%p190) target = $region40
        $region39: #{_lambda_.34} parent=31 // pred_region
          %193 = dma.done [#allocation6], 2048
        $region40: #{_lambda_.34} parent=31 // pred_fallthru
          _
        // Predicated region
        $region41: #{_lambda_.34} parent=31 // pred_check
          %p194 = pneg %p84
        $region42: #{_lambda_.34} parent=31 // pred_check_branch
          %196 = sbr.rel (%p194) target = $region44
        $region43: #{_lambda_.34} parent=31 // pred_region
          %197 = dma.done [#allocation6], 32
        $region44: #{_lambda_.34} parent=31 // pred_fallthru
          _
        %s198 = sand.u32 %s29, 1
        %s199 = scalar_lea.sflag [#allocation3], %s198
        %s200 = sand.u32 %s29, 1
        %s201 = smul.addr %s200, 16
        %s202 = scalar_lea.vmem [#allocation2], %s201
        %p203 = pneg %p42
        %p204 = pneg %p39
        %p205 = pneg %p63
        %p206 = pneg %p60
        %p207 = pneg %p84
        %p208 = pneg %p81
        %p209 = pneg %p110
        %p210 = pneg %p107
        %s211 = sand.u32 %s97, 1
        %s212 = scalar_lea.sflag [#allocation4], %s211
        %s213 = sand.u32 %s97, 1
        %s214 = smul.addr %s213, 32
        %s215 = scalar_lea.vmem [#allocation8], %s214
        %s216 = smul.u32 2, %s21
        %s217 = smul.u32 2, %s21
        %v219 = vld [vmem:[%s185] sm:$0xff]
        %v220 = vld [vmem:[%s185 + $0x8] sm:$0xff]
        %v221 = vpack.c.bf16 %v220, %v219
        %v222 = vld [vmem:[#allocation5] sm:$0xff]
        %v223 = vld [vmem:[#allocation5 + $0x8] sm:$0xff]
        %v224 = vld [vmem:[#allocation5 + $0x10] sm:$0xff]
        %v225 = vld [vmem:[#allocation5 + $0x18] sm:$0xff]
        %v226 = vld [vmem:[#allocation5 + $0x20] sm:$0xff]
        %v227 = vld [vmem:[#allocation5 + $0x28] sm:$0xff]
        %v228 = vld [vmem:[#allocation5 + $0x30] sm:$0xff]
        %v229 = vld [vmem:[#allocation5 + $0x38] sm:$0xff]
        %v230 = vld [vmem:[#allocation5 + $0x40] sm:$0xff]
        %v231 = vld [vmem:[#allocation5 + $0x48] sm:$0xff]
        %v232 = vld [vmem:[#allocation5 + $0x50] sm:$0xff]
        %v233 = vld [vmem:[#allocation5 + $0x58] sm:$0xff]
        %v234 = vld [vmem:[#allocation5 + $0x60] sm:$0xff]
        %v235 = vld [vmem:[#allocation5 + $0x68] sm:$0xff]
        %v236 = vld [vmem:[#allocation5 + $0x70] sm:$0xff]
        %v237 = vld [vmem:[#allocation5 + $0x78] sm:$0xff]
        %v238 = vld [vmem:[#allocation7] sm:$0x3]
        %v240 = vlaneseq
        %v241 = vshrl.u32 %v240, 7
        %v242 = vsub.s32 0, %v241
        %v243 = vrot.slane %v238, %v242
        %v244 = vlaneseq
        %v245 = vshrl.u32 %v244, 7
        %v246 = vsub.s32 1, %v245
        %v247 = vrot.slane %v238, %v246
        %v266 = vunpack.c.l.b16 %v222
        %v267 = vunpack.c.h.b16 %v222
        %v268 = vunpack.c.l.b16 %v223
        %v269 = vunpack.c.h.b16 %v223
        %v270 = vunpack.c.l.b16 %v224
        %v271 = vunpack.c.h.b16 %v224
        %v272 = vunpack.c.l.b16 %v225
        %v273 = vunpack.c.h.b16 %v225
        %v274 = vunpack.c.l.b16 %v226
        %v275 = vunpack.c.h.b16 %v226
        %v276 = vunpack.c.l.b16 %v227
        %v277 = vunpack.c.h.b16 %v227
        %v278 = vunpack.c.l.b16 %v228
        %v279 = vunpack.c.h.b16 %v228
        %v280 = vunpack.c.l.b16 %v229
        %v281 = vunpack.c.h.b16 %v229
        %v282 = vunpack.c.l.b16 %v230
        %v283 = vunpack.c.h.b16 %v230
        %v284 = vunpack.c.l.b16 %v231
        %v285 = vunpack.c.h.b16 %v231
        %v286 = vunpack.c.l.b16 %v232
        %v287 = vunpack.c.h.b16 %v232
        %v288 = vunpack.c.l.b16 %v233
        %v289 = vunpack.c.h.b16 %v233
        %v290 = vunpack.c.l.b16 %v234
        %v291 = vunpack.c.h.b16 %v234
        %v292 = vunpack.c.l.b16 %v235
        %v293 = vunpack.c.h.b16 %v235
        %v294 = vunpack.c.l.b16 %v236
        %v295 = vunpack.c.h.b16 %v236
        %v296 = vunpack.c.l.b16 %v237
        %v297 = vunpack.c.h.b16 %v237
        %v298 = vpack.c.b16 %v268, %v266
        %v299 = vpack.c.b16 %v269, %v267
        %v300 = vpack.c.b16 %v272, %v270
        %v301 = vpack.c.b16 %v273, %v271
        %v302 = vpack.c.b16 %v276, %v274
        %v303 = vpack.c.b16 %v277, %v275
        %v304 = vpack.c.b16 %v280, %v278
        %v305 = vpack.c.b16 %v281, %v279
        %v306 = vpack.c.b16 %v284, %v282
        %v307 = vpack.c.b16 %v285, %v283
        %v308 = vpack.c.b16 %v288, %v286
        %v309 = vpack.c.b16 %v289, %v287
        %v310 = vpack.c.b16 %v292, %v290
        %v311 = vpack.c.b16 %v293, %v291
        %v312 = vpack.c.b16 %v296, %v294
        %v313 = vpack.c.b16 %v297, %v295
        %330 = vmatprep.subr.bf16.mxu0 %v299
        %331 = vmatpush1.bf16.msra.mxu0 %v298
        %332 = vmatprep.subr.bf16.mxu0 %v301
        %333 = vmatpush1.bf16.msra.mxu0 %v300
        %334 = vmatprep.subr.bf16.mxu0 %v303
        %335 = vmatpush1.bf16.msra.mxu0 %v302
        %336 = vmatprep.subr.bf16.mxu0 %v305
        %337 = vmatpush1.bf16.msra.mxu0 %v304
        %338 = vmatprep.subr.bf16.mxu0 %v307
        %339 = vmatpush1.bf16.msra.mxu0 %v306
        %340 = vmatprep.subr.bf16.mxu0 %v309
        %341 = vmatpush1.bf16.msra.mxu0 %v308
        %342 = vmatprep.subr.bf16.mxu0 %v311
        %343 = vmatpush1.bf16.msra.mxu0 %v310
        %344 = vmatprep.subr.bf16.mxu0 %v313
        %345 = vmatpush1.bf16.msra.mxu0 %v312
        %346 = vmatprep.subr.bf16.mxu0 0
        %347 = vmatpush1.bf16.msra.mxu0 0
        %348 = vmatprep.subr.bf16.mxu0 0
        %349 = vmatpush1.bf16.msra.mxu0 0
        %350 = vmatprep.subr.bf16.mxu0 0
        %351 = vmatpush1.bf16.msra.mxu0 0
        %352 = vmatprep.subr.bf16.mxu0 0
        %353 = vmatpush1.bf16.msra.mxu0 0
        %354 = vmatprep.subr.bf16.mxu0 0
        %355 = vmatpush1.bf16.msra.mxu0 0
        %356 = vmatprep.subr.bf16.mxu0 0
        %357 = vmatpush1.bf16.msra.mxu0 0
        %358 = vmatprep.subr.bf16.mxu0 0
        %359 = vmatpush1.bf16.msra.mxu0 0
        %360 = vmatprep.subr.bf16.mxu0 0
        %361 = vmatpush1.bf16.msra.mxu0 0
        %362 = vmatprep.mubr.bf16.mxu0 0
        %363 = vmatmul.mubr.bf16.gmra.mrb[0].mxu0 %v221
        %v364 = vpop.f32.mrb[0].mxu0
        %v365 = vadd.f32 %v243, %v364
        %v366 = vpop.f32.mrb[0].mxu0
        %v367 = vadd.f32 %v247, %v366
        %v368 = vpop.f32.mrb[0].mxu0
        %v369 = vadd.f32 %v243, %v368
        %v370 = vpop.f32.mrb[0].mxu0
        %v371 = vadd.f32 %v247, %v370
        %372 = vdwg.mxu0
        %373 = vst [vmem:[%s215] sm:$0xff] %v365
        %374 = vst [vmem:[%s215 + $0x8] sm:$0xff] %v367
        %375 = vst [vmem:[%s215 + $0x10] sm:$0xff] %v369
        %376 = vst [vmem:[%s215 + $0x18] sm:$0xff] %v371
        %s377 = sand.u32 %s97, 1
        %s378 = scalar_lea.sflag [#allocation4], %s377
        %s379 = sand.u32 %s97, 1
        %s380 = smul.addr %s379, 32
        %s381 = scalar_lea.vmem [#allocation8], %s380
        // Predicated region
        $region45: #{_lambda_.34} parent=31 // pred_check
          %p382 = pneg %p107
        $region46: #{_lambda_.34} parent=31 // pred_check_branch
          %384 = sbr.rel (%p382) target = $region48
        $region47: #{_lambda_.34} parent=31 // pred_region
          %s385 = smul.u32 2, %s21
          %s387 = ssub.s32 512, 512
          %388 = vsyncadd %s378, %s387
          %s389 = smul.addr %s385, 2
          %s390 = smul.addr %s389, 128
          %s391 = scalar_lea.hbm %s3, %s390
          %s392 = sshll.u32 %s381, 4
          %s393 = int_to_ptr.vmem [resolvable:$true] %s392
          %398 = dma.vmem_to_hbm [thread:$0]  %s393, 512, %s391, %s378, 256, 256, 16
        $region48: #{_lambda_.34} parent=31 // pred_fallthru
          _
      $region32: #{_lambda_.34} parent=5 // pred_fallthru
        _
      %p399 = scmp.le.s32.totalorder 2, %s16
      // Predicated region
      $region49: #{_lambda_.34} parent=5 // pred_check
        %p400 = pneg %p399
      $region50: #{_lambda_.34} parent=5 // pred_check_branch
        %402 = sbr.rel (%p400) target = $region52
      $region51: #{_lambda_.34} parent=5 // pred_region
        %s403 = ssub.s32 %s16, 2
        // Predicated region
        $region53: #{_lambda_.34} parent=51 // pred_check
          %p404 = pneg %p113
        $region54: #{_lambda_.34} parent=51 // pred_check_branch
          %406 = sbr.rel (%p404) target = $region56
        $region55: #{_lambda_.34} parent=51 // pred_region
          %s407 = sand.u32 %s98, 1
          %s408 = scalar_lea.sflag [#allocation4], %s407
          %s409 = sand.u32 %s98, 1
          %s410 = smul.addr %s409, 32
          %s411 = scalar_lea.vmem [#allocation8], %s410
          %412 = dma.done %s408, 512
        $region56: #{_lambda_.34} parent=51 // pred_fallthru
          _
      $region52: #{_lambda_.34} parent=5 // pred_fallthru
        _
    $region6: #{_lambda_.34} parent=1 // loop_footer
      %s20 = sadd.s32 1, %s16
    $region7: #{_lambda_.34} parent=1 // loop_footer_branch
      %15 = sbr.rel target = $region3
    $region8: #{_lambda_.34} parent=1 // loop_exit
      _
    %413 = vsyncpa [#allocation3], 1
    %s414 = scalar_lea.sflag [#allocation3], 1
    %415 = vsyncpa %s414, 1
    %416 = vsyncpa [#allocation6], 1
    %417 = vsyncpa [#allocation4], 1
    %s418 = scalar_lea.sflag [#allocation4], 1
    %419 = vsyncpa %s418, 1

// kernel: _lambda_.41
$region0: #{_lambda_.41}
  #allocation0 [shape = 'u32[]', space=smem, size = 0x4, offset = 0x4, fixed_abs, tag = 'smem constant byte address 0x4 - core index']
  #allocation1 [shape = 'u32[144,128]{1,0:T(1,128)}', space=vmem, size = 0x12000, scoped, tag = 'internal scratch']
  %s0 = inlined_call_operand.hbm [shape: f32[32,128], index: 0, kind: input, shape index: {}]
  %s1 = inlined_call_operand.hbm [shape: bf16[128,4], index: 1, kind: input, shape index: {}]
  %s2 = inlined_call_operand.hbm [shape: f32[1,4], index: 2, kind: input, shape index: {}]
  %s3 = inlined_call_operand.hbm [shape: f32[32,4], index: 3, kind: output, shape index: {}]
  %s4 = sld [smem:[#allocation0]]
  $region57: #{_lambda_.41} parent=0
    _
  %s6 = ssub.s32 1, %s4
  %s7 = scalar_select 0, %s6, %s4
  $region1: #{_lambda_.41} parent=0
    #allocation2 [shape = 'u8[16384]{0}', space=vmem, size = 0x4000, scoped, tag = 'input window, operand 0']
    #allocation3 [shape = 's32[2]{0}', space=sflag, size = 0x8, scoped, tag = 'scoped memory for _lambda_.41']
    #allocation4 [shape = 's32[2]{0}', space=sflag, size = 0x8, scoped, tag = 'scoped memory for _lambda_.41']
    #allocation5 [shape = 'u8[32768]{0}', space=vmem, size = 0x8000, scoped, tag = 'input window, operand 1, single buffered']
    #allocation6 [shape = 's32[1]{0}', space=sflag, size = 0x4, scoped, tag = 'scoped memory for _lambda_.41']
    #allocation7 [shape = 'u8[512]{0}', space=vmem, size = 0x400, scoped, tag = 'input window, operand 2, single buffered']
    #allocation8 [shape = 'u8[16384]{0}', space=vmem, size = 0x4000, scoped, tag = 'output window, operand 0']
    %8 = vsyncpa [#allocation3], 0
    %s9 = scalar_lea.sflag [#allocation3], 1
    %10 = vsyncpa %s9, 0
    %11 = vsyncpa [#allocation6], 0
    %12 = vsyncpa [#allocation4], 0
    %s13 = scalar_lea.sflag [#allocation4], 1
    %14 = vsyncpa %s13, 0
    loop: start=0, step=1, limit=4
    $region2: #{_lambda_.41} parent=1 // loop_pre_header
      _
    $region3: #{_lambda_.41} parent=1 // loop_header
      %s16 = sphi 0, %s20
      %p17 = scmp.ge.s32.totalorder %s16, 4
      %s26 = sphi 0, %s28
      %s29 = sphi 0, %s26
      %s30 = sphi 0, %s29
      %s46 = sphi 0, %s30
      %s50 = sphi 0, %s50
      %s52 = sphi 0, %s50
      %s53 = sphi 0, %s52
      %s67 = sphi 0, %s53
      %s71 = sphi 0, %s71
      %s73 = sphi 0, %s71
      %s74 = sphi 0, %s73
      %s88 = sphi 0, %s74
      %s94 = sphi 0, %s96
      %s97 = sphi 0, %s94
      %s98 = sphi 0, %s97
      %s114 = sphi 0, %s98
    $region4: #{_lambda_.41} parent=1 // loop_header_branch
      %19 = sbr.rel (%p17) target = $region8
    $region5: #{_lambda_.41} parent=1 // loop_body
      %s21 = ssub.s32 %s16, 1
      %s22 = ssub.s32 %s16, 2
      %s23 = sadd.s32 %s16, 1
      %s24 = ssub.s32 %s16, %s23
      %p25 = scmp.eq.s32.totalorder %s24, 0
      %s27 = sadd.s32 %s26, 1
      %s28 = scalar_select %p25, %s26, %s27
      %p31 = pneg %p25
      %p32 = scmp.eq.s32.totalorder %s16, 1
      %p33 = por %p31, %p32
      %p34 = scmp.ne.s32.totalorder %s26, %s29
      %p35 = scmp.eq.s32.totalorder %s16, 0
      %p36 = por %p34, %p35
      %p37 = scmp.ne.s32.totalorder %s26, %s29
      %p38 = scmp.eq.s32.totalorder %s21, 1
      %p39 = por %p37, %p38
      %p40 = scmp.ne.s32.totalorder %s29, %s30
      %p41 = scmp.eq.s32.totalorder %s21, 0
      %p42 = por %p40, %p41
      %p43 = scmp.ne.s32.totalorder %s29, %s30
      %p44 = scmp.eq.s32.totalorder %s22, 1
      %p45 = por %p43, %p44
      %p47 = scmp.ne.s32.totalorder %s30, %s46
      %p48 = scmp.eq.s32.totalorder %s22, 0
      %p49 = por %p47, %p48
      %s51 = sadd.s32 %s50, 1
      %p54 = scmp.eq.s32.totalorder %s16, 1
      %p55 = scmp.ne.s32.totalorder %s50, %s52
      %p56 = scmp.eq.s32.totalorder %s16, 0
      %p57 = por %p55, %p56
      %p58 = scmp.ne.s32.totalorder %s50, %s52
      %p59 = scmp.eq.s32.totalorder %s21, 1
      %p60 = por %p58, %p59
      %p61 = scmp.ne.s32.totalorder %s52, %s53
      %p62 = scmp.eq.s32.totalorder %s21, 0
      %p63 = por %p61, %p62
      %p64 = scmp.ne.s32.totalorder %s52, %s53
      %p65 = scmp.eq.s32.totalorder %s22, 1
      %p66 = por %p64, %p65
      %p68 = scmp.ne.s32.totalorder %s53, %s67
      %p69 = scmp.eq.s32.totalorder %s22, 0
      %p70 = por %p68, %p69
      %s72 = sadd.s32 %s71, 1
      %p75 = scmp.eq.s32.totalorder %s16, 1
      %p76 = scmp.ne.s32.totalorder %s71, %s73
      %p77 = scmp.eq.s32.totalorder %s16, 0
      %p78 = por %p76, %p77
      %p79 = scmp.ne.s32.totalorder %s71, %s73
      %p80 = scmp.eq.s32.totalorder %s21, 1
      %p81 = por %p79, %p80
      %p82 = scmp.ne.s32.totalorder %s73, %s74
      %p83 = scmp.eq.s32.totalorder %s21, 0
      %p84 = por %p82, %p83
      %p85 = scmp.ne.s32.totalorder %s73, %s74
      %p86 = scmp.eq.s32.totalorder %s22, 1
      %p87 = por %p85, %p86
      %p89 = scmp.ne.s32.totalorder %s74, %s88
      %p90 = scmp.eq.s32.totalorder %s22, 0
      %p91 = por %p89, %p90
      %s92 = ssub.s32 %s16, %s23
      %p93 = scmp.eq.s32.totalorder %s92, 0
      %s95 = sadd.s32 %s94, 1
      %s96 = scalar_select %p93, %s94, %s95
      %p99 = pneg %p93
      %p100 = scmp.eq.s32.totalorder %s16, 1
      %p101 = por %p99, %p100
      %p102 = scmp.ne.s32.totalorder %s94, %s97
      %p103 = scmp.eq.s32.totalorder %s16, 0
      %p104 = por %p102, %p103
      %p105 = scmp.ne.s32.totalorder %s94, %s97
      %p106 = scmp.eq.s32.totalorder %s21, 1
      %p107 = por %p105, %p106
      %p108 = scmp.ne.s32.totalorder %s97, %s98
      %p109 = scmp.eq.s32.totalorder %s21, 0
      %p110 = por %p108, %p109
      %p111 = scmp.ne.s32.totalorder %s97, %s98
      %p112 = scmp.eq.s32.totalorder %s22, 1
      %p113 = por %p111, %p112
      %p115 = scmp.ne.s32.totalorder %s98, %s114
      %p116 = scmp.eq.s32.totalorder %s22, 0
      %p117 = por %p115, %p116
      %p118 = scmp.le.s32.totalorder 1, %s16
      %p119 = scmp.lt.s32.totalorder %s16, 3
      %p120 = pnand %p118, %p119
      %p121 = pneg %p120
      // Predicated region
      $region9: #{_lambda_.41} parent=5 // pred_check
        _
      $region10: #{_lambda_.41} parent=5 // pred_check_branch
        %123 = sbr.rel (%p120) target = $region12
      $region11: #{_lambda_.41} parent=5 // pred_region
        %s124 = ssub.s32 %s16, 1
        // Predicated region
        $region13: #{_lambda_.41} parent=11 // pred_check
          %p125 = pneg %p63
        $region14: #{_lambda_.41} parent=11 // pred_check_branch
          %127 = sbr.rel (%p125) target = $region16
        $region15: #{_lambda_.41} parent=11 // pred_region
          %s129 = ssub.s32 1024, 1024
          %130 = vsyncadd [#allocation6], %s129
          %s131 = sshll.u32 [#allocation5], 4
          %s132 = int_to_ptr.vmem [resolvable:$true] %s131
          %137 = dma.hbm_to_vmem [thread:$0]  %s1, 1024, %s132, [#allocation6], 64, 64, 4
        $region16: #{_lambda_.41} parent=11 // pred_fallthru
          _
        // Predicated region
        $region17: #{_lambda_.41} parent=11 // pred_check
          %p138 = pneg %p84
        $region18: #{_lambda_.41} parent=11 // pred_check_branch
          %140 = sbr.rel (%p138) target = $region20
        $region19: #{_lambda_.41} parent=11 // pred_region
          %s142 = ssub.s32 16, 16
          %143 = vsyncadd [#allocation6], %s142
          %s145 = sshll.u32 [#allocation7], 4
          %s146 = int_to_ptr.vmem [resolvable:$true] %s145
          %148 = dma.hbm_to_vmem [thread:$0]  %s2, 16, %s146, [#allocation6]
        $region20: #{_lambda_.41} parent=11 // pred_fallthru
          _
      $region12: #{_lambda_.41} parent=5 // pred_fallthru
        _
      %p149 = scmp.lt.s32.totalorder %s16, 2
      // Predicated region
      $region21: #{_lambda_.41} parent=5 // pred_check
        %p150 = pneg %p149
      $region22: #{_lambda_.41} parent=5 // pred_check_branch
        %152 = sbr.rel (%p150) target = $region24
      $region23: #{_lambda_.41} parent=5 // pred_region
        // Predicated region
        $region25: #{_lambda_.41} parent=23 // pred_check
          %p153 = pneg %p36
        $region26: #{_lambda_.41} parent=23 // pred_check_branch
          %155 = sbr.rel (%p153) target = $region28
        $region27: #{_lambda_.41} parent=23 // pred_region
          %s156 = sand.u32 %s26, 1
          %s157 = scalar_lea.sflag [#allocation3], %s156
          %s158 = sand.u32 %s26, 1
          %s159 = smul.addr %s158, 16
          %s160 = scalar_lea.vmem [#allocation2], %s159
          %s161 = smul.u32 2, %s16
          %s163 = ssub.s32 256, 256
          %164 = vsyncadd %s157, %s163
          %s165 = smul.addr %s161, 128
          %s166 = scalar_lea.hbm %s0, %s165
          %s167 = sshll.u32 %s160, 4
          %s168 = int_to_ptr.vmem [resolvable:$true] %s167
          %173 = dma.hbm_to_vmem [thread:$0]  %s166, 256, %s168, %s157, 128, 128, 8
        $region28: #{_lambda_.41} parent=23 // pred_fallthru
          _
      $region24: #{_lambda_.41} parent=5 // pred_fallthru
        _
      %p174 = scmp.le.s32.totalorder 1, %s16
      %p175 = scmp.lt.s32.totalorder %s16, 3
      %p176 = pnand %p174, %p175
      %p177 = pneg %p176
      // Predicated region
      $region29: #{_lambda_.41} parent=5 // pred_check
        _
      $region30: #{_lambda_.41} parent=5 // pred_check_branch
        %179 = sbr.rel (%p176) target = $region32
      $region31: #{_lambda_.41} parent=5 // pred_region
        %s180 = ssub.s32 %s16, 1
        %s181 = sand.u32 %s29, 1
        %s182 = scalar_lea.sflag [#allocation3], %s181
        %s183 = sand.u32 %s29, 1
        %s184 = smul.addr %s183, 16
        %s185 = scalar_lea.vmem [#allocation2], %s184
        // Predicated region
        $region33: #{_lambda_.41} parent=31 // pred_check
          %p186 = pneg %p42
        $region34: #{_lambda_.41} parent=31 // pred_check_branch
          %188 = sbr.rel (%p186) target = $region36
        $region35: #{_lambda_.41} parent=31 // pred_region
          %189 = dma.done %s182, 256
        $region36: #{_lambda_.41} parent=31 // pred_fallthru
          _
        // Predicated region
        $region37: #{_lambda_.41} parent=31 // pred_check
          %p190 = pneg %p63
        $region38: #{_lambda_.41} parent=31 // pred_check_branch
          %192 = sbr.rel (%p190) target = $region40
        $region39: #{_lambda_.41} parent=31 // pred_region
          %193 = dma.done [#allocation6], 1024
        $region40: #{_lambda_.41} parent=31 // pred_fallthru
          _
        // Predicated region
        $region41: #{_lambda_.41} parent=31 // pred_check
          %p194 = pneg %p84
        $region42: #{_lambda_.41} parent=31 // pred_check_branch
          %196 = sbr.rel (%p194) target = $region44
        $region43: #{_lambda_.41} parent=31 // pred_region
          %197 = dma.done [#allocation6], 16
        $region44: #{_lambda_.41} parent=31 // pred_fallthru
          _
        %s198 = sand.u32 %s29, 1
        %s199 = scalar_lea.sflag [#allocation3], %s198
        %s200 = sand.u32 %s29, 1
        %s201 = smul.addr %s200, 16
        %s202 = scalar_lea.vmem [#allocation2], %s201
        %p203 = pneg %p42
        %p204 = pneg %p39
        %p205 = pneg %p63
        %p206 = pneg %p60
        %p207 = pneg %p84
        %p208 = pneg %p81
        %p209 = pneg %p110
        %p210 = pneg %p107
        %s211 = sand.u32 %s97, 1
        %s212 = scalar_lea.sflag [#allocation4], %s211
        %s213 = sand.u32 %s97, 1
        %s214 = smul.addr %s213, 16
        %s215 = scalar_lea.vmem [#allocation8], %s214
        %s216 = smul.u32 2, %s21
        %s217 = smul.u32 2, %s21
        %v219 = vld [vmem:[%s185] sm:$0xff]
        %v220 = vld [vmem:[%s185 + $0x8] sm:$0xff]
        %v221 = vpack.c.bf16 %v220, %v219
        %v222 = vld [vmem:[#allocation5] sm:$0xf]
        %v223 = vld [vmem:[#allocation5 + $0x4] sm:$0xf]
        %v224 = vld [vmem:[#allocation5 + $0x8] sm:$0xf]
        %v225 = vld [vmem:[#allocation5 + $0xc] sm:$0xf]
        %v226 = vld [vmem:[#allocation5 + $0x10] sm:$0xf]
        %v227 = vld [vmem:[#allocation5 + $0x14] sm:$0xf]
        %v228 = vld [vmem:[#allocation5 + $0x18] sm:$0xf]
        %v229 = vld [vmem:[#allocation5 + $0x1c] sm:$0xf]
        %v230 = vld [vmem:[#allocation5 + $0x20] sm:$0xf]
        %v231 = vld [vmem:[#allocation5 + $0x24] sm:$0xf]
        %v232 = vld [vmem:[#allocation5 + $0x28] sm:$0xf]
        %v233 = vld [vmem:[#allocation5 + $0x2c] sm:$0xf]
        %v234 = vld [vmem:[#allocation5 + $0x30] sm:$0xf]
        %v235 = vld [vmem:[#allocation5 + $0x34] sm:$0xf]
        %v236 = vld [vmem:[#allocation5 + $0x38] sm:$0xf]
        %v237 = vld [vmem:[#allocation5 + $0x3c] sm:$0xf]
        %v238 = vld [vmem:[#allocation7] sm:$0x1]
        %v240 = vlaneseq
        %v241 = vshrl.u32 %v240, 7
        %v242 = vsub.s32 0, %v241
        %v243 = vrot.slane %v238, %v242
        %v261 = vunpack.c.l.b16 %v222
        %v262 = vunpack.c.l.b16 %v223
        %v263 = vunpack.c.l.b16 %v224
        %v264 = vunpack.c.l.b16 %v225
        %v265 = vunpack.c.l.b16 %v226
        %v266 = vunpack.c.l.b16 %v227
        %v267 = vunpack.c.l.b16 %v228
        %v268 = vunpack.c.l.b16 %v229
        %v269 = vunpack.c.l.b16 %v230
        %v270 = vunpack.c.l.b16 %v231
        %v271 = vunpack.c.l.b16 %v232
        %v272 = vunpack.c.l.b16 %v233
        %v273 = vunpack.c.l.b16 %v234
        %v274 = vunpack.c.l.b16 %v235
        %v275 = vunpack.c.l.b16 %v236
        %v276 = vunpack.c.l.b16 %v237
        %v277 = vpack.c.b16 %v262, %v261
        %v278 = vpack.c.b16 %v264, %v263
        %v279 = vpack.c.b16 %v266, %v265
        %v280 = vpack.c.b16 %v268, %v267
        %v281 = vpack.c.b16 %v270, %v269
        %v282 = vpack.c.b16 %v272, %v271
        %v283 = vpack.c.b16 %v274, %v273
        %v284 = vpack.c.b16 %v276, %v275
        %293 = vmatprep.subr.bf16.mxu0 0
        %294 = vmatpush1.bf16.msra.mxu0 %v277
        %295 = vmatprep.subr.bf16.mxu0 0
        %296 = vmatpush1.bf16.msra.mxu0 %v278
        %297 = vmatprep.subr.bf16.mxu0 0
        %298 = vmatpush1.bf16.msra.mxu0 %v279
        %299 = vmatprep.subr.bf16.mxu0 0
        %300 = vmatpush1.bf16.msra.mxu0 %v280
        %301 = vmatprep.subr.bf16.mxu0 0
        %302 = vmatpush1.bf16.msra.mxu0 %v281
        %303 = vmatprep.subr.bf16.mxu0 0
        %304 = vmatpush1.bf16.msra.mxu0 %v282
        %305 = vmatprep.subr.bf16.mxu0 0
        %306 = vmatpush1.bf16.msra.mxu0 %v283
        %307 = vmatprep.subr.bf16.mxu0 0
        %308 = vmatpush1.bf16.msra.mxu0 %v284
        %309 = vmatprep.subr.bf16.mxu0 0
        %310 = vmatpush1.bf16.msra.mxu0 0
        %311 = vmatprep.subr.bf16.mxu0 0
        %312 = vmatpush1.bf16.msra.mxu0 0
        %313 = vmatprep.subr.bf16.mxu0 0
        %314 = vmatpush1.bf16.msra.mxu0 0
        %315 = vmatprep.subr.bf16.mxu0 0
        %316 = vmatpush1.bf16.msra.mxu0 0
        %317 = vmatprep.subr.bf16.mxu0 0
        %318 = vmatpush1.bf16.msra.mxu0 0
        %319 = vmatprep.subr.bf16.mxu0 0
        %320 = vmatpush1.bf16.msra.mxu0 0
        %321 = vmatprep.subr.bf16.mxu0 0
        %322 = vmatpush1.bf16.msra.mxu0 0
        %323 = vmatprep.subr.bf16.mxu0 0
        %324 = vmatpush1.bf16.msra.mxu0 0
        %325 = vmatprep.mubr.bf16.mxu0 0
        %326 = vmatmul.mubr.bf16.gmra.mrb[0].mxu0 %v221
        %v327 = vpop.f32.mrb[0].mxu0
        %v328 = vadd.f32 %v243, %v327
        %v329 = vpop.f32.mrb[0].mxu0
        %v330 = vpop.f32.mrb[0].mxu0
        %v331 = vadd.f32 %v243, %v330
        %v332 = vpop.f32.mrb[0].mxu0
        %333 = vdwg.mxu0
        %vm334 = vcmask 31744
        %335 = vst.msk [vmem:[%s215] sm:$0xff] %vm334, %v328
        %336 = vst.msk [vmem:[%s215 + $0x8] sm:$0xff] %vm334, %v331
        %s337 = sand.u32 %s97, 1
        %s338 = scalar_lea.sflag [#allocation4], %s337
        %s339 = sand.u32 %s97, 1
        %s340 = smul.addr %s339, 16
        %s341 = scalar_lea.vmem [#allocation8], %s340
        // Predicated region
        $region45: #{_lambda_.41} parent=31 // pred_check
          %p342 = pneg %p107
        $region46: #{_lambda_.41} parent=31 // pred_check_branch
          %344 = sbr.rel (%p342) target = $region48
        $region47: #{_lambda_.41} parent=31 // pred_region
          %s345 = smul.u32 2, %s21
          %s347 = ssub.s32 256, 256
          %348 = vsyncadd %s338, %s347
          %s349 = smul.addr %s345, 128
          %s350 = scalar_lea.hbm %s3, %s349
          %s351 = sshll.u32 %s341, 4
          %s352 = int_to_ptr.vmem [resolvable:$true] %s351
          %357 = dma.vmem_to_hbm [thread:$0]  %s352, 256, %s350, %s338, 128, 128, 8
        $region48: #{_lambda_.41} parent=31 // pred_fallthru
          _
      $region32: #{_lambda_.41} parent=5 // pred_fallthru
        _
      %p358 = scmp.le.s32.totalorder 2, %s16
      // Predicated region
      $region49: #{_lambda_.41} parent=5 // pred_check
        %p359 = pneg %p358
      $region50: #{_lambda_.41} parent=5 // pred_check_branch
        %361 = sbr.rel (%p359) target = $region52
      $region51: #{_lambda_.41} parent=5 // pred_region
        %s362 = ssub.s32 %s16, 2
        // Predicated region
        $region53: #{_lambda_.41} parent=51 // pred_check
          %p363 = pneg %p113
        $region54: #{_lambda_.41} parent=51 // pred_check_branch
          %365 = sbr.rel (%p363) target = $region56
        $region55: #{_lambda_.41} parent=51 // pred_region
          %s366 = sand.u32 %s98, 1
          %s367 = scalar_lea.sflag [#allocation4], %s366
          %s368 = sand.u32 %s98, 1
          %s369 = smul.addr %s368, 16
          %s370 = scalar_lea.vmem [#allocation8], %s369
          %371 = dma.done %s367, 256
        $region56: #{_lambda_.41} parent=51 // pred_fallthru
          _
      $region52: #{_lambda_.41} parent=5 // pred_fallthru
        _
    $region6: #{_lambda_.41} parent=1 // loop_footer
      %s20 = sadd.s32 1, %s16
    $region7: #{_lambda_.41} parent=1 // loop_footer_branch
      %15 = sbr.rel target = $region3
    $region8: #{_lambda_.41} parent=1 // loop_exit
      _
    %372 = vsyncpa [#allocation3], 1
    %s373 = scalar_lea.sflag [#allocation3], 1
    %374 = vsyncpa %s373, 1
    %375 = vsyncpa [#allocation6], 1
    %376 = vsyncpa [#allocation4], 1
    %s377 = scalar_lea.sflag [#allocation4], 1
    %378 = vsyncpa %s377, 1

// kernel: _lambda_.35
$region0: #{_lambda_.35}
  #allocation0 [shape = 'u32[]', space=smem, size = 0x4, offset = 0x4, fixed_abs, tag = 'smem constant byte address 0x4 - core index']
  #allocation1 [shape = 'u32[144,128]{1,0:T(1,128)}', space=vmem, size = 0x12000, scoped, tag = 'internal scratch']
  %s0 = inlined_call_operand.hbm [shape: f32[2,16,128], index: 0, kind: input, shape index: {}]
  %s1 = inlined_call_operand.hbm [shape: f32[2,16,256], index: 1, kind: input, shape index: {}]
  %s2 = inlined_call_operand.hbm [shape: bf16[128,128], index: 2, kind: input, shape index: {}]
  %s3 = inlined_call_operand.hbm [shape: f32[1,128], index: 3, kind: input, shape index: {}]
  %s4 = inlined_call_operand.hbm [shape: f32[2,16,128], index: 4, kind: output, shape index: {}]
  %s5 = sld [smem:[#allocation0]]
  $region65: #{_lambda_.35} parent=0
    _
  %s7 = ssub.s32 1, %s5
  %s8 = scalar_select 0, %s7, %s5
  $region1: #{_lambda_.35} parent=0
    #allocation2 [shape = 'u8[16384]{0}', space=vmem, size = 0x4000, scoped, tag = 'input window, operand 0']
    #allocation3 [shape = 's32[2]{0}', space=sflag, size = 0x8, scoped, tag = 'scoped memory for _lambda_.35']
    #allocation4 [shape = 's32[2]{0}', space=sflag, size = 0x8, scoped, tag = 'scoped memory for _lambda_.35']
    #allocation5 [shape = 'u8[32768]{0}', space=vmem, size = 0x8000, scoped, tag = 'input window, operand 1']
    #allocation6 [shape = 's32[2]{0}', space=sflag, size = 0x8, scoped, tag = 'scoped memory for _lambda_.35']
    #allocation7 [shape = 'u8[32768]{0}', space=vmem, size = 0x8000, scoped, tag = 'input window, operand 2, single buffered']
    #allocation8 [shape = 'u8[512]{0}', space=vmem, size = 0x400, scoped, tag = 'input window, operand 3, single buffered']
    #allocation9 [shape = 's32[1]{0}', space=sflag, size = 0x4, scoped, tag = 'scoped memory for _lambda_.35']
    #allocation10 [shape = 'u8[16384]{0}', space=vmem, size = 0x4000, scoped, tag = 'output window, operand 0']
    %9 = vsyncpa [#allocation3], 0
    %s10 = scalar_lea.sflag [#allocation3], 1
    %11 = vsyncpa %s10, 0
    %12 = vsyncpa [#allocation6], 0
    %s13 = scalar_lea.sflag [#allocation6], 1
    %14 = vsyncpa %s13, 0
    %15 = vsyncpa [#allocation9], 0
    %16 = vsyncpa [#allocation4], 0
    %s17 = scalar_lea.sflag [#allocation4], 1
    %18 = vsyncpa %s17, 0
    loop: start=0, step=1, limit=4
    $region2: #{_lambda_.35} parent=1 // loop_pre_header
      _
    $region3: #{_lambda_.35} parent=1 // loop_header
      %s20 = sphi 0, %s24
      %p21 = scmp.ge.s32.totalorder %s20, 4
      %s30 = sphi 0, %s32
      %s33 = sphi 0, %s30
      %s34 = sphi 0, %s33
      %s50 = sphi 0, %s34
      %s56 = sphi 0, %s58
      %s59 = sphi 0, %s56
      %s60 = sphi 0, %s59
      %s76 = sphi 0, %s60
      %s80 = sphi 0, %s80
      %s82 = sphi 0, %s80
      %s83 = sphi 0, %s82
      %s97 = sphi 0, %s83
      %s101 = sphi 0, %s101
      %s103 = sphi 0, %s101
      %s104 = sphi 0, %s103
      %s118 = sphi 0, %s104
      %s124 = sphi 0, %s126
      %s127 = sphi 0, %s124
      %s128 = sphi 0, %s127
      %s144 = sphi 0, %s128
    $region4: #{_lambda_.35} parent=1 // loop_header_branch
      %23 = sbr.rel (%p21) target = $region8
    $region5: #{_lambda_.35} parent=1 // loop_body
      %s25 = ssub.s32 %s20, 1
      %s26 = ssub.s32 %s20, 2
      %s27 = sadd.s32 %s20, 1
      %s28 = ssub.s32 %s20, %s27
      %p29 = scmp.eq.s32.totalorder %s28, 0
      %s31 = sadd.s32 %s30, 1
      %s32 = scalar_select %p29, %s30, %s31
      %p35 = pneg %p29
      %p36 = scmp.eq.s32.totalorder %s20, 1
      %p37 = por %p35, %p36
      %p38 = scmp.ne.s32.totalorder %s30, %s33
      %p39 = scmp.eq.s32.totalorder %s20, 0
      %p40 = por %p38, %p39
      %p41 = scmp.ne.s32.totalorder %s30, %s33
      %p42 = scmp.eq.s32.totalorder %s25, 1
      %p43 = por %p41, %p42
      %p44 = scmp.ne.s32.totalorder %s33, %s34
      %p45 = scmp.eq.s32.totalorder %s25, 0
      %p46 = por %p44, %p45
      %p47 = scmp.ne.s32.totalorder %s33, %s34
      %p48 = scmp.eq.s32.totalorder %s26, 1
      %p49 = por %p47, %p48
      %p51 = scmp.ne.s32.totalorder %s34, %s50
      %p52 = scmp.eq.s32.totalorder %s26, 0
      %p53 = por %p51, %p52
      %s54 = ssub.s32 %s20, %s27
      %p55 = scmp.eq.s32.totalorder %s54, 0
      %s57 = sadd.s32 %s56, 1
      %s58 = scalar_select %p55, %s56, %s57
      %p61 = pneg %p55
      %p62 = scmp.eq.s32.totalorder %s20, 1
      %p63 = por %p61, %p62
      %p64 = scmp.ne.s32.totalorder %s56, %s59
      %p65 = scmp.eq.s32.totalorder %s20, 0
      %p66 = por %p64, %p65
      %p67 = scmp.ne.s32.totalorder %s56, %s59
      %p68 = scmp.eq.s32.totalorder %s25, 1
      %p69 = por %p67, %p68
      %p70 = scmp.ne.s32.totalorder %s59, %s60
      %p71 = scmp.eq.s32.totalorder %s25, 0
      %p72 = por %p70, %p71
      %p73 = scmp.ne.s32.totalorder %s59, %s60
      %p74 = scmp.eq.s32.totalorder %s26, 1
      %p75 = por %p73, %p74
      %p77 = scmp.ne.s32.totalorder %s60, %s76
      %p78 = scmp.eq.s32.totalorder %s26, 0
      %p79 = por %p77, %p78
      %s81 = sadd.s32 %s80, 1
      %p84 = scmp.eq.s32.totalorder %s20, 1
      %p85 = scmp.ne.s32.totalorder %s80, %s82
      %p86 = scmp.eq.s32.totalorder %s20, 0
      %p87 = por %p85, %p86
      %p88 = scmp.ne.s32.totalorder %s80, %s82
      %p89 = scmp.eq.s32.totalorder %s25, 1
      %p90 = por %p88, %p89
      %p91 = scmp.ne.s32.totalorder %s82, %s83
      %p92 = scmp.eq.s32.totalorder %s25, 0
      %p93 = por %p91, %p92
      %p94 = scmp.ne.s32.totalorder %s82, %s83
      %p95 = scmp.eq.s32.totalorder %s26, 1
      %p96 = por %p94, %p95
      %p98 = scmp.ne.s32.totalorder %s83, %s97
      %p99 = scmp.eq.s32.totalorder %s26, 0
      %p100 = por %p98, %p99
      %s102 = sadd.s32 %s101, 1
      %p105 = scmp.eq.s32.totalorder %s20, 1
      %p106 = scmp.ne.s32.totalorder %s101, %s103
      %p107 = scmp.eq.s32.totalorder %s20, 0
      %p108 = por %p106, %p107
      %p109 = scmp.ne.s32.totalorder %s101, %s103
      %p110 = scmp.eq.s32.totalorder %s25, 1
      %p111 = por %p109, %p110
      %p112 = scmp.ne.s32.totalorder %s103, %s104
      %p113 = scmp.eq.s32.totalorder %s25, 0
      %p114 = por %p112, %p113
      %p115 = scmp.ne.s32.totalorder %s103, %s104
      %p116 = scmp.eq.s32.totalorder %s26, 1
      %p117 = por %p115, %p116
      %p119 = scmp.ne.s32.totalorder %s104, %s118
      %p120 = scmp.eq.s32.totalorder %s26, 0
      %p121 = por %p119, %p120
      %s122 = ssub.s32 %s20, %s27
      %p123 = scmp.eq.s32.totalorder %s122, 0
      %s125 = sadd.s32 %s124, 1
      %s126 = scalar_select %p123, %s124, %s125
      %p129 = pneg %p123
      %p130 = scmp.eq.s32.totalorder %s20, 1
      %p131 = por %p129, %p130
      %p132 = scmp.ne.s32.totalorder %s124, %s127
      %p133 = scmp.eq.s32.totalorder %s20, 0
      %p134 = por %p132, %p133
      %p135 = scmp.ne.s32.totalorder %s124, %s127
      %p136 = scmp.eq.s32.totalorder %s25, 1
      %p137 = por %p135, %p136
      %p138 = scmp.ne.s32.totalorder %s127, %s128
      %p139 = scmp.eq.s32.totalorder %s25, 0
      %p140 = por %p138, %p139
      %p141 = scmp.ne.s32.totalorder %s127, %s128
      %p142 = scmp.eq.s32.totalorder %s26, 1
      %p143 = por %p141, %p142
      %p145 = scmp.ne.s32.totalorder %s128, %s144
      %p146 = scmp.eq.s32.totalorder %s26, 0
      %p147 = por %p145, %p146
      %p148 = scmp.le.s32.totalorder 1, %s20
      %p149 = scmp.lt.s32.totalorder %s20, 3
      %p150 = pnand %p148, %p149
      %p151 = pneg %p150
      // Predicated region
      $region9: #{_lambda_.35} parent=5 // pred_check
        _
      $region10: #{_lambda_.35} parent=5 // pred_check_branch
        %153 = sbr.rel (%p150) target = $region12
      $region11: #{_lambda_.35} parent=5 // pred_region
        %s154 = ssub.s32 %s20, 1
        // Predicated region
        $region13: #{_lambda_.35} parent=11 // pred_check
          %p155 = pneg %p93
        $region14: #{_lambda_.35} parent=11 // pred_check_branch
          %157 = sbr.rel (%p155) target = $region16
        $region15: #{_lambda_.35} parent=11 // pred_region
          %s159 = ssub.s32 1024, 1024
          %160 = vsyncadd [#allocation6], %s159
          %s161 = sshll.u32 [#allocation7], 4
          %s162 = int_to_ptr.vmem [resolvable:$true] %s161
          %167 = dma.hbm_to_vmem [thread:$0]  %s2, 1024, %s162, [#allocation6], 64, 64, 4
        $region16: #{_lambda_.35} parent=11 // pred_fallthru
          _
        // Predicated region
        $region17: #{_lambda_.35} parent=11 // pred_check
          %p168 = pneg %p114
        $region18: #{_lambda_.35} parent=11 // pred_check_branch
          %170 = sbr.rel (%p168) target = $region20
        $region19: #{_lambda_.35} parent=11 // pred_region
          %s172 = ssub.s32 16, 16
          %173 = vsyncadd [#allocation9], %s172
          %s175 = sshll.u32 [#allocation8], 4
          %s176 = int_to_ptr.vmem [resolvable:$true] %s175
          %178 = dma.hbm_to_vmem [thread:$0]  %s3, 16, %s176, [#allocation9]
        $region20: #{_lambda_.35} parent=11 // pred_fallthru
          _
      $region12: #{_lambda_.35} parent=5 // pred_fallthru
        _
      %p179 = scmp.lt.s32.totalorder %s20, 2
      // Predicated region
      $region21: #{_lambda_.35} parent=5 // pred_check
        %p180 = pneg %p179
      $region22: #{_lambda_.35} parent=5 // pred_check_branch
        %182 = sbr.rel (%p180) target = $region24
      $region23: #{_lambda_.35} parent=5 // pred_region
        // Predicated region
        $region25: #{_lambda_.35} parent=23 // pred_check
          %p183 = pneg %p40
        $region26: #{_lambda_.35} parent=23 // pred_check_branch
          %185 = sbr.rel (%p183) target = $region28
        $region27: #{_lambda_.35} parent=23 // pred_region
          %s186 = sand.u32 %s30, 1
          %s187 = scalar_lea.sflag [#allocation3], %s186
          %s188 = sand.u32 %s30, 1
          %s189 = smul.addr %s188, 16
          %s190 = scalar_lea.vmem [#allocation2], %s189
          %s192 = ssub.s32 256, 256
          %193 = vsyncadd %s187, %s192
          %s194 = smul.addr %s20, 2
          %s195 = smul.addr %s194, 128
          %s196 = scalar_lea.hbm %s0, %s195
          %s197 = sshll.u32 %s190, 4
          %s198 = int_to_ptr.vmem [resolvable:$true] %s197
          %203 = dma.hbm_to_vmem [thread:$0]  %s196, 256, %s198, %s187, 128, 128, 8
        $region28: #{_lambda_.35} parent=23 // pred_fallthru
          _
        // Predicated region
        $region29: #{_lambda_.35} parent=23 // pred_check
          %p204 = pneg %p66
        $region30: #{_lambda_.35} parent=23 // pred_check_branch
          %206 = sbr.rel (%p204) target = $region32
        $region31: #{_lambda_.35} parent=23 // pred_region
          %s207 = sand.u32 %s20, 1
          %s208 = scalar_lea.sflag [#allocation6], %s207
          %s209 = sand.u32 %s56, 1
          %s210 = smul.addr %s209, 32
          %s211 = scalar_lea.vmem [#allocation5], %s210
          %s213 = ssub.s32 512, 512
          %214 = vsyncadd %s208, %s213
          %s215 = smul.addr %s20, 4
          %s216 = smul.addr %s215, 128
          %s217 = scalar_lea.hbm %s1, %s216
          %s218 = sshll.u32 %s211, 4
          %s219 = int_to_ptr.vmem [resolvable:$true] %s218
          %224 = dma.hbm_to_vmem [thread:$0]  %s217, 512, %s219, %s208, 256, 256, 16
        $region32: #{_lambda_.35} parent=23 // pred_fallthru
          _
      $region24: #{_lambda_.35} parent=5 // pred_fallthru
        _
      %p225 = scmp.le.s32.totalorder 1, %s20
      %p226 = scmp.lt.s32.totalorder %s20, 3
      %p227 = pnand %p225, %p226
      %p228 = pneg %p227
      // Predicated region
      $region33: #{_lambda_.35} parent=5 // pred_check
        _
      $region34: #{_lambda_.35} parent=5 // pred_check_branch
        %230 = sbr.rel (%p227) target = $region36
      $region35: #{_lambda_.35} parent=5 // pred_region
        %s231 = ssub.s32 %s20, 1
        %s232 = sand.u32 %s33, 1
        %s233 = scalar_lea.sflag [#allocation3], %s232
        %s234 = sand.u32 %s33, 1
        %s235 = smul.addr %s234, 16
        %s236 = scalar_lea.vmem [#allocation2], %s235
        // Predicated region
        $region37: #{_lambda_.35} parent=35 // pred_check
          %p237 = pneg %p46
        $region38: #{_lambda_.35} parent=35 // pred_check_branch
          %239 = sbr.rel (%p237) target = $region40
        $region39: #{_lambda_.35} parent=35 // pred_region
          %240 = dma.done %s233, 256
        $region40: #{_lambda_.35} parent=35 // pred_fallthru
          _
        %s241 = sand.u32 %s25, 1
        %s242 = scalar_lea.sflag [#allocation6], %s241
        %s243 = sand.u32 %s59, 1
        %s244 = smul.addr %s243, 32
        %s245 = scalar_lea.vmem [#allocation5], %s244
        // Predicated region
        $region41: #{_lambda_.35} parent=35 // pred_check
          %p246 = pneg %p72
        $region42: #{_lambda_.35} parent=35 // pred_check_branch
          %248 = sbr.rel (%p246) target = $region44
        $region43: #{_lambda_.35} parent=35 // pred_region
          %249 = dma.done %s242, 512
        $region44: #{_lambda_.35} parent=35 // pred_fallthru
          _
        // Predicated region
        $region45: #{_lambda_.35} parent=35 // pred_check
          %p250 = pneg %p93
        $region46: #{_lambda_.35} parent=35 // pred_check_branch
          %252 = sbr.rel (%p250) target = $region48
        $region47: #{_lambda_.35} parent=35 // pred_region
          %253 = dma.done [#allocation6], 1024
        $region48: #{_lambda_.35} parent=35 // pred_fallthru
          _
        // Predicated region
        $region49: #{_lambda_.35} parent=35 // pred_check
          %p254 = pneg %p114
        $region50: #{_lambda_.35} parent=35 // pred_check_branch
          %256 = sbr.rel (%p254) target = $region52
        $region51: #{_lambda_.35} parent=35 // pred_region
          %257 = dma.done [#allocation9], 16
        $region52: #{_lambda_.35} parent=35 // pred_fallthru
          _
        %s258 = sand.u32 %s33, 1
        %s259 = scalar_lea.sflag [#allocation3], %s258
        %s260 = sand.u32 %s33, 1
        %s261 = smul.addr %s260, 16
        %s262 = scalar_lea.vmem [#allocation2], %s261
        %p263 = pneg %p46
        %p264 = pneg %p43
        %s265 = sand.u32 %s25, 1
        %s266 = scalar_lea.sflag [#allocation6], %s265
        %s267 = sand.u32 %s59, 1
        %s268 = smul.addr %s267, 32
        %s269 = scalar_lea.vmem [#allocation5], %s268
        %p270 = pneg %p72
        %p271 = pneg %p69
        %p272 = pneg %p93
        %p273 = pneg %p90
        %p274 = pneg %p114
        %p275 = pneg %p111
        %p276 = pneg %p140
        %p277 = pneg %p137
        %s278 = sand.u32 %s127, 1
        %s279 = scalar_lea.sflag [#allocation4], %s278
        %s280 = sand.u32 %s127, 1
        %s281 = smul.addr %s280, 16
        %s282 = scalar_lea.vmem [#allocation10], %s281
        %v284 = vld [vmem:[%s236] sm:$0xff]
        %v285 = vld [vmem:[%s236 + $0x8] sm:$0xff]
        %v286 = vld [vmem:[%s245] sm:$0xff]
        %v287 = vld [vmem:[%s245 + $0x8] sm:$0xff]
        %v288 = vld [vmem:[%s245 + $0x10] sm:$0xff]
        %v289 = vld [vmem:[%s245 + $0x18] sm:$0xff]
        %v290 = vpack.c.bf16 %v288, %v286
        %291 = vxpose.xlu0.b32.start [1/16] %v284, 128
        %292 = vxpose.xlu0.b32.cont [2/16] %v285, 128
        %293 = vxpose.xlu0.b32.cont [3/16] 0.0, 128
        %294 = vxpose.xlu0.b32.cont [4/16] 0.0, 128
        %295 = vxpose.xlu0.b32.cont [5/16] 0.0, 128
        %296 = vxpose.xlu0.b32.cont [6/16] 0.0, 128
        %297 = vxpose.xlu0.b32.cont [7/16] 0.0, 128
        %298 = vxpose.xlu0.b32.cont [8/16] 0.0, 128
        %299 = vxpose.xlu0.b32.cont [9/16] 0.0, 128
        %300 = vxpose.xlu0.b32.cont [10/16] 0.0, 128
        %301 = vxpose.xlu0.b32.cont [11/16] 0.0, 128
        %302 = vxpose.xlu0.b32.cont [12/16] 0.0, 128
        %303 = vxpose.xlu0.b32.cont [13/16] 0.0, 128
        %304 = vxpose.xlu0.b32.cont [14/16] 0.0, 128
        %305 = vxpose.xlu0.b32.cont [15/16] 0.0, 128
        %306 = vxpose.xlu0.b32.end [16/16] 0.0, 128
        %v307 = vpop.trf.xlu0
        %v308 = vpop.trf.xlu0
        %v309 = vpop.trf.xlu0
        %v310 = vpop.trf.xlu0
        %v311 = vpop.trf.xlu0
        %v312 = vpop.trf.xlu0
        %v313 = vpop.trf.xlu0
        %v314 = vpop.trf.xlu0
        %v315 = vpop.trf.xlu0
        %v316 = vpop.trf.xlu0
        %v317 = vpop.trf.xlu0
        %v318 = vpop.trf.xlu0
        %v319 = vpop.trf.xlu0
        %v320 = vpop.trf.xlu0
        %v321 = vpop.trf.xlu0
        %v322 = vpop.trf.xlu0
        %v323 = vpack.c.bf16 %v308, %v307
        %v324 = vpack.c.bf16 %v310, %v309
        %v325 = vpack.c.bf16 %v312, %v311
        %v326 = vpack.c.bf16 %v314, %v313
        %v327 = vpack.c.bf16 %v316, %v315
        %v328 = vpack.c.bf16 %v318, %v317
        %v329 = vpack.c.bf16 %v320, %v319
        %v330 = vpack.c.bf16 %v322, %v321
        %331 = vmatprep.subr.bf16.mxu0 0
        %332 = vmatpush1.bf16.msra.mxu0 %v323
        %333 = vmatprep.subr.bf16.mxu0 0
        %334 = vmatpush1.bf16.msra.mxu0 %v324
        %335 = vmatprep.subr.bf16.mxu0 0
        %336 = vmatpush1.bf16.msra.mxu0 %v325
        %337 = vmatprep.subr.bf16.mxu0 0
        %338 = vmatpush1.bf16.msra.mxu0 %v326
        %339 = vmatprep.subr.bf16.mxu0 0
        %340 = vmatpush1.bf16.msra.mxu0 %v327
        %341 = vmatprep.subr.bf16.mxu0 0
        %342 = vmatpush1.bf16.msra.mxu0 %v328
        %343 = vmatprep.subr.bf16.mxu0 0
        %344 = vmatpush1.bf16.msra.mxu0 %v329
        %345 = vmatprep.subr.bf16.mxu0 0
        %346 = vmatpush1.bf16.msra.mxu0 %v330
        %347 = vmatprep.subr.bf16.mxu0 0
        %348 = vmatpush1.bf16.msra.mxu0 0
        %349 = vmatprep.subr.bf16.mxu0 0
        %350 = vmatpush1.bf16.msra.mxu0 0
        %351 = vmatprep.subr.bf16.mxu0 0
        %352 = vmatpush1.bf16.msra.mxu0 0
        %353 = vmatprep.subr.bf16.mxu0 0
        %354 = vmatpush1.bf16.msra.mxu0 0
        %355 = vmatprep.subr.bf16.mxu0 0
        %356 = vmatpush1.bf16.msra.mxu0 0
        %357 = vmatprep.subr.bf16.mxu0 0
        %358 = vmatpush1.bf16.msra.mxu0 0
        %359 = vmatprep.subr.bf16.mxu0 0
        %360 = vmatpush1.bf16.msra.mxu0 0
        %361 = vmatprep.subr.bf16.mxu0 0
        %362 = vmatpush1.bf16.msra.mxu0 0
        %363 = vmatprep.mubr.bf16.mxu0 0
        %364 = vmatmul.mubr.bf16.gmra.mrb[0].mxu0 %v290
        %v365 = vpop.f32.mrb[0].mxu0
        %v366 = vadd.f32 0.0, %v365
        %v367 = vpop.f32.mrb[0].mxu0
        %v368 = vpop.f32.mrb[0].mxu0
        %v369 = vadd.f32 0.0, %v368
        %v370 = vpop.f32.mrb[0].mxu0
        %371 = vdwg.mxu0
        %v372 = vlaneseq
        %v373 = vshrl.u32 %v372, 7
        %v374 = vadd.s32 %v373, 8
        %377 = vrot.lane.b32.xlu0 %v366, 127
        %v378 = vpop.permute.xlu0 %377
        %379 = vrot.lane.b32.xlu0 %v369, 127
        %v380 = vpop.permute.xlu0 %379
        %383 = vrot.lane.b32.xlu0 %v366, 15
        %v384 = vpop.permute.xlu0 %383
        %385 = vrot.lane.b32.xlu0 %v369, 15
        %v386 = vpop.permute.xlu0 %385
        %vm389 = vcmask 121856
        %v390 = vsel %vm389, %v378, %v384
        %v391 = vsel %vm389, %v380, %v386
        %v392 = vand.u32 %v373, 1
        %v393 = vand.u32 %v374, 1
        %vm394 = vcmp.ne.s32.totalorder %v392, 0
        %vm395 = vcmp.ne.s32.totalorder %v393, 0
        %v396 = vsel %vm394, 1, 0
        %v397 = vsel %vm395, 1, 0
        %vm398 = vcmp.eq.s32.totalorder %v396, 1
        %vm399 = vcmp.eq.s32.totalorder %v397, 1
        %v400 = vsel %vm398, %v390, %v366
        %v401 = vsel %vm399, %v391, %v369
        %404 = vrot.lane.b32.xlu0 %v400, 126
        %v405 = vpop.permute.xlu0 %404
        %406 = vrot.lane.b32.xlu0 %v401, 126
        %v407 = vpop.permute.xlu0 %406
        %410 = vrot.lane.b32.xlu0 %v400, 14
        %v411 = vpop.permute.xlu0 %410
        %412 = vrot.lane.b32.xlu0 %v401, 14
        %v413 = vpop.permute.xlu0 %412
        %vm416 = vcmask 113664
        %v417 = vsel %vm416, %v405, %v411
        %v418 = vsel %vm416, %v407, %v413
        %v419 = vand.u32 %v373, 2
        %v420 = vand.u32 %v374, 2
        %vm421 = vcmp.ne.s32.totalorder %v419, 0
        %vm422 = vcmp.ne.s32.totalorder %v420, 0
        %v423 = vsel %vm421, 1, 0
        %v424 = vsel %vm422, 1, 0
        %vm425 = vcmp.eq.s32.totalorder %v423, 1
        %vm426 = vcmp.eq.s32.totalorder %v424, 1
        %v427 = vsel %vm425, %v417, %v400
        %v428 = vsel %vm426, %v418, %v401
        %431 = vrot.lane.b32.xlu0 %v427, 124
        %v432 = vpop.permute.xlu0 %431
        %433 = vrot.lane.b32.xlu0 %v428, 124
        %v434 = vpop.permute.xlu0 %433
        %437 = vrot.lane.b32.xlu0 %v427, 12
        %v438 = vpop.permute.xlu0 %437
        %439 = vrot.lane.b32.xlu0 %v428, 12
        %v440 = vpop.permute.xlu0 %439
        %vm443 = vcmask 97280
        %v444 = vsel %vm443, %v432, %v438
        %v445 = vsel %vm443, %v434, %v440
        %v446 = vand.u32 %v373, 4
        %v447 = vand.u32 %v374, 4
        %vm448 = vcmp.ne.s32.totalorder %v446, 0
        %vm449 = vcmp.ne.s32.totalorder %v447, 0
        %v450 = vsel %vm448, 1, 0
        %v451 = vsel %vm449, 1, 0
        %vm452 = vcmp.eq.s32.totalorder %v450, 1
        %vm453 = vcmp.eq.s32.totalorder %v451, 1
        %v454 = vsel %vm452, %v444, %v427
        %v455 = vsel %vm453, %v445, %v428
        %458 = vrot.lane.b32.xlu0 %v454, 120
        %v459 = vpop.permute.xlu0 %458
        %460 = vrot.lane.b32.xlu0 %v455, 120
        %v461 = vpop.permute.xlu0 %460
        %464 = vrot.lane.b32.xlu0 %v454, 8
        %v465 = vpop.permute.xlu0 %464
        %466 = vrot.lane.b32.xlu0 %v455, 8
        %v467 = vpop.permute.xlu0 %466
        %vm470 = vcmask 64512
        %v471 = vsel %vm470, %v459, %v465
        %v472 = vsel %vm470, %v461, %v467
        %v473 = vand.u32 %v373, 8
        %v474 = vand.u32 %v374, 8
        %vm475 = vcmp.ne.s32.totalorder %v473, 0
        %vm476 = vcmp.ne.s32.totalorder %v474, 0
        %v477 = vsel %vm475, 1, 0
        %v478 = vsel %vm476, 1, 0
        %vm479 = vcmp.eq.s32.totalorder %v477, 1
        %vm480 = vcmp.eq.s32.totalorder %v478, 1
        %v481 = vsel %vm479, %v471, %v454
        %v482 = vsel %vm480, %v472, %v455
        %vm483 = vcmask 130048
        %v484 = vsel %vm483, %v481, 0.0
        %v485 = vsel %vm483, %v482, 0.0
        %v486 = vadd.f32 %v484, %v485
        %v487 = vrot.slane %v486, 4
        %v488 = vadd.f32 %v486, %v487
        %v489 = vrot.slane %v488, 2
        %v490 = vadd.f32 %v488, %v489
        %v491 = vrot.slane %v490, 1
        %v492 = vadd.f32 %v490, %v491
        %v493 = vmul.f32 %v492, 0.0078125
        %v494 = vlaneseq
        %v495 = vand.u32 %v494, 127
        %v496 = vcvt.s32.f32 %v495
        %v497 = vsel %vm483, %v493, -inf
        %498 = vmax.xlane.f32.xlu0 %v497
        %v499 = vpop.xlane.xlu0 %498
        %vm500 = vcmp.ge.f32.partialorder %v493, %v499
        %v501 = vsel %vm500, %v496, 16.0
        %v502 = vsel %vm483, %v501, inf
        %503 = vmin.xlane.f32.xlu0 %v502
        %v504 = vpop.xlane.xlu0 %503
        %vm505 = vcmp.eq.f32.partialorder %v496, %v504
        %v506 = vsel %vm505, -3e+38, %v493
        %v507 = vsel %vm483, %v506, -inf
        %508 = vmax.xlane.f32.xlu0 %v507
        %v509 = vpop.xlane.xlu0 %508
        %vm510 = vcmp.ge.f32.partialorder %v506, %v509
        %v511 = vsel %vm510, %v496, 16.0
        %v512 = vsel %vm483, %v511, inf
        %513 = vmin.xlane.f32.xlu0 %v512
        %v514 = vpop.xlane.xlu0 %513
        %v515 = vmax.f32 %v499, %v509
        %v516 = vsub.f32 %v499, %v515
        %v517 = vmul.f32 %v516, 1.442695
        %v518 = vpow.pop %v517
        %v519 = vsub.f32 %v509, %v515
        %v520 = vmul.f32 %v519, 1.442695
        %v521 = vpow.pop %v520
        %v522 = vadd.f32 %v518, %v521
        %v523 = vrcp.pop %v522
        %v524 = vmul.f32 %v518, %v523
        %v525 = vmul.f32 %v521, %v523
        %v526 = vsub.s32 %v495, %v373
        %v527 = vsub.s32 %v495, %v374
        %vm528 = vcmp.lt.s32.totalorder %v526, 0
        %vm529 = vcmp.lt.s32.totalorder %v527, 0
        %v530 = vadd.s32 %v526, 16
        %v531 = vadd.s32 %v527, 16
        %v532 = vsel %vm528, %v530, %v526
        %v533 = vsel %vm529, %v531, %v527
        %v534 = vcvt.s32.f32 %v532
        %v535 = vcvt.s32.f32 %v533
        %vm536 = vcmp.eq.f32.partialorder %v534, %v504
        %vm537 = vcmp.eq.f32.partialorder %v535, %v504
        %v538 = vsel %vm536, %v524, 0.0
        %v539 = vsel %vm537, %v524, 0.0
        %v540 = vadd.f32 %v538, 0.0
        %v541 = vadd.f32 %v539, 0.0
        %vm542 = vcmp.eq.f32.partialorder %v534, %v514
        %vm543 = vcmp.eq.f32.partialorder %v535, %v514
        %v544 = vsel %vm542, %v525, 0.0
        %v545 = vsel %vm543, %v525, 0.0
        %v546 = vadd.f32 %v540, %v544
        %v547 = vadd.f32 %v541, %v545
        %v548 = vpack.c.bf16 %v547, %v546
        %v549 = vpack.c.bf16 %v289, %v287
        %v551 = vsel %vm483, %v548, 0
        %553 = vmatprep.subr.bf16.mxu0 0
        %554 = vmatpush1.bf16.msra.mxu0 %v549
        %555 = vmatprep.subr.bf16.mxu0 0
        %556 = vmatpush1.bf16.msra.mxu0 0
        %557 = vmatprep.subr.bf16.mxu0 0
        %558 = vmatpush1.bf16.msra.mxu0 0
        %559 = vmatprep.subr.bf16.mxu0 0
        %560 = vmatpush1.bf16.msra.mxu0 0
        %561 = vmatprep.subr.bf16.mxu0 0
        %562 = vmatpush1.bf16.msra.mxu0 0
        %563 = vmatprep.subr.bf16.mxu0 0
        %564 = vmatpush1.bf16.msra.mxu0 0
        %565 = vmatprep.subr.bf16.mxu0 0
        %566 = vmatpush1.bf16.msra.mxu0 0
        %567 = vmatprep.subr.bf16.mxu0 0
        %568 = vmatpush1.bf16.msra.mxu0 0
        %569 = vmatprep.subr.bf16.mxu0 0
        %570 = vmatpush1.bf16.msra.mxu0 0
        %571 = vmatprep.subr.bf16.mxu0 0
        %572 = vmatpush1.bf16.msra.mxu0 0
        %573 = vmatprep.subr.bf16.mxu0 0
        %574 = vmatpush1.bf16.msra.mxu0 0
        %575 = vmatprep.subr.bf16.mxu0 0
        %576 = vmatpush1.bf16.msra.mxu0 0
        %577 = vmatprep.subr.bf16.mxu0 0
        %578 = vmatpush1.bf16.msra.mxu0 0
        %579 = vmatprep.subr.bf16.mxu0 0
        %580 = vmatpush1.bf16.msra.mxu0 0
        %581 = vmatprep.subr.bf16.mxu0 0
        %582 = vmatpush1.bf16.msra.mxu0 0
        %583 = vmatprep.subr.bf16.mxu0 0
        %584 = vmatpush1.bf16.msra.mxu0 0
        %585 = vmatprep.mubr.bf16.mxu0 0
        %586 = vmatmul.mubr.bf16.gmra.mrb[0].mxu0 %v551
        %v587 = vpop.f32.mrb[0].mxu0
        %v588 = vadd.f32 0.0, %v587
        %v589 = vpop.f32.mrb[0].mxu0
        %v590 = vpop.f32.mrb[0].mxu0
        %v591 = vadd.f32 0.0, %v590
        %v592 = vpop.f32.mrb[0].mxu0
        %593 = vdwg.mxu0
        %v594 = vpack.c.bf16 %v591, %v588
        %v595 = vld [vmem:[#allocation7] sm:$0xf]
        %v596 = vld [vmem:[#allocation7 + $0x4] sm:$0xf]
        %v597 = vld [vmem:[#allocation7 + $0x8] sm:$0xf]
        %v598 = vld [vmem:[#allocation7 + $0xc] sm:$0xf]
        %v599 = vld [vmem:[#allocation7 + $0x10] sm:$0xf]
        %v600 = vld [vmem:[#allocation7 + $0x14] sm:$0xf]
        %v601 = vld [vmem:[#allocation7 + $0x18] sm:$0xf]
        %v602 = vld [vmem:[#allocation7 + $0x1c] sm:$0xf]
        %v603 = vld [vmem:[#allocation7 + $0x20] sm:$0xf]
        %v604 = vld [vmem:[#allocation7 + $0x24] sm:$0xf]
        %v605 = vld [vmem:[#allocation7 + $0x28] sm:$0xf]
        %v606 = vld [vmem:[#allocation7 + $0x2c] sm:$0xf]
        %v607 = vld [vmem:[#allocation7 + $0x30] sm:$0xf]
        %v608 = vld [vmem:[#allocation7 + $0x34] sm:$0xf]
        %v609 = vld [vmem:[#allocation7 + $0x38] sm:$0xf]
        %v610 = vld [vmem:[#allocation7 + $0x3c] sm:$0xf]
        %v611 = vld [vmem:[#allocation8] sm:$0x1]
        %v613 = vlaneseq
        %v614 = vshrl.u32 %v613, 7
        %v615 = vsub.s32 0, %v614
        %v616 = vrot.slane %v611, %v615
        %v634 = vunpack.c.l.b16 %v595
        %v635 = vunpack.c.l.b16 %v596
        %v636 = vunpack.c.l.b16 %v597
        %v637 = vunpack.c.l.b16 %v598
        %v638 = vunpack.c.l.b16 %v599
        %v639 = vunpack.c.l.b16 %v600
        %v640 = vunpack.c.l.b16 %v601
        %v641 = vunpack.c.l.b16 %v602
        %v642 = vunpack.c.l.b16 %v603
        %v643 = vunpack.c.l.b16 %v604
        %v644 = vunpack.c.l.b16 %v605
        %v645 = vunpack.c.l.b16 %v606
        %v646 = vunpack.c.l.b16 %v607
        %v647 = vunpack.c.l.b16 %v608
        %v648 = vunpack.c.l.b16 %v609
        %v649 = vunpack.c.l.b16 %v610
        %v650 = vpack.c.b16 %v635, %v634
        %v651 = vpack.c.b16 %v637, %v636
        %v652 = vpack.c.b16 %v639, %v638
        %v653 = vpack.c.b16 %v641, %v640
        %v654 = vpack.c.b16 %v643, %v642
        %v655 = vpack.c.b16 %v645, %v644
        %v656 = vpack.c.b16 %v647, %v646
        %v657 = vpack.c.b16 %v649, %v648
        %666 = vmatprep.subr.bf16.mxu0 0
        %667 = vmatpush1.bf16.msra.mxu0 %v650
        %668 = vmatprep.subr.bf16.mxu0 0
        %669 = vmatpush1.bf16.msra.mxu0 %v651
        %670 = vmatprep.subr.bf16.mxu0 0
        %671 = vmatpush1.bf16.msra.mxu0 %v652
        %672 = vmatprep.subr.bf16.mxu0 0
        %673 = vmatpush1.bf16.msra.mxu0 %v653
        %674 = vmatprep.subr.bf16.mxu0 0
        %675 = vmatpush1.bf16.msra.mxu0 %v654
        %676 = vmatprep.subr.bf16.mxu0 0
        %677 = vmatpush1.bf16.msra.mxu0 %v655
        %678 = vmatprep.subr.bf16.mxu0 0
        %679 = vmatpush1.bf16.msra.mxu0 %v656
        %680 = vmatprep.subr.bf16.mxu0 0
        %681 = vmatpush1.bf16.msra.mxu0 %v657
        %682 = vmatprep.subr.bf16.mxu0 0
        %683 = vmatpush1.bf16.msra.mxu0 0
        %684 = vmatprep.subr.bf16.mxu0 0
        %685 = vmatpush1.bf16.msra.mxu0 0
        %686 = vmatprep.subr.bf16.mxu0 0
        %687 = vmatpush1.bf16.msra.mxu0 0
        %688 = vmatprep.subr.bf16.mxu0 0
        %689 = vmatpush1.bf16.msra.mxu0 0
        %690 = vmatprep.subr.bf16.mxu0 0
        %691 = vmatpush1.bf16.msra.mxu0 0
        %692 = vmatprep.subr.bf16.mxu0 0
        %693 = vmatpush1.bf16.msra.mxu0 0
        %694 = vmatprep.subr.bf16.mxu0 0
        %695 = vmatpush1.bf16.msra.mxu0 0
        %696 = vmatprep.subr.bf16.mxu0 0
        %697 = vmatpush1.bf16.msra.mxu0 0
        %698 = vmatprep.mubr.bf16.mxu0 0
        %699 = vmatmul.mubr.bf16.gmra.mrb[0].mxu0 %v594
        %v700 = vpop.f32.mrb[0].mxu0
        %v701 = vadd.f32 %v616, %v700
        %v702 = vpop.f32.mrb[0].mxu0
        %v703 = vpop.f32.mrb[0].mxu0
        %v704 = vadd.f32 %v616, %v703
        %v705 = vpop.f32.mrb[0].mxu0
        %706 = vdwg.mxu0
        %707 = vst [vmem:[%s282] sm:$0xff] %v701
        %708 = vst [vmem:[%s282 + $0x8] sm:$0xff] %v704
        %s709 = sand.u32 %s127, 1
        %s710 = scalar_lea.sflag [#allocation4], %s709
        %s711 = sand.u32 %s127, 1
        %s712 = smul.addr %s711, 16
        %s713 = scalar_lea.vmem [#allocation10], %s712
        // Predicated region
        $region53: #{_lambda_.35} parent=35 // pred_check
          %p714 = pneg %p137
        $region54: #{_lambda_.35} parent=35 // pred_check_branch
          %716 = sbr.rel (%p714) target = $region56
        $region55: #{_lambda_.35} parent=35 // pred_region
          %s718 = ssub.s32 256, 256
          %719 = vsyncadd %s710, %s718
          %s720 = smul.addr %s25, 2
          %s721 = smul.addr %s720, 128
          %s722 = scalar_lea.hbm %s4, %s721
          %s723 = sshll.u32 %s713, 4
          %s724 = int_to_ptr.vmem [resolvable:$true] %s723
          %729 = dma.vmem_to_hbm [thread:$0]  %s724, 256, %s722, %s710, 128, 128, 8
        $region56: #{_lambda_.35} parent=35 // pred_fallthru
          _
      $region36: #{_lambda_.35} parent=5 // pred_fallthru
        _
      %p730 = scmp.le.s32.totalorder 2, %s20
      // Predicated region
      $region57: #{_lambda_.35} parent=5 // pred_check
        %p731 = pneg %p730
      $region58: #{_lambda_.35} parent=5 // pred_check_branch
        %733 = sbr.rel (%p731) target = $region60
      $region59: #{_lambda_.35} parent=5 // pred_region
        %s734 = ssub.s32 %s20, 2
        // Predicated region
        $region61: #{_lambda_.35} parent=59 // pred_check
          %p735 = pneg %p143
        $region62: #{_lambda_.35} parent=59 // pred_check_branch
          %737 = sbr.rel (%p735) target = $region64
        $region63: #{_lambda_.35} parent=59 // pred_region
          %s738 = sand.u32 %s128, 1
          %s739 = scalar_lea.sflag [#allocation4], %s738
          %s740 = sand.u32 %s128, 1
          %s741 = smul.addr %s740, 16
          %s742 = scalar_lea.vmem [#allocation10], %s741
          %743 = dma.done %s739, 256
        $region64: #{_lambda_.35} parent=59 // pred_fallthru
          _
      $region60: #{_lambda_.35} parent=5 // pred_fallthru
        _
    $region6: #{_lambda_.35} parent=1 // loop_footer
      %s24 = sadd.s32 1, %s20
    $region7: #{_lambda_.35} parent=1 // loop_footer_branch
      %19 = sbr.rel target = $region3
    $region8: #{_lambda_.35} parent=1 // loop_exit
      _
    %744 = vsyncpa [#allocation3], 1
    %s745 = scalar_lea.sflag [#allocation3], 1
    %746 = vsyncpa %s745, 1
    %747 = vsyncpa [#allocation6], 1
    %s748 = scalar_lea.sflag [#allocation6], 1
    %749 = vsyncpa %s748, 1
    %750 = vsyncpa [#allocation9], 1
    %751 = vsyncpa [#allocation4], 1
    %s752 = scalar_lea.sflag [#allocation4], 1
    %753 = vsyncpa %s752, 1

// kernel: _lambda_.39
$region0: #{_lambda_.39}
  #allocation0 [shape = 'u32[]', space=smem, size = 0x4, offset = 0x4, fixed_abs, tag = 'smem constant byte address 0x4 - core index']
  #allocation1 [shape = 'u32[144,128]{1,0:T(1,128)}', space=vmem, size = 0x12000, scoped, tag = 'internal scratch']
  %s0 = inlined_call_operand.hbm [shape: f32[2,16,128], index: 0, kind: input, shape index: {}]
  %s1 = inlined_call_operand.hbm [shape: f32[2,16,128], index: 1, kind: input, shape index: {}]
  %s2 = inlined_call_operand.hbm [shape: f32[2,16,128], index: 2, kind: input, shape index: {}]
  %s3 = inlined_call_operand.hbm [shape: bf16[128,4], index: 3, kind: input, shape index: {}]
  %s4 = inlined_call_operand.hbm [shape: bf16[128,4], index: 4, kind: input, shape index: {}]
  %s5 = inlined_call_operand.hbm [shape: bf16[128,4], index: 5, kind: input, shape index: {}]
  %s6 = inlined_call_operand.hbm [shape: f32[2,16,4], index: 6, kind: output, shape index: {}]
  %s7 = sld [smem:[#allocation0]]
  $region81: #{_lambda_.39} parent=0
    _
  %s9 = ssub.s32 1, %s7
  %s10 = scalar_select 0, %s9, %s7
  $region1: #{_lambda_.39} parent=0
    #allocation2 [shape = 'u8[16384]{0}', space=vmem, size = 0x4000, scoped, tag = 'input window, operand 0']
    #allocation3 [shape = 's32[2]{0}', space=sflag, size = 0x8, scoped, tag = 'scoped memory for _lambda_.39']
    #allocation4 [shape = 's32[2]{0}', space=sflag, size = 0x8, scoped, tag = 'scoped memory for _lambda_.39']
    #allocation5 [shape = 'u8[16384]{0}', space=vmem, size = 0x4000, scoped, tag = 'input window, operand 1']
    #allocation6 [shape = 's32[2]{0}', space=sflag, size = 0x8, scoped, tag = 'scoped memory for _lambda_.39']
    #allocation7 [shape = 'u8[16384]{0}', space=vmem, size = 0x4000, scoped, tag = 'input window, operand 2']
    #allocation8 [shape = 'u8[32768]{0}', space=vmem, size = 0x8000, scoped, tag = 'input window, operand 3, single buffered']
    #allocation9 [shape = 's32[1]{0}', space=sflag, size = 0x4, scoped, tag = 'scoped memory for _lambda_.39']
    #allocation10 [shape = 'u8[32768]{0}', space=vmem, size = 0x8000, scoped, tag = 'input window, operand 4, single buffered']
    #allocation11 [shape = 'u8[32768]{0}', space=vmem, size = 0x8000, scoped, tag = 'input window, operand 5, single buffered']
    #allocation12 [shape = 's32[1]{0}', space=sflag, size = 0x4, scoped, tag = 'scoped memory for _lambda_.39']
    #allocation13 [shape = 'u8[16384]{0}', space=vmem, size = 0x4000, scoped, tag = 'output window, operand 0']
    %11 = vsyncpa [#allocation3], 0
    %s12 = scalar_lea.sflag [#allocation3], 1
    %13 = vsyncpa %s12, 0
    %14 = vsyncpa [#allocation6], 0
    %s15 = scalar_lea.sflag [#allocation6], 1
    %16 = vsyncpa %s15, 0
    %17 = vsyncpa [#allocation9], 0
    %18 = vsyncpa [#allocation12], 0
    %19 = vsyncpa [#allocation4], 0
    %s20 = scalar_lea.sflag [#allocation4], 1
    %21 = vsyncpa %s20, 0
    loop: start=0, step=1, limit=4
    $region2: #{_lambda_.39} parent=1 // loop_pre_header
      _
    $region3: #{_lambda_.39} parent=1 // loop_header
      %s23 = sphi 0, %s27
      %p24 = scmp.ge.s32.totalorder %s23, 4
      %s33 = sphi 0, %s35
      %s36 = sphi 0, %s33
      %s37 = sphi 0, %s36
      %s53 = sphi 0, %s37
      %s59 = sphi 0, %s61
      %s62 = sphi 0, %s59
      %s63 = sphi 0, %s62
      %s79 = sphi 0, %s63
      %s85 = sphi 0, %s87
      %s88 = sphi 0, %s85
      %s89 = sphi 0, %s88
      %s105 = sphi 0, %s89
      %s109 = sphi 0, %s109
      %s111 = sphi 0, %s109
      %s112 = sphi 0, %s111
      %s126 = sphi 0, %s112
      %s130 = sphi 0, %s130
      %s132 = sphi 0, %s130
      %s133 = sphi 0, %s132
      %s147 = sphi 0, %s133
      %s151 = sphi 0, %s151
      %s153 = sphi 0, %s151
      %s154 = sphi 0, %s153
      %s168 = sphi 0, %s154
      %s174 = sphi 0, %s176
      %s177 = sphi 0, %s174
      %s178 = sphi 0, %s177
      %s194 = sphi 0, %s178
    $region4: #{_lambda_.39} parent=1 // loop_header_branch
      %26 = sbr.rel (%p24) target = $region8
    $region5: #{_lambda_.39} parent=1 // loop_body
      %s28 = ssub.s32 %s23, 1
      %s29 = ssub.s32 %s23, 2
      %s30 = sadd.s32 %s23, 1
      %s31 = ssub.s32 %s23, %s30
      %p32 = scmp.eq.s32.totalorder %s31, 0
      %s34 = sadd.s32 %s33, 1
      %s35 = scalar_select %p32, %s33, %s34
      %p38 = pneg %p32
      %p39 = scmp.eq.s32.totalorder %s23, 1
      %p40 = por %p38, %p39
      %p41 = scmp.ne.s32.totalorder %s33, %s36
      %p42 = scmp.eq.s32.totalorder %s23, 0
      %p43 = por %p41, %p42
      %p44 = scmp.ne.s32.totalorder %s33, %s36
      %p45 = scmp.eq.s32.totalorder %s28, 1
      %p46 = por %p44, %p45
      %p47 = scmp.ne.s32.totalorder %s36, %s37
      %p48 = scmp.eq.s32.totalorder %s28, 0
      %p49 = por %p47, %p48
      %p50 = scmp.ne.s32.totalorder %s36, %s37
      %p51 = scmp.eq.s32.totalorder %s29, 1
      %p52 = por %p50, %p51
      %p54 = scmp.ne.s32.totalorder %s37, %s53
      %p55 = scmp.eq.s32.totalorder %s29, 0
      %p56 = por %p54, %p55
      %s57 = ssub.s32 %s23, %s30
      %p58 = scmp.eq.s32.totalorder %s57, 0
      %s60 = sadd.s32 %s59, 1
      %s61 = scalar_select %p58, %s59, %s60
      %p64 = pneg %p58
      %p65 = scmp.eq.s32.totalorder %s23, 1
      %p66 = por %p64, %p65
      %p67 = scmp.ne.s32.totalorder %s59, %s62
      %p68 = scmp.eq.s32.totalorder %s23, 0
      %p69 = por %p67, %p68
      %p70 = scmp.ne.s32.totalorder %s59, %s62
      %p71 = scmp.eq.s32.totalorder %s28, 1
      %p72 = por %p70, %p71
      %p73 = scmp.ne.s32.totalorder %s62, %s63
      %p74 = scmp.eq.s32.totalorder %s28, 0
      %p75 = por %p73, %p74
      %p76 = scmp.ne.s32.totalorder %s62, %s63
      %p77 = scmp.eq.s32.totalorder %s29, 1
      %p78 = por %p76, %p77
      %p80 = scmp.ne.s32.totalorder %s63, %s79
      %p81 = scmp.eq.s32.totalorder %s29, 0
      %p82 = por %p80, %p81
      %s83 = ssub.s32 %s23, %s30
      %p84 = scmp.eq.s32.totalorder %s83, 0
      %s86 = sadd.s32 %s85, 1
      %s87 = scalar_select %p84, %s85, %s86
      %p90 = pneg %p84
      %p91 = scmp.eq.s32.totalorder %s23, 1
      %p92 = por %p90, %p91
      %p93 = scmp.ne.s32.totalorder %s85, %s88
      %p94 = scmp.eq.s32.totalorder %s23, 0
      %p95 = por %p93, %p94
      %p96 = scmp.ne.s32.totalorder %s85, %s88
      %p97 = scmp.eq.s32.totalorder %s28, 1
      %p98 = por %p96, %p97
      %p99 = scmp.ne.s32.totalorder %s88, %s89
      %p100 = scmp.eq.s32.totalorder %s28, 0
      %p101 = por %p99, %p100
      %p102 = scmp.ne.s32.totalorder %s88, %s89
      %p103 = scmp.eq.s32.totalorder %s29, 1
      %p104 = por %p102, %p103
      %p106 = scmp.ne.s32.totalorder %s89, %s105
      %p107 = scmp.eq.s32.totalorder %s29, 0
      %p108 = por %p106, %p107
      %s110 = sadd.s32 %s109, 1
      %p113 = scmp.eq.s32.totalorder %s23, 1
      %p114 = scmp.ne.s32.totalorder %s109, %s111
      %p115 = scmp.eq.s32.totalorder %s23, 0
      %p116 = por %p114, %p115
      %p117 = scmp.ne.s32.totalorder %s109, %s111
      %p118 = scmp.eq.s32.totalorder %s28, 1
      %p119 = por %p117, %p118
      %p120 = scmp.ne.s32.totalorder %s111, %s112
      %p121 = scmp.eq.s32.totalorder %s28, 0
      %p122 = por %p120, %p121
      %p123 = scmp.ne.s32.totalorder %s111, %s112
      %p124 = scmp.eq.s32.totalorder %s29, 1
      %p125 = por %p123, %p124
      %p127 = scmp.ne.s32.totalorder %s112, %s126
      %p128 = scmp.eq.s32.totalorder %s29, 0
      %p129 = por %p127, %p128
      %s131 = sadd.s32 %s130, 1
      %p134 = scmp.eq.s32.totalorder %s23, 1
      %p135 = scmp.ne.s32.totalorder %s130, %s132
      %p136 = scmp.eq.s32.totalorder %s23, 0
      %p137 = por %p135, %p136
      %p138 = scmp.ne.s32.totalorder %s130, %s132
      %p139 = scmp.eq.s32.totalorder %s28, 1
      %p140 = por %p138, %p139
      %p141 = scmp.ne.s32.totalorder %s132, %s133
      %p142 = scmp.eq.s32.totalorder %s28, 0
      %p143 = por %p141, %p142
      %p144 = scmp.ne.s32.totalorder %s132, %s133
      %p145 = scmp.eq.s32.totalorder %s29, 1
      %p146 = por %p144, %p145
      %p148 = scmp.ne.s32.totalorder %s133, %s147
      %p149 = scmp.eq.s32.totalorder %s29, 0
      %p150 = por %p148, %p149
      %s152 = sadd.s32 %s151, 1
      %p155 = scmp.eq.s32.totalorder %s23, 1
      %p156 = scmp.ne.s32.totalorder %s151, %s153
      %p157 = scmp.eq.s32.totalorder %s23, 0
      %p158 = por %p156, %p157
      %p159 = scmp.ne.s32.totalorder %s151, %s153
      %p160 = scmp.eq.s32.totalorder %s28, 1
      %p161 = por %p159, %p160
      %p162 = scmp.ne.s32.totalorder %s153, %s154
      %p163 = scmp.eq.s32.totalorder %s28, 0
      %p164 = por %p162, %p163
      %p165 = scmp.ne.s32.totalorder %s153, %s154
      %p166 = scmp.eq.s32.totalorder %s29, 1
      %p167 = por %p165, %p166
      %p169 = scmp.ne.s32.totalorder %s154, %s168
      %p170 = scmp.eq.s32.totalorder %s29, 0
      %p171 = por %p169, %p170
      %s172 = ssub.s32 %s23, %s30
      %p173 = scmp.eq.s32.totalorder %s172, 0
      %s175 = sadd.s32 %s174, 1
      %s176 = scalar_select %p173, %s174, %s175
      %p179 = pneg %p173
      %p180 = scmp.eq.s32.totalorder %s23, 1
      %p181 = por %p179, %p180
      %p182 = scmp.ne.s32.totalorder %s174, %s177
      %p183 = scmp.eq.s32.totalorder %s23, 0
      %p184 = por %p182, %p183
      %p185 = scmp.ne.s32.totalorder %s174, %s177
      %p186 = scmp.eq.s32.totalorder %s28, 1
      %p187 = por %p185, %p186
      %p188 = scmp.ne.s32.totalorder %s177, %s178
      %p189 = scmp.eq.s32.totalorder %s28, 0
      %p190 = por %p188, %p189
      %p191 = scmp.ne.s32.totalorder %s177, %s178
      %p192 = scmp.eq.s32.totalorder %s29, 1
      %p193 = por %p191, %p192
      %p195 = scmp.ne.s32.totalorder %s178, %s194
      %p196 = scmp.eq.s32.totalorder %s29, 0
      %p197 = por %p195, %p196
      %p198 = scmp.le.s32.totalorder 1, %s23
      %p199 = scmp.lt.s32.totalorder %s23, 3
      %p200 = pnand %p198, %p199
      %p201 = pneg %p200
      // Predicated region
      $region9: #{_lambda_.39} parent=5 // pred_check
        _
      $region10: #{_lambda_.39} parent=5 // pred_check_branch
        %203 = sbr.rel (%p200) target = $region12
      $region11: #{_lambda_.39} parent=5 // pred_region
        %s204 = ssub.s32 %s23, 1
        // Predicated region
        $region13: #{_lambda_.39} parent=11 // pred_check
          %p205 = pneg %p122
        $region14: #{_lambda_.39} parent=11 // pred_check_branch
          %207 = sbr.rel (%p205) target = $region16
        $region15: #{_lambda_.39} parent=11 // pred_region
          %s209 = ssub.s32 1024, 1024
          %210 = vsyncadd [#allocation9], %s209
          %s211 = sshll.u32 [#allocation8], 4
          %s212 = int_to_ptr.vmem [resolvable:$true] %s211
          %217 = dma.hbm_to_vmem [thread:$0]  %s3, 1024, %s212, [#allocation9], 64, 64, 4
        $region16: #{_lambda_.39} parent=11 // pred_fallthru
          _
        // Predicated region
        $region17: #{_lambda_.39} parent=11 // pred_check
          %p218 = pneg %p143
        $region18: #{_lambda_.39} parent=11 // pred_check_branch
          %220 = sbr.rel (%p218) target = $region20
        $region19: #{_lambda_.39} parent=11 // pred_region
          %s222 = ssub.s32 1024, 1024
          %223 = vsyncadd [#allocation9], %s222
          %s224 = sshll.u32 [#allocation10], 4
          %s225 = int_to_ptr.vmem [resolvable:$true] %s224
          %230 = dma.hbm_to_vmem [thread:$0]  %s4, 1024, %s225, [#allocation9], 64, 64, 4
        $region20: #{_lambda_.39} parent=11 // pred_fallthru
          _
        // Predicated region
        $region21: #{_lambda_.39} parent=11 // pred_check
          %p231 = pneg %p164
        $region22: #{_lambda_.39} parent=11 // pred_check_branch
          %233 = sbr.rel (%p231) target = $region24
        $region23: #{_lambda_.39} parent=11 // pred_region
          %s235 = ssub.s32 1024, 1024
          %236 = vsyncadd [#allocation12], %s235
          %s237 = sshll.u32 [#allocation11], 4
          %s238 = int_to_ptr.vmem [resolvable:$true] %s237
          %243 = dma.hbm_to_vmem [thread:$0]  %s5, 1024, %s238, [#allocation12], 64, 64, 4
        $region24: #{_lambda_.39} parent=11 // pred_fallthru
          _
      $region12: #{_lambda_.39} parent=5 // pred_fallthru
        _
      %p244 = scmp.lt.s32.totalorder %s23, 2
      // Predicated region
      $region25: #{_lambda_.39} parent=5 // pred_check
        %p245 = pneg %p244
      $region26: #{_lambda_.39} parent=5 // pred_check_branch
        %247 = sbr.rel (%p245) target = $region28
      $region27: #{_lambda_.39} parent=5 // pred_region
        // Predicated region
        $region29: #{_lambda_.39} parent=27 // pred_check
          %p248 = pneg %p43
        $region30: #{_lambda_.39} parent=27 // pred_check_branch
          %250 = sbr.rel (%p248) target = $region32
        $region31: #{_lambda_.39} parent=27 // pred_region
          %s251 = sand.u32 %s33, 1
          %s252 = scalar_lea.sflag [#allocation3], %s251
          %s253 = sand.u32 %s33, 1
          %s254 = smul.addr %s253, 16
          %s255 = scalar_lea.vmem [#allocation2], %s254
          %s257 = ssub.s32 256, 256
          %258 = vsyncadd %s252, %s257
          %s259 = smul.addr %s23, 2
          %s260 = smul.addr %s259, 128
          %s261 = scalar_lea.hbm %s0, %s260
          %s262 = sshll.u32 %s255, 4
          %s263 = int_to_ptr.vmem [resolvable:$true] %s262
          %268 = dma.hbm_to_vmem [thread:$0]  %s261, 256, %s263, %s252, 128, 128, 8
        $region32: #{_lambda_.39} parent=27 // pred_fallthru
          _
        // Predicated region
        $region33: #{_lambda_.39} parent=27 // pred_check
          %p269 = pneg %p69
        $region34: #{_lambda_.39} parent=27 // pred_check_branch
          %271 = sbr.rel (%p269) target = $region36
        $region35: #{_lambda_.39} parent=27 // pred_region
          %s272 = sand.u32 %s23, 1
          %s273 = scalar_lea.sflag [#allocation6], %s272
          %s274 = sand.u32 %s59, 1
          %s275 = smul.addr %s274, 16
          %s276 = scalar_lea.vmem [#allocation5], %s275
          %s278 = ssub.s32 256, 256
          %279 = vsyncadd %s273, %s278
          %s280 = smul.addr %s23, 2
          %s281 = smul.addr %s280, 128
          %s282 = scalar_lea.hbm %s1, %s281
          %s283 = sshll.u32 %s276, 4
          %s284 = int_to_ptr.vmem [resolvable:$true] %s283
          %289 = dma.hbm_to_vmem [thread:$0]  %s282, 256, %s284, %s273, 128, 128, 8
        $region36: #{_lambda_.39} parent=27 // pred_fallthru
          _
        // Predicated region
        $region37: #{_lambda_.39} parent=27 // pred_check
          %p290 = pneg %p95
        $region38: #{_lambda_.39} parent=27 // pred_check_branch
          %292 = sbr.rel (%p290) target = $region40
        $region39: #{_lambda_.39} parent=27 // pred_region
          %s293 = sand.u32 %s23, 1
          %s294 = scalar_lea.sflag [#allocation6], %s293
          %s295 = sand.u32 %s85, 1
          %s296 = smul.addr %s295, 16
          %s297 = scalar_lea.vmem [#allocation7], %s296
          %s299 = ssub.s32 256, 256
          %300 = vsyncadd %s294, %s299
          %s301 = smul.addr %s23, 2
          %s302 = smul.addr %s301, 128
          %s303 = scalar_lea.hbm %s2, %s302
          %s304 = sshll.u32 %s297, 4
          %s305 = int_to_ptr.vmem [resolvable:$true] %s304
          %310 = dma.hbm_to_vmem [thread:$0]  %s303, 256, %s305, %s294, 128, 128, 8
        $region40: #{_lambda_.39} parent=27 // pred_fallthru
          _
      $region28: #{_lambda_.39} parent=5 // pred_fallthru
        _
      %p311 = scmp.le.s32.totalorder 1, %s23
      %p312 = scmp.lt.s32.totalorder %s23, 3
      %p313 = pnand %p311, %p312
      %p314 = pneg %p313
      // Predicated region
      $region41: #{_lambda_.39} parent=5 // pred_check
        _
      $region42: #{_lambda_.39} parent=5 // pred_check_branch
        %316 = sbr.rel (%p313) target = $region44
      $region43: #{_lambda_.39} parent=5 // pred_region
        %s317 = ssub.s32 %s23, 1
        %s318 = sand.u32 %s36, 1
        %s319 = scalar_lea.sflag [#allocation3], %s318
        %s320 = sand.u32 %s36, 1
        %s321 = smul.addr %s320, 16
        %s322 = scalar_lea.vmem [#allocation2], %s321
        // Predicated region
        $region45: #{_lambda_.39} parent=43 // pred_check
          %p323 = pneg %p49
        $region46: #{_lambda_.39} parent=43 // pred_check_branch
          %325 = sbr.rel (%p323) target = $region48
        $region47: #{_lambda_.39} parent=43 // pred_region
          %326 = dma.done %s319, 256
        $region48: #{_lambda_.39} parent=43 // pred_fallthru
          _
        %s327 = sand.u32 %s28, 1
        %s328 = scalar_lea.sflag [#allocation6], %s327
        %s329 = sand.u32 %s62, 1
        %s330 = smul.addr %s329, 16
        %s331 = scalar_lea.vmem [#allocation5], %s330
        // Predicated region
        $region49: #{_lambda_.39} parent=43 // pred_check
          %p332 = pneg %p75
        $region50: #{_lambda_.39} parent=43 // pred_check_branch
          %334 = sbr.rel (%p332) target = $region52
        $region51: #{_lambda_.39} parent=43 // pred_region
          %335 = dma.done %s328, 256
        $region52: #{_lambda_.39} parent=43 // pred_fallthru
          _
        %s336 = sand.u32 %s28, 1
        %s337 = scalar_lea.sflag [#allocation6], %s336
        %s338 = sand.u32 %s88, 1
        %s339 = smul.addr %s338, 16
        %s340 = scalar_lea.vmem [#allocation7], %s339
        // Predicated region
        $region53: #{_lambda_.39} parent=43 // pred_check
          %p341 = pneg %p101
        $region54: #{_lambda_.39} parent=43 // pred_check_branch
          %343 = sbr.rel (%p341) target = $region56
        $region55: #{_lambda_.39} parent=43 // pred_region
          %344 = dma.done %s337, 256
        $region56: #{_lambda_.39} parent=43 // pred_fallthru
          _
        // Predicated region
        $region57: #{_lambda_.39} parent=43 // pred_check
          %p345 = pneg %p122
        $region58: #{_lambda_.39} parent=43 // pred_check_branch
          %347 = sbr.rel (%p345) target = $region60
        $region59: #{_lambda_.39} parent=43 // pred_region
          %348 = dma.done [#allocation9], 1024
        $region60: #{_lambda_.39} parent=43 // pred_fallthru
          _
        // Predicated region
        $region61: #{_lambda_.39} parent=43 // pred_check
          %p349 = pneg %p143
        $region62: #{_lambda_.39} parent=43 // pred_check_branch
          %351 = sbr.rel (%p349) target = $region64
        $region63: #{_lambda_.39} parent=43 // pred_region
          %352 = dma.done [#allocation9], 1024
        $region64: #{_lambda_.39} parent=43 // pred_fallthru
          _
        // Predicated region
        $region65: #{_lambda_.39} parent=43 // pred_check
          %p353 = pneg %p164
        $region66: #{_lambda_.39} parent=43 // pred_check_branch
          %355 = sbr.rel (%p353) target = $region68
        $region67: #{_lambda_.39} parent=43 // pred_region
          %356 = dma.done [#allocation12], 1024
        $region68: #{_lambda_.39} parent=43 // pred_fallthru
          _
        %s357 = sand.u32 %s36, 1
        %s358 = scalar_lea.sflag [#allocation3], %s357
        %s359 = sand.u32 %s36, 1
        %s360 = smul.addr %s359, 16
        %s361 = scalar_lea.vmem [#allocation2], %s360
        %p362 = pneg %p49
        %p363 = pneg %p46
        %s364 = sand.u32 %s28, 1
        %s365 = scalar_lea.sflag [#allocation6], %s364
        %s366 = sand.u32 %s62, 1
        %s367 = smul.addr %s366, 16
        %s368 = scalar_lea.vmem [#allocation5], %s367
        %p369 = pneg %p75
        %p370 = pneg %p72
        %s371 = sand.u32 %s28, 1
        %s372 = scalar_lea.sflag [#allocation6], %s371
        %s373 = sand.u32 %s88, 1
        %s374 = smul.addr %s373, 16
        %s375 = scalar_lea.vmem [#allocation7], %s374
        %p376 = pneg %p101
        %p377 = pneg %p98
        %p378 = pneg %p122
        %p379 = pneg %p119
        %p380 = pneg %p143
        %p381 = pneg %p140
        %p382 = pneg %p164
        %p383 = pneg %p161
        %p384 = pneg %p190
        %p385 = pneg %p187
        %s386 = sand.u32 %s177, 1
        %s387 = scalar_lea.sflag [#allocation4], %s386
        %s388 = sand.u32 %s177, 1
        %s389 = smul.addr %s388, 16
        %s390 = scalar_lea.vmem [#allocation13], %s389
        %v392 = vld [vmem:[%s322] sm:$0xff]
        %v393 = vld [vmem:[%s322 + $0x8] sm:$0xff]
        %v394 = vld [vmem:[%s331] sm:$0xff]
        %v395 = vld [vmem:[%s331 + $0x8] sm:$0xff]
        %v396 = vadd.f32 %v392, %v394
        %v397 = vadd.f32 %v393, %v395
        %v398 = vld [vmem:[%s340] sm:$0xff]
        %v399 = vld [vmem:[%s340 + $0x8] sm:$0xff]
        %v400 = vadd.f32 %v396, %v398
        %v401 = vadd.f32 %v397, %v399
        %v403 = vrot.slane %v401, 7
        %vm406 = vcmask 1040384
        %v407 = vrot.slane %v400, 7
        %v408 = vsel %vm406, %v407, %v403
        %v411 = vsel %vm406, %v403, %v407
        %vm412 = vcmask 1046528
        %v413 = vrot.slane %v400, 1
        %v414 = vrot.slane %v401, 1
        %v415 = vsel %vm412, %v413, %v414
        %v419 = vsel %vm412, %v414, %v413
        %v420 = vpack.c.bf16 %v408, %v411
        %v421 = vld [vmem:[#allocation8] sm:$0xf]
        %v422 = vld [vmem:[#allocation8 + $0x4] sm:$0xf]
        %v423 = vld [vmem:[#allocation8 + $0x8] sm:$0xf]
        %v424 = vld [vmem:[#allocation8 + $0xc] sm:$0xf]
        %v425 = vld [vmem:[#allocation8 + $0x10] sm:$0xf]
        %v426 = vld [vmem:[#allocation8 + $0x14] sm:$0xf]
        %v427 = vld [vmem:[#allocation8 + $0x18] sm:$0xf]
        %v428 = vld [vmem:[#allocation8 + $0x1c] sm:$0xf]
        %v429 = vld [vmem:[#allocation8 + $0x20] sm:$0xf]
        %v430 = vld [vmem:[#allocation8 + $0x24] sm:$0xf]
        %v431 = vld [vmem:[#allocation8 + $0x28] sm:$0xf]
        %v432 = vld [vmem:[#allocation8 + $0x2c] sm:$0xf]
        %v433 = vld [vmem:[#allocation8 + $0x30] sm:$0xf]
        %v434 = vld [vmem:[#allocation8 + $0x34] sm:$0xf]
        %v435 = vld [vmem:[#allocation8 + $0x38] sm:$0xf]
        %v436 = vld [vmem:[#allocation8 + $0x3c] sm:$0xf]
        %v437 = vpack.c.bf16 %v401, %v400
        %v438 = vld [vmem:[#allocation10] sm:$0xf]
        %v439 = vld [vmem:[#allocation10 + $0x4] sm:$0xf]
        %v440 = vld [vmem:[#allocation10 + $0x8] sm:$0xf]
        %v441 = vld [vmem:[#allocation10 + $0xc] sm:$0xf]
        %v442 = vld [vmem:[#allocation10 + $0x10] sm:$0xf]
        %v443 = vld [vmem:[#allocation10 + $0x14] sm:$0xf]
        %v444 = vld [vmem:[#allocation10 + $0x18] sm:$0xf]
        %v445 = vld [vmem:[#allocation10 + $0x1c] sm:$0xf]
        %v446 = vld [vmem:[#allocation10 + $0x20] sm:$0xf]
        %v447 = vld [vmem:[#allocation10 + $0x24] sm:$0xf]
        %v448 = vld [vmem:[#allocation10 + $0x28] sm:$0xf]
        %v449 = vld [vmem:[#allocation10 + $0x2c] sm:$0xf]
        %v450 = vld [vmem:[#allocation10 + $0x30] sm:$0xf]
        %v451 = vld [vmem:[#allocation10 + $0x34] sm:$0xf]
        %v452 = vld [vmem:[#allocation10 + $0x38] sm:$0xf]
        %v453 = vld [vmem:[#allocation10 + $0x3c] sm:$0xf]
        %v470 = vunpack.c.l.b16 %v438
        %v471 = vunpack.c.l.b16 %v439
        %v472 = vunpack.c.l.b16 %v440
        %v473 = vunpack.c.l.b16 %v441
        %v474 = vunpack.c.l.b16 %v442
        %v475 = vunpack.c.l.b16 %v443
        %v476 = vunpack.c.l.b16 %v444
        %v477 = vunpack.c.l.b16 %v445
        %v478 = vunpack.c.l.b16 %v446
        %v479 = vunpack.c.l.b16 %v447
        %v480 = vunpack.c.l.b16 %v448
        %v481 = vunpack.c.l.b16 %v449
        %v482 = vunpack.c.l.b16 %v450
        %v483 = vunpack.c.l.b16 %v451
        %v484 = vunpack.c.l.b16 %v452
        %v485 = vunpack.c.l.b16 %v453
        %v486 = vpack.c.b16 %v471, %v470
        %v487 = vpack.c.b16 %v473, %v472
        %v488 = vpack.c.b16 %v475, %v474
        %v489 = vpack.c.b16 %v477, %v476
        %v490 = vpack.c.b16 %v479, %v478
        %v491 = vpack.c.b16 %v481, %v480
        %v492 = vpack.c.b16 %v483, %v482
        %v493 = vpack.c.b16 %v485, %v484
        %502 = vmatprep.subr.bf16.mxu0 0
        %503 = vmatpush1.bf16.msra.mxu0 %v486
        %504 = vmatprep.subr.bf16.mxu0 0
        %505 = vmatpush1.bf16.msra.mxu0 %v487
        %506 = vmatprep.subr.bf16.mxu0 0
        %507 = vmatpush1.bf16.msra.mxu0 %v488
        %508 = vmatprep.subr.bf16.mxu0 0
        %509 = vmatpush1.bf16.msra.mxu0 %v489
        %510 = vmatprep.subr.bf16.mxu0 0
        %511 = vmatpush1.bf16.msra.mxu0 %v490
        %512 = vmatprep.subr.bf16.mxu0 0
        %513 = vmatpush1.bf16.msra.mxu0 %v491
        %514 = vmatprep.subr.bf16.mxu0 0
        %515 = vmatpush1.bf16.msra.mxu0 %v492
        %516 = vmatprep.subr.bf16.mxu0 0
        %517 = vmatpush1.bf16.msra.mxu0 %v493
        %518 = vmatprep.subr.bf16.mxu0 0
        %519 = vmatpush1.bf16.msra.mxu0 0
        %520 = vmatprep.subr.bf16.mxu0 0
        %521 = vmatpush1.bf16.msra.mxu0 0
        %522 = vmatprep.subr.bf16.mxu0 0
        %523 = vmatpush1.bf16.msra.mxu0 0
        %524 = vmatprep.subr.bf16.mxu0 0
        %525 = vmatpush1.bf16.msra.mxu0 0
        %526 = vmatprep.subr.bf16.mxu0 0
        %527 = vmatpush1.bf16.msra.mxu0 0
        %528 = vmatprep.subr.bf16.mxu0 0
        %529 = vmatpush1.bf16.msra.mxu0 0
        %530 = vmatprep.subr.bf16.mxu0 0
        %531 = vmatpush1.bf16.msra.mxu0 0
        %532 = vmatprep.subr.bf16.mxu0 0
        %533 = vmatpush1.bf16.msra.mxu0 0
        %534 = vmatprep.mubr.bf16.mxu0 0
        %535 = vmatmul.mubr.bf16.gmra.mrb[0].mxu0 %v437
        %v536 = vpop.f32.mrb[0].mxu0
        %v537 = vadd.f32 0.0, %v536
        %v538 = vpop.f32.mrb[0].mxu0
        %v539 = vpop.f32.mrb[0].mxu0
        %v540 = vadd.f32 0.0, %v539
        %v541 = vpop.f32.mrb[0].mxu0
        %542 = vdwg.mxu0
        %v559 = vunpack.c.l.b16 %v421
        %v560 = vunpack.c.l.b16 %v422
        %v561 = vunpack.c.l.b16 %v423
        %v562 = vunpack.c.l.b16 %v424
        %v563 = vunpack.c.l.b16 %v425
        %v564 = vunpack.c.l.b16 %v426
        %v565 = vunpack.c.l.b16 %v427
        %v566 = vunpack.c.l.b16 %v428
        %v567 = vunpack.c.l.b16 %v429
        %v568 = vunpack.c.l.b16 %v430
        %v569 = vunpack.c.l.b16 %v431
        %v570 = vunpack.c.l.b16 %v432
        %v571 = vunpack.c.l.b16 %v433
        %v572 = vunpack.c.l.b16 %v434
        %v573 = vunpack.c.l.b16 %v435
        %v574 = vunpack.c.l.b16 %v436
        %v575 = vpack.c.b16 %v560, %v559
        %v576 = vpack.c.b16 %v562, %v561
        %v577 = vpack.c.b16 %v564, %v563
        %v578 = vpack.c.b16 %v566, %v565
        %v579 = vpack.c.b16 %v568, %v567
        %v580 = vpack.c.b16 %v570, %v569
        %v581 = vpack.c.b16 %v572, %v571
        %v582 = vpack.c.b16 %v574, %v573
        %591 = vmatprep.subr.bf16.mxu0 0
        %592 = vmatpush1.bf16.msra.mxu0 %v575
        %593 = vmatprep.subr.bf16.mxu0 0
        %594 = vmatpush1.bf16.msra.mxu0 %v576
        %595 = vmatprep.subr.bf16.mxu0 0
        %596 = vmatpush1.bf16.msra.mxu0 %v577
        %597 = vmatprep.subr.bf16.mxu0 0
        %598 = vmatpush1.bf16.msra.mxu0 %v578
        %599 = vmatprep.subr.bf16.mxu0 0
        %600 = vmatpush1.bf16.msra.mxu0 %v579
        %601 = vmatprep.subr.bf16.mxu0 0
        %602 = vmatpush1.bf16.msra.mxu0 %v580
        %603 = vmatprep.subr.bf16.mxu0 0
        %604 = vmatpush1.bf16.msra.mxu0 %v581
        %605 = vmatprep.subr.bf16.mxu0 0
        %606 = vmatpush1.bf16.msra.mxu0 %v582
        %607 = vmatprep.subr.bf16.mxu0 0
        %608 = vmatpush1.bf16.msra.mxu0 0
        %609 = vmatprep.subr.bf16.mxu0 0
        %610 = vmatpush1.bf16.msra.mxu0 0
        %611 = vmatprep.subr.bf16.mxu0 0
        %612 = vmatpush1.bf16.msra.mxu0 0
        %613 = vmatprep.subr.bf16.mxu0 0
        %614 = vmatpush1.bf16.msra.mxu0 0
        %615 = vmatprep.subr.bf16.mxu0 0
        %616 = vmatpush1.bf16.msra.mxu0 0
        %617 = vmatprep.subr.bf16.mxu0 0
        %618 = vmatpush1.bf16.msra.mxu0 0
        %619 = vmatprep.subr.bf16.mxu0 0
        %620 = vmatpush1.bf16.msra.mxu0 0
        %621 = vmatprep.subr.bf16.mxu0 0
        %622 = vmatpush1.bf16.msra.mxu0 0
        %623 = vmatprep.mubr.bf16.mxu0 0
        %624 = vmatmul.mubr.bf16.gmra.mrb[0].mxu0 %v420
        %v625 = vpop.f32.mrb[0].mxu0
        %v626 = vadd.f32 %v537, %v625
        %v627 = vpop.f32.mrb[0].mxu0
        %v628 = vpop.f32.mrb[0].mxu0
        %v629 = vadd.f32 %v540, %v628
        %v630 = vpop.f32.mrb[0].mxu0
        %631 = vdwg.mxu0
        %v632 = vpack.c.bf16 %v419, %v415
        %v633 = vld [vmem:[#allocation11] sm:$0xf]
        %v634 = vld [vmem:[#allocation11 + $0x4] sm:$0xf]
        %v635 = vld [vmem:[#allocation11 + $0x8] sm:$0xf]
        %v636 = vld [vmem:[#allocation11 + $0xc] sm:$0xf]
        %v637 = vld [vmem:[#allocation11 + $0x10] sm:$0xf]
        %v638 = vld [vmem:[#allocation11 + $0x14] sm:$0xf]
        %v639 = vld [vmem:[#allocation11 + $0x18] sm:$0xf]
        %v640 = vld [vmem:[#allocation11 + $0x1c] sm:$0xf]
        %v641 = vld [vmem:[#allocation11 + $0x20] sm:$0xf]
        %v642 = vld [vmem:[#allocation11 + $0x24] sm:$0xf]
        %v643 = vld [vmem:[#allocation11 + $0x28] sm:$0xf]
        %v644 = vld [vmem:[#allocation11 + $0x2c] sm:$0xf]
        %v645 = vld [vmem:[#allocation11 + $0x30] sm:$0xf]
        %v646 = vld [vmem:[#allocation11 + $0x34] sm:$0xf]
        %v647 = vld [vmem:[#allocation11 + $0x38] sm:$0xf]
        %v648 = vld [vmem:[#allocation11 + $0x3c] sm:$0xf]
        %v665 = vunpack.c.l.b16 %v633
        %v666 = vunpack.c.l.b16 %v634
        %v667 = vunpack.c.l.b16 %v635
        %v668 = vunpack.c.l.b16 %v636
        %v669 = vunpack.c.l.b16 %v637
        %v670 = vunpack.c.l.b16 %v638
        %v671 = vunpack.c.l.b16 %v639
        %v672 = vunpack.c.l.b16 %v640
        %v673 = vunpack.c.l.b16 %v641
        %v674 = vunpack.c.l.b16 %v642
        %v675 = vunpack.c.l.b16 %v643
        %v676 = vunpack.c.l.b16 %v644
        %v677 = vunpack.c.l.b16 %v645
        %v678 = vunpack.c.l.b16 %v646
        %v679 = vunpack.c.l.b16 %v647
        %v680 = vunpack.c.l.b16 %v648
        %v681 = vpack.c.b16 %v666, %v665
        %v682 = vpack.c.b16 %v668, %v667
        %v683 = vpack.c.b16 %v670, %v669
        %v684 = vpack.c.b16 %v672, %v671
        %v685 = vpack.c.b16 %v674, %v673
        %v686 = vpack.c.b16 %v676, %v675
        %v687 = vpack.c.b16 %v678, %v677
        %v688 = vpack.c.b16 %v680, %v679
        %697 = vmatprep.subr.bf16.mxu0 0
        %698 = vmatpush1.bf16.msra.mxu0 %v681
        %699 = vmatprep.subr.bf16.mxu0 0
        %700 = vmatpush1.bf16.msra.mxu0 %v682
        %701 = vmatprep.subr.bf16.mxu0 0
        %702 = vmatpush1.bf16.msra.mxu0 %v683
        %703 = vmatprep.subr.bf16.mxu0 0
        %704 = vmatpush1.bf16.msra.mxu0 %v684
        %705 = vmatprep.subr.bf16.mxu0 0
        %706 = vmatpush1.bf16.msra.mxu0 %v685
        %707 = vmatprep.subr.bf16.mxu0 0
        %708 = vmatpush1.bf16.msra.mxu0 %v686
        %709 = vmatprep.subr.bf16.mxu0 0
        %710 = vmatpush1.bf16.msra.mxu0 %v687
        %711 = vmatprep.subr.bf16.mxu0 0
        %712 = vmatpush1.bf16.msra.mxu0 %v688
        %713 = vmatprep.subr.bf16.mxu0 0
        %714 = vmatpush1.bf16.msra.mxu0 0
        %715 = vmatprep.subr.bf16.mxu0 0
        %716 = vmatpush1.bf16.msra.mxu0 0
        %717 = vmatprep.subr.bf16.mxu0 0
        %718 = vmatpush1.bf16.msra.mxu0 0
        %719 = vmatprep.subr.bf16.mxu0 0
        %720 = vmatpush1.bf16.msra.mxu0 0
        %721 = vmatprep.subr.bf16.mxu0 0
        %722 = vmatpush1.bf16.msra.mxu0 0
        %723 = vmatprep.subr.bf16.mxu0 0
        %724 = vmatpush1.bf16.msra.mxu0 0
        %725 = vmatprep.subr.bf16.mxu0 0
        %726 = vmatpush1.bf16.msra.mxu0 0
        %727 = vmatprep.subr.bf16.mxu0 0
        %728 = vmatpush1.bf16.msra.mxu0 0
        %729 = vmatprep.mubr.bf16.mxu0 0
        %730 = vmatmul.mubr.bf16.gmra.mrb[0].mxu0 %v632
        %v731 = vpop.f32.mrb[0].mxu0
        %v732 = vadd.f32 0.0, %v731
        %v733 = vpop.f32.mrb[0].mxu0
        %v734 = vpop.f32.mrb[0].mxu0
        %v735 = vadd.f32 0.0, %v734
        %v736 = vpop.f32.mrb[0].mxu0
        %737 = vdwg.mxu0
        %v738 = vadd.f32 %v626, %v732
        %v739 = vadd.f32 %v629, %v735
        %vm740 = vcmask 31744
        %741 = vst.msk [vmem:[%s390] sm:$0xff] %vm740, %v738
        %742 = vst.msk [vmem:[%s390 + $0x8] sm:$0xff] %vm740, %v739
        %s743 = sand.u32 %s177, 1
        %s744 = scalar_lea.sflag [#allocation4], %s743
        %s745 = sand.u32 %s177, 1
        %s746 = smul.addr %s745, 16
        %s747 = scalar_lea.vmem [#allocation13], %s746
        // Predicated region
        $region69: #{_lambda_.39} parent=43 // pred_check
          %p748 = pneg %p187
        $region70: #{_lambda_.39} parent=43 // pred_check_branch
          %750 = sbr.rel (%p748) target = $region72
        $region71: #{_lambda_.39} parent=43 // pred_region
          %s752 = ssub.s32 256, 256
          %753 = vsyncadd %s744, %s752
          %s754 = smul.addr %s28, 2
          %s755 = smul.addr %s754, 128
          %s756 = scalar_lea.hbm %s6, %s755
          %s757 = sshll.u32 %s747, 4
          %s758 = int_to_ptr.vmem [resolvable:$true] %s757
          %763 = dma.vmem_to_hbm [thread:$0]  %s758, 256, %s756, %s744, 128, 128, 8
        $region72: #{_lambda_.39} parent=43 // pred_fallthru
          _
      $region44: #{_lambda_.39} parent=5 // pred_fallthru
        _
      %p764 = scmp.le.s32.totalorder 2, %s23
      // Predicated region
      $region73: #{_lambda_.39} parent=5 // pred_check
        %p765 = pneg %p764
      $region74: #{_lambda_.39} parent=5 // pred_check_branch
        %767 = sbr.rel (%p765) target = $region76
      $region75: #{_lambda_.39} parent=5 // pred_region
        %s768 = ssub.s32 %s23, 2
        // Predicated region
        $region77: #{_lambda_.39} parent=75 // pred_check
          %p769 = pneg %p193
        $region78: #{_lambda_.39} parent=75 // pred_check_branch
          %771 = sbr.rel (%p769) target = $region80
        $region79: #{_lambda_.39} parent=75 // pred_region
          %s772 = sand.u32 %s178, 1
          %s773 = scalar_lea.sflag [#allocation4], %s772
          %s774 = sand.u32 %s178, 1
          %s775 = smul.addr %s774, 16
          %s776 = scalar_lea.vmem [#allocation13], %s775
          %777 = dma.done %s773, 256
        $region80: #{_lambda_.39} parent=75 // pred_fallthru
          _
      $region76: #{_lambda_.39} parent=5 // pred_fallthru
        _
    $region6: #{_lambda_.39} parent=1 // loop_footer
      %s27 = sadd.s32 1, %s23
    $region7: #{_lambda_.39} parent=1 // loop_footer_branch
      %22 = sbr.rel target = $region3
    $region8: #{_lambda_.39} parent=1 // loop_exit
      _
    %778 = vsyncpa [#allocation3], 1
    %s779 = scalar_lea.sflag [#allocation3], 1
    %780 = vsyncpa %s779, 1
    %781 = vsyncpa [#allocation6], 1
    %s782 = scalar_lea.sflag [#allocation6], 1
    %783 = vsyncpa %s782, 1
    %784 = vsyncpa [#allocation9], 1
    %785 = vsyncpa [#allocation12], 1
    %786 = vsyncpa [#allocation4], 1
    %s787 = scalar_lea.sflag [#allocation4], 1
    %788 = vsyncpa %s787, 1

</llo_original>
